<compile_context>
chip_gen: v6e
topology: v6e:2x2x1
jax: 0.10.0
libtpu: 0.0.40
codegen_flags: <defaults>
</compile_context>

<pallas_src>
import functools

import jax
import jax.numpy as jnp
from jax.experimental import pallas as pl
from jax.experimental.pallas import tpu as pltpu

# ----------------------------- model hyper-params (small, synthetic) ----------
B = 2                 # batch size
CAMS = 6              # NuScenes: 6 cameras per sample
VOX_CH = 16           # voxel_channel
MID = 16              # mid_channel
OUT = 32              # out_channel
IMG_CH = 32           # img_channel (256 in the real model)
IMG_LEVELS = [0, 1]
L = len(IMG_LEVELS)
H_IMG = W_IMG = 16    # camera image H, W
FPN_SHAPES = [(8, 8), (4, 4)]
NUM_VOX = 64
BN_EPS = 1e-3
COUT_PAD = 128        # lane-dense output channel padding
VMEM_LIMIT = 32 * 1024 * 1024

POINT_CLOUD_RANGE = jnp.array([-5.0, -51.2, -51.2], jnp.float32)
VOXEL_SIZE = jnp.array([0.2, 0.1, 0.1], jnp.float32)
INV_IDX = jnp.array([2, 1, 0], jnp.int32)


def _round_up(x, m):
    return (x + m - 1) // m * m


def _cdiv(a, b):
    return -(-a // b)


# ----------------------------- Kernel 1: direct 3x3 conv + BN + ReLU ----------
def _conv3x3_kernel(x_ref, w_ref, b_ref, o_ref, *, cin, win, valid_rows):
    # x_ref: [band, Cin] bf16  -- flattened (img, padded_row, padded_col) band.
    # w_ref: [9*Cin, COUT_PAD] bf16, BN scale already folded into the columns.
    # b_ref: [1, COUT_PAD] f32 folded bias.  o_ref: [band, COUT_PAD] bf16.
    band = x_ref.shape[0]
    coutp = w_ref.shape[1]
    acc = jnp.zeros((valid_rows, coutp), jnp.float32)
    for ky in range(3):
        for kx in range(3):
            off = ky * win + kx                       # static row shift per tap
            tap = x_ref[off:off + valid_rows, :]
            wk = w_ref[(ky * 3 + kx) * cin:(ky * 3 + kx + 1) * cin, :]
            acc = acc + jnp.dot(tap, wk, preferred_element_type=jnp.float32)
    y = jnp.maximum(acc + b_ref[...], 0.0).astype(o_ref.dtype)
    pad = jnp.zeros((band - valid_rows, coutp), o_ref.dtype)
    o_ref[...] = jnp.concatenate([y, pad], axis=0)    # single lane-dense store


def conv3x3_bn_relu(x_nchw, w, conv_b, gamma, beta, rmean, rvar,
                    eps=BN_EPS, target_rows=1024):
    """Conv2d(3x3, pad=1) + BatchNorm2d(eval) + ReLU.  Returns NHWC bf16."""
    N, Cin, H, W = x_nchw.shape
    Cout = w.shape[0]

    # fold BN scale into the weight columns (f32 fold -> bf16 cast)
    scale = gamma / jnp.sqrt(rvar + eps)                        # [Cout]
    bias = (conv_b - rmean) * scale + beta                      # [Cout]
    w_mat = jnp.transpose(w, (2, 3, 1, 0)).reshape(9 * Cin, Cout) * scale[None, :]
    w_mat = jnp.pad(w_mat, ((0, 0), (0, COUT_PAD - Cout))).astype(jnp.bfloat16)
    bias = jnp.pad(bias, (0, COUT_PAD - Cout)).reshape(1, COUT_PAD).astype(jnp.float32)

    # spatial zero pad only (no im2col); width padded so every slice stays
    # sublane-aligned and the junk tail rows per tile are a multiple of 8.
    Hp = H + 2
    Win = _round_up(W, 8) + 8                                   # >= W + 8
    x_nhwc = jnp.transpose(x_nchw, (0, 2, 3, 1)).astype(jnp.bfloat16)
    x_pad = jnp.pad(x_nhwc, ((0, 0), (1, 1), (1, Win - W - 1), (0, 0)))
    x2 = x_pad.reshape(N * Hp * Win, Cin)                       # metadata reshape

    rows_per_img = Hp * Win
    t_cap = max(1, target_rows // rows_per_img)
    if N >= 2:
        t_cap = max(1, min(t_cap, N // 2))     # keep >= 2 tiles (v7x: both TCs)
    T = max(d for d in range(1, t_cap + 1) if N % d == 0)
    band = T * rows_per_img                                     # multiple of 8
    valid_rows = band - (2 * Win + 8)                           # multiple of 8
    grid = (N // T,)

    kernel = functools.partial(_conv3x3_kernel, cin=Cin, win=Win,
                               valid_rows=valid_rows)
    out = pl.pallas_call(
        kernel,
        out_shape=jax.ShapeDtypeStruct((N * rows_per_img, COUT_PAD), jnp.bfloat16),
        grid=grid,
        in_specs=[
            pl.BlockSpec((band, Cin), lambda i: (i, 0)),
            pl.BlockSpec((9 * Cin, COUT_PAD), lambda i: (0, 0)),
            pl.BlockSpec((1, COUT_PAD), lambda i: (0, 0)),
        ],
        out_specs=pl.BlockSpec((band, COUT_PAD), lambda i: (i, 0)),
        compiler_params=pltpu.CompilerParams(
            dimension_semantics=("parallel",), vmem_limit_bytes=VMEM_LIMIT),
    )(x2, w_mat, bias)
    # drop padded rows / columns / lanes; keep NHWC layout for the glue.
    return out.reshape(N, Hp, Win, COUT_PAD)[:, :H, :W, :Cout]


# ----------------------------- Kernel 3: fused voxel/img transform + SE -------
def _fused_voxel_se_kernel(x_ref, wa_ref, ba_ref, w1_ref, w2_ref, o_ref,
                           *, out_ch, out_pad):
    # x_ref : [TM, Ci+Cv] bf16, columns = [img_pts | voxel_feats]
    # wa_ref: [Ci+Cv, 2*OUT] bf16 block-diag (BN scale folded): img | voxel
    # ba_ref: [1, 2*OUT] f32 folded biases [ti | tv]
    # w1_ref: [2*OUT, 2*OUT] bf16 = [sefc_pt.w1.T | sefc_img.w1.T]
    # w2_ref: [2*OUT, 2*OUT] bf16 block-diag(sefc_pt.w2.T, sefc_img.w2.T)
    cat = jnp.dot(x_ref[...], wa_ref[...], preferred_element_type=jnp.float32)
    cat = cat + ba_ref[...]                              # [TM, 2*OUT] = [img|pts]
    h = jnp.dot(cat.astype(jnp.bfloat16), w1_ref[...],
                preferred_element_type=jnp.float32)
    h = jnp.maximum(h, 0.0)                              # [TM, 2*OUT]
    g = jnp.dot(h.astype(jnp.bfloat16), w2_ref[...],
                preferred_element_type=jnp.float32)
    # sigmoid via exp + approximate reciprocal -> stays on the EUP slot
    se = pl.reciprocal(1.0 + jnp.exp(-g), approx=True)   # [TM, 2*OUT] = [pt|img]

    img = cat[:, :out_ch]
    pts = cat[:, out_ch:]
    fuse = img * se[:, :out_ch] + img + pts * se[:, out_ch:] + pts
    fuse = jnp.maximum(fuse, 0.0)                        # activate_out=True
    pad = jnp.zeros((fuse.shape[0], out_pad - out_ch), jnp.float32)
    o_ref[...] = jnp.concatenate([fuse, pad], axis=-1)   # lane-dense store


def fused_voxel_se(features, img_pts, params, tm_target=1024):
    """voxel_transform + img_transform + sefc_pt/sefc_img + fuse, one kernel."""
    N, Cv = features.shape
    Ci = img_pts.shape[1]
    vt = params["voxel_transform"]
    it = params["img_transform"]
    out_ch = vt["w"].shape[0]
    sv, tv = fold_bn1d(vt)
    si, ti = fold_bn1d(it)

    # block-diagonal transform weight (BN scale folded in f32, then bf16)
    wi = it["w"].T * si[None, :]                                 # [Ci, OUT]
    wv = vt["w"].T * sv[None, :]                                 # [Cv, OUT]
    wa = jnp.zeros((Ci + Cv, 2 * out_ch), jnp.float32)
    wa = wa.at[:Ci, :out_ch].set(wi).at[Ci:, out_ch:].set(wv)
    ba = jnp.concatenate([ti, tv]).reshape(1, 2 * out_ch).astype(jnp.float32)
    # SE first layer: both branches read the full [img|pts] cat
    w1 = jnp.concatenate([params["sefc_pt"]["w1"].T,
                          params["sefc_img"]["w1"].T], axis=1)   # [2O, 2O]
    # SE second layer: block diagonal
    w2 = jnp.zeros((2 * out_ch, 2 * out_ch), jnp.float32)
    w2 = w2.at[:out_ch, :out_ch].set(params["sefc_pt"]["w2"].T)
    w2 = w2.at[out_ch:, out_ch:].set(params["sefc_img"]["w2"].T)

    x = jnp.concatenate([img_pts, features.astype(img_pts.dtype)],
                        axis=1).astype(jnp.bfloat16)             # [N, Ci+Cv]

    # tile: large, but keep >= 2 grid tiles (v7x megacore); cdiv grid (no full
    # round_up-to-tile padding -- Pallas masks the ragged last block).
    tm = min(tm_target, max(8, _round_up(_cdiv(N, 2), 8)))
    grid = (_cdiv(N, tm),)

    kernel = functools.partial(_fused_voxel_se_kernel, out_ch=out_ch,
                               out_pad=COUT_PAD)
    out = pl.pallas_call(
        kernel,
        out_shape=jax.ShapeDtypeStruct((N, COUT_PAD), jnp.float32),
        grid=grid,
        in_specs=[
            pl.BlockSpec((tm, Ci + Cv), lambda i: (i, 0)),
            pl.BlockSpec((Ci + Cv, 2 * out_ch), lambda i: (0, 0)),
            pl.BlockSpec((1, 2 * out_ch), lambda i: (0, 0)),
            pl.BlockSpec((2 * out_ch, 2 * out_ch), lambda i: (0, 0)),
            pl.BlockSpec((2 * out_ch, 2 * out_ch), lambda i: (0, 0)),
        ],
        out_specs=pl.BlockSpec((tm, COUT_PAD), lambda i: (i, 0)),
        compiler_params=pltpu.CompilerParams(
            dimension_semantics=("parallel",), vmem_limit_bytes=VMEM_LIMIT),
    )(x, wa.astype(jnp.bfloat16), ba,
      w1.astype(jnp.bfloat16), w2.astype(jnp.bfloat16))
    return out[:, :out_ch]


# ----------------------------- JAX glue ----------------------------------------
def fold_bn1d(lin, eps=BN_EPS):
    s = lin["gamma"] / jnp.sqrt(lin["rv"] + eps)
    t = (lin["b"] - lin["rm"]) * s + lin["beta"]
    return s, t


def layer_attention(la, x):
    # Linear -> ReLU -> Linear -> Sigmoid on a 12x32 input: plain jnp, a
    # pallas_call here is pure launch overhead (per review feedback).
    h = jnp.maximum(x.astype(jnp.float32) @ la["w1"].T + la["b1"], 0.0)
    return jax.nn.sigmoid(h @ la["w2"].T + la["b2"])


def bilinear_align_corners_nhwc(x, out_h, out_w):
    """torch F.interpolate(mode='bilinear', align_corners=True). x: [N,H,W,C]."""
    N, H, W, C = x.shape
    x = x.astype(jnp.float32)
    ys = jnp.linspace(0.0, H - 1.0, out_h)
    xs = jnp.linspace(0.0, W - 1.0, out_w)
    y0 = jnp.floor(ys).astype(jnp.int32)
    x0 = jnp.floor(xs).astype(jnp.int32)
    y1 = jnp.clip(y0 + 1, 0, H - 1)
    x1 = jnp.clip(x0 + 1, 0, W - 1)
    wy = (ys - y0.astype(jnp.float32))[None, :, None, None]
    wx = (xs - x0.astype(jnp.float32))[None, None, :, None]
    rows = x[:, y0, :, :] * (1.0 - wy) + x[:, y1, :, :] * wy
    return rows[:, :, x0, :] * (1.0 - wx) + rows[:, :, x1, :] * wx


def point_sample_nus(params, img_feats, voxels_3d, batch_index, batch, H, W):
    """Mirrors C2BFusion.point_sample_nus (eval mode), fully vectorized."""
    Bsz = batch["batch_size"]
    v3d = voxels_3d[:, INV_IDX]                                  # [N, 3]
    feats = [f.reshape(Bsz, CAMS, H, W, -1) for f in img_feats]  # NHWC per level

    # LayerAttention per (batch, camera) on the full-res pooled means
    pooled = [f.astype(jnp.float32).mean(axis=(2, 3)) for f in feats]  # [B,6,MID]
    img_inter = jnp.concatenate(pooled, axis=-1)                 # [B, 6, L*MID]
    lw = layer_attention(params["layer_att"],
                         img_inter.reshape(Bsz * CAMS, -1)).reshape(Bsz, CAMS, L)
    feats = [f * (1.0 + lw[:, :, l][:, :, None, None, None])
             for l, f in enumerate(feats)]

    # replicate torch's stack(dim=1).view(B, 6, -1, H, W) channel-mixing quirk
    stacked = jnp.stack([jnp.transpose(f, (0, 1, 4, 2, 3)) for f in feats],
                        axis=1)                                  # [B, L, 6, C, H, W]
    img_feat = stacked.reshape(Bsz, CAMS, -1, H, W)              # [B, 6, L*C, H, W]
    LC = img_feat.shape[2]
    N = v3d.shape[0]
    bi = batch_index.astype(jnp.int32)                           # [N]

    # vectorized projection
    la = batch["lidar_aug_matrix"]                               # [B, 4, 4]
    la_rot_inv = jnp.linalg.inv(la[:, :3, :3])
    cc0 = v3d - la[bi, :3, 3]
    cc0 = jnp.einsum("nij,nj->ni", la_rot_inv[bi], cc0)          # [N, 3]

    l2i = batch["lidar2image"][bi]                               # [N, 6, 4, 4]
    cc = jnp.einsum("ncij,nj->nci", l2i[:, :, :3, :3], cc0) + l2i[:, :, :3, 3]
    z = jnp.clip(cc[..., 2], 1e-5, 1e5)
    proj = jnp.stack([cc[..., 0] / z, cc[..., 1] / z, z], axis=-1)
    ia = batch["img_aug_matrix"][bi]                             # [N, 6, 4, 4]
    proj = jnp.einsum("ncij,ncj->nci", ia[:, :, :3, :3], proj) + ia[:, :, :3, 3]
    u = proj[..., 0]                                             # col (vs W)
    v = proj[..., 1]                                             # row (vs H)
    on = (v < H) & (v >= 0) & (u < W) & (u >= 0)                 # [N, 6]
    vi = jnp.clip(v.astype(jnp.int32), 0, H - 1)
    ui = jnp.clip(u.astype(jnp.int32), 0, W - 1)

    # single flattened gather over a channels-last table, masked + summed
    # TODO(synk): at production image sizes this gather + the bilinear upsample
    # should become a Pallas scalar-prefetch/DMA gather kernel sampling directly
    # from the low-res FPN maps (per-voxel (b,cam,row,col) indices in SMEM).
    table = jnp.transpose(img_feat, (0, 1, 3, 4, 2)).reshape(Bsz * CAMS * H * W, LC)
    cam = jnp.arange(CAMS, dtype=jnp.int32)[None, :]
    flat_idx = ((bi[:, None] * CAMS + cam) * H + vi) * W + ui    # [N, 6]
    gathered = jnp.take(table, flat_idx.reshape(-1), axis=0).reshape(N, CAMS, LC)
    img_pts = jnp.sum(jnp.where(on[..., None], gathered, 0.0), axis=1)
    # TODO(synk): training-time F.dropout(p=0.3) skipped (eval-mode semantics).
    return img_pts


def c2b_forward(params, indices, features, batch):
    assert batch["dataset"] == "NuScenesDataset"
    # TODO(synk): KITTI branch not implemented (needs external calib.lidar_to_img).
    h, w = batch["camera_imgs"].shape[3:]
    spatial_indices = indices[:, 1:].astype(jnp.float32)
    voxels_3d = spatial_indices * VOXEL_SIZE + POINT_CLOUD_RANGE
    batch_index = indices[:, 0]

    # lateral FPN convs (direct Pallas conv) + bilinear upsample to (h, w)
    img_feats = []
    for li, lvl in enumerate(IMG_LEVELS):
        p = params["lateral"][li]
        f = conv3x3_bn_relu(batch["image_fpn"][lvl], p["w"], p["b"],
                            p["gamma"], p["beta"], p["rm"], p["rv"])   # NHWC bf16
        # NOTE: append only when interpolation happens -- mirrors the reference,
        # which silently drops FPN levels that already match (h, w).
        if f.shape[1:3] != (h, w):
            f = bilinear_align_corners_nhwc(f, h, w)
            img_feats.append(f)

    img_pts = point_sample_nus(params, img_feats, voxels_3d, batch_index, batch, h, w)

    # voxel_transform + img_transform + sefc_pt/sefc_img + fuse: one Pallas kernel
    fuse_out = fused_voxel_se(features, img_pts, params)
    # fuse_out=False in the module config -> no fuse_conv
    return fuse_out


# ----------------------------- deterministic parameter init --------------------
def init_params(key):
    ks = iter(jax.random.split(key, 64))

    def nrm(shape, s=0.1):
        return (s * jax.random.normal(next(ks), shape)).astype(jnp.float32)

    def bn(c):
        return dict(gamma=(1.0 + nrm((c,))), beta=nrm((c,)),
                    rm=nrm((c,)), rv=(0.5 + jax.random.uniform(next(ks), (c,)))
                    .astype(jnp.float32))

    params = {}
    params["voxel_transform"] = dict(w=nrm((OUT, VOX_CH)), b=nrm((OUT,)), **bn(OUT))
    params["lateral"] = [dict(w=nrm((MID, IMG_CH, 3, 3)), b=nrm((MID,)), **bn(MID))
                         for _ in IMG_LEVELS]
    params["img_transform"] = dict(w=nrm((OUT, MID * L)), b=nrm((OUT,)), **bn(OUT))
    hid = (MID * L) // 8
    params["layer_att"] = dict(w1=nrm((hid, MID * L)), b1=nrm((hid,)),
                               w2=nrm((L, hid)), b2=nrm((L,)))
    params["sefc_pt"] = dict(w1=nrm((OUT, 2 * OUT)), w2=nrm((OUT, OUT)))
    params["sefc_img"] = dict(w1=nrm((OUT, 2 * OUT)), w2=nrm((OUT, OUT)))
    return params


# ----------------------------- main --------------------------------------------
if __name__ == "__main__":
    key = jax.random.PRNGKey(0)
    kp, kd = jax.random.split(key)
    params = init_params(kp)
    dkeys = jax.random.split(kd, 10)

    # sparse voxel tensor (indices batch-sorted, as spconv produces)
    n_per_b = NUM_VOX // B
    bidx = jnp.repeat(jnp.arange(B, dtype=jnp.int32), n_per_b)[:, None]
    zi = jax.random.randint(dkeys[0], (NUM_VOX, 1), 0, 40)
    yi = jax.random.randint(dkeys[1], (NUM_VOX, 1), 0, 1024)
    xi = jax.random.randint(dkeys[2], (NUM_VOX, 1), 0, 1024)
    indices = jnp.concatenate([bidx, zi, yi, xi], axis=1).astype(jnp.int32)
    features = jax.random.normal(dkeys[3], (NUM_VOX, VOX_CH), jnp.float32)

    image_fpn = [0.5 * jax.random.normal(dkeys[4 + i], (B * CAMS, IMG_CH, sh, sw),
                                         jnp.float32)
                 for i, (sh, sw) in enumerate(FPN_SHAPES)]

    eye4 = jnp.eye(4, dtype=jnp.float32)
    img_aug = jnp.tile(eye4, (B, CAMS, 1, 1))
    lidar_aug = jnp.tile(eye4, (B, 1, 1)) + 0.02 * jax.random.normal(dkeys[6], (B, 4, 4))
    base_proj = jnp.array([[0.0, 1.0, 0.0, 400.0],
                           [0.0, 0.0, 1.0, 400.0],
                           [1.0, 0.0, 0.0, 60.0],
                           [0.0, 0.0, 0.0, 1.0]], jnp.float32)
    lidar2image = (jnp.tile(base_proj, (B, CAMS, 1, 1))
                   + 0.01 * jax.random.normal(dkeys[7], (B, CAMS, 4, 4)))

    batch = dict(
        batch_size=B,
        dataset="NuScenesDataset",
        camera_imgs=jnp.zeros((B, CAMS, 3, H_IMG, W_IMG), jnp.float32),
        image_fpn=image_fpn,
        img_aug_matrix=img_aug.astype(jnp.float32),
        lidar_aug_matrix=lidar_aug.astype(jnp.float32),
        lidar2image=lidar2image.astype(jnp.float32),
    )

    out = c2b_forward(params, indices, features, batch)
    out = jax.block_until_ready(out)
    assert out.shape == (NUM_VOX, OUT)
    assert bool(jnp.all(jnp.isfinite(out)))
    print("KERNEL_OK")
</pallas_src>

<mosaic_0001>
module attributes {stable_mosaic.version = 11 : i64} {
  func.func @_conv3x3_kernel(%arg0: i32, %arg1: memref<960x32xbf16, #tpu.memory_space<vmem>>, %arg2: memref<288x128xbf16, #tpu.memory_space<vmem>>, %arg3: memref<1x128xf32, #tpu.memory_space<vmem>>, %arg4: memref<960x128xbf16, #tpu.memory_space<vmem>>) attributes {dimension_semantics = [#tpu.dimension_semantics<parallel>], iteration_bounds = array<i64: 2>, scalar_prefetch = 0 : i64, scratch_operands = 0 : i64, tpu.core_type = #tpu.core_type<tc>, window_params = [{transform_indices = @transform_0, window_bounds = array<i64: 960, 32>}, {pipeline_mode = #tpu.pipeline_mode<synchronous>, transform_indices = @transform_1, window_bounds = array<i64: 288, 128>}, {pipeline_mode = #tpu.pipeline_mode<synchronous>, transform_indices = @transform_2, window_bounds = array<i64: 1, 128>}, {transform_indices = @transform_3, window_bounds = array<i64: 960, 128>}]} {
    %cst = arith.constant 0.000000e+00 : f32
    %0 = vector.broadcast %cst : f32 to vector<920x128xf32>
    %c0 = arith.constant 0 : index
    %c0_0 = arith.constant 0 : index
    %1 = vector.load %arg1[%c0, %c0_0] : memref<960x32xbf16, #tpu.memory_space<vmem>>, vector<920x32xbf16>
    %c0_1 = arith.constant 0 : index
    %c0_2 = arith.constant 0 : index
    %2 = vector.load %arg2[%c0_1, %c0_2] : memref<288x128xbf16, #tpu.memory_space<vmem>>, vector<32x128xbf16>
    %cst_3 = arith.constant dense<0.000000e+00> : vector<920x128xf32>
    %3 = tpu.matmul %1, %2, %cst_3 {dimension_numbers = #tpu.dot_dimension_numbers<[1], [0], [0], [1], [0, 0, 1, 1], [], []>} : vector<920x32xbf16>, vector<32x128xbf16>, vector<920x128xf32> -> vector<920x128xf32>
    %4 = arith.addf %0, %3 : vector<920x128xf32>
    %c1 = arith.constant 1 : index
    %c0_4 = arith.constant 0 : index
    %5 = vector.load %arg1[%c1, %c0_4] : memref<960x32xbf16, #tpu.memory_space<vmem>>, vector<920x32xbf16>
    %c32 = arith.constant 32 : index
    %c0_5 = arith.constant 0 : index
    %6 = vector.load %arg2[%c32, %c0_5] : memref<288x128xbf16, #tpu.memory_space<vmem>>, vector<32x128xbf16>
    %cst_6 = arith.constant dense<0.000000e+00> : vector<920x128xf32>
    %7 = tpu.matmul %5, %6, %cst_6 {dimension_numbers = #tpu.dot_dimension_numbers<[1], [0], [0], [1], [0, 0, 1, 1], [], []>} : vector<920x32xbf16>, vector<32x128xbf16>, vector<920x128xf32> -> vector<920x128xf32>
    %8 = arith.addf %4, %7 : vector<920x128xf32>
    %c2 = arith.constant 2 : index
    %c0_7 = arith.constant 0 : index
    %9 = vector.load %arg1[%c2, %c0_7] : memref<960x32xbf16, #tpu.memory_space<vmem>>, vector<920x32xbf16>
    %c64 = arith.constant 64 : index
    %c0_8 = arith.constant 0 : index
    %10 = vector.load %arg2[%c64, %c0_8] : memref<288x128xbf16, #tpu.memory_space<vmem>>, vector<32x128xbf16>
    %cst_9 = arith.constant dense<0.000000e+00> : vector<920x128xf32>
    %11 = tpu.matmul %9, %10, %cst_9 {dimension_numbers = #tpu.dot_dimension_numbers<[1], [0], [0], [1], [0, 0, 1, 1], [], []>} : vector<920x32xbf16>, vector<32x128xbf16>, vector<920x128xf32> -> vector<920x128xf32>
    %12 = arith.addf %8, %11 : vector<920x128xf32>
    %c16 = arith.constant 16 : index
    %c0_10 = arith.constant 0 : index
    %13 = vector.load %arg1[%c16, %c0_10] : memref<960x32xbf16, #tpu.memory_space<vmem>>, vector<920x32xbf16>
    %c96 = arith.constant 96 : index
    %c0_11 = arith.constant 0 : index
    %14 = vector.load %arg2[%c96, %c0_11] : memref<288x128xbf16, #tpu.memory_space<vmem>>, vector<32x128xbf16>
    %cst_12 = arith.constant dense<0.000000e+00> : vector<920x128xf32>
    %15 = tpu.matmul %13, %14, %cst_12 {dimension_numbers = #tpu.dot_dimension_numbers<[1], [0], [0], [1], [0, 0, 1, 1], [], []>} : vector<920x32xbf16>, vector<32x128xbf16>, vector<920x128xf32> -> vector<920x128xf32>
    %16 = arith.addf %12, %15 : vector<920x128xf32>
    %c17 = arith.constant 17 : index
    %c0_13 = arith.constant 0 : index
    %17 = vector.load %arg1[%c17, %c0_13] : memref<960x32xbf16, #tpu.memory_space<vmem>>, vector<920x32xbf16>
    %c128 = arith.constant 128 : index
    %c0_14 = arith.constant 0 : index
    %18 = vector.load %arg2[%c128, %c0_14] : memref<288x128xbf16, #tpu.memory_space<vmem>>, vector<32x128xbf16>
    %cst_15 = arith.constant dense<0.000000e+00> : vector<920x128xf32>
    %19 = tpu.matmul %17, %18, %cst_15 {dimension_numbers = #tpu.dot_dimension_numbers<[1], [0], [0], [1], [0, 0, 1, 1], [], []>} : vector<920x32xbf16>, vector<32x128xbf16>, vector<920x128xf32> -> vector<920x128xf32>
    %20 = arith.addf %16, %19 : vector<920x128xf32>
    %c18 = arith.constant 18 : index
    %c0_16 = arith.constant 0 : index
    %21 = vector.load %arg1[%c18, %c0_16] : memref<960x32xbf16, #tpu.memory_space<vmem>>, vector<920x32xbf16>
    %c160 = arith.constant 160 : index
    %c0_17 = arith.constant 0 : index
    %22 = vector.load %arg2[%c160, %c0_17] : memref<288x128xbf16, #tpu.memory_space<vmem>>, vector<32x128xbf16>
    %cst_18 = arith.constant dense<0.000000e+00> : vector<920x128xf32>
    %23 = tpu.matmul %21, %22, %cst_18 {dimension_numbers = #tpu.dot_dimension_numbers<[1], [0], [0], [1], [0, 0, 1, 1], [], []>} : vector<920x32xbf16>, vector<32x128xbf16>, vector<920x128xf32> -> vector<920x128xf32>
    %24 = arith.addf %20, %23 : vector<920x128xf32>
    %c32_19 = arith.constant 32 : index
    %c0_20 = arith.constant 0 : index
    %25 = vector.load %arg1[%c32_19, %c0_20] : memref<960x32xbf16, #tpu.memory_space<vmem>>, vector<920x32xbf16>
    %c192 = arith.constant 192 : index
    %c0_21 = arith.constant 0 : index
    %26 = vector.load %arg2[%c192, %c0_21] : memref<288x128xbf16, #tpu.memory_space<vmem>>, vector<32x128xbf16>
    %cst_22 = arith.constant dense<0.000000e+00> : vector<920x128xf32>
    %27 = tpu.matmul %25, %26, %cst_22 {dimension_numbers = #tpu.dot_dimension_numbers<[1], [0], [0], [1], [0, 0, 1, 1], [], []>} : vector<920x32xbf16>, vector<32x128xbf16>, vector<920x128xf32> -> vector<920x128xf32>
    %28 = arith.addf %24, %27 : vector<920x128xf32>
    %c33 = arith.constant 33 : index
    %c0_23 = arith.constant 0 : index
    %29 = vector.load %arg1[%c33, %c0_23] : memref<960x32xbf16, #tpu.memory_space<vmem>>, vector<920x32xbf16>
    %c224 = arith.constant 224 : index
    %c0_24 = arith.constant 0 : index
    %30 = vector.load %arg2[%c224, %c0_24] : memref<288x128xbf16, #tpu.memory_space<vmem>>, vector<32x128xbf16>
    %cst_25 = arith.constant dense<0.000000e+00> : vector<920x128xf32>
    %31 = tpu.matmul %29, %30, %cst_25 {dimension_numbers = #tpu.dot_dimension_numbers<[1], [0], [0], [1], [0, 0, 1, 1], [], []>} : vector<920x32xbf16>, vector<32x128xbf16>, vector<920x128xf32> -> vector<920x128xf32>
    %32 = arith.addf %28, %31 : vector<920x128xf32>
    %c34 = arith.constant 34 : index
    %c0_26 = arith.constant 0 : index
    %33 = vector.load %arg1[%c34, %c0_26] : memref<960x32xbf16, #tpu.memory_space<vmem>>, vector<920x32xbf16>
    %c256 = arith.constant 256 : index
    %c0_27 = arith.constant 0 : index
    %34 = vector.load %arg2[%c256, %c0_27] : memref<288x128xbf16, #tpu.memory_space<vmem>>, vector<32x128xbf16>
    %cst_28 = arith.constant dense<0.000000e+00> : vector<920x128xf32>
    %35 = tpu.matmul %33, %34, %cst_28 {dimension_numbers = #tpu.dot_dimension_numbers<[1], [0], [0], [1], [0, 0, 1, 1], [], []>} : vector<920x32xbf16>, vector<32x128xbf16>, vector<920x128xf32> -> vector<920x128xf32>
    %36 = arith.addf %32, %35 : vector<920x128xf32>
    %c0_29 = arith.constant 0 : index
    %c0_30 = arith.constant 0 : index
    %37 = vector.load %arg3[%c0_29, %c0_30] : memref<1x128xf32, #tpu.memory_space<vmem>>, vector<1x128xf32>
    %38 = vector.broadcast %37 : vector<1x128xf32> to vector<920x128xf32>
    %39 = arith.addf %36, %38 : vector<920x128xf32>
    %cst_31 = arith.constant 0.000000e+00 : f32
    %40 = vector.broadcast %cst_31 : f32 to vector<920x128xf32>
    %41 = arith.maximumf %39, %40 : vector<920x128xf32>
    %42 = arith.truncf %41 : vector<920x128xf32> to vector<920x128xbf16>
    %cst_32 = arith.constant 0.000000e+00 : bf16
    %43 = vector.broadcast %cst_32 : bf16 to vector<40x128xbf16>
    %44 = tpu.concatenate %42, %43 in 0 : vector<920x128xbf16>, vector<40x128xbf16> -> vector<960x128xbf16>
    %c0_33 = arith.constant 0 : index
    %c0_34 = arith.constant 0 : index
    %45 = vector.load %arg4[%c0_33, %c0_34] : memref<960x128xbf16, #tpu.memory_space<vmem>>, vector<960x128xbf16>
    tpu.vector_store %arg4[%c0_33, %c0_34], %44 {strides = array<i32>} : memref<960x128xbf16, #tpu.memory_space<vmem>>, vector<960x128xbf16>,
    return
  }
  func.func @transform_0(%arg0: i32) -> (i32, i32) {
    %c0_i32 = arith.constant 0 : i32
    %c0_i32_0 = arith.constant 0 : i32
    return %arg0, %c0_i32 : i32, i32
  }
  func.func @transform_1(%arg0: i32) -> (i32, i32) {
    %c0_i32 = arith.constant 0 : i32
    %c0_i32_0 = arith.constant 0 : i32
    %c0_i32_1 = arith.constant 0 : i32
    return %c0_i32, %c0_i32_0 : i32, i32
  }
  func.func @transform_2(%arg0: i32) -> (i32, i32) {
    %c0_i32 = arith.constant 0 : i32
    %c0_i32_0 = arith.constant 0 : i32
    %c0_i32_1 = arith.constant 0 : i32
    return %c0_i32, %c0_i32_0 : i32, i32
  }
  func.func @transform_3(%arg0: i32) -> (i32, i32) {
    %c0_i32 = arith.constant 0 : i32
    %c0_i32_0 = arith.constant 0 : i32
    return %arg0, %c0_i32 : i32, i32
  }
}

</mosaic_0001>

<llo_original>
// kernel: tpu_custom_call.1
$region0: #{tpu_custom_call.1}
  #allocation0 [shape = 'u32[]', space=smem, size = 0x4, offset = 0x4, fixed_abs, tag = 'smem constant byte address 0x4 - core index']
  #allocation1 [shape = 'u32[144,128]{1,0:T(1,128)}', space=vmem, size = 0x12000, scoped, tag = 'internal scratch']
  %s0 = inlined_call_operand.vmem [shape: bf16[1920,32], index: 0, kind: input, shape index: {}]
  %s1 = inlined_call_operand.vmem [shape: bf16[288,128], index: 1, kind: input, shape index: {}]
  %s2 = inlined_call_operand.vmem [shape: f32[1,128], index: 2, kind: input, shape index: {}]
  %s3 = inlined_call_operand.hbm [shape: bf16[1920,128], index: 3, kind: output, shape index: {}]
  %s4 = sld [smem:[#allocation0]]
  $region45: #{tpu_custom_call.1} parent=0
    _
  %s6 = ssub.s32 1, %s4
  %s7 = scalar_select 0, %s6, %s4
  $region1: #{tpu_custom_call.1} parent=0
    #allocation2 [shape = 'u8[491520]{0}', space=vmem, size = 0x78000, scoped, tag = 'output window, operand 0']
    #allocation3 [shape = 's32[2]{0}', space=sflag, size = 0x8, scoped, tag = 'scoped memory for tpu_custom_call.1']
    %8 = vsyncpa [#allocation3], 0
    %s9 = scalar_lea.sflag [#allocation3], 1
    %10 = vsyncpa %s9, 0
    loop: start=0, step=1, limit=4
    $region2: #{tpu_custom_call.1} parent=1 // loop_pre_header
      _
    $region3: #{tpu_custom_call.1} parent=1 // loop_header
      %s12 = sphi 0, %s16
      %p13 = scmp.ge.s32.totalorder %s12, 4
      %s22 = sphi 0, %s24
      %s25 = sphi 0, %s22
      %s26 = sphi 0, %s25
      %s42 = sphi 0, %s26
      %s46 = sphi 0, %s46
      %s48 = sphi 0, %s46
      %s49 = sphi 0, %s48
      %s63 = sphi 0, %s49
      %s67 = sphi 0, %s67
      %s69 = sphi 0, %s67
      %s70 = sphi 0, %s69
      %s84 = sphi 0, %s70
      %s90 = sphi 0, %s92
      %s93 = sphi 0, %s90
      %s94 = sphi 0, %s93
      %s110 = sphi 0, %s94
    $region4: #{tpu_custom_call.1} parent=1 // loop_header_branch
      %15 = sbr.rel (%p13) target = $region8
    $region5: #{tpu_custom_call.1} parent=1 // loop_body
      %s17 = ssub.s32 %s12, 1
      %s18 = ssub.s32 %s12, 2
      %s19 = sadd.s32 %s12, 1
      %s20 = ssub.s32 %s12, %s19
      %p21 = scmp.eq.s32.totalorder %s20, 0
      %s23 = sadd.s32 %s22, 1
      %s24 = scalar_select %p21, %s22, %s23
      %p27 = pneg %p21
      %p28 = scmp.eq.s32.totalorder %s12, 1
      %p29 = por %p27, %p28
      %p30 = scmp.ne.s32.totalorder %s22, %s25
      %p31 = scmp.eq.s32.totalorder %s12, 0
      %p32 = por %p30, %p31
      %p33 = scmp.ne.s32.totalorder %s22, %s25
      %p34 = scmp.eq.s32.totalorder %s17, 1
      %p35 = por %p33, %p34
      %p36 = scmp.ne.s32.totalorder %s25, %s26
      %p37 = scmp.eq.s32.totalorder %s17, 0
      %p38 = por %p36, %p37
      %p39 = scmp.ne.s32.totalorder %s25, %s26
      %p40 = scmp.eq.s32.totalorder %s18, 1
      %p41 = por %p39, %p40
      %p43 = scmp.ne.s32.totalorder %s26, %s42
      %p44 = scmp.eq.s32.totalorder %s18, 0
      %p45 = por %p43, %p44
      %s47 = sadd.s32 %s46, 1
      %p50 = scmp.eq.s32.totalorder %s12, 1
      %p51 = scmp.ne.s32.totalorder %s46, %s48
      %p52 = scmp.eq.s32.totalorder %s12, 0
      %p53 = por %p51, %p52
      %p54 = scmp.ne.s32.totalorder %s46, %s48
      %p55 = scmp.eq.s32.totalorder %s17, 1
      %p56 = por %p54, %p55
      %p57 = scmp.ne.s32.totalorder %s48, %s49
      %p58 = scmp.eq.s32.totalorder %s17, 0
      %p59 = por %p57, %p58
      %p60 = scmp.ne.s32.totalorder %s48, %s49
      %p61 = scmp.eq.s32.totalorder %s18, 1
      %p62 = por %p60, %p61
      %p64 = scmp.ne.s32.totalorder %s49, %s63
      %p65 = scmp.eq.s32.totalorder %s18, 0
      %p66 = por %p64, %p65
      %s68 = sadd.s32 %s67, 1
      %p71 = scmp.eq.s32.totalorder %s12, 1
      %p72 = scmp.ne.s32.totalorder %s67, %s69
      %p73 = scmp.eq.s32.totalorder %s12, 0
      %p74 = por %p72, %p73
      %p75 = scmp.ne.s32.totalorder %s67, %s69
      %p76 = scmp.eq.s32.totalorder %s17, 1
      %p77 = por %p75, %p76
      %p78 = scmp.ne.s32.totalorder %s69, %s70
      %p79 = scmp.eq.s32.totalorder %s17, 0
      %p80 = por %p78, %p79
      %p81 = scmp.ne.s32.totalorder %s69, %s70
      %p82 = scmp.eq.s32.totalorder %s18, 1
      %p83 = por %p81, %p82
      %p85 = scmp.ne.s32.totalorder %s70, %s84
      %p86 = scmp.eq.s32.totalorder %s18, 0
      %p87 = por %p85, %p86
      %s88 = ssub.s32 %s12, %s19
      %p89 = scmp.eq.s32.totalorder %s88, 0
      %s91 = sadd.s32 %s90, 1
      %s92 = scalar_select %p89, %s90, %s91
      %p95 = pneg %p89
      %p96 = scmp.eq.s32.totalorder %s12, 1
      %p97 = por %p95, %p96
      %p98 = scmp.ne.s32.totalorder %s90, %s93
      %p99 = scmp.eq.s32.totalorder %s12, 0
      %p100 = por %p98, %p99
      %p101 = scmp.ne.s32.totalorder %s90, %s93
      %p102 = scmp.eq.s32.totalorder %s17, 1
      %p103 = por %p101, %p102
      %p104 = scmp.ne.s32.totalorder %s93, %s94
      %p105 = scmp.eq.s32.totalorder %s17, 0
      %p106 = por %p104, %p105
      %p107 = scmp.ne.s32.totalorder %s93, %s94
      %p108 = scmp.eq.s32.totalorder %s18, 1
      %p109 = por %p107, %p108
      %p111 = scmp.ne.s32.totalorder %s94, %s110
      %p112 = scmp.eq.s32.totalorder %s18, 0
      %p113 = por %p111, %p112
      %p114 = scmp.le.s32.totalorder 1, %s12
      %p115 = scmp.lt.s32.totalorder %s12, 3
      %p116 = pnand %p114, %p115
      %p117 = pneg %p116
      // Predicated region
      $region9: #{tpu_custom_call.1} parent=5 // pred_check
        _
      $region10: #{tpu_custom_call.1} parent=5 // pred_check_branch
        %119 = sbr.rel (%p116) target = $region12
      $region11: #{tpu_custom_call.1} parent=5 // pred_region
        %s120 = ssub.s32 %s12, 1
        // Predicated region
        $region13: #{tpu_custom_call.1} parent=11 // pred_check
          %p121 = pneg %p59
        $region14: #{tpu_custom_call.1} parent=11 // pred_check_branch
          %123 = sbr.rel (%p121) target = $region16
        $region15: #{tpu_custom_call.1} parent=11 // pred_region
          _
        $region16: #{tpu_custom_call.1} parent=11 // pred_fallthru
          _
        // Predicated region
        $region17: #{tpu_custom_call.1} parent=11 // pred_check
          %p124 = pneg %p80
        $region18: #{tpu_custom_call.1} parent=11 // pred_check_branch
          %126 = sbr.rel (%p124) target = $region20
        $region19: #{tpu_custom_call.1} parent=11 // pred_region
          _
        $region20: #{tpu_custom_call.1} parent=11 // pred_fallthru
          _
      $region12: #{tpu_custom_call.1} parent=5 // pred_fallthru
        _
      %p127 = scmp.lt.s32.totalorder %s12, 2
      // Predicated region
      $region21: #{tpu_custom_call.1} parent=5 // pred_check
        %p128 = pneg %p127
      $region22: #{tpu_custom_call.1} parent=5 // pred_check_branch
        %130 = sbr.rel (%p128) target = $region24
      $region23: #{tpu_custom_call.1} parent=5 // pred_region
        // Predicated region
        $region25: #{tpu_custom_call.1} parent=23 // pred_check
          %p131 = pneg %p32
        $region26: #{tpu_custom_call.1} parent=23 // pred_check_branch
          %133 = sbr.rel (%p131) target = $region28
        $region27: #{tpu_custom_call.1} parent=23 // pred_region
          %s134 = smul.u32 120, %s12
          %p135 = scmp.lt.s32.totalorder %s134, 239
          %s136 = scalar_select %p135, %s134, 239
          %s137 = smul.addr %s136, 4
          %s138 = scalar_lea.vmem %s0, %s137
          %s139 = smul.u32 120, %s12
        $region28: #{tpu_custom_call.1} parent=23 // pred_fallthru
          _
      $region24: #{tpu_custom_call.1} parent=5 // pred_fallthru
        _
      %p140 = scmp.le.s32.totalorder 1, %s12
      %p141 = scmp.lt.s32.totalorder %s12, 3
      %p142 = pnand %p140, %p141
      %p143 = pneg %p142
      // Predicated region
      $region29: #{tpu_custom_call.1} parent=5 // pred_check
        _
      $region30: #{tpu_custom_call.1} parent=5 // pred_check_branch
        %145 = sbr.rel (%p142) target = $region32
      $region31: #{tpu_custom_call.1} parent=5 // pred_region
        %s146 = ssub.s32 %s12, 1
        %s147 = smul.u32 120, %s17
        %p148 = scmp.lt.s32.totalorder %s147, 239
        %s149 = scalar_select %p148, %s147, 239
        %s150 = smul.addr %s149, 4
        %s151 = scalar_lea.vmem %s0, %s150
        %p152 = pneg %p38
        %p153 = pneg %p35
        %p154 = pneg %p59
        %p155 = pneg %p56
        %p156 = pneg %p80
        %p157 = pneg %p77
        %p158 = pneg %p106
        %p159 = pneg %p103
        %s160 = sand.u32 %s93, 1
        %s161 = scalar_lea.sflag [#allocation3], %s160
        %s162 = sand.u32 %s93, 1
        %s163 = smul.addr %s162, 480
        %s164 = scalar_lea.vmem [#allocation2], %s163
        %s165 = smul.u32 120, %s17
        %p166 = scmp.lt.s32.totalorder %s165, 239
        %s167 = scalar_select %p166, %s165, 239
        %s168 = smul.addr %s167, 4
        %s169 = scalar_lea.vmem %s0, %s168
        %s170 = smul.u32 120, %s17
        %s171 = smul.u32 120, %s17
        %v173 = vld [vmem:[%s169] sm:$0xf]
        %v174 = vld [vmem:[%s169 + $0x4] sm:$0xf]
        %v175 = vld [vmem:[%s169 + $0x8] sm:$0xf]
        %v176 = vld [vmem:[%s169 + $0xc] sm:$0xf]
        %v177 = vld [vmem:[%s169 + $0x10] sm:$0xf]
        %v178 = vld [vmem:[%s169 + $0x14] sm:$0xf]
        %v179 = vld [vmem:[%s169 + $0x18] sm:$0xf]
        %v180 = vld [vmem:[%s169 + $0x1c] sm:$0xf]
        %v181 = vld [vmem:[%s169 + $0x20] sm:$0xf]
        %v182 = vld [vmem:[%s169 + $0x24] sm:$0xf]
        %v183 = vld [vmem:[%s169 + $0x28] sm:$0xf]
        %v184 = vld [vmem:[%s169 + $0x2c] sm:$0xf]
        %v185 = vld [vmem:[%s169 + $0x30] sm:$0xf]
        %v186 = vld [vmem:[%s169 + $0x34] sm:$0xf]
        %v187 = vld [vmem:[%s169 + $0x38] sm:$0xf]
        %v188 = vld [vmem:[%s169 + $0x3c] sm:$0xf]
        %v189 = vld [vmem:[%s169 + $0x40] sm:$0xf]
        %v190 = vld [vmem:[%s169 + $0x44] sm:$0xf]
        %v191 = vld [vmem:[%s169 + $0x48] sm:$0xf]
        %v192 = vld [vmem:[%s169 + $0x4c] sm:$0xf]
        %v193 = vld [vmem:[%s169 + $0x50] sm:$0xf]
        %v194 = vld [vmem:[%s169 + $0x54] sm:$0xf]
        %v195 = vld [vmem:[%s169 + $0x58] sm:$0xf]
        %v196 = vld [vmem:[%s169 + $0x5c] sm:$0xf]
        %v197 = vld [vmem:[%s169 + $0x60] sm:$0xf]
        %v198 = vld [vmem:[%s169 + $0x64] sm:$0xf]
        %v199 = vld [vmem:[%s169 + $0x68] sm:$0xf]
        %v200 = vld [vmem:[%s169 + $0x6c] sm:$0xf]
        %v201 = vld [vmem:[%s169 + $0x70] sm:$0xf]
        %v202 = vld [vmem:[%s169 + $0x74] sm:$0xf]
        %v203 = vld [vmem:[%s169 + $0x78] sm:$0xf]
        %v204 = vld [vmem:[%s169 + $0x7c] sm:$0xf]
        %v205 = vld [vmem:[%s169 + $0x80] sm:$0xf]
        %v206 = vld [vmem:[%s169 + $0x84] sm:$0xf]
        %v207 = vld [vmem:[%s169 + $0x88] sm:$0xf]
        %v208 = vld [vmem:[%s169 + $0x8c] sm:$0xf]
        %v209 = vld [vmem:[%s169 + $0x90] sm:$0xf]
        %v210 = vld [vmem:[%s169 + $0x94] sm:$0xf]
        %v211 = vld [vmem:[%s169 + $0x98] sm:$0xf]
        %v212 = vld [vmem:[%s169 + $0x9c] sm:$0xf]
        %v213 = vld [vmem:[%s169 + $0xa0] sm:$0xf]
        %v214 = vld [vmem:[%s169 + $0xa4] sm:$0xf]
        %v215 = vld [vmem:[%s169 + $0xa8] sm:$0xf]
        %v216 = vld [vmem:[%s169 + $0xac] sm:$0xf]
        %v217 = vld [vmem:[%s169 + $0xb0] sm:$0xf]
        %v218 = vld [vmem:[%s169 + $0xb4] sm:$0xf]
        %v219 = vld [vmem:[%s169 + $0xb8] sm:$0xf]
        %v220 = vld [vmem:[%s169 + $0xbc] sm:$0xf]
        %v221 = vld [vmem:[%s169 + $0xc0] sm:$0xf]
        %v222 = vld [vmem:[%s169 + $0xc4] sm:$0xf]
        %v223 = vld [vmem:[%s169 + $0xc8] sm:$0xf]
        %v224 = vld [vmem:[%s169 + $0xcc] sm:$0xf]
        %v225 = vld [vmem:[%s169 + $0xd0] sm:$0xf]
        %v226 = vld [vmem:[%s169 + $0xd4] sm:$0xf]
        %v227 = vld [vmem:[%s169 + $0xd8] sm:$0xf]
        %v228 = vld [vmem:[%s169 + $0xdc] sm:$0xf]
        %v229 = vld [vmem:[%s169 + $0xe0] sm:$0xf]
        %v230 = vld [vmem:[%s169 + $0xe4] sm:$0xf]
        %v231 = vld [vmem:[%s169 + $0xe8] sm:$0xf]
        %v232 = vld [vmem:[%s169 + $0xec] sm:$0xf]
        %v233 = vld [vmem:[%s169 + $0xf0] sm:$0xf]
        %v234 = vld [vmem:[%s169 + $0xf4] sm:$0xf]
        %v235 = vld [vmem:[%s169 + $0xf8] sm:$0xf]
        %v236 = vld [vmem:[%s169 + $0xfc] sm:$0xf]
        %v237 = vld [vmem:[%s169 + $0x100] sm:$0xf]
        %v238 = vld [vmem:[%s169 + $0x104] sm:$0xf]
        %v239 = vld [vmem:[%s169 + $0x108] sm:$0xf]
        %v240 = vld [vmem:[%s169 + $0x10c] sm:$0xf]
        %v241 = vld [vmem:[%s169 + $0x110] sm:$0xf]
        %v242 = vld [vmem:[%s169 + $0x114] sm:$0xf]
        %v243 = vld [vmem:[%s169 + $0x118] sm:$0xf]
        %v244 = vld [vmem:[%s169 + $0x11c] sm:$0xf]
        %v245 = vld [vmem:[%s169 + $0x120] sm:$0xf]
        %v246 = vld [vmem:[%s169 + $0x124] sm:$0xf]
        %v247 = vld [vmem:[%s169 + $0x128] sm:$0xf]
        %v248 = vld [vmem:[%s169 + $0x12c] sm:$0xf]
        %v249 = vld [vmem:[%s169 + $0x130] sm:$0xf]
        %v250 = vld [vmem:[%s169 + $0x134] sm:$0xf]
        %v251 = vld [vmem:[%s169 + $0x138] sm:$0xf]
        %v252 = vld [vmem:[%s169 + $0x13c] sm:$0xf]
        %v253 = vld [vmem:[%s169 + $0x140] sm:$0xf]
        %v254 = vld [vmem:[%s169 + $0x144] sm:$0xf]
        %v255 = vld [vmem:[%s169 + $0x148] sm:$0xf]
        %v256 = vld [vmem:[%s169 + $0x14c] sm:$0xf]
        %v257 = vld [vmem:[%s169 + $0x150] sm:$0xf]
        %v258 = vld [vmem:[%s169 + $0x154] sm:$0xf]
        %v259 = vld [vmem:[%s169 + $0x158] sm:$0xf]
        %v260 = vld [vmem:[%s169 + $0x15c] sm:$0xf]
        %v261 = vld [vmem:[%s169 + $0x160] sm:$0xf]
        %v262 = vld [vmem:[%s169 + $0x164] sm:$0xf]
        %v263 = vld [vmem:[%s169 + $0x168] sm:$0xf]
        %v264 = vld [vmem:[%s169 + $0x16c] sm:$0xf]
        %v265 = vld [vmem:[%s169 + $0x170] sm:$0xf]
        %v266 = vld [vmem:[%s169 + $0x174] sm:$0xf]
        %v267 = vld [vmem:[%s169 + $0x178] sm:$0xf]
        %v268 = vld [vmem:[%s169 + $0x17c] sm:$0xf]
        %v269 = vld [vmem:[%s169 + $0x180] sm:$0xf]
        %v270 = vld [vmem:[%s169 + $0x184] sm:$0xf]
        %v271 = vld [vmem:[%s169 + $0x188] sm:$0xf]
        %v272 = vld [vmem:[%s169 + $0x18c] sm:$0xf]
        %v273 = vld [vmem:[%s169 + $0x190] sm:$0xf]
        %v274 = vld [vmem:[%s169 + $0x194] sm:$0xf]
        %v275 = vld [vmem:[%s169 + $0x198] sm:$0xf]
        %v276 = vld [vmem:[%s169 + $0x19c] sm:$0xf]
        %v277 = vld [vmem:[%s169 + $0x1a0] sm:$0xf]
        %v278 = vld [vmem:[%s169 + $0x1a4] sm:$0xf]
        %v279 = vld [vmem:[%s169 + $0x1a8] sm:$0xf]
        %v280 = vld [vmem:[%s169 + $0x1ac] sm:$0xf]
        %v281 = vld [vmem:[%s169 + $0x1b0] sm:$0xf]
        %v282 = vld [vmem:[%s169 + $0x1b4] sm:$0xf]
        %v283 = vld [vmem:[%s169 + $0x1b8] sm:$0xf]
        %v284 = vld [vmem:[%s169 + $0x1bc] sm:$0xf]
        %v285 = vld [vmem:[%s169 + $0x1c0] sm:$0xf]
        %v286 = vld [vmem:[%s169 + $0x1c4] sm:$0xf]
        %v287 = vld [vmem:[%s169 + $0x1c8] sm:$0xf]
        %v288 = vld [vmem:[%s1] sm:$0xf]
        %v289 = vld [vmem:[%s1 + $0x4] sm:$0xf]
        %v290 = vld [vmem:[%s1 + $0x8] sm:$0xf]
        %v291 = vld [vmem:[%s1 + $0xc] sm:$0xf]
        %v292 = vld [vmem:[%s169 + $0x1cc] sm:$0x1]
        %v293 = vld [vmem:[%s1 + $0x10] sm:$0xf]
        %v294 = vld [vmem:[%s1 + $0x14] sm:$0xf]
        %v295 = vld [vmem:[%s1 + $0x18] sm:$0xf]
        %v296 = vld [vmem:[%s1 + $0x1c] sm:$0xf]
        %v413 = vunpack.c.l.b16 %v173
        %v414 = vunpack.c.l.b16 %v174
        %v415 = vunpack.c.l.b16 %v175
        %v416 = vunpack.c.l.b16 %v176
        %v417 = vunpack.c.l.b16 %v177
        %v418 = vunpack.c.l.b16 %v178
        %v419 = vunpack.c.l.b16 %v179
        %v420 = vunpack.c.l.b16 %v180
        %v421 = vunpack.c.l.b16 %v181
        %v422 = vunpack.c.l.b16 %v182
        %v423 = vunpack.c.l.b16 %v183
        %v424 = vunpack.c.l.b16 %v184
        %v425 = vunpack.c.l.b16 %v185
        %v426 = vunpack.c.l.b16 %v186
        %v427 = vunpack.c.l.b16 %v187
        %v428 = vunpack.c.l.b16 %v188
        %v429 = vunpack.c.l.b16 %v189
        %v430 = vunpack.c.l.b16 %v190
        %v431 = vunpack.c.l.b16 %v191
        %v432 = vunpack.c.l.b16 %v192
        %v433 = vunpack.c.l.b16 %v193
        %v434 = vunpack.c.l.b16 %v194
        %v435 = vunpack.c.l.b16 %v195
        %v436 = vunpack.c.l.b16 %v196
        %v437 = vunpack.c.l.b16 %v197
        %v438 = vunpack.c.l.b16 %v198
        %v439 = vunpack.c.l.b16 %v199
        %v440 = vunpack.c.l.b16 %v200
        %v441 = vunpack.c.l.b16 %v201
        %v442 = vunpack.c.l.b16 %v202
        %v443 = vunpack.c.l.b16 %v203
        %v444 = vunpack.c.l.b16 %v204
        %v445 = vunpack.c.l.b16 %v205
        %v446 = vunpack.c.l.b16 %v206
        %v447 = vunpack.c.l.b16 %v207
        %v448 = vunpack.c.l.b16 %v208
        %v449 = vunpack.c.l.b16 %v209
        %v450 = vunpack.c.l.b16 %v210
        %v451 = vunpack.c.l.b16 %v211
        %v452 = vunpack.c.l.b16 %v212
        %v453 = vunpack.c.l.b16 %v213
        %v454 = vunpack.c.l.b16 %v214
        %v455 = vunpack.c.l.b16 %v215
        %v456 = vunpack.c.l.b16 %v216
        %v457 = vunpack.c.l.b16 %v217
        %v458 = vunpack.c.l.b16 %v218
        %v459 = vunpack.c.l.b16 %v219
        %v460 = vunpack.c.l.b16 %v220
        %v461 = vunpack.c.l.b16 %v221
        %v462 = vunpack.c.l.b16 %v222
        %v463 = vunpack.c.l.b16 %v223
        %v464 = vunpack.c.l.b16 %v224
        %v465 = vunpack.c.l.b16 %v225
        %v466 = vunpack.c.l.b16 %v226
        %v467 = vunpack.c.l.b16 %v227
        %v468 = vunpack.c.l.b16 %v228
        %v469 = vunpack.c.l.b16 %v229
        %v470 = vunpack.c.l.b16 %v230
        %v471 = vunpack.c.l.b16 %v231
        %v472 = vunpack.c.l.b16 %v232
        %v473 = vunpack.c.l.b16 %v233
        %v474 = vunpack.c.l.b16 %v234
        %v475 = vunpack.c.l.b16 %v235
        %v476 = vunpack.c.l.b16 %v236
        %v477 = vunpack.c.l.b16 %v237
        %v478 = vunpack.c.l.b16 %v238
        %v479 = vunpack.c.l.b16 %v239
        %v480 = vunpack.c.l.b16 %v240
        %v481 = vunpack.c.l.b16 %v241
        %v482 = vunpack.c.l.b16 %v242
        %v483 = vunpack.c.l.b16 %v243
        %v484 = vunpack.c.l.b16 %v244
        %v485 = vunpack.c.l.b16 %v245
        %v486 = vunpack.c.l.b16 %v246
        %v487 = vunpack.c.l.b16 %v247
        %v488 = vunpack.c.l.b16 %v248
        %v489 = vunpack.c.l.b16 %v249
        %v490 = vunpack.c.l.b16 %v250
        %v491 = vunpack.c.l.b16 %v251
        %v492 = vunpack.c.l.b16 %v252
        %v493 = vunpack.c.l.b16 %v253
        %v494 = vunpack.c.l.b16 %v254
        %v495 = vunpack.c.l.b16 %v255
        %v496 = vunpack.c.l.b16 %v256
        %v497 = vunpack.c.l.b16 %v257
        %v498 = vunpack.c.l.b16 %v258
        %v499 = vunpack.c.l.b16 %v259
        %v500 = vunpack.c.l.b16 %v260
        %v501 = vunpack.c.l.b16 %v261
        %v502 = vunpack.c.l.b16 %v262
        %v503 = vunpack.c.l.b16 %v263
        %v504 = vunpack.c.l.b16 %v264
        %v505 = vunpack.c.l.b16 %v265
        %v506 = vunpack.c.l.b16 %v266
        %v507 = vunpack.c.l.b16 %v267
        %v508 = vunpack.c.l.b16 %v268
        %v509 = vunpack.c.l.b16 %v269
        %v510 = vunpack.c.l.b16 %v270
        %v511 = vunpack.c.l.b16 %v271
        %v512 = vunpack.c.l.b16 %v272
        %v513 = vunpack.c.l.b16 %v273
        %v514 = vunpack.c.l.b16 %v274
        %v515 = vunpack.c.l.b16 %v275
        %v516 = vunpack.c.l.b16 %v276
        %v517 = vunpack.c.l.b16 %v277
        %v518 = vunpack.c.l.b16 %v278
        %v519 = vunpack.c.l.b16 %v279
        %v520 = vunpack.c.l.b16 %v280
        %v521 = vunpack.c.l.b16 %v281
        %v522 = vunpack.c.l.b16 %v282
        %v523 = vunpack.c.l.b16 %v283
        %v524 = vunpack.c.l.b16 %v284
        %v525 = vunpack.c.l.b16 %v285
        %v526 = vunpack.c.l.b16 %v286
        %v527 = vunpack.c.l.b16 %v287
        %v528 = vunpack.c.l.b16 %v292
        %v529 = vpack.c.b16 %v414, %v413
        %v530 = vpack.c.b16 %v416, %v415
        %v531 = vpack.c.b16 %v418, %v417
        %v532 = vpack.c.b16 %v420, %v419
        %v533 = vpack.c.b16 %v422, %v421
        %v534 = vpack.c.b16 %v424, %v423
        %v535 = vpack.c.b16 %v426, %v425
        %v536 = vpack.c.b16 %v428, %v427
        %v537 = vpack.c.b16 %v430, %v429
        %v538 = vpack.c.b16 %v432, %v431
        %v539 = vpack.c.b16 %v434, %v433
        %v540 = vpack.c.b16 %v436, %v435
        %v541 = vpack.c.b16 %v438, %v437
        %v542 = vpack.c.b16 %v440, %v439
        %v543 = vpack.c.b16 %v442, %v441
        %v544 = vpack.c.b16 %v444, %v443
        %v545 = vpack.c.b16 %v446, %v445
        %v546 = vpack.c.b16 %v448, %v447
        %v547 = vpack.c.b16 %v450, %v449
        %v548 = vpack.c.b16 %v452, %v451
        %v549 = vpack.c.b16 %v454, %v453
        %v550 = vpack.c.b16 %v456, %v455
        %v551 = vpack.c.b16 %v458, %v457
        %v552 = vpack.c.b16 %v460, %v459
        %v553 = vpack.c.b16 %v462, %v461
        %v554 = vpack.c.b16 %v464, %v463
        %v555 = vpack.c.b16 %v466, %v465
        %v556 = vpack.c.b16 %v468, %v467
        %v557 = vpack.c.b16 %v470, %v469
        %v558 = vpack.c.b16 %v472, %v471
        %v559 = vpack.c.b16 %v474, %v473
        %v560 = vpack.c.b16 %v476, %v475
        %v561 = vpack.c.b16 %v478, %v477
        %v562 = vpack.c.b16 %v480, %v479
        %v563 = vpack.c.b16 %v482, %v481
        %v564 = vpack.c.b16 %v484, %v483
        %v565 = vpack.c.b16 %v486, %v485
        %v566 = vpack.c.b16 %v488, %v487
        %v567 = vpack.c.b16 %v490, %v489
        %v568 = vpack.c.b16 %v492, %v491
        %v569 = vpack.c.b16 %v494, %v493
        %v570 = vpack.c.b16 %v496, %v495
        %v571 = vpack.c.b16 %v498, %v497
        %v572 = vpack.c.b16 %v500, %v499
        %v573 = vpack.c.b16 %v502, %v501
        %v574 = vpack.c.b16 %v504, %v503
        %v575 = vpack.c.b16 %v506, %v505
        %v576 = vpack.c.b16 %v508, %v507
        %v577 = vpack.c.b16 %v510, %v509
        %v578 = vpack.c.b16 %v512, %v511
        %v579 = vpack.c.b16 %v514, %v513
        %v580 = vpack.c.b16 %v516, %v515
        %v581 = vpack.c.b16 %v518, %v517
        %v582 = vpack.c.b16 %v520, %v519
        %v583 = vpack.c.b16 %v522, %v521
        %v584 = vpack.c.b16 %v524, %v523
        %v585 = vpack.c.b16 %v526, %v525
        %v586 = vpack.c.b16 %v528, %v527
        %vm587 = vsmask.f32 7424
        %v589 = vshrl.u32 %v529, 16
        %v591 = vshll.u32 %v529, 16
        %v593 = vrot.slane %v591, 1
        %v594 = vor.u32 %v589, %v593
        %v596 = vshll.u32 %v530, 16
        %v598 = vrot.slane %v596, 1
        %v599 = vsel %vm587, %v594, %v598
        %v600 = vshrl.u32 %v530, 16
        %v602 = vor.u32 %v600, %v598
        %v604 = vshll.u32 %v531, 16
        %v606 = vrot.slane %v604, 1
        %v607 = vsel %vm587, %v602, %v606
        %v608 = vshrl.u32 %v531, 16
        %v610 = vor.u32 %v608, %v606
        %v612 = vshll.u32 %v532, 16
        %v614 = vrot.slane %v612, 1
        %v615 = vsel %vm587, %v610, %v614
        %v616 = vshrl.u32 %v532, 16
        %v618 = vor.u32 %v616, %v614
        %v620 = vshll.u32 %v533, 16
        %v622 = vrot.slane %v620, 1
        %v623 = vsel %vm587, %v618, %v622
        %v624 = vshrl.u32 %v533, 16
        %v626 = vor.u32 %v624, %v622
        %v628 = vshll.u32 %v534, 16
        %v630 = vrot.slane %v628, 1
        %v631 = vsel %vm587, %v626, %v630
        %v632 = vshrl.u32 %v534, 16
        %v634 = vor.u32 %v632, %v630
        %v636 = vshll.u32 %v535, 16
        %v638 = vrot.slane %v636, 1
        %v639 = vsel %vm587, %v634, %v638
        %v640 = vshrl.u32 %v535, 16
        %v642 = vor.u32 %v640, %v638
        %v644 = vshll.u32 %v536, 16
        %v646 = vrot.slane %v644, 1
        %v647 = vsel %vm587, %v642, %v646
        %v648 = vshrl.u32 %v536, 16
        %v650 = vor.u32 %v648, %v646
        %v652 = vshll.u32 %v537, 16
        %v654 = vrot.slane %v652, 1
        %v655 = vsel %vm587, %v650, %v654
        %v656 = vshrl.u32 %v537, 16
        %v658 = vor.u32 %v656, %v654
        %v660 = vshll.u32 %v538, 16
        %v662 = vrot.slane %v660, 1
        %v663 = vsel %vm587, %v658, %v662
        %v664 = vshrl.u32 %v538, 16
        %v666 = vor.u32 %v664, %v662
        %v668 = vshll.u32 %v539, 16
        %v670 = vrot.slane %v668, 1
        %v671 = vsel %vm587, %v666, %v670
        %v672 = vshrl.u32 %v539, 16
        %v674 = vor.u32 %v672, %v670
        %v676 = vshll.u32 %v540, 16
        %v678 = vrot.slane %v676, 1
        %v679 = vsel %vm587, %v674, %v678
        %v680 = vshrl.u32 %v540, 16
        %v682 = vor.u32 %v680, %v678
        %v684 = vshll.u32 %v541, 16
        %v686 = vrot.slane %v684, 1
        %v687 = vsel %vm587, %v682, %v686
        %v688 = vshrl.u32 %v541, 16
        %v690 = vor.u32 %v688, %v686
        %v692 = vshll.u32 %v542, 16
        %v694 = vrot.slane %v692, 1
        %v695 = vsel %vm587, %v690, %v694
        %v696 = vshrl.u32 %v542, 16
        %v698 = vor.u32 %v696, %v694
        %v700 = vshll.u32 %v543, 16
        %v702 = vrot.slane %v700, 1
        %v703 = vsel %vm587, %v698, %v702
        %v704 = vshrl.u32 %v543, 16
        %v706 = vor.u32 %v704, %v702
        %v708 = vshll.u32 %v544, 16
        %v710 = vrot.slane %v708, 1
        %v711 = vsel %vm587, %v706, %v710
        %v712 = vshrl.u32 %v544, 16
        %v714 = vor.u32 %v712, %v710
        %v716 = vshll.u32 %v545, 16
        %v718 = vrot.slane %v716, 1
        %v719 = vsel %vm587, %v714, %v718
        %v720 = vshrl.u32 %v545, 16
        %v722 = vor.u32 %v720, %v718
        %v724 = vshll.u32 %v546, 16
        %v726 = vrot.slane %v724, 1
        %v727 = vsel %vm587, %v722, %v726
        %v728 = vshrl.u32 %v546, 16
        %v730 = vor.u32 %v728, %v726
        %v732 = vshll.u32 %v547, 16
        %v734 = vrot.slane %v732, 1
        %v735 = vsel %vm587, %v730, %v734
        %v736 = vshrl.u32 %v547, 16
        %v738 = vor.u32 %v736, %v734
        %v740 = vshll.u32 %v548, 16
        %v742 = vrot.slane %v740, 1
        %v743 = vsel %vm587, %v738, %v742
        %v744 = vshrl.u32 %v548, 16
        %v746 = vor.u32 %v744, %v742
        %v748 = vshll.u32 %v549, 16
        %v750 = vrot.slane %v748, 1
        %v751 = vsel %vm587, %v746, %v750
        %v752 = vshrl.u32 %v549, 16
        %v754 = vor.u32 %v752, %v750
        %v756 = vshll.u32 %v550, 16
        %v758 = vrot.slane %v756, 1
        %v759 = vsel %vm587, %v754, %v758
        %v760 = vshrl.u32 %v550, 16
        %v762 = vor.u32 %v760, %v758
        %v764 = vshll.u32 %v551, 16
        %v766 = vrot.slane %v764, 1
        %v767 = vsel %vm587, %v762, %v766
        %v768 = vshrl.u32 %v551, 16
        %v770 = vor.u32 %v768, %v766
        %v772 = vshll.u32 %v552, 16
        %v774 = vrot.slane %v772, 1
        %v775 = vsel %vm587, %v770, %v774
        %v776 = vshrl.u32 %v552, 16
        %v778 = vor.u32 %v776, %v774
        %v780 = vshll.u32 %v553, 16
        %v782 = vrot.slane %v780, 1
        %v783 = vsel %vm587, %v778, %v782
        %v784 = vshrl.u32 %v553, 16
        %v786 = vor.u32 %v784, %v782
        %v788 = vshll.u32 %v554, 16
        %v790 = vrot.slane %v788, 1
        %v791 = vsel %vm587, %v786, %v790
        %v792 = vshrl.u32 %v554, 16
        %v794 = vor.u32 %v792, %v790
        %v796 = vshll.u32 %v555, 16
        %v798 = vrot.slane %v796, 1
        %v799 = vsel %vm587, %v794, %v798
        %v800 = vshrl.u32 %v555, 16
        %v802 = vor.u32 %v800, %v798
        %v804 = vshll.u32 %v556, 16
        %v806 = vrot.slane %v804, 1
        %v807 = vsel %vm587, %v802, %v806
        %v808 = vshrl.u32 %v556, 16
        %v810 = vor.u32 %v808, %v806
        %v812 = vshll.u32 %v557, 16
        %v814 = vrot.slane %v812, 1
        %v815 = vsel %vm587, %v810, %v814
        %v816 = vshrl.u32 %v557, 16
        %v818 = vor.u32 %v816, %v814
        %v820 = vshll.u32 %v558, 16
        %v822 = vrot.slane %v820, 1
        %v823 = vsel %vm587, %v818, %v822
        %v824 = vshrl.u32 %v558, 16
        %v826 = vor.u32 %v824, %v822
        %v828 = vshll.u32 %v559, 16
        %v830 = vrot.slane %v828, 1
        %v831 = vsel %vm587, %v826, %v830
        %v832 = vshrl.u32 %v559, 16
        %v834 = vor.u32 %v832, %v830
        %v836 = vshll.u32 %v560, 16
        %v838 = vrot.slane %v836, 1
        %v839 = vsel %vm587, %v834, %v838
        %v840 = vshrl.u32 %v560, 16
        %v842 = vor.u32 %v840, %v838
        %v844 = vshll.u32 %v561, 16
        %v846 = vrot.slane %v844, 1
        %v847 = vsel %vm587, %v842, %v846
        %v848 = vshrl.u32 %v561, 16
        %v850 = vor.u32 %v848, %v846
        %v852 = vshll.u32 %v562, 16
        %v854 = vrot.slane %v852, 1
        %v855 = vsel %vm587, %v850, %v854
        %v856 = vshrl.u32 %v562, 16
        %v858 = vor.u32 %v856, %v854
        %v860 = vshll.u32 %v563, 16
        %v862 = vrot.slane %v860, 1
        %v863 = vsel %vm587, %v858, %v862
        %v864 = vshrl.u32 %v563, 16
        %v866 = vor.u32 %v864, %v862
        %v868 = vshll.u32 %v564, 16
        %v870 = vrot.slane %v868, 1
        %v871 = vsel %vm587, %v866, %v870
        %v872 = vshrl.u32 %v564, 16
        %v874 = vor.u32 %v872, %v870
        %v876 = vshll.u32 %v565, 16
        %v878 = vrot.slane %v876, 1
        %v879 = vsel %vm587, %v874, %v878
        %v880 = vshrl.u32 %v565, 16
        %v882 = vor.u32 %v880, %v878
        %v884 = vshll.u32 %v566, 16
        %v886 = vrot.slane %v884, 1
        %v887 = vsel %vm587, %v882, %v886
        %v888 = vshrl.u32 %v566, 16
        %v890 = vor.u32 %v888, %v886
        %v892 = vshll.u32 %v567, 16
        %v894 = vrot.slane %v892, 1
        %v895 = vsel %vm587, %v890, %v894
        %v896 = vshrl.u32 %v567, 16
        %v898 = vor.u32 %v896, %v894
        %v900 = vshll.u32 %v568, 16
        %v902 = vrot.slane %v900, 1
        %v903 = vsel %vm587, %v898, %v902
        %v904 = vshrl.u32 %v568, 16
        %v906 = vor.u32 %v904, %v902
        %v908 = vshll.u32 %v569, 16
        %v910 = vrot.slane %v908, 1
        %v911 = vsel %vm587, %v906, %v910
        %v912 = vshrl.u32 %v569, 16
        %v914 = vor.u32 %v912, %v910
        %v916 = vshll.u32 %v570, 16
        %v918 = vrot.slane %v916, 1
        %v919 = vsel %vm587, %v914, %v918
        %v920 = vshrl.u32 %v570, 16
        %v922 = vor.u32 %v920, %v918
        %v924 = vshll.u32 %v571, 16
        %v926 = vrot.slane %v924, 1
        %v927 = vsel %vm587, %v922, %v926
        %v928 = vshrl.u32 %v571, 16
        %v930 = vor.u32 %v928, %v926
        %v932 = vshll.u32 %v572, 16
        %v934 = vrot.slane %v932, 1
        %v935 = vsel %vm587, %v930, %v934
        %v936 = vshrl.u32 %v572, 16
        %v938 = vor.u32 %v936, %v934
        %v940 = vshll.u32 %v573, 16
        %v942 = vrot.slane %v940, 1
        %v943 = vsel %vm587, %v938, %v942
        %v944 = vshrl.u32 %v573, 16
        %v946 = vor.u32 %v944, %v942
        %v948 = vshll.u32 %v574, 16
        %v950 = vrot.slane %v948, 1
        %v951 = vsel %vm587, %v946, %v950
        %v952 = vshrl.u32 %v574, 16
        %v954 = vor.u32 %v952, %v950
        %v956 = vshll.u32 %v575, 16
        %v958 = vrot.slane %v956, 1
        %v959 = vsel %vm587, %v954, %v958
        %v960 = vshrl.u32 %v575, 16
        %v962 = vor.u32 %v960, %v958
        %v964 = vshll.u32 %v576, 16
        %v966 = vrot.slane %v964, 1
        %v967 = vsel %vm587, %v962, %v966
        %v968 = vshrl.u32 %v576, 16
        %v970 = vor.u32 %v968, %v966
        %v972 = vshll.u32 %v577, 16
        %v974 = vrot.slane %v972, 1
        %v975 = vsel %vm587, %v970, %v974
        %v976 = vshrl.u32 %v577, 16
        %v978 = vor.u32 %v976, %v974
        %v980 = vshll.u32 %v578, 16
        %v982 = vrot.slane %v980, 1
        %v983 = vsel %vm587, %v978, %v982
        %v984 = vshrl.u32 %v578, 16
        %v986 = vor.u32 %v984, %v982
        %v988 = vshll.u32 %v579, 16
        %v990 = vrot.slane %v988, 1
        %v991 = vsel %vm587, %v986, %v990
        %v992 = vshrl.u32 %v579, 16
        %v994 = vor.u32 %v992, %v990
        %v996 = vshll.u32 %v580, 16
        %v998 = vrot.slane %v996, 1
        %v999 = vsel %vm587, %v994, %v998
        %v1000 = vshrl.u32 %v580, 16
        %v1002 = vor.u32 %v1000, %v998
        %v1004 = vshll.u32 %v581, 16
        %v1006 = vrot.slane %v1004, 1
        %v1007 = vsel %vm587, %v1002, %v1006
        %v1008 = vshrl.u32 %v581, 16
        %v1010 = vor.u32 %v1008, %v1006
        %v1012 = vshll.u32 %v582, 16
        %v1014 = vrot.slane %v1012, 1
        %v1015 = vsel %vm587, %v1010, %v1014
        %v1016 = vshrl.u32 %v582, 16
        %v1018 = vor.u32 %v1016, %v1014
        %v1020 = vshll.u32 %v583, 16
        %v1022 = vrot.slane %v1020, 1
        %v1023 = vsel %vm587, %v1018, %v1022
        %v1024 = vshrl.u32 %v583, 16
        %v1026 = vor.u32 %v1024, %v1022
        %v1028 = vshll.u32 %v584, 16
        %v1030 = vrot.slane %v1028, 1
        %v1031 = vsel %vm587, %v1026, %v1030
        %v1032 = vshrl.u32 %v584, 16
        %v1034 = vor.u32 %v1032, %v1030
        %v1036 = vshll.u32 %v585, 16
        %v1038 = vrot.slane %v1036, 1
        %v1039 = vsel %vm587, %v1034, %v1038
        %v1040 = vshrl.u32 %v585, 16
        %v1042 = vor.u32 %v1040, %v1038
        %v1044 = vshll.u32 %v586, 16
        %v1046 = vrot.slane %v1044, 1
        %v1047 = vsel %vm587, %v1042, %v1046
        %v1048 = vshrl.u32 %v586, 16
        %v1050 = vor.u32 %v1048, %v1046
        %v1055 = vunpack.c.l.b16 %v293
        %v1056 = vunpack.c.l.b16 %v294
        %v1057 = vunpack.c.l.b16 %v295
        %v1058 = vunpack.c.l.b16 %v296
        %v1059 = vpack.c.b16 %v1056, %v1055
        %v1060 = vpack.c.b16 %v1058, %v1057
        %vm1063 = vcmask 261120
        %v1065 = vsel %vm1063, %v599, 0
        %v1068 = vsel %vm1063, %v607, 0
        %v1071 = vsel %vm1063, %v615, 0
        %v1074 = vsel %vm1063, %v623, 0
        %v1077 = vsel %vm1063, %v631, 0
        %v1080 = vsel %vm1063, %v639, 0
        %v1083 = vsel %vm1063, %v647, 0
        %v1086 = vsel %vm1063, %v655, 0
        %v1089 = vsel %vm1063, %v663, 0
        %v1092 = vsel %vm1063, %v671, 0
        %v1095 = vsel %vm1063, %v679, 0
        %v1098 = vsel %vm1063, %v687, 0
        %v1101 = vsel %vm1063, %v695, 0
        %v1104 = vsel %vm1063, %v703, 0
        %v1107 = vsel %vm1063, %v711, 0
        %v1110 = vsel %vm1063, %v719, 0
        %v1113 = vsel %vm1063, %v727, 0
        %v1116 = vsel %vm1063, %v735, 0
        %v1119 = vsel %vm1063, %v743, 0
        %v1122 = vsel %vm1063, %v751, 0
        %v1125 = vsel %vm1063, %v759, 0
        %v1128 = vsel %vm1063, %v767, 0
        %v1131 = vsel %vm1063, %v775, 0
        %v1134 = vsel %vm1063, %v783, 0
        %v1137 = vsel %vm1063, %v791, 0
        %v1140 = vsel %vm1063, %v799, 0
        %v1143 = vsel %vm1063, %v807, 0
        %v1146 = vsel %vm1063, %v815, 0
        %v1149 = vsel %vm1063, %v823, 0
        %v1152 = vsel %vm1063, %v831, 0
        %v1155 = vsel %vm1063, %v839, 0
        %v1158 = vsel %vm1063, %v847, 0
        %v1161 = vsel %vm1063, %v855, 0
        %v1164 = vsel %vm1063, %v863, 0
        %v1167 = vsel %vm1063, %v871, 0
        %v1170 = vsel %vm1063, %v879, 0
        %v1173 = vsel %vm1063, %v887, 0
        %v1176 = vsel %vm1063, %v895, 0
        %v1179 = vsel %vm1063, %v903, 0
        %v1182 = vsel %vm1063, %v911, 0
        %v1185 = vsel %vm1063, %v919, 0
        %v1188 = vsel %vm1063, %v927, 0
        %v1191 = vsel %vm1063, %v935, 0
        %v1194 = vsel %vm1063, %v943, 0
        %v1197 = vsel %vm1063, %v951, 0
        %v1200 = vsel %vm1063, %v959, 0
        %v1203 = vsel %vm1063, %v967, 0
        %v1206 = vsel %vm1063, %v975, 0
        %v1209 = vsel %vm1063, %v983, 0
        %v1212 = vsel %vm1063, %v991, 0
        %v1215 = vsel %vm1063, %v999, 0
        %v1218 = vsel %vm1063, %v1007, 0
        %v1221 = vsel %vm1063, %v1015, 0
        %v1224 = vsel %vm1063, %v1023, 0
        %v1227 = vsel %vm1063, %v1031, 0
        %v1230 = vsel %vm1063, %v1039, 0
        %v1233 = vsel %vm1063, %v1047, 0
        %v1236 = vsel %vm1063, %v1050, 0
        %1238 = vmatprep.subr.bf16.mxu0 0
        %1239 = vmatpush1.bf16.msra.mxu0 0
        %1240 = vmatprep.subr.bf16.mxu0 0
        %1241 = vmatpush1.bf16.msra.mxu0 0
        %1242 = vmatprep.subr.bf16.mxu0 0
        %1243 = vmatpush1.bf16.msra.mxu0 0
        %1244 = vmatprep.subr.bf16.mxu0 0
        %1245 = vmatpush1.bf16.msra.mxu0 0
        %1246 = vmatprep.subr.bf16.mxu0 0
        %1247 = vmatpush1.bf16.msra.mxu0 0
        %1248 = vmatprep.subr.bf16.mxu0 0
        %1249 = vmatpush1.bf16.msra.mxu0 0
        %1250 = vmatprep.subr.bf16.mxu0 0
        %1251 = vmatpush1.bf16.msra.mxu0 %v1060
        %1252 = vmatprep.subr.bf16.mxu0 0
        %1253 = vmatpush1.bf16.msra.mxu0 %v1059
        %1254 = vmatprep.subr.bf16.mxu0 0
        %1255 = vmatpush2.bf16.msra.mxu0 0
        %1256 = vmatprep.subr.bf16.mxu0 0
        %1257 = vmatpush2.bf16.msra.mxu0 0
        %1258 = vmatprep.subr.bf16.mxu0 0
        %1259 = vmatpush2.bf16.msra.mxu0 0
        %1260 = vmatprep.subr.bf16.mxu0 0
        %1261 = vmatpush2.bf16.msra.mxu0 0
        %1262 = vmatprep.subr.bf16.mxu0 0
        %1263 = vmatpush2.bf16.msra.mxu0 0
        %1264 = vmatprep.subr.bf16.mxu0 0
        %1265 = vmatpush2.bf16.msra.mxu0 0
        %1266 = vmatprep.subr.bf16.mxu0 0
        %1267 = vmatpush2.bf16.msra.mxu0 0
        %1268 = vmatprep.subr.bf16.mxu0 0
        %1269 = vmatpush2.bf16.msra.mxu0 0
        %1270 = vmatprep.mubr.bf16.mxu0 0
        %1271 = vmatmul.mubr.bf16.gmra.mxu0 %v1065
        %v1272 = vpop.f32.mrf.mxu0
        %v1273 = vadd.f32 0.0, %v1272
        %v1274 = vpop.f32.mrf.mxu0
        %v1275 = vpop.f32.mrf.mxu0
        %v1276 = vadd.f32 0.0, %v1275
        %v1277 = vpop.f32.mrf.mxu0
        %1278 = vmatprep.mubr.bf16.mxu0 0
        %1279 = vmatmul.mubr.bf16.gmra.mxu0 %v1068
        %v1280 = vpop.f32.mrf.mxu0
        %v1281 = vadd.f32 0.0, %v1280
        %v1282 = vpop.f32.mrf.mxu0
        %v1283 = vpop.f32.mrf.mxu0
        %v1284 = vadd.f32 0.0, %v1283
        %v1285 = vpop.f32.mrf.mxu0
        %1286 = vmatprep.mubr.bf16.mxu0 0
        %1287 = vmatmul.mubr.bf16.gmra.mxu0 %v1071
        %v1288 = vpop.f32.mrf.mxu0
        %v1289 = vadd.f32 0.0, %v1288
        %v1290 = vpop.f32.mrf.mxu0
        %v1291 = vpop.f32.mrf.mxu0
        %v1292 = vadd.f32 0.0, %v1291
        %v1293 = vpop.f32.mrf.mxu0
        %1294 = vmatprep.mubr.bf16.mxu0 0
        %1295 = vmatmul.mubr.bf16.gmra.mxu0 %v1074
        %v1296 = vpop.f32.mrf.mxu0
        %v1297 = vadd.f32 0.0, %v1296
        %v1298 = vpop.f32.mrf.mxu0
        %v1299 = vpop.f32.mrf.mxu0
        %v1300 = vadd.f32 0.0, %v1299
        %v1301 = vpop.f32.mrf.mxu0
        %1302 = vmatprep.mubr.bf16.mxu0 0
        %1303 = vmatmul.mubr.bf16.gmra.mxu0 %v1077
        %v1304 = vpop.f32.mrf.mxu0
        %v1305 = vadd.f32 0.0, %v1304
        %v1306 = vpop.f32.mrf.mxu0
        %v1307 = vpop.f32.mrf.mxu0
        %v1308 = vadd.f32 0.0, %v1307
        %v1309 = vpop.f32.mrf.mxu0
        %1310 = vmatprep.mubr.bf16.mxu0 0
        %1311 = vmatmul.mubr.bf16.gmra.mxu0 %v1080
        %v1312 = vpop.f32.mrf.mxu0
        %v1313 = vadd.f32 0.0, %v1312
        %v1314 = vpop.f32.mrf.mxu0
        %v1315 = vpop.f32.mrf.mxu0
        %v1316 = vadd.f32 0.0, %v1315
        %v1317 = vpop.f32.mrf.mxu0
        %1318 = vmatprep.mubr.bf16.mxu0 0
        %1319 = vmatmul.mubr.bf16.gmra.mxu0 %v1083
        %v1320 = vpop.f32.mrf.mxu0
        %v1321 = vadd.f32 0.0, %v1320
        %v1322 = vpop.f32.mrf.mxu0
        %v1323 = vpop.f32.mrf.mxu0
        %v1324 = vadd.f32 0.0, %v1323
        %v1325 = vpop.f32.mrf.mxu0
        %1326 = vmatprep.mubr.bf16.mxu0 0
        %1327 = vmatmul.mubr.bf16.gmra.mxu0 %v1086
        %v1328 = vpop.f32.mrf.mxu0
        %v1329 = vadd.f32 0.0, %v1328
        %v1330 = vpop.f32.mrf.mxu0
        %v1331 = vpop.f32.mrf.mxu0
        %v1332 = vadd.f32 0.0, %v1331
        %v1333 = vpop.f32.mrf.mxu0
        %1334 = vmatprep.mubr.bf16.mxu0 0
        %1335 = vmatmul.mubr.bf16.gmra.mxu0 %v1089
        %v1336 = vpop.f32.mrf.mxu0
        %v1337 = vadd.f32 0.0, %v1336
        %v1338 = vpop.f32.mrf.mxu0
        %v1339 = vpop.f32.mrf.mxu0
        %v1340 = vadd.f32 0.0, %v1339
        %v1341 = vpop.f32.mrf.mxu0
        %1342 = vmatprep.mubr.bf16.mxu0 0
        %1343 = vmatmul.mubr.bf16.gmra.mxu0 %v1092
        %v1344 = vpop.f32.mrf.mxu0
        %v1345 = vadd.f32 0.0, %v1344
        %v1346 = vpop.f32.mrf.mxu0
        %v1347 = vpop.f32.mrf.mxu0
        %v1348 = vadd.f32 0.0, %v1347
        %v1349 = vpop.f32.mrf.mxu0
        %1350 = vmatprep.mubr.bf16.mxu0 0
        %1351 = vmatmul.mubr.bf16.gmra.mxu0 %v1095
        %v1352 = vpop.f32.mrf.mxu0
        %v1353 = vadd.f32 0.0, %v1352
        %v1354 = vpop.f32.mrf.mxu0
        %v1355 = vpop.f32.mrf.mxu0
        %v1356 = vadd.f32 0.0, %v1355
        %v1357 = vpop.f32.mrf.mxu0
        %1358 = vmatprep.mubr.bf16.mxu0 0
        %1359 = vmatmul.mubr.bf16.gmra.mxu0 %v1098
        %v1360 = vpop.f32.mrf.mxu0
        %v1361 = vadd.f32 0.0, %v1360
        %v1362 = vpop.f32.mrf.mxu0
        %v1363 = vpop.f32.mrf.mxu0
        %v1364 = vadd.f32 0.0, %v1363
        %v1365 = vpop.f32.mrf.mxu0
        %1366 = vmatprep.mubr.bf16.mxu0 0
        %1367 = vmatmul.mubr.bf16.gmra.mxu0 %v1101
        %v1368 = vpop.f32.mrf.mxu0
        %v1369 = vadd.f32 0.0, %v1368
        %v1370 = vpop.f32.mrf.mxu0
        %v1371 = vpop.f32.mrf.mxu0
        %v1372 = vadd.f32 0.0, %v1371
        %v1373 = vpop.f32.mrf.mxu0
        %1374 = vmatprep.mubr.bf16.mxu0 0
        %1375 = vmatmul.mubr.bf16.gmra.mxu0 %v1104
        %v1376 = vpop.f32.mrf.mxu0
        %v1377 = vadd.f32 0.0, %v1376
        %v1378 = vpop.f32.mrf.mxu0
        %v1379 = vpop.f32.mrf.mxu0
        %v1380 = vadd.f32 0.0, %v1379
        %v1381 = vpop.f32.mrf.mxu0
        %1382 = vmatprep.mubr.bf16.mxu0 0
        %1383 = vmatmul.mubr.bf16.gmra.mxu0 %v1107
        %v1384 = vpop.f32.mrf.mxu0
        %v1385 = vadd.f32 0.0, %v1384
        %v1386 = vpop.f32.mrf.mxu0
        %v1387 = vpop.f32.mrf.mxu0
        %v1388 = vadd.f32 0.0, %v1387
        %v1389 = vpop.f32.mrf.mxu0
        %1390 = vmatprep.mubr.bf16.mxu0 0
        %1391 = vmatmul.mubr.bf16.gmra.mxu0 %v1110
        %v1392 = vpop.f32.mrf.mxu0
        %v1393 = vadd.f32 0.0, %v1392
        %v1394 = vpop.f32.mrf.mxu0
        %v1395 = vpop.f32.mrf.mxu0
        %v1396 = vadd.f32 0.0, %v1395
        %v1397 = vpop.f32.mrf.mxu0
        %1398 = vmatprep.mubr.bf16.mxu0 0
        %1399 = vmatmul.mubr.bf16.gmra.mxu0 %v1113
        %v1400 = vpop.f32.mrf.mxu0
        %v1401 = vadd.f32 0.0, %v1400
        %v1402 = vpop.f32.mrf.mxu0
        %v1403 = vpop.f32.mrf.mxu0
        %v1404 = vadd.f32 0.0, %v1403
        %v1405 = vpop.f32.mrf.mxu0
        %1406 = vmatprep.mubr.bf16.mxu0 0
        %1407 = vmatmul.mubr.bf16.gmra.mxu0 %v1116
        %v1408 = vpop.f32.mrf.mxu0
        %v1409 = vadd.f32 0.0, %v1408
        %v1410 = vpop.f32.mrf.mxu0
        %v1411 = vpop.f32.mrf.mxu0
        %v1412 = vadd.f32 0.0, %v1411
        %v1413 = vpop.f32.mrf.mxu0
        %1414 = vmatprep.mubr.bf16.mxu0 0
        %1415 = vmatmul.mubr.bf16.gmra.mxu0 %v1119
        %v1416 = vpop.f32.mrf.mxu0
        %v1417 = vadd.f32 0.0, %v1416
        %v1418 = vpop.f32.mrf.mxu0
        %v1419 = vpop.f32.mrf.mxu0
        %v1420 = vadd.f32 0.0, %v1419
        %v1421 = vpop.f32.mrf.mxu0
        %1422 = vmatprep.mubr.bf16.mxu0 0
        %1423 = vmatmul.mubr.bf16.gmra.mxu0 %v1122
        %v1424 = vpop.f32.mrf.mxu0
        %v1425 = vadd.f32 0.0, %v1424
        %v1426 = vpop.f32.mrf.mxu0
        %v1427 = vpop.f32.mrf.mxu0
        %v1428 = vadd.f32 0.0, %v1427
        %v1429 = vpop.f32.mrf.mxu0
        %1430 = vmatprep.mubr.bf16.mxu0 0
        %1431 = vmatmul.mubr.bf16.gmra.mxu0 %v1125
        %v1432 = vpop.f32.mrf.mxu0
        %v1433 = vadd.f32 0.0, %v1432
        %v1434 = vpop.f32.mrf.mxu0
        %v1435 = vpop.f32.mrf.mxu0
        %v1436 = vadd.f32 0.0, %v1435
        %v1437 = vpop.f32.mrf.mxu0
        %1438 = vmatprep.mubr.bf16.mxu0 0
        %1439 = vmatmul.mubr.bf16.gmra.mxu0 %v1128
        %v1440 = vpop.f32.mrf.mxu0
        %v1441 = vadd.f32 0.0, %v1440
        %v1442 = vpop.f32.mrf.mxu0
        %v1443 = vpop.f32.mrf.mxu0
        %v1444 = vadd.f32 0.0, %v1443
        %v1445 = vpop.f32.mrf.mxu0
        %1446 = vmatprep.mubr.bf16.mxu0 0
        %1447 = vmatmul.mubr.bf16.gmra.mxu0 %v1131
        %v1448 = vpop.f32.mrf.mxu0
        %v1449 = vadd.f32 0.0, %v1448
        %v1450 = vpop.f32.mrf.mxu0
        %v1451 = vpop.f32.mrf.mxu0
        %v1452 = vadd.f32 0.0, %v1451
        %v1453 = vpop.f32.mrf.mxu0
        %1454 = vmatprep.mubr.bf16.mxu0 0
        %1455 = vmatmul.mubr.bf16.gmra.mxu0 %v1134
        %v1456 = vpop.f32.mrf.mxu0
        %v1457 = vadd.f32 0.0, %v1456
        %v1458 = vpop.f32.mrf.mxu0
        %v1459 = vpop.f32.mrf.mxu0
        %v1460 = vadd.f32 0.0, %v1459
        %v1461 = vpop.f32.mrf.mxu0
        %1462 = vmatprep.mubr.bf16.mxu0 0
        %1463 = vmatmul.mubr.bf16.gmra.mxu0 %v1137
        %v1464 = vpop.f32.mrf.mxu0
        %v1465 = vadd.f32 0.0, %v1464
        %v1466 = vpop.f32.mrf.mxu0
        %v1467 = vpop.f32.mrf.mxu0
        %v1468 = vadd.f32 0.0, %v1467
        %v1469 = vpop.f32.mrf.mxu0
        %1470 = vmatprep.mubr.bf16.mxu0 0
        %1471 = vmatmul.mubr.bf16.gmra.mxu0 %v1140
        %v1472 = vpop.f32.mrf.mxu0
        %v1473 = vadd.f32 0.0, %v1472
        %v1474 = vpop.f32.mrf.mxu0
        %v1475 = vpop.f32.mrf.mxu0
        %v1476 = vadd.f32 0.0, %v1475
        %v1477 = vpop.f32.mrf.mxu0
        %1478 = vmatprep.mubr.bf16.mxu0 0
        %1479 = vmatmul.mubr.bf16.gmra.mxu0 %v1143
        %v1480 = vpop.f32.mrf.mxu0
        %v1481 = vadd.f32 0.0, %v1480
        %v1482 = vpop.f32.mrf.mxu0
        %v1483 = vpop.f32.mrf.mxu0
        %v1484 = vadd.f32 0.0, %v1483
        %v1485 = vpop.f32.mrf.mxu0
        %1486 = vmatprep.mubr.bf16.mxu0 0
        %1487 = vmatmul.mubr.bf16.gmra.mxu0 %v1146
        %v1488 = vpop.f32.mrf.mxu0
        %v1489 = vadd.f32 0.0, %v1488
        %v1490 = vpop.f32.mrf.mxu0
        %v1491 = vpop.f32.mrf.mxu0
        %v1492 = vadd.f32 0.0, %v1491
        %v1493 = vpop.f32.mrf.mxu0
        %1494 = vmatprep.mubr.bf16.mxu0 0
        %1495 = vmatmul.mubr.bf16.gmra.mxu0 %v1149
        %v1496 = vpop.f32.mrf.mxu0
        %v1497 = vadd.f32 0.0, %v1496
        %v1498 = vpop.f32.mrf.mxu0
        %v1499 = vpop.f32.mrf.mxu0
        %v1500 = vadd.f32 0.0, %v1499
        %v1501 = vpop.f32.mrf.mxu0
        %1502 = vmatprep.mubr.bf16.mxu0 0
        %1503 = vmatmul.mubr.bf16.gmra.mxu0 %v1152
        %v1504 = vpop.f32.mrf.mxu0
        %v1505 = vadd.f32 0.0, %v1504
        %v1506 = vpop.f32.mrf.mxu0
        %v1507 = vpop.f32.mrf.mxu0
        %v1508 = vadd.f32 0.0, %v1507
        %v1509 = vpop.f32.mrf.mxu0
        %1510 = vmatprep.mubr.bf16.mxu0 0
        %1511 = vmatmul.mubr.bf16.gmra.mxu0 %v1155
        %v1512 = vpop.f32.mrf.mxu0
        %v1513 = vadd.f32 0.0, %v1512
        %v1514 = vpop.f32.mrf.mxu0
        %v1515 = vpop.f32.mrf.mxu0
        %v1516 = vadd.f32 0.0, %v1515
        %v1517 = vpop.f32.mrf.mxu0
        %1518 = vmatprep.mubr.bf16.mxu0 0
        %1519 = vmatmul.mubr.bf16.gmra.mxu0 %v1158
        %v1520 = vpop.f32.mrf.mxu0
        %v1521 = vadd.f32 0.0, %v1520
        %v1522 = vpop.f32.mrf.mxu0
        %v1523 = vpop.f32.mrf.mxu0
        %v1524 = vadd.f32 0.0, %v1523
        %v1525 = vpop.f32.mrf.mxu0
        %1526 = vmatprep.mubr.bf16.mxu0 0
        %1527 = vmatmul.mubr.bf16.gmra.mxu0 %v1161
        %v1528 = vpop.f32.mrf.mxu0
        %v1529 = vadd.f32 0.0, %v1528
        %v1530 = vpop.f32.mrf.mxu0
        %v1531 = vpop.f32.mrf.mxu0
        %v1532 = vadd.f32 0.0, %v1531
        %v1533 = vpop.f32.mrf.mxu0
        %1534 = vmatprep.mubr.bf16.mxu0 0
        %1535 = vmatmul.mubr.bf16.gmra.mxu0 %v1164
        %v1536 = vpop.f32.mrf.mxu0
        %v1537 = vadd.f32 0.0, %v1536
        %v1538 = vpop.f32.mrf.mxu0
        %v1539 = vpop.f32.mrf.mxu0
        %v1540 = vadd.f32 0.0, %v1539
        %v1541 = vpop.f32.mrf.mxu0
        %1542 = vmatprep.mubr.bf16.mxu0 0
        %1543 = vmatmul.mubr.bf16.gmra.mxu0 %v1167
        %v1544 = vpop.f32.mrf.mxu0
        %v1545 = vadd.f32 0.0, %v1544
        %v1546 = vpop.f32.mrf.mxu0
        %v1547 = vpop.f32.mrf.mxu0
        %v1548 = vadd.f32 0.0, %v1547
        %v1549 = vpop.f32.mrf.mxu0
        %1550 = vmatprep.mubr.bf16.mxu0 0
        %1551 = vmatmul.mubr.bf16.gmra.mxu0 %v1170
        %v1552 = vpop.f32.mrf.mxu0
        %v1553 = vadd.f32 0.0, %v1552
        %v1554 = vpop.f32.mrf.mxu0
        %v1555 = vpop.f32.mrf.mxu0
        %v1556 = vadd.f32 0.0, %v1555
        %v1557 = vpop.f32.mrf.mxu0
        %1558 = vmatprep.mubr.bf16.mxu0 0
        %1559 = vmatmul.mubr.bf16.gmra.mxu0 %v1173
        %v1560 = vpop.f32.mrf.mxu0
        %v1561 = vadd.f32 0.0, %v1560
        %v1562 = vpop.f32.mrf.mxu0
        %v1563 = vpop.f32.mrf.mxu0
        %v1564 = vadd.f32 0.0, %v1563
        %v1565 = vpop.f32.mrf.mxu0
        %1566 = vmatprep.mubr.bf16.mxu0 0
        %1567 = vmatmul.mubr.bf16.gmra.mxu0 %v1176
        %v1568 = vpop.f32.mrf.mxu0
        %v1569 = vadd.f32 0.0, %v1568
        %v1570 = vpop.f32.mrf.mxu0
        %v1571 = vpop.f32.mrf.mxu0
        %v1572 = vadd.f32 0.0, %v1571
        %v1573 = vpop.f32.mrf.mxu0
        %1574 = vmatprep.mubr.bf16.mxu0 0
        %1575 = vmatmul.mubr.bf16.gmra.mxu0 %v1179
        %v1576 = vpop.f32.mrf.mxu0
        %v1577 = vadd.f32 0.0, %v1576
        %v1578 = vpop.f32.mrf.mxu0
        %v1579 = vpop.f32.mrf.mxu0
        %v1580 = vadd.f32 0.0, %v1579
        %v1581 = vpop.f32.mrf.mxu0
        %1582 = vmatprep.mubr.bf16.mxu0 0
        %1583 = vmatmul.mubr.bf16.gmra.mxu0 %v1182
        %v1584 = vpop.f32.mrf.mxu0
        %v1585 = vadd.f32 0.0, %v1584
        %v1586 = vpop.f32.mrf.mxu0
        %v1587 = vpop.f32.mrf.mxu0
        %v1588 = vadd.f32 0.0, %v1587
        %v1589 = vpop.f32.mrf.mxu0
        %1590 = vmatprep.mubr.bf16.mxu0 0
        %1591 = vmatmul.mubr.bf16.gmra.mxu0 %v1185
        %v1592 = vpop.f32.mrf.mxu0
        %v1593 = vadd.f32 0.0, %v1592
        %v1594 = vpop.f32.mrf.mxu0
        %v1595 = vpop.f32.mrf.mxu0
        %v1596 = vadd.f32 0.0, %v1595
        %v1597 = vpop.f32.mrf.mxu0
        %1598 = vmatprep.mubr.bf16.mxu0 0
        %1599 = vmatmul.mubr.bf16.gmra.mxu0 %v1188
        %v1600 = vpop.f32.mrf.mxu0
        %v1601 = vadd.f32 0.0, %v1600
        %v1602 = vpop.f32.mrf.mxu0
        %v1603 = vpop.f32.mrf.mxu0
        %v1604 = vadd.f32 0.0, %v1603
        %v1605 = vpop.f32.mrf.mxu0
        %1606 = vmatprep.mubr.bf16.mxu0 0
        %1607 = vmatmul.mubr.bf16.gmra.mxu0 %v1191
        %v1608 = vpop.f32.mrf.mxu0
        %v1609 = vadd.f32 0.0, %v1608
        %v1610 = vpop.f32.mrf.mxu0
        %v1611 = vpop.f32.mrf.mxu0
        %v1612 = vadd.f32 0.0, %v1611
        %v1613 = vpop.f32.mrf.mxu0
        %1614 = vmatprep.mubr.bf16.mxu0 0
        %1615 = vmatmul.mubr.bf16.gmra.mxu0 %v1194
        %v1616 = vpop.f32.mrf.mxu0
        %v1617 = vadd.f32 0.0, %v1616
        %v1618 = vpop.f32.mrf.mxu0
        %v1619 = vpop.f32.mrf.mxu0
        %v1620 = vadd.f32 0.0, %v1619
        %v1621 = vpop.f32.mrf.mxu0
        %1622 = vmatprep.mubr.bf16.mxu0 0
        %1623 = vmatmul.mubr.bf16.gmra.mxu0 %v1197
        %v1624 = vpop.f32.mrf.mxu0
        %v1625 = vadd.f32 0.0, %v1624
        %v1626 = vpop.f32.mrf.mxu0
        %v1627 = vpop.f32.mrf.mxu0
        %v1628 = vadd.f32 0.0, %v1627
        %v1629 = vpop.f32.mrf.mxu0
        %1630 = vmatprep.mubr.bf16.mxu0 0
        %1631 = vmatmul.mubr.bf16.gmra.mxu0 %v1200
        %v1632 = vpop.f32.mrf.mxu0
        %v1633 = vadd.f32 0.0, %v1632
        %v1634 = vpop.f32.mrf.mxu0
        %v1635 = vpop.f32.mrf.mxu0
        %v1636 = vadd.f32 0.0, %v1635
        %v1637 = vpop.f32.mrf.mxu0
        %1638 = vmatprep.mubr.bf16.mxu0 0
        %1639 = vmatmul.mubr.bf16.gmra.mxu0 %v1203
        %v1640 = vpop.f32.mrf.mxu0
        %v1641 = vadd.f32 0.0, %v1640
        %v1642 = vpop.f32.mrf.mxu0
        %v1643 = vpop.f32.mrf.mxu0
        %v1644 = vadd.f32 0.0, %v1643
        %v1645 = vpop.f32.mrf.mxu0
        %1646 = vmatprep.mubr.bf16.mxu0 0
        %1647 = vmatmul.mubr.bf16.gmra.mxu0 %v1206
        %v1648 = vpop.f32.mrf.mxu0
        %v1649 = vadd.f32 0.0, %v1648
        %v1650 = vpop.f32.mrf.mxu0
        %v1651 = vpop.f32.mrf.mxu0
        %v1652 = vadd.f32 0.0, %v1651
        %v1653 = vpop.f32.mrf.mxu0
        %1654 = vmatprep.mubr.bf16.mxu0 0
        %1655 = vmatmul.mubr.bf16.gmra.mxu0 %v1209
        %v1656 = vpop.f32.mrf.mxu0
        %v1657 = vadd.f32 0.0, %v1656
        %v1658 = vpop.f32.mrf.mxu0
        %v1659 = vpop.f32.mrf.mxu0
        %v1660 = vadd.f32 0.0, %v1659
        %v1661 = vpop.f32.mrf.mxu0
        %1662 = vmatprep.mubr.bf16.mxu0 0
        %1663 = vmatmul.mubr.bf16.gmra.mxu0 %v1212
        %v1664 = vpop.f32.mrf.mxu0
        %v1665 = vadd.f32 0.0, %v1664
        %v1666 = vpop.f32.mrf.mxu0
        %v1667 = vpop.f32.mrf.mxu0
        %v1668 = vadd.f32 0.0, %v1667
        %v1669 = vpop.f32.mrf.mxu0
        %1670 = vmatprep.mubr.bf16.mxu0 0
        %1671 = vmatmul.mubr.bf16.gmra.mxu0 %v1215
        %v1672 = vpop.f32.mrf.mxu0
        %v1673 = vadd.f32 0.0, %v1672
        %v1674 = vpop.f32.mrf.mxu0
        %v1675 = vpop.f32.mrf.mxu0
        %v1676 = vadd.f32 0.0, %v1675
        %v1677 = vpop.f32.mrf.mxu0
        %1678 = vmatprep.mubr.bf16.mxu0 0
        %1679 = vmatmul.mubr.bf16.gmra.mxu0 %v1218
        %v1680 = vpop.f32.mrf.mxu0
        %v1681 = vadd.f32 0.0, %v1680
        %v1682 = vpop.f32.mrf.mxu0
        %v1683 = vpop.f32.mrf.mxu0
        %v1684 = vadd.f32 0.0, %v1683
        %v1685 = vpop.f32.mrf.mxu0
        %1686 = vmatprep.mubr.bf16.mxu0 0
        %1687 = vmatmul.mubr.bf16.gmra.mxu0 %v1221
        %v1688 = vpop.f32.mrf.mxu0
        %v1689 = vadd.f32 0.0, %v1688
        %v1690 = vpop.f32.mrf.mxu0
        %v1691 = vpop.f32.mrf.mxu0
        %v1692 = vadd.f32 0.0, %v1691
        %v1693 = vpop.f32.mrf.mxu0
        %1694 = vmatprep.mubr.bf16.mxu0 0
        %1695 = vmatmul.mubr.bf16.gmra.mxu0 %v1224
        %v1696 = vpop.f32.mrf.mxu0
        %v1697 = vadd.f32 0.0, %v1696
        %v1698 = vpop.f32.mrf.mxu0
        %v1699 = vpop.f32.mrf.mxu0
        %v1700 = vadd.f32 0.0, %v1699
        %v1701 = vpop.f32.mrf.mxu0
        %1702 = vmatprep.mubr.bf16.mxu0 0
        %1703 = vmatmul.mubr.bf16.gmra.mxu0 %v1227
        %v1704 = vpop.f32.mrf.mxu0
        %v1705 = vadd.f32 0.0, %v1704
        %v1706 = vpop.f32.mrf.mxu0
        %v1707 = vpop.f32.mrf.mxu0
        %v1708 = vadd.f32 0.0, %v1707
        %v1709 = vpop.f32.mrf.mxu0
        %1710 = vmatprep.mubr.bf16.mxu0 0
        %1711 = vmatmul.mubr.bf16.gmra.mxu0 %v1230
        %v1712 = vpop.f32.mrf.mxu0
        %v1713 = vadd.f32 0.0, %v1712
        %v1714 = vpop.f32.mrf.mxu0
        %v1715 = vpop.f32.mrf.mxu0
        %v1716 = vadd.f32 0.0, %v1715
        %v1717 = vpop.f32.mrf.mxu0
        %1718 = vmatprep.mubr.bf16.mxu0 0
        %1719 = vmatmul.mubr.bf16.gmra.mxu0 %v1233
        %v1720 = vpop.f32.mrf.mxu0
        %v1721 = vadd.f32 0.0, %v1720
        %v1722 = vpop.f32.mrf.mxu0
        %v1723 = vpop.f32.mrf.mxu0
        %v1724 = vadd.f32 0.0, %v1723
        %v1725 = vpop.f32.mrf.mxu0
        %1726 = vmatprep.mubr.bf16.mxu0 0
        %1727 = vmatmul.mubr.bf16.gmra.mxu0 %v1236
        %v1728 = vpop.f32.mrf.mxu0
        %v1729 = vadd.f32 0.0, %v1728
        %v1730 = vpop.f32.mrf.mxu0
        %v1731 = vpop.f32.mrf.mxu0
        %v1732 = vpop.f32.mrf.mxu0
        %1733 = vdwg.mxu0
        %v1734 = vpack.c.b16 %v527, %v527
        %v1739 = vunpack.c.l.b16 %v288
        %v1740 = vunpack.c.l.b16 %v289
        %v1741 = vunpack.c.l.b16 %v290
        %v1742 = vunpack.c.l.b16 %v291
        %v1743 = vpack.c.b16 %v1740, %v1739
        %v1744 = vpack.c.b16 %v1742, %v1741
        %v1747 = vsel %vm1063, %v529, 0
        %v1749 = vsel %vm1063, %v530, 0
        %v1751 = vsel %vm1063, %v531, 0
        %v1753 = vsel %vm1063, %v532, 0
        %v1755 = vsel %vm1063, %v533, 0
        %v1757 = vsel %vm1063, %v534, 0
        %v1759 = vsel %vm1063, %v535, 0
        %v1761 = vsel %vm1063, %v536, 0
        %v1763 = vsel %vm1063, %v537, 0
        %v1765 = vsel %vm1063, %v538, 0
        %v1767 = vsel %vm1063, %v539, 0
        %v1769 = vsel %vm1063, %v540, 0
        %v1771 = vsel %vm1063, %v541, 0
        %v1773 = vsel %vm1063, %v542, 0
        %v1775 = vsel %vm1063, %v543, 0
        %v1777 = vsel %vm1063, %v544, 0
        %v1779 = vsel %vm1063, %v545, 0
        %v1781 = vsel %vm1063, %v546, 0
        %v1783 = vsel %vm1063, %v547, 0
        %v1785 = vsel %vm1063, %v548, 0
        %v1787 = vsel %vm1063, %v549, 0
        %v1789 = vsel %vm1063, %v550, 0
        %v1791 = vsel %vm1063, %v551, 0
        %v1793 = vsel %vm1063, %v552, 0
        %v1795 = vsel %vm1063, %v553, 0
        %v1797 = vsel %vm1063, %v554, 0
        %v1799 = vsel %vm1063, %v555, 0
        %v1801 = vsel %vm1063, %v556, 0
        %v1803 = vsel %vm1063, %v557, 0
        %v1805 = vsel %vm1063, %v558, 0
        %v1807 = vsel %vm1063, %v559, 0
        %v1809 = vsel %vm1063, %v560, 0
        %v1811 = vsel %vm1063, %v561, 0
        %v1813 = vsel %vm1063, %v562, 0
        %v1815 = vsel %vm1063, %v563, 0
        %v1817 = vsel %vm1063, %v564, 0
        %v1819 = vsel %vm1063, %v565, 0
        %v1821 = vsel %vm1063, %v566, 0
        %v1823 = vsel %vm1063, %v567, 0
        %v1825 = vsel %vm1063, %v568, 0
        %v1827 = vsel %vm1063, %v569, 0
        %v1829 = vsel %vm1063, %v570, 0
        %v1831 = vsel %vm1063, %v571, 0
        %v1833 = vsel %vm1063, %v572, 0
        %v1835 = vsel %vm1063, %v573, 0
        %v1837 = vsel %vm1063, %v574, 0
        %v1839 = vsel %vm1063, %v575, 0
        %v1841 = vsel %vm1063, %v576, 0
        %v1843 = vsel %vm1063, %v577, 0
        %v1845 = vsel %vm1063, %v578, 0
        %v1847 = vsel %vm1063, %v579, 0
        %v1849 = vsel %vm1063, %v580, 0
        %v1851 = vsel %vm1063, %v581, 0
        %v1853 = vsel %vm1063, %v582, 0
        %v1855 = vsel %vm1063, %v583, 0
        %v1857 = vsel %vm1063, %v584, 0
        %v1859 = vsel %vm1063, %v585, 0
        %v1862 = vsel %vm1063, %v1734, 0
        %1864 = vmatprep.subr.bf16.mxu0 0
        %1865 = vmatpush1.bf16.msra.mxu0 0
        %1866 = vmatprep.subr.bf16.mxu0 0
        %1867 = vmatpush1.bf16.msra.mxu0 0
        %1868 = vmatprep.subr.bf16.mxu0 0
        %1869 = vmatpush1.bf16.msra.mxu0 0
        %1870 = vmatprep.subr.bf16.mxu0 0
        %1871 = vmatpush1.bf16.msra.mxu0 0
        %1872 = vmatprep.subr.bf16.mxu0 0
        %1873 = vmatpush1.bf16.msra.mxu0 0
        %1874 = vmatprep.subr.bf16.mxu0 0
        %1875 = vmatpush1.bf16.msra.mxu0 0
        %1876 = vmatprep.subr.bf16.mxu0 0
        %1877 = vmatpush1.bf16.msra.mxu0 %v1744
        %1878 = vmatprep.subr.bf16.mxu0 0
        %1879 = vmatpush1.bf16.msra.mxu0 %v1743
        %1880 = vmatprep.subr.bf16.mxu0 0
        %1881 = vmatpush2.bf16.msra.mxu0 0
        %1882 = vmatprep.subr.bf16.mxu0 0
        %1883 = vmatpush2.bf16.msra.mxu0 0
        %1884 = vmatprep.subr.bf16.mxu0 0
        %1885 = vmatpush2.bf16.msra.mxu0 0
        %1886 = vmatprep.subr.bf16.mxu0 0
        %1887 = vmatpush2.bf16.msra.mxu0 0
        %1888 = vmatprep.subr.bf16.mxu0 0
        %1889 = vmatpush2.bf16.msra.mxu0 0
        %1890 = vmatprep.subr.bf16.mxu0 0
        %1891 = vmatpush2.bf16.msra.mxu0 0
        %1892 = vmatprep.subr.bf16.mxu0 0
        %1893 = vmatpush2.bf16.msra.mxu0 0
        %1894 = vmatprep.subr.bf16.mxu0 0
        %1895 = vmatpush2.bf16.msra.mxu0 0
        %1896 = vmatprep.mubr.bf16.mxu0 0
        %1897 = vmatmul.mubr.bf16.gmra.mxu0 %v1747
        %v1898 = vpop.f32.mrf.mxu0
        %v1899 = vadd.f32 %v1273, %v1898
        %v1900 = vpop.f32.mrf.mxu0
        %v1901 = vpop.f32.mrf.mxu0
        %v1902 = vadd.f32 %v1276, %v1901
        %v1903 = vpop.f32.mrf.mxu0
        %1904 = vmatprep.mubr.bf16.mxu0 0
        %1905 = vmatmul.mubr.bf16.gmra.mxu0 %v1749
        %v1906 = vpop.f32.mrf.mxu0
        %v1907 = vadd.f32 %v1281, %v1906
        %v1908 = vpop.f32.mrf.mxu0
        %v1909 = vpop.f32.mrf.mxu0
        %v1910 = vadd.f32 %v1284, %v1909
        %v1911 = vpop.f32.mrf.mxu0
        %1912 = vmatprep.mubr.bf16.mxu0 0
        %1913 = vmatmul.mubr.bf16.gmra.mxu0 %v1751
        %v1914 = vpop.f32.mrf.mxu0
        %v1915 = vadd.f32 %v1289, %v1914
        %v1916 = vpop.f32.mrf.mxu0
        %v1917 = vpop.f32.mrf.mxu0
        %v1918 = vadd.f32 %v1292, %v1917
        %v1919 = vpop.f32.mrf.mxu0
        %1920 = vmatprep.mubr.bf16.mxu0 0
        %1921 = vmatmul.mubr.bf16.gmra.mxu0 %v1753
        %v1922 = vpop.f32.mrf.mxu0
        %v1923 = vadd.f32 %v1297, %v1922
        %v1924 = vpop.f32.mrf.mxu0
        %v1925 = vpop.f32.mrf.mxu0
        %v1926 = vadd.f32 %v1300, %v1925
        %v1927 = vpop.f32.mrf.mxu0
        %1928 = vmatprep.mubr.bf16.mxu0 0
        %1929 = vmatmul.mubr.bf16.gmra.mxu0 %v1755
        %v1930 = vpop.f32.mrf.mxu0
        %v1931 = vadd.f32 %v1305, %v1930
        %v1932 = vpop.f32.mrf.mxu0
        %v1933 = vpop.f32.mrf.mxu0
        %v1934 = vadd.f32 %v1308, %v1933
        %v1935 = vpop.f32.mrf.mxu0
        %1936 = vmatprep.mubr.bf16.mxu0 0
        %1937 = vmatmul.mubr.bf16.gmra.mxu0 %v1757
        %v1938 = vpop.f32.mrf.mxu0
        %v1939 = vadd.f32 %v1313, %v1938
        %v1940 = vpop.f32.mrf.mxu0
        %v1941 = vpop.f32.mrf.mxu0
        %v1942 = vadd.f32 %v1316, %v1941
        %v1943 = vpop.f32.mrf.mxu0
        %1944 = vmatprep.mubr.bf16.mxu0 0
        %1945 = vmatmul.mubr.bf16.gmra.mxu0 %v1759
        %v1946 = vpop.f32.mrf.mxu0
        %v1947 = vadd.f32 %v1321, %v1946
        %v1948 = vpop.f32.mrf.mxu0
        %v1949 = vpop.f32.mrf.mxu0
        %v1950 = vadd.f32 %v1324, %v1949
        %v1951 = vpop.f32.mrf.mxu0
        %1952 = vmatprep.mubr.bf16.mxu0 0
        %1953 = vmatmul.mubr.bf16.gmra.mxu0 %v1761
        %v1954 = vpop.f32.mrf.mxu0
        %v1955 = vadd.f32 %v1329, %v1954
        %v1956 = vpop.f32.mrf.mxu0
        %v1957 = vpop.f32.mrf.mxu0
        %v1958 = vadd.f32 %v1332, %v1957
        %v1959 = vpop.f32.mrf.mxu0
        %1960 = vmatprep.mubr.bf16.mxu0 0
        %1961 = vmatmul.mubr.bf16.gmra.mxu0 %v1763
        %v1962 = vpop.f32.mrf.mxu0
        %v1963 = vadd.f32 %v1337, %v1962
        %v1964 = vpop.f32.mrf.mxu0
        %v1965 = vpop.f32.mrf.mxu0
        %v1966 = vadd.f32 %v1340, %v1965
        %v1967 = vpop.f32.mrf.mxu0
        %1968 = vmatprep.mubr.bf16.mxu0 0
        %1969 = vmatmul.mubr.bf16.gmra.mxu0 %v1765
        %v1970 = vpop.f32.mrf.mxu0
        %v1971 = vadd.f32 %v1345, %v1970
        %v1972 = vpop.f32.mrf.mxu0
        %v1973 = vpop.f32.mrf.mxu0
        %v1974 = vadd.f32 %v1348, %v1973
        %v1975 = vpop.f32.mrf.mxu0
        %1976 = vmatprep.mubr.bf16.mxu0 0
        %1977 = vmatmul.mubr.bf16.gmra.mxu0 %v1767
        %v1978 = vpop.f32.mrf.mxu0
        %v1979 = vadd.f32 %v1353, %v1978
        %v1980 = vpop.f32.mrf.mxu0
        %v1981 = vpop.f32.mrf.mxu0
        %v1982 = vadd.f32 %v1356, %v1981
        %v1983 = vpop.f32.mrf.mxu0
        %1984 = vmatprep.mubr.bf16.mxu0 0
        %1985 = vmatmul.mubr.bf16.gmra.mxu0 %v1769
        %v1986 = vpop.f32.mrf.mxu0
        %v1987 = vadd.f32 %v1361, %v1986
        %v1988 = vpop.f32.mrf.mxu0
        %v1989 = vpop.f32.mrf.mxu0
        %v1990 = vadd.f32 %v1364, %v1989
        %v1991 = vpop.f32.mrf.mxu0
        %1992 = vmatprep.mubr.bf16.mxu0 0
        %1993 = vmatmul.mubr.bf16.gmra.mxu0 %v1771
        %v1994 = vpop.f32.mrf.mxu0
        %v1995 = vadd.f32 %v1369, %v1994
        %v1996 = vpop.f32.mrf.mxu0
        %v1997 = vpop.f32.mrf.mxu0
        %v1998 = vadd.f32 %v1372, %v1997
        %v1999 = vpop.f32.mrf.mxu0
        %2000 = vmatprep.mubr.bf16.mxu0 0
        %2001 = vmatmul.mubr.bf16.gmra.mxu0 %v1773
        %v2002 = vpop.f32.mrf.mxu0
        %v2003 = vadd.f32 %v1377, %v2002
        %v2004 = vpop.f32.mrf.mxu0
        %v2005 = vpop.f32.mrf.mxu0
        %v2006 = vadd.f32 %v1380, %v2005
        %v2007 = vpop.f32.mrf.mxu0
        %2008 = vmatprep.mubr.bf16.mxu0 0
        %2009 = vmatmul.mubr.bf16.gmra.mxu0 %v1775
        %v2010 = vpop.f32.mrf.mxu0
        %v2011 = vadd.f32 %v1385, %v2010
        %v2012 = vpop.f32.mrf.mxu0
        %v2013 = vpop.f32.mrf.mxu0
        %v2014 = vadd.f32 %v1388, %v2013
        %v2015 = vpop.f32.mrf.mxu0
        %2016 = vmatprep.mubr.bf16.mxu0 0
        %2017 = vmatmul.mubr.bf16.gmra.mxu0 %v1777
        %v2018 = vpop.f32.mrf.mxu0
        %v2019 = vadd.f32 %v1393, %v2018
        %v2020 = vpop.f32.mrf.mxu0
        %v2021 = vpop.f32.mrf.mxu0
        %v2022 = vadd.f32 %v1396, %v2021
        %v2023 = vpop.f32.mrf.mxu0
        %2024 = vmatprep.mubr.bf16.mxu0 0
        %2025 = vmatmul.mubr.bf16.gmra.mxu0 %v1779
        %v2026 = vpop.f32.mrf.mxu0
        %v2027 = vadd.f32 %v1401, %v2026
        %v2028 = vpop.f32.mrf.mxu0
        %v2029 = vpop.f32.mrf.mxu0
        %v2030 = vadd.f32 %v1404, %v2029
        %v2031 = vpop.f32.mrf.mxu0
        %2032 = vmatprep.mubr.bf16.mxu0 0
        %2033 = vmatmul.mubr.bf16.gmra.mxu0 %v1781
        %v2034 = vpop.f32.mrf.mxu0
        %v2035 = vadd.f32 %v1409, %v2034
        %v2036 = vpop.f32.mrf.mxu0
        %v2037 = vpop.f32.mrf.mxu0
        %v2038 = vadd.f32 %v1412, %v2037
        %v2039 = vpop.f32.mrf.mxu0
        %2040 = vmatprep.mubr.bf16.mxu0 0
        %2041 = vmatmul.mubr.bf16.gmra.mxu0 %v1783
        %v2042 = vpop.f32.mrf.mxu0
        %v2043 = vadd.f32 %v1417, %v2042
        %v2044 = vpop.f32.mrf.mxu0
        %v2045 = vpop.f32.mrf.mxu0
        %v2046 = vadd.f32 %v1420, %v2045
        %v2047 = vpop.f32.mrf.mxu0
        %2048 = vmatprep.mubr.bf16.mxu0 0
        %2049 = vmatmul.mubr.bf16.gmra.mxu0 %v1785
        %v2050 = vpop.f32.mrf.mxu0
        %v2051 = vadd.f32 %v1425, %v2050
        %v2052 = vpop.f32.mrf.mxu0
        %v2053 = vpop.f32.mrf.mxu0
        %v2054 = vadd.f32 %v1428, %v2053
        %v2055 = vpop.f32.mrf.mxu0
        %2056 = vmatprep.mubr.bf16.mxu0 0
        %2057 = vmatmul.mubr.bf16.gmra.mxu0 %v1787
        %v2058 = vpop.f32.mrf.mxu0
        %v2059 = vadd.f32 %v1433, %v2058
        %v2060 = vpop.f32.mrf.mxu0
        %v2061 = vpop.f32.mrf.mxu0
        %v2062 = vadd.f32 %v1436, %v2061
        %v2063 = vpop.f32.mrf.mxu0
        %2064 = vmatprep.mubr.bf16.mxu0 0
        %2065 = vmatmul.mubr.bf16.gmra.mxu0 %v1789
        %v2066 = vpop.f32.mrf.mxu0
        %v2067 = vadd.f32 %v1441, %v2066
        %v2068 = vpop.f32.mrf.mxu0
        %v2069 = vpop.f32.mrf.mxu0
        %v2070 = vadd.f32 %v1444, %v2069
        %v2071 = vpop.f32.mrf.mxu0
        %2072 = vmatprep.mubr.bf16.mxu0 0
        %2073 = vmatmul.mubr.bf16.gmra.mxu0 %v1791
        %v2074 = vpop.f32.mrf.mxu0
        %v2075 = vadd.f32 %v1449, %v2074
        %v2076 = vpop.f32.mrf.mxu0
        %v2077 = vpop.f32.mrf.mxu0
        %v2078 = vadd.f32 %v1452, %v2077
        %v2079 = vpop.f32.mrf.mxu0
        %2080 = vmatprep.mubr.bf16.mxu0 0
        %2081 = vmatmul.mubr.bf16.gmra.mxu0 %v1793
        %v2082 = vpop.f32.mrf.mxu0
        %v2083 = vadd.f32 %v1457, %v2082
        %v2084 = vpop.f32.mrf.mxu0
        %v2085 = vpop.f32.mrf.mxu0
        %v2086 = vadd.f32 %v1460, %v2085
        %v2087 = vpop.f32.mrf.mxu0
        %2088 = vmatprep.mubr.bf16.mxu0 0
        %2089 = vmatmul.mubr.bf16.gmra.mxu0 %v1795
        %v2090 = vpop.f32.mrf.mxu0
        %v2091 = vadd.f32 %v1465, %v2090
        %v2092 = vpop.f32.mrf.mxu0
        %v2093 = vpop.f32.mrf.mxu0
        %v2094 = vadd.f32 %v1468, %v2093
        %v2095 = vpop.f32.mrf.mxu0
        %2096 = vmatprep.mubr.bf16.mxu0 0
        %2097 = vmatmul.mubr.bf16.gmra.mxu0 %v1797
        %v2098 = vpop.f32.mrf.mxu0
        %v2099 = vadd.f32 %v1473, %v2098
        %v2100 = vpop.f32.mrf.mxu0
        %v2101 = vpop.f32.mrf.mxu0
        %v2102 = vadd.f32 %v1476, %v2101
        %v2103 = vpop.f32.mrf.mxu0
        %2104 = vmatprep.mubr.bf16.mxu0 0
        %2105 = vmatmul.mubr.bf16.gmra.mxu0 %v1799
        %v2106 = vpop.f32.mrf.mxu0
        %v2107 = vadd.f32 %v1481, %v2106
        %v2108 = vpop.f32.mrf.mxu0
        %v2109 = vpop.f32.mrf.mxu0
        %v2110 = vadd.f32 %v1484, %v2109
        %v2111 = vpop.f32.mrf.mxu0
        %2112 = vmatprep.mubr.bf16.mxu0 0
        %2113 = vmatmul.mubr.bf16.gmra.mxu0 %v1801
        %v2114 = vpop.f32.mrf.mxu0
        %v2115 = vadd.f32 %v1489, %v2114
        %v2116 = vpop.f32.mrf.mxu0
        %v2117 = vpop.f32.mrf.mxu0
        %v2118 = vadd.f32 %v1492, %v2117
        %v2119 = vpop.f32.mrf.mxu0
        %2120 = vmatprep.mubr.bf16.mxu0 0
        %2121 = vmatmul.mubr.bf16.gmra.mxu0 %v1803
        %v2122 = vpop.f32.mrf.mxu0
        %v2123 = vadd.f32 %v1497, %v2122
        %v2124 = vpop.f32.mrf.mxu0
        %v2125 = vpop.f32.mrf.mxu0
        %v2126 = vadd.f32 %v1500, %v2125
        %v2127 = vpop.f32.mrf.mxu0
        %2128 = vmatprep.mubr.bf16.mxu0 0
        %2129 = vmatmul.mubr.bf16.gmra.mxu0 %v1805
        %v2130 = vpop.f32.mrf.mxu0
        %v2131 = vadd.f32 %v1505, %v2130
        %v2132 = vpop.f32.mrf.mxu0
        %v2133 = vpop.f32.mrf.mxu0
        %v2134 = vadd.f32 %v1508, %v2133
        %v2135 = vpop.f32.mrf.mxu0
        %2136 = vmatprep.mubr.bf16.mxu0 0
        %2137 = vmatmul.mubr.bf16.gmra.mxu0 %v1807
        %v2138 = vpop.f32.mrf.mxu0
        %v2139 = vadd.f32 %v1513, %v2138
        %v2140 = vpop.f32.mrf.mxu0
        %v2141 = vpop.f32.mrf.mxu0
        %v2142 = vadd.f32 %v1516, %v2141
        %v2143 = vpop.f32.mrf.mxu0
        %2144 = vmatprep.mubr.bf16.mxu0 0
        %2145 = vmatmul.mubr.bf16.gmra.mxu0 %v1809
        %v2146 = vpop.f32.mrf.mxu0
        %v2147 = vadd.f32 %v1521, %v2146
        %v2148 = vpop.f32.mrf.mxu0
        %v2149 = vpop.f32.mrf.mxu0
        %v2150 = vadd.f32 %v1524, %v2149
        %v2151 = vpop.f32.mrf.mxu0
        %2152 = vmatprep.mubr.bf16.mxu0 0
        %2153 = vmatmul.mubr.bf16.gmra.mxu0 %v1811
        %v2154 = vpop.f32.mrf.mxu0
        %v2155 = vadd.f32 %v1529, %v2154
        %v2156 = vpop.f32.mrf.mxu0
        %v2157 = vpop.f32.mrf.mxu0
        %v2158 = vadd.f32 %v1532, %v2157
        %v2159 = vpop.f32.mrf.mxu0
        %2160 = vmatprep.mubr.bf16.mxu0 0
        %2161 = vmatmul.mubr.bf16.gmra.mxu0 %v1813
        %v2162 = vpop.f32.mrf.mxu0
        %v2163 = vadd.f32 %v1537, %v2162
        %v2164 = vpop.f32.mrf.mxu0
        %v2165 = vpop.f32.mrf.mxu0
        %v2166 = vadd.f32 %v1540, %v2165
        %v2167 = vpop.f32.mrf.mxu0
        %2168 = vmatprep.mubr.bf16.mxu0 0
        %2169 = vmatmul.mubr.bf16.gmra.mxu0 %v1815
        %v2170 = vpop.f32.mrf.mxu0
        %v2171 = vadd.f32 %v1545, %v2170
        %v2172 = vpop.f32.mrf.mxu0
        %v2173 = vpop.f32.mrf.mxu0
        %v2174 = vadd.f32 %v1548, %v2173
        %v2175 = vpop.f32.mrf.mxu0
        %2176 = vmatprep.mubr.bf16.mxu0 0
        %2177 = vmatmul.mubr.bf16.gmra.mxu0 %v1817
        %v2178 = vpop.f32.mrf.mxu0
        %v2179 = vadd.f32 %v1553, %v2178
        %v2180 = vpop.f32.mrf.mxu0
        %v2181 = vpop.f32.mrf.mxu0
        %v2182 = vadd.f32 %v1556, %v2181
        %v2183 = vpop.f32.mrf.mxu0
        %2184 = vmatprep.mubr.bf16.mxu0 0
        %2185 = vmatmul.mubr.bf16.gmra.mxu0 %v1819
        %v2186 = vpop.f32.mrf.mxu0
        %v2187 = vadd.f32 %v1561, %v2186
        %v2188 = vpop.f32.mrf.mxu0
        %v2189 = vpop.f32.mrf.mxu0
        %v2190 = vadd.f32 %v1564, %v2189
        %v2191 = vpop.f32.mrf.mxu0
        %2192 = vmatprep.mubr.bf16.mxu0 0
        %2193 = vmatmul.mubr.bf16.gmra.mxu0 %v1821
        %v2194 = vpop.f32.mrf.mxu0
        %v2195 = vadd.f32 %v1569, %v2194
        %v2196 = vpop.f32.mrf.mxu0
        %v2197 = vpop.f32.mrf.mxu0
        %v2198 = vadd.f32 %v1572, %v2197
        %v2199 = vpop.f32.mrf.mxu0
        %2200 = vmatprep.mubr.bf16.mxu0 0
        %2201 = vmatmul.mubr.bf16.gmra.mxu0 %v1823
        %v2202 = vpop.f32.mrf.mxu0
        %v2203 = vadd.f32 %v1577, %v2202
        %v2204 = vpop.f32.mrf.mxu0
        %v2205 = vpop.f32.mrf.mxu0
        %v2206 = vadd.f32 %v1580, %v2205
        %v2207 = vpop.f32.mrf.mxu0
        %2208 = vmatprep.mubr.bf16.mxu0 0
        %2209 = vmatmul.mubr.bf16.gmra.mxu0 %v1825
        %v2210 = vpop.f32.mrf.mxu0
        %v2211 = vadd.f32 %v1585, %v2210
        %v2212 = vpop.f32.mrf.mxu0
        %v2213 = vpop.f32.mrf.mxu0
        %v2214 = vadd.f32 %v1588, %v2213
        %v2215 = vpop.f32.mrf.mxu0
        %2216 = vmatprep.mubr.bf16.mxu0 0
        %2217 = vmatmul.mubr.bf16.gmra.mxu0 %v1827
        %v2218 = vpop.f32.mrf.mxu0
        %v2219 = vadd.f32 %v1593, %v2218
        %v2220 = vpop.f32.mrf.mxu0
        %v2221 = vpop.f32.mrf.mxu0
        %v2222 = vadd.f32 %v1596, %v2221
        %v2223 = vpop.f32.mrf.mxu0
        %2224 = vmatprep.mubr.bf16.mxu0 0
        %2225 = vmatmul.mubr.bf16.gmra.mxu0 %v1829
        %v2226 = vpop.f32.mrf.mxu0
        %v2227 = vadd.f32 %v1601, %v2226
        %v2228 = vpop.f32.mrf.mxu0
        %v2229 = vpop.f32.mrf.mxu0
        %v2230 = vadd.f32 %v1604, %v2229
        %v2231 = vpop.f32.mrf.mxu0
        %2232 = vmatprep.mubr.bf16.mxu0 0
        %2233 = vmatmul.mubr.bf16.gmra.mxu0 %v1831
        %v2234 = vpop.f32.mrf.mxu0
        %v2235 = vadd.f32 %v1609, %v2234
        %v2236 = vpop.f32.mrf.mxu0
        %v2237 = vpop.f32.mrf.mxu0
        %v2238 = vadd.f32 %v1612, %v2237
        %v2239 = vpop.f32.mrf.mxu0
        %2240 = vmatprep.mubr.bf16.mxu0 0
        %2241 = vmatmul.mubr.bf16.gmra.mxu0 %v1833
        %v2242 = vpop.f32.mrf.mxu0
        %v2243 = vadd.f32 %v1617, %v2242
        %v2244 = vpop.f32.mrf.mxu0
        %v2245 = vpop.f32.mrf.mxu0
        %v2246 = vadd.f32 %v1620, %v2245
        %v2247 = vpop.f32.mrf.mxu0
        %2248 = vmatprep.mubr.bf16.mxu0 0
        %2249 = vmatmul.mubr.bf16.gmra.mxu0 %v1835
        %v2250 = vpop.f32.mrf.mxu0
        %v2251 = vadd.f32 %v1625, %v2250
        %v2252 = vpop.f32.mrf.mxu0
        %v2253 = vpop.f32.mrf.mxu0
        %v2254 = vadd.f32 %v1628, %v2253
        %v2255 = vpop.f32.mrf.mxu0
        %2256 = vmatprep.mubr.bf16.mxu0 0
        %2257 = vmatmul.mubr.bf16.gmra.mxu0 %v1837
        %v2258 = vpop.f32.mrf.mxu0
        %v2259 = vadd.f32 %v1633, %v2258
        %v2260 = vpop.f32.mrf.mxu0
        %v2261 = vpop.f32.mrf.mxu0
        %v2262 = vadd.f32 %v1636, %v2261
        %v2263 = vpop.f32.mrf.mxu0
        %2264 = vmatprep.mubr.bf16.mxu0 0
        %2265 = vmatmul.mubr.bf16.gmra.mxu0 %v1839
        %v2266 = vpop.f32.mrf.mxu0
        %v2267 = vadd.f32 %v1641, %v2266
        %v2268 = vpop.f32.mrf.mxu0
        %v2269 = vpop.f32.mrf.mxu0
        %v2270 = vadd.f32 %v1644, %v2269
        %v2271 = vpop.f32.mrf.mxu0
        %2272 = vmatprep.mubr.bf16.mxu0 0
        %2273 = vmatmul.mubr.bf16.gmra.mxu0 %v1841
        %v2274 = vpop.f32.mrf.mxu0
        %v2275 = vadd.f32 %v1649, %v2274
        %v2276 = vpop.f32.mrf.mxu0
        %v2277 = vpop.f32.mrf.mxu0
        %v2278 = vadd.f32 %v1652, %v2277
        %v2279 = vpop.f32.mrf.mxu0
        %2280 = vmatprep.mubr.bf16.mxu0 0
        %2281 = vmatmul.mubr.bf16.gmra.mxu0 %v1843
        %v2282 = vpop.f32.mrf.mxu0
        %v2283 = vadd.f32 %v1657, %v2282
        %v2284 = vpop.f32.mrf.mxu0
        %v2285 = vpop.f32.mrf.mxu0
        %v2286 = vadd.f32 %v1660, %v2285
        %v2287 = vpop.f32.mrf.mxu0
        %2288 = vmatprep.mubr.bf16.mxu0 0
        %2289 = vmatmul.mubr.bf16.gmra.mxu0 %v1845
        %v2290 = vpop.f32.mrf.mxu0
        %v2291 = vadd.f32 %v1665, %v2290
        %v2292 = vpop.f32.mrf.mxu0
        %v2293 = vpop.f32.mrf.mxu0
        %v2294 = vadd.f32 %v1668, %v2293
        %v2295 = vpop.f32.mrf.mxu0
        %2296 = vmatprep.mubr.bf16.mxu0 0
        %2297 = vmatmul.mubr.bf16.gmra.mxu0 %v1847
        %v2298 = vpop.f32.mrf.mxu0
        %v2299 = vadd.f32 %v1673, %v2298
        %v2300 = vpop.f32.mrf.mxu0
        %v2301 = vpop.f32.mrf.mxu0
        %v2302 = vadd.f32 %v1676, %v2301
        %v2303 = vpop.f32.mrf.mxu0
        %2304 = vmatprep.mubr.bf16.mxu0 0
        %2305 = vmatmul.mubr.bf16.gmra.mxu0 %v1849
        %v2306 = vpop.f32.mrf.mxu0
        %v2307 = vadd.f32 %v1681, %v2306
        %v2308 = vpop.f32.mrf.mxu0
        %v2309 = vpop.f32.mrf.mxu0
        %v2310 = vadd.f32 %v1684, %v2309
        %v2311 = vpop.f32.mrf.mxu0
        %2312 = vmatprep.mubr.bf16.mxu0 0
        %2313 = vmatmul.mubr.bf16.gmra.mxu0 %v1851
        %v2314 = vpop.f32.mrf.mxu0
        %v2315 = vadd.f32 %v1689, %v2314
        %v2316 = vpop.f32.mrf.mxu0
        %v2317 = vpop.f32.mrf.mxu0
        %v2318 = vadd.f32 %v1692, %v2317
        %v2319 = vpop.f32.mrf.mxu0
        %2320 = vmatprep.mubr.bf16.mxu0 0
        %2321 = vmatmul.mubr.bf16.gmra.mxu0 %v1853
        %v2322 = vpop.f32.mrf.mxu0
        %v2323 = vadd.f32 %v1697, %v2322
        %v2324 = vpop.f32.mrf.mxu0
        %v2325 = vpop.f32.mrf.mxu0
        %v2326 = vadd.f32 %v1700, %v2325
        %v2327 = vpop.f32.mrf.mxu0
        %2328 = vmatprep.mubr.bf16.mxu0 0
        %2329 = vmatmul.mubr.bf16.gmra.mxu0 %v1855
        %v2330 = vpop.f32.mrf.mxu0
        %v2331 = vadd.f32 %v1705, %v2330
        %v2332 = vpop.f32.mrf.mxu0
        %v2333 = vpop.f32.mrf.mxu0
        %v2334 = vadd.f32 %v1708, %v2333
        %v2335 = vpop.f32.mrf.mxu0
        %2336 = vmatprep.mubr.bf16.mxu0 0
        %2337 = vmatmul.mubr.bf16.gmra.mxu0 %v1857
        %v2338 = vpop.f32.mrf.mxu0
        %v2339 = vadd.f32 %v1713, %v2338
        %v2340 = vpop.f32.mrf.mxu0
        %v2341 = vpop.f32.mrf.mxu0
        %v2342 = vadd.f32 %v1716, %v2341
        %v2343 = vpop.f32.mrf.mxu0
        %2344 = vmatprep.mubr.bf16.mxu0 0
        %2345 = vmatmul.mubr.bf16.gmra.mxu0 %v1859
        %v2346 = vpop.f32.mrf.mxu0
        %v2347 = vadd.f32 %v1721, %v2346
        %v2348 = vpop.f32.mrf.mxu0
        %v2349 = vpop.f32.mrf.mxu0
        %v2350 = vadd.f32 %v1724, %v2349
        %v2351 = vpop.f32.mrf.mxu0
        %2352 = vmatprep.mubr.bf16.mxu0 0
        %2353 = vmatmul.mubr.bf16.gmra.mxu0 %v1862
        %v2354 = vpop.f32.mrf.mxu0
        %v2355 = vadd.f32 %v1729, %v2354
        %v2356 = vpop.f32.mrf.mxu0
        %v2357 = vpop.f32.mrf.mxu0
        %v2358 = vpop.f32.mrf.mxu0
        %2359 = vdwg.mxu0
        %v2360 = vld [vmem:[%s169] sm:$0xe]
        %v2361 = vld [vmem:[%s1 + $0x20] sm:$0xf]
        %v2362 = vld [vmem:[%s1 + $0x24] sm:$0xf]
        %v2363 = vld [vmem:[%s1 + $0x28] sm:$0xf]
        %v2364 = vld [vmem:[%s1 + $0x2c] sm:$0xf]
        %v2366 = vunpack.c.l.b16 %v2360
        %v2367 = vpack.c.b16 %v414, %v2366
        %vm2368 = vcmask 1046528
        %v2369 = vrot.slane %v2367, 1
        %v2370 = vrot.slane %v530, 1
        %v2371 = vsel %vm2368, %v2369, %v2370
        %v2372 = vrot.slane %v531, 1
        %v2373 = vsel %vm2368, %v2370, %v2372
        %v2374 = vrot.slane %v532, 1
        %v2375 = vsel %vm2368, %v2372, %v2374
        %v2376 = vrot.slane %v533, 1
        %v2377 = vsel %vm2368, %v2374, %v2376
        %v2378 = vrot.slane %v534, 1
        %v2379 = vsel %vm2368, %v2376, %v2378
        %v2380 = vrot.slane %v535, 1
        %v2381 = vsel %vm2368, %v2378, %v2380
        %v2382 = vrot.slane %v536, 1
        %v2383 = vsel %vm2368, %v2380, %v2382
        %v2384 = vrot.slane %v537, 1
        %v2385 = vsel %vm2368, %v2382, %v2384
        %v2386 = vrot.slane %v538, 1
        %v2387 = vsel %vm2368, %v2384, %v2386
        %v2388 = vrot.slane %v539, 1
        %v2389 = vsel %vm2368, %v2386, %v2388
        %v2390 = vrot.slane %v540, 1
        %v2391 = vsel %vm2368, %v2388, %v2390
        %v2392 = vrot.slane %v541, 1
        %v2393 = vsel %vm2368, %v2390, %v2392
        %v2394 = vrot.slane %v542, 1
        %v2395 = vsel %vm2368, %v2392, %v2394
        %v2396 = vrot.slane %v543, 1
        %v2397 = vsel %vm2368, %v2394, %v2396
        %v2398 = vrot.slane %v544, 1
        %v2399 = vsel %vm2368, %v2396, %v2398
        %v2400 = vrot.slane %v545, 1
        %v2401 = vsel %vm2368, %v2398, %v2400
        %v2402 = vrot.slane %v546, 1
        %v2403 = vsel %vm2368, %v2400, %v2402
        %v2404 = vrot.slane %v547, 1
        %v2405 = vsel %vm2368, %v2402, %v2404
        %v2406 = vrot.slane %v548, 1
        %v2407 = vsel %vm2368, %v2404, %v2406
        %v2408 = vrot.slane %v549, 1
        %v2409 = vsel %vm2368, %v2406, %v2408
        %v2410 = vrot.slane %v550, 1
        %v2411 = vsel %vm2368, %v2408, %v2410
        %v2412 = vrot.slane %v551, 1
        %v2413 = vsel %vm2368, %v2410, %v2412
        %v2414 = vrot.slane %v552, 1
        %v2415 = vsel %vm2368, %v2412, %v2414
        %v2416 = vrot.slane %v553, 1
        %v2417 = vsel %vm2368, %v2414, %v2416
        %v2418 = vrot.slane %v554, 1
        %v2419 = vsel %vm2368, %v2416, %v2418
        %v2420 = vrot.slane %v555, 1
        %v2421 = vsel %vm2368, %v2418, %v2420
        %v2422 = vrot.slane %v556, 1
        %v2423 = vsel %vm2368, %v2420, %v2422
        %v2424 = vrot.slane %v557, 1
        %v2425 = vsel %vm2368, %v2422, %v2424
        %v2426 = vrot.slane %v558, 1
        %v2427 = vsel %vm2368, %v2424, %v2426
        %v2428 = vrot.slane %v559, 1
        %v2429 = vsel %vm2368, %v2426, %v2428
        %v2430 = vrot.slane %v560, 1
        %v2431 = vsel %vm2368, %v2428, %v2430
        %v2432 = vrot.slane %v561, 1
        %v2433 = vsel %vm2368, %v2430, %v2432
        %v2434 = vrot.slane %v562, 1
        %v2435 = vsel %vm2368, %v2432, %v2434
        %v2436 = vrot.slane %v563, 1
        %v2437 = vsel %vm2368, %v2434, %v2436
        %v2438 = vrot.slane %v564, 1
        %v2439 = vsel %vm2368, %v2436, %v2438
        %v2440 = vrot.slane %v565, 1
        %v2441 = vsel %vm2368, %v2438, %v2440
        %v2442 = vrot.slane %v566, 1
        %v2443 = vsel %vm2368, %v2440, %v2442
        %v2444 = vrot.slane %v567, 1
        %v2445 = vsel %vm2368, %v2442, %v2444
        %v2446 = vrot.slane %v568, 1
        %v2447 = vsel %vm2368, %v2444, %v2446
        %v2448 = vrot.slane %v569, 1
        %v2449 = vsel %vm2368, %v2446, %v2448
        %v2450 = vrot.slane %v570, 1
        %v2451 = vsel %vm2368, %v2448, %v2450
        %v2452 = vrot.slane %v571, 1
        %v2453 = vsel %vm2368, %v2450, %v2452
        %v2454 = vrot.slane %v572, 1
        %v2455 = vsel %vm2368, %v2452, %v2454
        %v2456 = vrot.slane %v573, 1
        %v2457 = vsel %vm2368, %v2454, %v2456
        %v2458 = vrot.slane %v574, 1
        %v2459 = vsel %vm2368, %v2456, %v2458
        %v2460 = vrot.slane %v575, 1
        %v2461 = vsel %vm2368, %v2458, %v2460
        %v2462 = vrot.slane %v576, 1
        %v2463 = vsel %vm2368, %v2460, %v2462
        %v2464 = vrot.slane %v577, 1
        %v2465 = vsel %vm2368, %v2462, %v2464
        %v2466 = vrot.slane %v578, 1
        %v2467 = vsel %vm2368, %v2464, %v2466
        %v2468 = vrot.slane %v579, 1
        %v2469 = vsel %vm2368, %v2466, %v2468
        %v2470 = vrot.slane %v580, 1
        %v2471 = vsel %vm2368, %v2468, %v2470
        %v2472 = vrot.slane %v581, 1
        %v2473 = vsel %vm2368, %v2470, %v2472
        %v2474 = vrot.slane %v582, 1
        %v2475 = vsel %vm2368, %v2472, %v2474
        %v2476 = vrot.slane %v583, 1
        %v2477 = vsel %vm2368, %v2474, %v2476
        %v2478 = vrot.slane %v584, 1
        %v2479 = vsel %vm2368, %v2476, %v2478
        %v2480 = vrot.slane %v585, 1
        %v2481 = vsel %vm2368, %v2478, %v2480
        %v2482 = vrot.slane %v586, 1
        %v2483 = vsel %vm2368, %v2480, %v2482
        %v2488 = vunpack.c.l.b16 %v2361
        %v2489 = vunpack.c.l.b16 %v2362
        %v2490 = vunpack.c.l.b16 %v2363
        %v2491 = vunpack.c.l.b16 %v2364
        %v2492 = vpack.c.b16 %v2489, %v2488
        %v2493 = vpack.c.b16 %v2491, %v2490
        %v2497 = vsel %vm1063, %v2371, 0
        %v2500 = vsel %vm1063, %v2373, 0
        %v2503 = vsel %vm1063, %v2375, 0
        %v2506 = vsel %vm1063, %v2377, 0
        %v2509 = vsel %vm1063, %v2379, 0
        %v2512 = vsel %vm1063, %v2381, 0
        %v2515 = vsel %vm1063, %v2383, 0
        %v2518 = vsel %vm1063, %v2385, 0
        %v2521 = vsel %vm1063, %v2387, 0
        %v2524 = vsel %vm1063, %v2389, 0
        %v2527 = vsel %vm1063, %v2391, 0
        %v2530 = vsel %vm1063, %v2393, 0
        %v2533 = vsel %vm1063, %v2395, 0
        %v2536 = vsel %vm1063, %v2397, 0
        %v2539 = vsel %vm1063, %v2399, 0
        %v2542 = vsel %vm1063, %v2401, 0
        %v2545 = vsel %vm1063, %v2403, 0
        %v2548 = vsel %vm1063, %v2405, 0
        %v2551 = vsel %vm1063, %v2407, 0
        %v2554 = vsel %vm1063, %v2409, 0
        %v2557 = vsel %vm1063, %v2411, 0
        %v2560 = vsel %vm1063, %v2413, 0
        %v2563 = vsel %vm1063, %v2415, 0
        %v2566 = vsel %vm1063, %v2417, 0
        %v2569 = vsel %vm1063, %v2419, 0
        %v2572 = vsel %vm1063, %v2421, 0
        %v2575 = vsel %vm1063, %v2423, 0
        %v2578 = vsel %vm1063, %v2425, 0
        %v2581 = vsel %vm1063, %v2427, 0
        %v2584 = vsel %vm1063, %v2429, 0
        %v2587 = vsel %vm1063, %v2431, 0
        %v2590 = vsel %vm1063, %v2433, 0
        %v2593 = vsel %vm1063, %v2435, 0
        %v2596 = vsel %vm1063, %v2437, 0
        %v2599 = vsel %vm1063, %v2439, 0
        %v2602 = vsel %vm1063, %v2441, 0
        %v2605 = vsel %vm1063, %v2443, 0
        %v2608 = vsel %vm1063, %v2445, 0
        %v2611 = vsel %vm1063, %v2447, 0
        %v2614 = vsel %vm1063, %v2449, 0
        %v2617 = vsel %vm1063, %v2451, 0
        %v2620 = vsel %vm1063, %v2453, 0
        %v2623 = vsel %vm1063, %v2455, 0
        %v2626 = vsel %vm1063, %v2457, 0
        %v2629 = vsel %vm1063, %v2459, 0
        %v2632 = vsel %vm1063, %v2461, 0
        %v2635 = vsel %vm1063, %v2463, 0
        %v2638 = vsel %vm1063, %v2465, 0
        %v2641 = vsel %vm1063, %v2467, 0
        %v2644 = vsel %vm1063, %v2469, 0
        %v2647 = vsel %vm1063, %v2471, 0
        %v2650 = vsel %vm1063, %v2473, 0
        %v2653 = vsel %vm1063, %v2475, 0
        %v2656 = vsel %vm1063, %v2477, 0
        %v2659 = vsel %vm1063, %v2479, 0
        %v2662 = vsel %vm1063, %v2481, 0
        %v2665 = vsel %vm1063, %v2483, 0
        %v2668 = vsel %vm1063, %v2482, 0
        %2670 = vmatprep.subr.bf16.mxu0 0
        %2671 = vmatpush1.bf16.msra.mxu0 0
        %2672 = vmatprep.subr.bf16.mxu0 0
        %2673 = vmatpush1.bf16.msra.mxu0 0
        %2674 = vmatprep.subr.bf16.mxu0 0
        %2675 = vmatpush1.bf16.msra.mxu0 0
        %2676 = vmatprep.subr.bf16.mxu0 0
        %2677 = vmatpush1.bf16.msra.mxu0 0
        %2678 = vmatprep.subr.bf16.mxu0 0
        %2679 = vmatpush1.bf16.msra.mxu0 0
        %2680 = vmatprep.subr.bf16.mxu0 0
        %2681 = vmatpush1.bf16.msra.mxu0 0
        %2682 = vmatprep.subr.bf16.mxu0 0
        %2683 = vmatpush1.bf16.msra.mxu0 %v2493
        %2684 = vmatprep.subr.bf16.mxu0 0
        %2685 = vmatpush1.bf16.msra.mxu0 %v2492
        %2686 = vmatprep.subr.bf16.mxu0 0
        %2687 = vmatpush2.bf16.msra.mxu0 0
        %2688 = vmatprep.subr.bf16.mxu0 0
        %2689 = vmatpush2.bf16.msra.mxu0 0
        %2690 = vmatprep.subr.bf16.mxu0 0
        %2691 = vmatpush2.bf16.msra.mxu0 0
        %2692 = vmatprep.subr.bf16.mxu0 0
        %2693 = vmatpush2.bf16.msra.mxu0 0
        %2694 = vmatprep.subr.bf16.mxu0 0
        %2695 = vmatpush2.bf16.msra.mxu0 0
        %2696 = vmatprep.subr.bf16.mxu0 0
        %2697 = vmatpush2.bf16.msra.mxu0 0
        %2698 = vmatprep.subr.bf16.mxu0 0
        %2699 = vmatpush2.bf16.msra.mxu0 0
        %2700 = vmatprep.subr.bf16.mxu0 0
        %2701 = vmatpush2.bf16.msra.mxu0 0
        %2702 = vmatprep.mubr.bf16.mxu0 0
        %2703 = vmatmul.mubr.bf16.gmra.mxu0 %v2497
        %v2704 = vpop.f32.mrf.mxu0
        %v2705 = vadd.f32 0.0, %v2704
        %v2706 = vpop.f32.mrf.mxu0
        %v2707 = vpop.f32.mrf.mxu0
        %v2708 = vadd.f32 0.0, %v2707
        %v2709 = vpop.f32.mrf.mxu0
        %2710 = vmatprep.mubr.bf16.mxu0 0
        %2711 = vmatmul.mubr.bf16.gmra.mxu0 %v2500
        %v2712 = vpop.f32.mrf.mxu0
        %v2713 = vadd.f32 0.0, %v2712
        %v2714 = vpop.f32.mrf.mxu0
        %v2715 = vpop.f32.mrf.mxu0
        %v2716 = vadd.f32 0.0, %v2715
        %v2717 = vpop.f32.mrf.mxu0
        %2718 = vmatprep.mubr.bf16.mxu0 0
        %2719 = vmatmul.mubr.bf16.gmra.mxu0 %v2503
        %v2720 = vpop.f32.mrf.mxu0
        %v2721 = vadd.f32 0.0, %v2720
        %v2722 = vpop.f32.mrf.mxu0
        %v2723 = vpop.f32.mrf.mxu0
        %v2724 = vadd.f32 0.0, %v2723
        %v2725 = vpop.f32.mrf.mxu0
        %2726 = vmatprep.mubr.bf16.mxu0 0
        %2727 = vmatmul.mubr.bf16.gmra.mxu0 %v2506
        %v2728 = vpop.f32.mrf.mxu0
        %v2729 = vadd.f32 0.0, %v2728
        %v2730 = vpop.f32.mrf.mxu0
        %v2731 = vpop.f32.mrf.mxu0
        %v2732 = vadd.f32 0.0, %v2731
        %v2733 = vpop.f32.mrf.mxu0
        %2734 = vmatprep.mubr.bf16.mxu0 0
        %2735 = vmatmul.mubr.bf16.gmra.mxu0 %v2509
        %v2736 = vpop.f32.mrf.mxu0
        %v2737 = vadd.f32 0.0, %v2736
        %v2738 = vpop.f32.mrf.mxu0
        %v2739 = vpop.f32.mrf.mxu0
        %v2740 = vadd.f32 0.0, %v2739
        %v2741 = vpop.f32.mrf.mxu0
        %2742 = vmatprep.mubr.bf16.mxu0 0
        %2743 = vmatmul.mubr.bf16.gmra.mxu0 %v2512
        %v2744 = vpop.f32.mrf.mxu0
        %v2745 = vadd.f32 0.0, %v2744
        %v2746 = vpop.f32.mrf.mxu0
        %v2747 = vpop.f32.mrf.mxu0
        %v2748 = vadd.f32 0.0, %v2747
        %v2749 = vpop.f32.mrf.mxu0
        %2750 = vmatprep.mubr.bf16.mxu0 0
        %2751 = vmatmul.mubr.bf16.gmra.mxu0 %v2515
        %v2752 = vpop.f32.mrf.mxu0
        %v2753 = vadd.f32 0.0, %v2752
        %v2754 = vpop.f32.mrf.mxu0
        %v2755 = vpop.f32.mrf.mxu0
        %v2756 = vadd.f32 0.0, %v2755
        %v2757 = vpop.f32.mrf.mxu0
        %2758 = vmatprep.mubr.bf16.mxu0 0
        %2759 = vmatmul.mubr.bf16.gmra.mxu0 %v2518
        %v2760 = vpop.f32.mrf.mxu0
        %v2761 = vadd.f32 0.0, %v2760
        %v2762 = vpop.f32.mrf.mxu0
        %v2763 = vpop.f32.mrf.mxu0
        %v2764 = vadd.f32 0.0, %v2763
        %v2765 = vpop.f32.mrf.mxu0
        %2766 = vmatprep.mubr.bf16.mxu0 0
        %2767 = vmatmul.mubr.bf16.gmra.mxu0 %v2521
        %v2768 = vpop.f32.mrf.mxu0
        %v2769 = vadd.f32 0.0, %v2768
        %v2770 = vpop.f32.mrf.mxu0
        %v2771 = vpop.f32.mrf.mxu0
        %v2772 = vadd.f32 0.0, %v2771
        %v2773 = vpop.f32.mrf.mxu0
        %2774 = vmatprep.mubr.bf16.mxu0 0
        %2775 = vmatmul.mubr.bf16.gmra.mxu0 %v2524
        %v2776 = vpop.f32.mrf.mxu0
        %v2777 = vadd.f32 0.0, %v2776
        %v2778 = vpop.f32.mrf.mxu0
        %v2779 = vpop.f32.mrf.mxu0
        %v2780 = vadd.f32 0.0, %v2779
        %v2781 = vpop.f32.mrf.mxu0
        %2782 = vmatprep.mubr.bf16.mxu0 0
        %2783 = vmatmul.mubr.bf16.gmra.mxu0 %v2527
        %v2784 = vpop.f32.mrf.mxu0
        %v2785 = vadd.f32 0.0, %v2784
        %v2786 = vpop.f32.mrf.mxu0
        %v2787 = vpop.f32.mrf.mxu0
        %v2788 = vadd.f32 0.0, %v2787
        %v2789 = vpop.f32.mrf.mxu0
        %2790 = vmatprep.mubr.bf16.mxu0 0
        %2791 = vmatmul.mubr.bf16.gmra.mxu0 %v2530
        %v2792 = vpop.f32.mrf.mxu0
        %v2793 = vadd.f32 0.0, %v2792
        %v2794 = vpop.f32.mrf.mxu0
        %v2795 = vpop.f32.mrf.mxu0
        %v2796 = vadd.f32 0.0, %v2795
        %v2797 = vpop.f32.mrf.mxu0
        %2798 = vmatprep.mubr.bf16.mxu0 0
        %2799 = vmatmul.mubr.bf16.gmra.mxu0 %v2533
        %v2800 = vpop.f32.mrf.mxu0
        %v2801 = vadd.f32 0.0, %v2800
        %v2802 = vpop.f32.mrf.mxu0
        %v2803 = vpop.f32.mrf.mxu0
        %v2804 = vadd.f32 0.0, %v2803
        %v2805 = vpop.f32.mrf.mxu0
        %2806 = vmatprep.mubr.bf16.mxu0 0
        %2807 = vmatmul.mubr.bf16.gmra.mxu0 %v2536
        %v2808 = vpop.f32.mrf.mxu0
        %v2809 = vadd.f32 0.0, %v2808
        %v2810 = vpop.f32.mrf.mxu0
        %v2811 = vpop.f32.mrf.mxu0
        %v2812 = vadd.f32 0.0, %v2811
        %v2813 = vpop.f32.mrf.mxu0
        %2814 = vmatprep.mubr.bf16.mxu0 0
        %2815 = vmatmul.mubr.bf16.gmra.mxu0 %v2539
        %v2816 = vpop.f32.mrf.mxu0
        %v2817 = vadd.f32 0.0, %v2816
        %v2818 = vpop.f32.mrf.mxu0
        %v2819 = vpop.f32.mrf.mxu0
        %v2820 = vadd.f32 0.0, %v2819
        %v2821 = vpop.f32.mrf.mxu0
        %2822 = vmatprep.mubr.bf16.mxu0 0
        %2823 = vmatmul.mubr.bf16.gmra.mxu0 %v2542
        %v2824 = vpop.f32.mrf.mxu0
        %v2825 = vadd.f32 0.0, %v2824
        %v2826 = vpop.f32.mrf.mxu0
        %v2827 = vpop.f32.mrf.mxu0
        %v2828 = vadd.f32 0.0, %v2827
        %v2829 = vpop.f32.mrf.mxu0
        %2830 = vmatprep.mubr.bf16.mxu0 0
        %2831 = vmatmul.mubr.bf16.gmra.mxu0 %v2545
        %v2832 = vpop.f32.mrf.mxu0
        %v2833 = vadd.f32 0.0, %v2832
        %v2834 = vpop.f32.mrf.mxu0
        %v2835 = vpop.f32.mrf.mxu0
        %v2836 = vadd.f32 0.0, %v2835
        %v2837 = vpop.f32.mrf.mxu0
        %2838 = vmatprep.mubr.bf16.mxu0 0
        %2839 = vmatmul.mubr.bf16.gmra.mxu0 %v2548
        %v2840 = vpop.f32.mrf.mxu0
        %v2841 = vadd.f32 0.0, %v2840
        %v2842 = vpop.f32.mrf.mxu0
        %v2843 = vpop.f32.mrf.mxu0
        %v2844 = vadd.f32 0.0, %v2843
        %v2845 = vpop.f32.mrf.mxu0
        %2846 = vmatprep.mubr.bf16.mxu0 0
        %2847 = vmatmul.mubr.bf16.gmra.mxu0 %v2551
        %v2848 = vpop.f32.mrf.mxu0
        %v2849 = vadd.f32 0.0, %v2848
        %v2850 = vpop.f32.mrf.mxu0
        %v2851 = vpop.f32.mrf.mxu0
        %v2852 = vadd.f32 0.0, %v2851
        %v2853 = vpop.f32.mrf.mxu0
        %2854 = vmatprep.mubr.bf16.mxu0 0
        %2855 = vmatmul.mubr.bf16.gmra.mxu0 %v2554
        %v2856 = vpop.f32.mrf.mxu0
        %v2857 = vadd.f32 0.0, %v2856
        %v2858 = vpop.f32.mrf.mxu0
        %v2859 = vpop.f32.mrf.mxu0
        %v2860 = vadd.f32 0.0, %v2859
        %v2861 = vpop.f32.mrf.mxu0
        %2862 = vmatprep.mubr.bf16.mxu0 0
        %2863 = vmatmul.mubr.bf16.gmra.mxu0 %v2557
        %v2864 = vpop.f32.mrf.mxu0
        %v2865 = vadd.f32 0.0, %v2864
        %v2866 = vpop.f32.mrf.mxu0
        %v2867 = vpop.f32.mrf.mxu0
        %v2868 = vadd.f32 0.0, %v2867
        %v2869 = vpop.f32.mrf.mxu0
        %2870 = vmatprep.mubr.bf16.mxu0 0
        %2871 = vmatmul.mubr.bf16.gmra.mxu0 %v2560
        %v2872 = vpop.f32.mrf.mxu0
        %v2873 = vadd.f32 0.0, %v2872
        %v2874 = vpop.f32.mrf.mxu0
        %v2875 = vpop.f32.mrf.mxu0
        %v2876 = vadd.f32 0.0, %v2875
        %v2877 = vpop.f32.mrf.mxu0
        %2878 = vmatprep.mubr.bf16.mxu0 0
        %2879 = vmatmul.mubr.bf16.gmra.mxu0 %v2563
        %v2880 = vpop.f32.mrf.mxu0
        %v2881 = vadd.f32 0.0, %v2880
        %v2882 = vpop.f32.mrf.mxu0
        %v2883 = vpop.f32.mrf.mxu0
        %v2884 = vadd.f32 0.0, %v2883
        %v2885 = vpop.f32.mrf.mxu0
        %2886 = vmatprep.mubr.bf16.mxu0 0
        %2887 = vmatmul.mubr.bf16.gmra.mxu0 %v2566
        %v2888 = vpop.f32.mrf.mxu0
        %v2889 = vadd.f32 0.0, %v2888
        %v2890 = vpop.f32.mrf.mxu0
        %v2891 = vpop.f32.mrf.mxu0
        %v2892 = vadd.f32 0.0, %v2891
        %v2893 = vpop.f32.mrf.mxu0
        %2894 = vmatprep.mubr.bf16.mxu0 0
        %2895 = vmatmul.mubr.bf16.gmra.mxu0 %v2569
        %v2896 = vpop.f32.mrf.mxu0
        %v2897 = vadd.f32 0.0, %v2896
        %v2898 = vpop.f32.mrf.mxu0
        %v2899 = vpop.f32.mrf.mxu0
        %v2900 = vadd.f32 0.0, %v2899
        %v2901 = vpop.f32.mrf.mxu0
        %2902 = vmatprep.mubr.bf16.mxu0 0
        %2903 = vmatmul.mubr.bf16.gmra.mxu0 %v2572
        %v2904 = vpop.f32.mrf.mxu0
        %v2905 = vadd.f32 0.0, %v2904
        %v2906 = vpop.f32.mrf.mxu0
        %v2907 = vpop.f32.mrf.mxu0
        %v2908 = vadd.f32 0.0, %v2907
        %v2909 = vpop.f32.mrf.mxu0
        %2910 = vmatprep.mubr.bf16.mxu0 0
        %2911 = vmatmul.mubr.bf16.gmra.mxu0 %v2575
        %v2912 = vpop.f32.mrf.mxu0
        %v2913 = vadd.f32 0.0, %v2912
        %v2914 = vpop.f32.mrf.mxu0
        %v2915 = vpop.f32.mrf.mxu0
        %v2916 = vadd.f32 0.0, %v2915
        %v2917 = vpop.f32.mrf.mxu0
        %2918 = vmatprep.mubr.bf16.mxu0 0
        %2919 = vmatmul.mubr.bf16.gmra.mxu0 %v2578
        %v2920 = vpop.f32.mrf.mxu0
        %v2921 = vadd.f32 0.0, %v2920
        %v2922 = vpop.f32.mrf.mxu0
        %v2923 = vpop.f32.mrf.mxu0
        %v2924 = vadd.f32 0.0, %v2923
        %v2925 = vpop.f32.mrf.mxu0
        %2926 = vmatprep.mubr.bf16.mxu0 0
        %2927 = vmatmul.mubr.bf16.gmra.mxu0 %v2581
        %v2928 = vpop.f32.mrf.mxu0
        %v2929 = vadd.f32 0.0, %v2928
        %v2930 = vpop.f32.mrf.mxu0
        %v2931 = vpop.f32.mrf.mxu0
        %v2932 = vadd.f32 0.0, %v2931
        %v2933 = vpop.f32.mrf.mxu0
        %2934 = vmatprep.mubr.bf16.mxu0 0
        %2935 = vmatmul.mubr.bf16.gmra.mxu0 %v2584
        %v2936 = vpop.f32.mrf.mxu0
        %v2937 = vadd.f32 0.0, %v2936
        %v2938 = vpop.f32.mrf.mxu0
        %v2939 = vpop.f32.mrf.mxu0
        %v2940 = vadd.f32 0.0, %v2939
        %v2941 = vpop.f32.mrf.mxu0
        %2942 = vmatprep.mubr.bf16.mxu0 0
        %2943 = vmatmul.mubr.bf16.gmra.mxu0 %v2587
        %v2944 = vpop.f32.mrf.mxu0
        %v2945 = vadd.f32 0.0, %v2944
        %v2946 = vpop.f32.mrf.mxu0
        %v2947 = vpop.f32.mrf.mxu0
        %v2948 = vadd.f32 0.0, %v2947
        %v2949 = vpop.f32.mrf.mxu0
        %2950 = vmatprep.mubr.bf16.mxu0 0
        %2951 = vmatmul.mubr.bf16.gmra.mxu0 %v2590
        %v2952 = vpop.f32.mrf.mxu0
        %v2953 = vadd.f32 0.0, %v2952
        %v2954 = vpop.f32.mrf.mxu0
        %v2955 = vpop.f32.mrf.mxu0
        %v2956 = vadd.f32 0.0, %v2955
        %v2957 = vpop.f32.mrf.mxu0
        %2958 = vmatprep.mubr.bf16.mxu0 0
        %2959 = vmatmul.mubr.bf16.gmra.mxu0 %v2593
        %v2960 = vpop.f32.mrf.mxu0
        %v2961 = vadd.f32 0.0, %v2960
        %v2962 = vpop.f32.mrf.mxu0
        %v2963 = vpop.f32.mrf.mxu0
        %v2964 = vadd.f32 0.0, %v2963
        %v2965 = vpop.f32.mrf.mxu0
        %2966 = vmatprep.mubr.bf16.mxu0 0
        %2967 = vmatmul.mubr.bf16.gmra.mxu0 %v2596
        %v2968 = vpop.f32.mrf.mxu0
        %v2969 = vadd.f32 0.0, %v2968
        %v2970 = vpop.f32.mrf.mxu0
        %v2971 = vpop.f32.mrf.mxu0
        %v2972 = vadd.f32 0.0, %v2971
        %v2973 = vpop.f32.mrf.mxu0
        %2974 = vmatprep.mubr.bf16.mxu0 0
        %2975 = vmatmul.mubr.bf16.gmra.mxu0 %v2599
        %v2976 = vpop.f32.mrf.mxu0
        %v2977 = vadd.f32 0.0, %v2976
        %v2978 = vpop.f32.mrf.mxu0
        %v2979 = vpop.f32.mrf.mxu0
        %v2980 = vadd.f32 0.0, %v2979
        %v2981 = vpop.f32.mrf.mxu0
        %2982 = vmatprep.mubr.bf16.mxu0 0
        %2983 = vmatmul.mubr.bf16.gmra.mxu0 %v2602
        %v2984 = vpop.f32.mrf.mxu0
        %v2985 = vadd.f32 0.0, %v2984
        %v2986 = vpop.f32.mrf.mxu0
        %v2987 = vpop.f32.mrf.mxu0
        %v2988 = vadd.f32 0.0, %v2987
        %v2989 = vpop.f32.mrf.mxu0
        %2990 = vmatprep.mubr.bf16.mxu0 0
        %2991 = vmatmul.mubr.bf16.gmra.mxu0 %v2605
        %v2992 = vpop.f32.mrf.mxu0
        %v2993 = vadd.f32 0.0, %v2992
        %v2994 = vpop.f32.mrf.mxu0
        %v2995 = vpop.f32.mrf.mxu0
        %v2996 = vadd.f32 0.0, %v2995
        %v2997 = vpop.f32.mrf.mxu0
        %2998 = vmatprep.mubr.bf16.mxu0 0
        %2999 = vmatmul.mubr.bf16.gmra.mxu0 %v2608
        %v3000 = vpop.f32.mrf.mxu0
        %v3001 = vadd.f32 0.0, %v3000
        %v3002 = vpop.f32.mrf.mxu0
        %v3003 = vpop.f32.mrf.mxu0
        %v3004 = vadd.f32 0.0, %v3003
        %v3005 = vpop.f32.mrf.mxu0
        %3006 = vmatprep.mubr.bf16.mxu0 0
        %3007 = vmatmul.mubr.bf16.gmra.mxu0 %v2611
        %v3008 = vpop.f32.mrf.mxu0
        %v3009 = vadd.f32 0.0, %v3008
        %v3010 = vpop.f32.mrf.mxu0
        %v3011 = vpop.f32.mrf.mxu0
        %v3012 = vadd.f32 0.0, %v3011
        %v3013 = vpop.f32.mrf.mxu0
        %3014 = vmatprep.mubr.bf16.mxu0 0
        %3015 = vmatmul.mubr.bf16.gmra.mxu0 %v2614
        %v3016 = vpop.f32.mrf.mxu0
        %v3017 = vadd.f32 0.0, %v3016
        %v3018 = vpop.f32.mrf.mxu0
        %v3019 = vpop.f32.mrf.mxu0
        %v3020 = vadd.f32 0.0, %v3019
        %v3021 = vpop.f32.mrf.mxu0
        %3022 = vmatprep.mubr.bf16.mxu0 0
        %3023 = vmatmul.mubr.bf16.gmra.mxu0 %v2617
        %v3024 = vpop.f32.mrf.mxu0
        %v3025 = vadd.f32 0.0, %v3024
        %v3026 = vpop.f32.mrf.mxu0
        %v3027 = vpop.f32.mrf.mxu0
        %v3028 = vadd.f32 0.0, %v3027
        %v3029 = vpop.f32.mrf.mxu0
        %3030 = vmatprep.mubr.bf16.mxu0 0
        %3031 = vmatmul.mubr.bf16.gmra.mxu0 %v2620
        %v3032 = vpop.f32.mrf.mxu0
        %v3033 = vadd.f32 0.0, %v3032
        %v3034 = vpop.f32.mrf.mxu0
        %v3035 = vpop.f32.mrf.mxu0
        %v3036 = vadd.f32 0.0, %v3035
        %v3037 = vpop.f32.mrf.mxu0
        %3038 = vmatprep.mubr.bf16.mxu0 0
        %3039 = vmatmul.mubr.bf16.gmra.mxu0 %v2623
        %v3040 = vpop.f32.mrf.mxu0
        %v3041 = vadd.f32 0.0, %v3040
        %v3042 = vpop.f32.mrf.mxu0
        %v3043 = vpop.f32.mrf.mxu0
        %v3044 = vadd.f32 0.0, %v3043
        %v3045 = vpop.f32.mrf.mxu0
        %3046 = vmatprep.mubr.bf16.mxu0 0
        %3047 = vmatmul.mubr.bf16.gmra.mxu0 %v2626
        %v3048 = vpop.f32.mrf.mxu0
        %v3049 = vadd.f32 0.0, %v3048
        %v3050 = vpop.f32.mrf.mxu0
        %v3051 = vpop.f32.mrf.mxu0
        %v3052 = vadd.f32 0.0, %v3051
        %v3053 = vpop.f32.mrf.mxu0
        %3054 = vmatprep.mubr.bf16.mxu0 0
        %3055 = vmatmul.mubr.bf16.gmra.mxu0 %v2629
        %v3056 = vpop.f32.mrf.mxu0
        %v3057 = vadd.f32 0.0, %v3056
        %v3058 = vpop.f32.mrf.mxu0
        %v3059 = vpop.f32.mrf.mxu0
        %v3060 = vadd.f32 0.0, %v3059
        %v3061 = vpop.f32.mrf.mxu0
        %3062 = vmatprep.mubr.bf16.mxu0 0
        %3063 = vmatmul.mubr.bf16.gmra.mxu0 %v2632
        %v3064 = vpop.f32.mrf.mxu0
        %v3065 = vadd.f32 0.0, %v3064
        %v3066 = vpop.f32.mrf.mxu0
        %v3067 = vpop.f32.mrf.mxu0
        %v3068 = vadd.f32 0.0, %v3067
        %v3069 = vpop.f32.mrf.mxu0
        %3070 = vmatprep.mubr.bf16.mxu0 0
        %3071 = vmatmul.mubr.bf16.gmra.mxu0 %v2635
        %v3072 = vpop.f32.mrf.mxu0
        %v3073 = vadd.f32 0.0, %v3072
        %v3074 = vpop.f32.mrf.mxu0
        %v3075 = vpop.f32.mrf.mxu0
        %v3076 = vadd.f32 0.0, %v3075
        %v3077 = vpop.f32.mrf.mxu0
        %3078 = vmatprep.mubr.bf16.mxu0 0
        %3079 = vmatmul.mubr.bf16.gmra.mxu0 %v2638
        %v3080 = vpop.f32.mrf.mxu0
        %v3081 = vadd.f32 0.0, %v3080
        %v3082 = vpop.f32.mrf.mxu0
        %v3083 = vpop.f32.mrf.mxu0
        %v3084 = vadd.f32 0.0, %v3083
        %v3085 = vpop.f32.mrf.mxu0
        %3086 = vmatprep.mubr.bf16.mxu0 0
        %3087 = vmatmul.mubr.bf16.gmra.mxu0 %v2641
        %v3088 = vpop.f32.mrf.mxu0
        %v3089 = vadd.f32 0.0, %v3088
        %v3090 = vpop.f32.mrf.mxu0
        %v3091 = vpop.f32.mrf.mxu0
        %v3092 = vadd.f32 0.0, %v3091
        %v3093 = vpop.f32.mrf.mxu0
        %3094 = vmatprep.mubr.bf16.mxu0 0
        %3095 = vmatmul.mubr.bf16.gmra.mxu0 %v2644
        %v3096 = vpop.f32.mrf.mxu0
        %v3097 = vadd.f32 0.0, %v3096
        %v3098 = vpop.f32.mrf.mxu0
        %v3099 = vpop.f32.mrf.mxu0
        %v3100 = vadd.f32 0.0, %v3099
        %v3101 = vpop.f32.mrf.mxu0
        %3102 = vmatprep.mubr.bf16.mxu0 0
        %3103 = vmatmul.mubr.bf16.gmra.mxu0 %v2647
        %v3104 = vpop.f32.mrf.mxu0
        %v3105 = vadd.f32 0.0, %v3104
        %v3106 = vpop.f32.mrf.mxu0
        %v3107 = vpop.f32.mrf.mxu0
        %v3108 = vadd.f32 0.0, %v3107
        %v3109 = vpop.f32.mrf.mxu0
        %3110 = vmatprep.mubr.bf16.mxu0 0
        %3111 = vmatmul.mubr.bf16.gmra.mxu0 %v2650
        %v3112 = vpop.f32.mrf.mxu0
        %v3113 = vadd.f32 0.0, %v3112
        %v3114 = vpop.f32.mrf.mxu0
        %v3115 = vpop.f32.mrf.mxu0
        %v3116 = vadd.f32 0.0, %v3115
        %v3117 = vpop.f32.mrf.mxu0
        %3118 = vmatprep.mubr.bf16.mxu0 0
        %3119 = vmatmul.mubr.bf16.gmra.mxu0 %v2653
        %v3120 = vpop.f32.mrf.mxu0
        %v3121 = vadd.f32 0.0, %v3120
        %v3122 = vpop.f32.mrf.mxu0
        %v3123 = vpop.f32.mrf.mxu0
        %v3124 = vadd.f32 0.0, %v3123
        %v3125 = vpop.f32.mrf.mxu0
        %3126 = vmatprep.mubr.bf16.mxu0 0
        %3127 = vmatmul.mubr.bf16.gmra.mxu0 %v2656
        %v3128 = vpop.f32.mrf.mxu0
        %v3129 = vadd.f32 0.0, %v3128
        %v3130 = vpop.f32.mrf.mxu0
        %v3131 = vpop.f32.mrf.mxu0
        %v3132 = vadd.f32 0.0, %v3131
        %v3133 = vpop.f32.mrf.mxu0
        %3134 = vmatprep.mubr.bf16.mxu0 0
        %3135 = vmatmul.mubr.bf16.gmra.mxu0 %v2659
        %v3136 = vpop.f32.mrf.mxu0
        %v3137 = vadd.f32 0.0, %v3136
        %v3138 = vpop.f32.mrf.mxu0
        %v3139 = vpop.f32.mrf.mxu0
        %v3140 = vadd.f32 0.0, %v3139
        %v3141 = vpop.f32.mrf.mxu0
        %3142 = vmatprep.mubr.bf16.mxu0 0
        %3143 = vmatmul.mubr.bf16.gmra.mxu0 %v2662
        %v3144 = vpop.f32.mrf.mxu0
        %v3145 = vadd.f32 0.0, %v3144
        %v3146 = vpop.f32.mrf.mxu0
        %v3147 = vpop.f32.mrf.mxu0
        %v3148 = vadd.f32 0.0, %v3147
        %v3149 = vpop.f32.mrf.mxu0
        %3150 = vmatprep.mubr.bf16.mxu0 0
        %3151 = vmatmul.mubr.bf16.gmra.mxu0 %v2665
        %v3152 = vpop.f32.mrf.mxu0
        %v3153 = vadd.f32 0.0, %v3152
        %v3154 = vpop.f32.mrf.mxu0
        %v3155 = vpop.f32.mrf.mxu0
        %v3156 = vadd.f32 0.0, %v3155
        %v3157 = vpop.f32.mrf.mxu0
        %3158 = vmatprep.mubr.bf16.mxu0 0
        %3159 = vmatmul.mubr.bf16.gmra.mxu0 %v2668
        %v3160 = vpop.f32.mrf.mxu0
        %v3161 = vadd.f32 0.0, %v3160
        %v3162 = vpop.f32.mrf.mxu0
        %v3163 = vpop.f32.mrf.mxu0
        %v3164 = vpop.f32.mrf.mxu0
        %3165 = vdwg.mxu0
        %v3166 = vadd.f32 %v1899, %v2705
        %v3167 = vadd.f32 %v1902, %v2708
        %v3168 = vadd.f32 %v1907, %v2713
        %v3169 = vadd.f32 %v1910, %v2716
        %v3170 = vadd.f32 %v1915, %v2721
        %v3171 = vadd.f32 %v1918, %v2724
        %v3172 = vadd.f32 %v1923, %v2729
        %v3173 = vadd.f32 %v1926, %v2732
        %v3174 = vadd.f32 %v1931, %v2737
        %v3175 = vadd.f32 %v1934, %v2740
        %v3176 = vadd.f32 %v1939, %v2745
        %v3177 = vadd.f32 %v1942, %v2748
        %v3178 = vadd.f32 %v1947, %v2753
        %v3179 = vadd.f32 %v1950, %v2756
        %v3180 = vadd.f32 %v1955, %v2761
        %v3181 = vadd.f32 %v1958, %v2764
        %v3182 = vadd.f32 %v1963, %v2769
        %v3183 = vadd.f32 %v1966, %v2772
        %v3184 = vadd.f32 %v1971, %v2777
        %v3185 = vadd.f32 %v1974, %v2780
        %v3186 = vadd.f32 %v1979, %v2785
        %v3187 = vadd.f32 %v1982, %v2788
        %v3188 = vadd.f32 %v1987, %v2793
        %v3189 = vadd.f32 %v1990, %v2796
        %v3190 = vadd.f32 %v1995, %v2801
        %v3191 = vadd.f32 %v1998, %v2804
        %v3192 = vadd.f32 %v2003, %v2809
        %v3193 = vadd.f32 %v2006, %v2812
        %v3194 = vadd.f32 %v2011, %v2817
        %v3195 = vadd.f32 %v2014, %v2820
        %v3196 = vadd.f32 %v2019, %v2825
        %v3197 = vadd.f32 %v2022, %v2828
        %v3198 = vadd.f32 %v2027, %v2833
        %v3199 = vadd.f32 %v2030, %v2836
        %v3200 = vadd.f32 %v2035, %v2841
        %v3201 = vadd.f32 %v2038, %v2844
        %v3202 = vadd.f32 %v2043, %v2849
        %v3203 = vadd.f32 %v2046, %v2852
        %v3204 = vadd.f32 %v2051, %v2857
        %v3205 = vadd.f32 %v2054, %v2860
        %v3206 = vadd.f32 %v2059, %v2865
        %v3207 = vadd.f32 %v2062, %v2868
        %v3208 = vadd.f32 %v2067, %v2873
        %v3209 = vadd.f32 %v2070, %v2876
        %v3210 = vadd.f32 %v2075, %v2881
        %v3211 = vadd.f32 %v2078, %v2884
        %v3212 = vadd.f32 %v2083, %v2889
        %v3213 = vadd.f32 %v2086, %v2892
        %v3214 = vadd.f32 %v2091, %v2897
        %v3215 = vadd.f32 %v2094, %v2900
        %v3216 = vadd.f32 %v2099, %v2905
        %v3217 = vadd.f32 %v2102, %v2908
        %v3218 = vadd.f32 %v2107, %v2913
        %v3219 = vadd.f32 %v2110, %v2916
        %v3220 = vadd.f32 %v2115, %v2921
        %v3221 = vadd.f32 %v2118, %v2924
        %v3222 = vadd.f32 %v2123, %v2929
        %v3223 = vadd.f32 %v2126, %v2932
        %v3224 = vadd.f32 %v2131, %v2937
        %v3225 = vadd.f32 %v2134, %v2940
        %v3226 = vadd.f32 %v2139, %v2945
        %v3227 = vadd.f32 %v2142, %v2948
        %v3228 = vadd.f32 %v2147, %v2953
        %v3229 = vadd.f32 %v2150, %v2956
        %v3230 = vadd.f32 %v2155, %v2961
        %v3231 = vadd.f32 %v2158, %v2964
        %v3232 = vadd.f32 %v2163, %v2969
        %v3233 = vadd.f32 %v2166, %v2972
        %v3234 = vadd.f32 %v2171, %v2977
        %v3235 = vadd.f32 %v2174, %v2980
        %v3236 = vadd.f32 %v2179, %v2985
        %v3237 = vadd.f32 %v2182, %v2988
        %v3238 = vadd.f32 %v2187, %v2993
        %v3239 = vadd.f32 %v2190, %v2996
        %v3240 = vadd.f32 %v2195, %v3001
        %v3241 = vadd.f32 %v2198, %v3004
        %v3242 = vadd.f32 %v2203, %v3009
        %v3243 = vadd.f32 %v2206, %v3012
        %v3244 = vadd.f32 %v2211, %v3017
        %v3245 = vadd.f32 %v2214, %v3020
        %v3246 = vadd.f32 %v2219, %v3025
        %v3247 = vadd.f32 %v2222, %v3028
        %v3248 = vadd.f32 %v2227, %v3033
        %v3249 = vadd.f32 %v2230, %v3036
        %v3250 = vadd.f32 %v2235, %v3041
        %v3251 = vadd.f32 %v2238, %v3044
        %v3252 = vadd.f32 %v2243, %v3049
        %v3253 = vadd.f32 %v2246, %v3052
        %v3254 = vadd.f32 %v2251, %v3057
        %v3255 = vadd.f32 %v2254, %v3060
        %v3256 = vadd.f32 %v2259, %v3065
        %v3257 = vadd.f32 %v2262, %v3068
        %v3258 = vadd.f32 %v2267, %v3073
        %v3259 = vadd.f32 %v2270, %v3076
        %v3260 = vadd.f32 %v2275, %v3081
        %v3261 = vadd.f32 %v2278, %v3084
        %v3262 = vadd.f32 %v2283, %v3089
        %v3263 = vadd.f32 %v2286, %v3092
        %v3264 = vadd.f32 %v2291, %v3097
        %v3265 = vadd.f32 %v2294, %v3100
        %v3266 = vadd.f32 %v2299, %v3105
        %v3267 = vadd.f32 %v2302, %v3108
        %v3268 = vadd.f32 %v2307, %v3113
        %v3269 = vadd.f32 %v2310, %v3116
        %v3270 = vadd.f32 %v2315, %v3121
        %v3271 = vadd.f32 %v2318, %v3124
        %v3272 = vadd.f32 %v2323, %v3129
        %v3273 = vadd.f32 %v2326, %v3132
        %v3274 = vadd.f32 %v2331, %v3137
        %v3275 = vadd.f32 %v2334, %v3140
        %v3276 = vadd.f32 %v2339, %v3145
        %v3277 = vadd.f32 %v2342, %v3148
        %v3278 = vadd.f32 %v2347, %v3153
        %v3279 = vadd.f32 %v2350, %v3156
        %v3280 = vadd.f32 %v2355, %v3161
        %v3281 = vld [vmem:[%s169 + $0x8] sm:$0xf]
        %v3282 = vld [vmem:[%s169 + $0xc] sm:$0xf]
        %v3283 = vld [vmem:[%s169 + $0x10] sm:$0xf]
        %v3284 = vld [vmem:[%s169 + $0x14] sm:$0xf]
        %v3285 = vld [vmem:[%s169 + $0x18] sm:$0xf]
        %v3286 = vld [vmem:[%s169 + $0x1c] sm:$0xf]
        %v3287 = vld [vmem:[%s169 + $0x20] sm:$0xf]
        %v3288 = vld [vmem:[%s169 + $0x24] sm:$0xf]
        %v3289 = vld [vmem:[%s169 + $0x28] sm:$0xf]
        %v3290 = vld [vmem:[%s169 + $0x2c] sm:$0xf]
        %v3291 = vld [vmem:[%s169 + $0x30] sm:$0xf]
        %v3292 = vld [vmem:[%s169 + $0x34] sm:$0xf]
        %v3293 = vld [vmem:[%s169 + $0x38] sm:$0xf]
        %v3294 = vld [vmem:[%s169 + $0x3c] sm:$0xf]
        %v3295 = vld [vmem:[%s169 + $0x40] sm:$0xf]
        %v3296 = vld [vmem:[%s169 + $0x44] sm:$0xf]
        %v3297 = vld [vmem:[%s169 + $0x48] sm:$0xf]
        %v3298 = vld [vmem:[%s169 + $0x4c] sm:$0xf]
        %v3299 = vld [vmem:[%s169 + $0x50] sm:$0xf]
        %v3300 = vld [vmem:[%s169 + $0x54] sm:$0xf]
        %v3301 = vld [vmem:[%s169 + $0x58] sm:$0xf]
        %v3302 = vld [vmem:[%s169 + $0x5c] sm:$0xf]
        %v3303 = vld [vmem:[%s169 + $0x60] sm:$0xf]
        %v3304 = vld [vmem:[%s169 + $0x64] sm:$0xf]
        %v3305 = vld [vmem:[%s169 + $0x68] sm:$0xf]
        %v3306 = vld [vmem:[%s169 + $0x6c] sm:$0xf]
        %v3307 = vld [vmem:[%s169 + $0x70] sm:$0xf]
        %v3308 = vld [vmem:[%s169 + $0x74] sm:$0xf]
        %v3309 = vld [vmem:[%s169 + $0x78] sm:$0xf]
        %v3310 = vld [vmem:[%s169 + $0x7c] sm:$0xf]
        %v3311 = vld [vmem:[%s169 + $0x80] sm:$0xf]
        %v3312 = vld [vmem:[%s169 + $0x84] sm:$0xf]
        %v3313 = vld [vmem:[%s169 + $0x88] sm:$0xf]
        %v3314 = vld [vmem:[%s169 + $0x8c] sm:$0xf]
        %v3315 = vld [vmem:[%s169 + $0x90] sm:$0xf]
        %v3316 = vld [vmem:[%s169 + $0x94] sm:$0xf]
        %v3317 = vld [vmem:[%s169 + $0x98] sm:$0xf]
        %v3318 = vld [vmem:[%s169 + $0x9c] sm:$0xf]
        %v3319 = vld [vmem:[%s169 + $0xa0] sm:$0xf]
        %v3320 = vld [vmem:[%s169 + $0xa4] sm:$0xf]
        %v3321 = vld [vmem:[%s169 + $0xa8] sm:$0xf]
        %v3322 = vld [vmem:[%s169 + $0xac] sm:$0xf]
        %v3323 = vld [vmem:[%s169 + $0xb0] sm:$0xf]
        %v3324 = vld [vmem:[%s169 + $0xb4] sm:$0xf]
        %v3325 = vld [vmem:[%s169 + $0xb8] sm:$0xf]
        %v3326 = vld [vmem:[%s169 + $0xbc] sm:$0xf]
        %v3327 = vld [vmem:[%s169 + $0xc0] sm:$0xf]
        %v3328 = vld [vmem:[%s169 + $0xc4] sm:$0xf]
        %v3329 = vld [vmem:[%s169 + $0xc8] sm:$0xf]
        %v3330 = vld [vmem:[%s169 + $0xcc] sm:$0xf]
        %v3331 = vld [vmem:[%s169 + $0xd0] sm:$0xf]
        %v3332 = vld [vmem:[%s169 + $0xd4] sm:$0xf]
        %v3333 = vld [vmem:[%s169 + $0xd8] sm:$0xf]
        %v3334 = vld [vmem:[%s169 + $0xdc] sm:$0xf]
        %v3335 = vld [vmem:[%s169 + $0xe0] sm:$0xf]
        %v3336 = vld [vmem:[%s169 + $0xe4] sm:$0xf]
        %v3337 = vld [vmem:[%s169 + $0xe8] sm:$0xf]
        %v3338 = vld [vmem:[%s169 + $0xec] sm:$0xf]
        %v3339 = vld [vmem:[%s169 + $0xf0] sm:$0xf]
        %v3340 = vld [vmem:[%s169 + $0xf4] sm:$0xf]
        %v3341 = vld [vmem:[%s169 + $0xf8] sm:$0xf]
        %v3342 = vld [vmem:[%s169 + $0xfc] sm:$0xf]
        %v3343 = vld [vmem:[%s169 + $0x100] sm:$0xf]
        %v3344 = vld [vmem:[%s169 + $0x104] sm:$0xf]
        %v3345 = vld [vmem:[%s169 + $0x108] sm:$0xf]
        %v3346 = vld [vmem:[%s169 + $0x10c] sm:$0xf]
        %v3347 = vld [vmem:[%s169 + $0x110] sm:$0xf]
        %v3348 = vld [vmem:[%s169 + $0x114] sm:$0xf]
        %v3349 = vld [vmem:[%s169 + $0x118] sm:$0xf]
        %v3350 = vld [vmem:[%s169 + $0x11c] sm:$0xf]
        %v3351 = vld [vmem:[%s169 + $0x120] sm:$0xf]
        %v3352 = vld [vmem:[%s169 + $0x124] sm:$0xf]
        %v3353 = vld [vmem:[%s169 + $0x128] sm:$0xf]
        %v3354 = vld [vmem:[%s169 + $0x12c] sm:$0xf]
        %v3355 = vld [vmem:[%s169 + $0x130] sm:$0xf]
        %v3356 = vld [vmem:[%s169 + $0x134] sm:$0xf]
        %v3357 = vld [vmem:[%s169 + $0x138] sm:$0xf]
        %v3358 = vld [vmem:[%s169 + $0x13c] sm:$0xf]
        %v3359 = vld [vmem:[%s169 + $0x140] sm:$0xf]
        %v3360 = vld [vmem:[%s169 + $0x144] sm:$0xf]
        %v3361 = vld [vmem:[%s169 + $0x148] sm:$0xf]
        %v3362 = vld [vmem:[%s169 + $0x14c] sm:$0xf]
        %v3363 = vld [vmem:[%s169 + $0x150] sm:$0xf]
        %v3364 = vld [vmem:[%s169 + $0x154] sm:$0xf]
        %v3365 = vld [vmem:[%s169 + $0x158] sm:$0xf]
        %v3366 = vld [vmem:[%s169 + $0x15c] sm:$0xf]
        %v3367 = vld [vmem:[%s169 + $0x160] sm:$0xf]
        %v3368 = vld [vmem:[%s169 + $0x164] sm:$0xf]
        %v3369 = vld [vmem:[%s169 + $0x168] sm:$0xf]
        %v3370 = vld [vmem:[%s169 + $0x16c] sm:$0xf]
        %v3371 = vld [vmem:[%s169 + $0x170] sm:$0xf]
        %v3372 = vld [vmem:[%s169 + $0x174] sm:$0xf]
        %v3373 = vld [vmem:[%s169 + $0x178] sm:$0xf]
        %v3374 = vld [vmem:[%s169 + $0x17c] sm:$0xf]
        %v3375 = vld [vmem:[%s169 + $0x180] sm:$0xf]
        %v3376 = vld [vmem:[%s169 + $0x184] sm:$0xf]
        %v3377 = vld [vmem:[%s169 + $0x188] sm:$0xf]
        %v3378 = vld [vmem:[%s169 + $0x18c] sm:$0xf]
        %v3379 = vld [vmem:[%s169 + $0x190] sm:$0xf]
        %v3380 = vld [vmem:[%s169 + $0x194] sm:$0xf]
        %v3381 = vld [vmem:[%s169 + $0x198] sm:$0xf]
        %v3382 = vld [vmem:[%s169 + $0x19c] sm:$0xf]
        %v3383 = vld [vmem:[%s169 + $0x1a0] sm:$0xf]
        %v3384 = vld [vmem:[%s169 + $0x1a4] sm:$0xf]
        %v3385 = vld [vmem:[%s169 + $0x1a8] sm:$0xf]
        %v3386 = vld [vmem:[%s169 + $0x1ac] sm:$0xf]
        %v3387 = vld [vmem:[%s169 + $0x1b0] sm:$0xf]
        %v3388 = vld [vmem:[%s169 + $0x1b4] sm:$0xf]
        %v3389 = vld [vmem:[%s169 + $0x1b8] sm:$0xf]
        %v3390 = vld [vmem:[%s169 + $0x1bc] sm:$0xf]
        %v3391 = vld [vmem:[%s169 + $0x1c0] sm:$0xf]
        %v3392 = vld [vmem:[%s169 + $0x1c4] sm:$0xf]
        %v3393 = vld [vmem:[%s169 + $0x1c8] sm:$0xf]
        %v3394 = vld [vmem:[%s169 + $0x1cc] sm:$0xf]
        %v3395 = vld [vmem:[%s169 + $0x1d0] sm:$0xf]
        %v3396 = vld [vmem:[%s1 + $0x30] sm:$0xf]
        %v3397 = vld [vmem:[%s1 + $0x34] sm:$0xf]
        %v3398 = vld [vmem:[%s1 + $0x38] sm:$0xf]
        %v3399 = vld [vmem:[%s1 + $0x3c] sm:$0xf]
        %v3515 = vunpack.c.l.b16 %v3281
        %v3516 = vunpack.c.l.b16 %v3282
        %v3517 = vunpack.c.l.b16 %v3283
        %v3518 = vunpack.c.l.b16 %v3284
        %v3519 = vunpack.c.l.b16 %v3285
        %v3520 = vunpack.c.l.b16 %v3286
        %v3521 = vunpack.c.l.b16 %v3287
        %v3522 = vunpack.c.l.b16 %v3288
        %v3523 = vunpack.c.l.b16 %v3289
        %v3524 = vunpack.c.l.b16 %v3290
        %v3525 = vunpack.c.l.b16 %v3291
        %v3526 = vunpack.c.l.b16 %v3292
        %v3527 = vunpack.c.l.b16 %v3293
        %v3528 = vunpack.c.l.b16 %v3294
        %v3529 = vunpack.c.l.b16 %v3295
        %v3530 = vunpack.c.l.b16 %v3296
        %v3531 = vunpack.c.l.b16 %v3297
        %v3532 = vunpack.c.l.b16 %v3298
        %v3533 = vunpack.c.l.b16 %v3299
        %v3534 = vunpack.c.l.b16 %v3300
        %v3535 = vunpack.c.l.b16 %v3301
        %v3536 = vunpack.c.l.b16 %v3302
        %v3537 = vunpack.c.l.b16 %v3303
        %v3538 = vunpack.c.l.b16 %v3304
        %v3539 = vunpack.c.l.b16 %v3305
        %v3540 = vunpack.c.l.b16 %v3306
        %v3541 = vunpack.c.l.b16 %v3307
        %v3542 = vunpack.c.l.b16 %v3308
        %v3543 = vunpack.c.l.b16 %v3309
        %v3544 = vunpack.c.l.b16 %v3310
        %v3545 = vunpack.c.l.b16 %v3311
        %v3546 = vunpack.c.l.b16 %v3312
        %v3547 = vunpack.c.l.b16 %v3313
        %v3548 = vunpack.c.l.b16 %v3314
        %v3549 = vunpack.c.l.b16 %v3315
        %v3550 = vunpack.c.l.b16 %v3316
        %v3551 = vunpack.c.l.b16 %v3317
        %v3552 = vunpack.c.l.b16 %v3318
        %v3553 = vunpack.c.l.b16 %v3319
        %v3554 = vunpack.c.l.b16 %v3320
        %v3555 = vunpack.c.l.b16 %v3321
        %v3556 = vunpack.c.l.b16 %v3322
        %v3557 = vunpack.c.l.b16 %v3323
        %v3558 = vunpack.c.l.b16 %v3324
        %v3559 = vunpack.c.l.b16 %v3325
        %v3560 = vunpack.c.l.b16 %v3326
        %v3561 = vunpack.c.l.b16 %v3327
        %v3562 = vunpack.c.l.b16 %v3328
        %v3563 = vunpack.c.l.b16 %v3329
        %v3564 = vunpack.c.l.b16 %v3330
        %v3565 = vunpack.c.l.b16 %v3331
        %v3566 = vunpack.c.l.b16 %v3332
        %v3567 = vunpack.c.l.b16 %v3333
        %v3568 = vunpack.c.l.b16 %v3334
        %v3569 = vunpack.c.l.b16 %v3335
        %v3570 = vunpack.c.l.b16 %v3336
        %v3571 = vunpack.c.l.b16 %v3337
        %v3572 = vunpack.c.l.b16 %v3338
        %v3573 = vunpack.c.l.b16 %v3339
        %v3574 = vunpack.c.l.b16 %v3340
        %v3575 = vunpack.c.l.b16 %v3341
        %v3576 = vunpack.c.l.b16 %v3342
        %v3577 = vunpack.c.l.b16 %v3343
        %v3578 = vunpack.c.l.b16 %v3344
        %v3579 = vunpack.c.l.b16 %v3345
        %v3580 = vunpack.c.l.b16 %v3346
        %v3581 = vunpack.c.l.b16 %v3347
        %v3582 = vunpack.c.l.b16 %v3348
        %v3583 = vunpack.c.l.b16 %v3349
        %v3584 = vunpack.c.l.b16 %v3350
        %v3585 = vunpack.c.l.b16 %v3351
        %v3586 = vunpack.c.l.b16 %v3352
        %v3587 = vunpack.c.l.b16 %v3353
        %v3588 = vunpack.c.l.b16 %v3354
        %v3589 = vunpack.c.l.b16 %v3355
        %v3590 = vunpack.c.l.b16 %v3356
        %v3591 = vunpack.c.l.b16 %v3357
        %v3592 = vunpack.c.l.b16 %v3358
        %v3593 = vunpack.c.l.b16 %v3359
        %v3594 = vunpack.c.l.b16 %v3360
        %v3595 = vunpack.c.l.b16 %v3361
        %v3596 = vunpack.c.l.b16 %v3362
        %v3597 = vunpack.c.l.b16 %v3363
        %v3598 = vunpack.c.l.b16 %v3364
        %v3599 = vunpack.c.l.b16 %v3365
        %v3600 = vunpack.c.l.b16 %v3366
        %v3601 = vunpack.c.l.b16 %v3367
        %v3602 = vunpack.c.l.b16 %v3368
        %v3603 = vunpack.c.l.b16 %v3369
        %v3604 = vunpack.c.l.b16 %v3370
        %v3605 = vunpack.c.l.b16 %v3371
        %v3606 = vunpack.c.l.b16 %v3372
        %v3607 = vunpack.c.l.b16 %v3373
        %v3608 = vunpack.c.l.b16 %v3374
        %v3609 = vunpack.c.l.b16 %v3375
        %v3610 = vunpack.c.l.b16 %v3376
        %v3611 = vunpack.c.l.b16 %v3377
        %v3612 = vunpack.c.l.b16 %v3378
        %v3613 = vunpack.c.l.b16 %v3379
        %v3614 = vunpack.c.l.b16 %v3380
        %v3615 = vunpack.c.l.b16 %v3381
        %v3616 = vunpack.c.l.b16 %v3382
        %v3617 = vunpack.c.l.b16 %v3383
        %v3618 = vunpack.c.l.b16 %v3384
        %v3619 = vunpack.c.l.b16 %v3385
        %v3620 = vunpack.c.l.b16 %v3386
        %v3621 = vunpack.c.l.b16 %v3387
        %v3622 = vunpack.c.l.b16 %v3388
        %v3623 = vunpack.c.l.b16 %v3389
        %v3624 = vunpack.c.l.b16 %v3390
        %v3625 = vunpack.c.l.b16 %v3391
        %v3626 = vunpack.c.l.b16 %v3392
        %v3627 = vunpack.c.l.b16 %v3393
        %v3628 = vunpack.c.l.b16 %v3394
        %v3629 = vunpack.c.l.b16 %v3395
        %v3630 = vpack.c.b16 %v3516, %v3515
        %v3631 = vpack.c.b16 %v3518, %v3517
        %v3632 = vpack.c.b16 %v3520, %v3519
        %v3633 = vpack.c.b16 %v3522, %v3521
        %v3634 = vpack.c.b16 %v3524, %v3523
        %v3635 = vpack.c.b16 %v3526, %v3525
        %v3636 = vpack.c.b16 %v3528, %v3527
        %v3637 = vpack.c.b16 %v3530, %v3529
        %v3638 = vpack.c.b16 %v3532, %v3531
        %v3639 = vpack.c.b16 %v3534, %v3533
        %v3640 = vpack.c.b16 %v3536, %v3535
        %v3641 = vpack.c.b16 %v3538, %v3537
        %v3642 = vpack.c.b16 %v3540, %v3539
        %v3643 = vpack.c.b16 %v3542, %v3541
        %v3644 = vpack.c.b16 %v3544, %v3543
        %v3645 = vpack.c.b16 %v3546, %v3545
        %v3646 = vpack.c.b16 %v3548, %v3547
        %v3647 = vpack.c.b16 %v3550, %v3549
        %v3648 = vpack.c.b16 %v3552, %v3551
        %v3649 = vpack.c.b16 %v3554, %v3553
        %v3650 = vpack.c.b16 %v3556, %v3555
        %v3651 = vpack.c.b16 %v3558, %v3557
        %v3652 = vpack.c.b16 %v3560, %v3559
        %v3653 = vpack.c.b16 %v3562, %v3561
        %v3654 = vpack.c.b16 %v3564, %v3563
        %v3655 = vpack.c.b16 %v3566, %v3565
        %v3656 = vpack.c.b16 %v3568, %v3567
        %v3657 = vpack.c.b16 %v3570, %v3569
        %v3658 = vpack.c.b16 %v3572, %v3571
        %v3659 = vpack.c.b16 %v3574, %v3573
        %v3660 = vpack.c.b16 %v3576, %v3575
        %v3661 = vpack.c.b16 %v3578, %v3577
        %v3662 = vpack.c.b16 %v3580, %v3579
        %v3663 = vpack.c.b16 %v3582, %v3581
        %v3664 = vpack.c.b16 %v3584, %v3583
        %v3665 = vpack.c.b16 %v3586, %v3585
        %v3666 = vpack.c.b16 %v3588, %v3587
        %v3667 = vpack.c.b16 %v3590, %v3589
        %v3668 = vpack.c.b16 %v3592, %v3591
        %v3669 = vpack.c.b16 %v3594, %v3593
        %v3670 = vpack.c.b16 %v3596, %v3595
        %v3671 = vpack.c.b16 %v3598, %v3597
        %v3672 = vpack.c.b16 %v3600, %v3599
        %v3673 = vpack.c.b16 %v3602, %v3601
        %v3674 = vpack.c.b16 %v3604, %v3603
        %v3675 = vpack.c.b16 %v3606, %v3605
        %v3676 = vpack.c.b16 %v3608, %v3607
        %v3677 = vpack.c.b16 %v3610, %v3609
        %v3678 = vpack.c.b16 %v3612, %v3611
        %v3679 = vpack.c.b16 %v3614, %v3613
        %v3680 = vpack.c.b16 %v3616, %v3615
        %v3681 = vpack.c.b16 %v3618, %v3617
        %v3682 = vpack.c.b16 %v3620, %v3619
        %v3683 = vpack.c.b16 %v3622, %v3621
        %v3684 = vpack.c.b16 %v3624, %v3623
        %v3685 = vpack.c.b16 %v3626, %v3625
        %v3686 = vpack.c.b16 %v3628, %v3627
        %v3687 = vpack.c.b16 %v3629, %v3629
        %v3692 = vunpack.c.l.b16 %v3396
        %v3693 = vunpack.c.l.b16 %v3397
        %v3694 = vunpack.c.l.b16 %v3398
        %v3695 = vunpack.c.l.b16 %v3399
        %v3696 = vpack.c.b16 %v3693, %v3692
        %v3697 = vpack.c.b16 %v3695, %v3694
        %v3701 = vsel %vm1063, %v3630, 0
        %v3704 = vsel %vm1063, %v3631, 0
        %v3707 = vsel %vm1063, %v3632, 0
        %v3710 = vsel %vm1063, %v3633, 0
        %v3713 = vsel %vm1063, %v3634, 0
        %v3716 = vsel %vm1063, %v3635, 0
        %v3719 = vsel %vm1063, %v3636, 0
        %v3722 = vsel %vm1063, %v3637, 0
        %v3725 = vsel %vm1063, %v3638, 0
        %v3728 = vsel %vm1063, %v3639, 0
        %v3731 = vsel %vm1063, %v3640, 0
        %v3734 = vsel %vm1063, %v3641, 0
        %v3737 = vsel %vm1063, %v3642, 0
        %v3740 = vsel %vm1063, %v3643, 0
        %v3743 = vsel %vm1063, %v3644, 0
        %v3746 = vsel %vm1063, %v3645, 0
        %v3749 = vsel %vm1063, %v3646, 0
        %v3752 = vsel %vm1063, %v3647, 0
        %v3755 = vsel %vm1063, %v3648, 0
        %v3758 = vsel %vm1063, %v3649, 0
        %v3761 = vsel %vm1063, %v3650, 0
        %v3764 = vsel %vm1063, %v3651, 0
        %v3767 = vsel %vm1063, %v3652, 0
        %v3770 = vsel %vm1063, %v3653, 0
        %v3773 = vsel %vm1063, %v3654, 0
        %v3776 = vsel %vm1063, %v3655, 0
        %v3779 = vsel %vm1063, %v3656, 0
        %v3782 = vsel %vm1063, %v3657, 0
        %v3785 = vsel %vm1063, %v3658, 0
        %v3788 = vsel %vm1063, %v3659, 0
        %v3791 = vsel %vm1063, %v3660, 0
        %v3794 = vsel %vm1063, %v3661, 0
        %v3797 = vsel %vm1063, %v3662, 0
        %v3800 = vsel %vm1063, %v3663, 0
        %v3803 = vsel %vm1063, %v3664, 0
        %v3806 = vsel %vm1063, %v3665, 0
        %v3809 = vsel %vm1063, %v3666, 0
        %v3812 = vsel %vm1063, %v3667, 0
        %v3815 = vsel %vm1063, %v3668, 0
        %v3818 = vsel %vm1063, %v3669, 0
        %v3821 = vsel %vm1063, %v3670, 0
        %v3824 = vsel %vm1063, %v3671, 0
        %v3827 = vsel %vm1063, %v3672, 0
        %v3830 = vsel %vm1063, %v3673, 0
        %v3833 = vsel %vm1063, %v3674, 0
        %v3836 = vsel %vm1063, %v3675, 0
        %v3839 = vsel %vm1063, %v3676, 0
        %v3842 = vsel %vm1063, %v3677, 0
        %v3845 = vsel %vm1063, %v3678, 0
        %v3848 = vsel %vm1063, %v3679, 0
        %v3851 = vsel %vm1063, %v3680, 0
        %v3854 = vsel %vm1063, %v3681, 0
        %v3857 = vsel %vm1063, %v3682, 0
        %v3860 = vsel %vm1063, %v3683, 0
        %v3863 = vsel %vm1063, %v3684, 0
        %v3866 = vsel %vm1063, %v3685, 0
        %v3869 = vsel %vm1063, %v3686, 0
        %v3872 = vsel %vm1063, %v3687, 0
        %3874 = vmatprep.subr.bf16.mxu0 0
        %3875 = vmatpush1.bf16.msra.mxu0 0
        %3876 = vmatprep.subr.bf16.mxu0 0
        %3877 = vmatpush1.bf16.msra.mxu0 0
        %3878 = vmatprep.subr.bf16.mxu0 0
        %3879 = vmatpush1.bf16.msra.mxu0 0
        %3880 = vmatprep.subr.bf16.mxu0 0
        %3881 = vmatpush1.bf16.msra.mxu0 0
        %3882 = vmatprep.subr.bf16.mxu0 0
        %3883 = vmatpush1.bf16.msra.mxu0 0
        %3884 = vmatprep.subr.bf16.mxu0 0
        %3885 = vmatpush1.bf16.msra.mxu0 0
        %3886 = vmatprep.subr.bf16.mxu0 0
        %3887 = vmatpush1.bf16.msra.mxu0 %v3697
        %3888 = vmatprep.subr.bf16.mxu0 0
        %3889 = vmatpush1.bf16.msra.mxu0 %v3696
        %3890 = vmatprep.subr.bf16.mxu0 0
        %3891 = vmatpush2.bf16.msra.mxu0 0
        %3892 = vmatprep.subr.bf16.mxu0 0
        %3893 = vmatpush2.bf16.msra.mxu0 0
        %3894 = vmatprep.subr.bf16.mxu0 0
        %3895 = vmatpush2.bf16.msra.mxu0 0
        %3896 = vmatprep.subr.bf16.mxu0 0
        %3897 = vmatpush2.bf16.msra.mxu0 0
        %3898 = vmatprep.subr.bf16.mxu0 0
        %3899 = vmatpush2.bf16.msra.mxu0 0
        %3900 = vmatprep.subr.bf16.mxu0 0
        %3901 = vmatpush2.bf16.msra.mxu0 0
        %3902 = vmatprep.subr.bf16.mxu0 0
        %3903 = vmatpush2.bf16.msra.mxu0 0
        %3904 = vmatprep.subr.bf16.mxu0 0
        %3905 = vmatpush2.bf16.msra.mxu0 0
        %3906 = vmatprep.mubr.bf16.mxu0 0
        %3907 = vmatmul.mubr.bf16.gmra.mxu0 %v3701
        %v3908 = vpop.f32.mrf.mxu0
        %v3909 = vadd.f32 0.0, %v3908
        %v3910 = vpop.f32.mrf.mxu0
        %v3911 = vpop.f32.mrf.mxu0
        %v3912 = vadd.f32 0.0, %v3911
        %v3913 = vpop.f32.mrf.mxu0
        %3914 = vmatprep.mubr.bf16.mxu0 0
        %3915 = vmatmul.mubr.bf16.gmra.mxu0 %v3704
        %v3916 = vpop.f32.mrf.mxu0
        %v3917 = vadd.f32 0.0, %v3916
        %v3918 = vpop.f32.mrf.mxu0
        %v3919 = vpop.f32.mrf.mxu0
        %v3920 = vadd.f32 0.0, %v3919
        %v3921 = vpop.f32.mrf.mxu0
        %3922 = vmatprep.mubr.bf16.mxu0 0
        %3923 = vmatmul.mubr.bf16.gmra.mxu0 %v3707
        %v3924 = vpop.f32.mrf.mxu0
        %v3925 = vadd.f32 0.0, %v3924
        %v3926 = vpop.f32.mrf.mxu0
        %v3927 = vpop.f32.mrf.mxu0
        %v3928 = vadd.f32 0.0, %v3927
        %v3929 = vpop.f32.mrf.mxu0
        %3930 = vmatprep.mubr.bf16.mxu0 0
        %3931 = vmatmul.mubr.bf16.gmra.mxu0 %v3710
        %v3932 = vpop.f32.mrf.mxu0
        %v3933 = vadd.f32 0.0, %v3932
        %v3934 = vpop.f32.mrf.mxu0
        %v3935 = vpop.f32.mrf.mxu0
        %v3936 = vadd.f32 0.0, %v3935
        %v3937 = vpop.f32.mrf.mxu0
        %3938 = vmatprep.mubr.bf16.mxu0 0
        %3939 = vmatmul.mubr.bf16.gmra.mxu0 %v3713
        %v3940 = vpop.f32.mrf.mxu0
        %v3941 = vadd.f32 0.0, %v3940
        %v3942 = vpop.f32.mrf.mxu0
        %v3943 = vpop.f32.mrf.mxu0
        %v3944 = vadd.f32 0.0, %v3943
        %v3945 = vpop.f32.mrf.mxu0
        %3946 = vmatprep.mubr.bf16.mxu0 0
        %3947 = vmatmul.mubr.bf16.gmra.mxu0 %v3716
        %v3948 = vpop.f32.mrf.mxu0
        %v3949 = vadd.f32 0.0, %v3948
        %v3950 = vpop.f32.mrf.mxu0
        %v3951 = vpop.f32.mrf.mxu0
        %v3952 = vadd.f32 0.0, %v3951
        %v3953 = vpop.f32.mrf.mxu0
        %3954 = vmatprep.mubr.bf16.mxu0 0
        %3955 = vmatmul.mubr.bf16.gmra.mxu0 %v3719
        %v3956 = vpop.f32.mrf.mxu0
        %v3957 = vadd.f32 0.0, %v3956
        %v3958 = vpop.f32.mrf.mxu0
        %v3959 = vpop.f32.mrf.mxu0
        %v3960 = vadd.f32 0.0, %v3959
        %v3961 = vpop.f32.mrf.mxu0
        %3962 = vmatprep.mubr.bf16.mxu0 0
        %3963 = vmatmul.mubr.bf16.gmra.mxu0 %v3722
        %v3964 = vpop.f32.mrf.mxu0
        %v3965 = vadd.f32 0.0, %v3964
        %v3966 = vpop.f32.mrf.mxu0
        %v3967 = vpop.f32.mrf.mxu0
        %v3968 = vadd.f32 0.0, %v3967
        %v3969 = vpop.f32.mrf.mxu0
        %3970 = vmatprep.mubr.bf16.mxu0 0
        %3971 = vmatmul.mubr.bf16.gmra.mxu0 %v3725
        %v3972 = vpop.f32.mrf.mxu0
        %v3973 = vadd.f32 0.0, %v3972
        %v3974 = vpop.f32.mrf.mxu0
        %v3975 = vpop.f32.mrf.mxu0
        %v3976 = vadd.f32 0.0, %v3975
        %v3977 = vpop.f32.mrf.mxu0
        %3978 = vmatprep.mubr.bf16.mxu0 0
        %3979 = vmatmul.mubr.bf16.gmra.mxu0 %v3728
        %v3980 = vpop.f32.mrf.mxu0
        %v3981 = vadd.f32 0.0, %v3980
        %v3982 = vpop.f32.mrf.mxu0
        %v3983 = vpop.f32.mrf.mxu0
        %v3984 = vadd.f32 0.0, %v3983
        %v3985 = vpop.f32.mrf.mxu0
        %3986 = vmatprep.mubr.bf16.mxu0 0
        %3987 = vmatmul.mubr.bf16.gmra.mxu0 %v3731
        %v3988 = vpop.f32.mrf.mxu0
        %v3989 = vadd.f32 0.0, %v3988
        %v3990 = vpop.f32.mrf.mxu0
        %v3991 = vpop.f32.mrf.mxu0
        %v3992 = vadd.f32 0.0, %v3991
        %v3993 = vpop.f32.mrf.mxu0
        %3994 = vmatprep.mubr.bf16.mxu0 0
        %3995 = vmatmul.mubr.bf16.gmra.mxu0 %v3734
        %v3996 = vpop.f32.mrf.mxu0
        %v3997 = vadd.f32 0.0, %v3996
        %v3998 = vpop.f32.mrf.mxu0
        %v3999 = vpop.f32.mrf.mxu0
        %v4000 = vadd.f32 0.0, %v3999
        %v4001 = vpop.f32.mrf.mxu0
        %4002 = vmatprep.mubr.bf16.mxu0 0
        %4003 = vmatmul.mubr.bf16.gmra.mxu0 %v3737
        %v4004 = vpop.f32.mrf.mxu0
        %v4005 = vadd.f32 0.0, %v4004
        %v4006 = vpop.f32.mrf.mxu0
        %v4007 = vpop.f32.mrf.mxu0
        %v4008 = vadd.f32 0.0, %v4007
        %v4009 = vpop.f32.mrf.mxu0
        %4010 = vmatprep.mubr.bf16.mxu0 0
        %4011 = vmatmul.mubr.bf16.gmra.mxu0 %v3740
        %v4012 = vpop.f32.mrf.mxu0
        %v4013 = vadd.f32 0.0, %v4012
        %v4014 = vpop.f32.mrf.mxu0
        %v4015 = vpop.f32.mrf.mxu0
        %v4016 = vadd.f32 0.0, %v4015
        %v4017 = vpop.f32.mrf.mxu0
        %4018 = vmatprep.mubr.bf16.mxu0 0
        %4019 = vmatmul.mubr.bf16.gmra.mxu0 %v3743
        %v4020 = vpop.f32.mrf.mxu0
        %v4021 = vadd.f32 0.0, %v4020
        %v4022 = vpop.f32.mrf.mxu0
        %v4023 = vpop.f32.mrf.mxu0
        %v4024 = vadd.f32 0.0, %v4023
        %v4025 = vpop.f32.mrf.mxu0
        %4026 = vmatprep.mubr.bf16.mxu0 0
        %4027 = vmatmul.mubr.bf16.gmra.mxu0 %v3746
        %v4028 = vpop.f32.mrf.mxu0
        %v4029 = vadd.f32 0.0, %v4028
        %v4030 = vpop.f32.mrf.mxu0
        %v4031 = vpop.f32.mrf.mxu0
        %v4032 = vadd.f32 0.0, %v4031
        %v4033 = vpop.f32.mrf.mxu0
        %4034 = vmatprep.mubr.bf16.mxu0 0
        %4035 = vmatmul.mubr.bf16.gmra.mxu0 %v3749
        %v4036 = vpop.f32.mrf.mxu0
        %v4037 = vadd.f32 0.0, %v4036
        %v4038 = vpop.f32.mrf.mxu0
        %v4039 = vpop.f32.mrf.mxu0
        %v4040 = vadd.f32 0.0, %v4039
        %v4041 = vpop.f32.mrf.mxu0
        %4042 = vmatprep.mubr.bf16.mxu0 0
        %4043 = vmatmul.mubr.bf16.gmra.mxu0 %v3752
        %v4044 = vpop.f32.mrf.mxu0
        %v4045 = vadd.f32 0.0, %v4044
        %v4046 = vpop.f32.mrf.mxu0
        %v4047 = vpop.f32.mrf.mxu0
        %v4048 = vadd.f32 0.0, %v4047
        %v4049 = vpop.f32.mrf.mxu0
        %4050 = vmatprep.mubr.bf16.mxu0 0
        %4051 = vmatmul.mubr.bf16.gmra.mxu0 %v3755
        %v4052 = vpop.f32.mrf.mxu0
        %v4053 = vadd.f32 0.0, %v4052
        %v4054 = vpop.f32.mrf.mxu0
        %v4055 = vpop.f32.mrf.mxu0
        %v4056 = vadd.f32 0.0, %v4055
        %v4057 = vpop.f32.mrf.mxu0
        %4058 = vmatprep.mubr.bf16.mxu0 0
        %4059 = vmatmul.mubr.bf16.gmra.mxu0 %v3758
        %v4060 = vpop.f32.mrf.mxu0
        %v4061 = vadd.f32 0.0, %v4060
        %v4062 = vpop.f32.mrf.mxu0
        %v4063 = vpop.f32.mrf.mxu0
        %v4064 = vadd.f32 0.0, %v4063
        %v4065 = vpop.f32.mrf.mxu0
        %4066 = vmatprep.mubr.bf16.mxu0 0
        %4067 = vmatmul.mubr.bf16.gmra.mxu0 %v3761
        %v4068 = vpop.f32.mrf.mxu0
        %v4069 = vadd.f32 0.0, %v4068
        %v4070 = vpop.f32.mrf.mxu0
        %v4071 = vpop.f32.mrf.mxu0
        %v4072 = vadd.f32 0.0, %v4071
        %v4073 = vpop.f32.mrf.mxu0
        %4074 = vmatprep.mubr.bf16.mxu0 0
        %4075 = vmatmul.mubr.bf16.gmra.mxu0 %v3764
        %v4076 = vpop.f32.mrf.mxu0
        %v4077 = vadd.f32 0.0, %v4076
        %v4078 = vpop.f32.mrf.mxu0
        %v4079 = vpop.f32.mrf.mxu0
        %v4080 = vadd.f32 0.0, %v4079
        %v4081 = vpop.f32.mrf.mxu0
        %4082 = vmatprep.mubr.bf16.mxu0 0
        %4083 = vmatmul.mubr.bf16.gmra.mxu0 %v3767
        %v4084 = vpop.f32.mrf.mxu0
        %v4085 = vadd.f32 0.0, %v4084
        %v4086 = vpop.f32.mrf.mxu0
        %v4087 = vpop.f32.mrf.mxu0
        %v4088 = vadd.f32 0.0, %v4087
        %v4089 = vpop.f32.mrf.mxu0
        %4090 = vmatprep.mubr.bf16.mxu0 0
        %4091 = vmatmul.mubr.bf16.gmra.mxu0 %v3770
        %v4092 = vpop.f32.mrf.mxu0
        %v4093 = vadd.f32 0.0, %v4092
        %v4094 = vpop.f32.mrf.mxu0
        %v4095 = vpop.f32.mrf.mxu0
        %v4096 = vadd.f32 0.0, %v4095
        %v4097 = vpop.f32.mrf.mxu0
        %4098 = vmatprep.mubr.bf16.mxu0 0
        %4099 = vmatmul.mubr.bf16.gmra.mxu0 %v3773
        %v4100 = vpop.f32.mrf.mxu0
        %v4101 = vadd.f32 0.0, %v4100
        %v4102 = vpop.f32.mrf.mxu0
        %v4103 = vpop.f32.mrf.mxu0
        %v4104 = vadd.f32 0.0, %v4103
        %v4105 = vpop.f32.mrf.mxu0
        %4106 = vmatprep.mubr.bf16.mxu0 0
        %4107 = vmatmul.mubr.bf16.gmra.mxu0 %v3776
        %v4108 = vpop.f32.mrf.mxu0
        %v4109 = vadd.f32 0.0, %v4108
        %v4110 = vpop.f32.mrf.mxu0
        %v4111 = vpop.f32.mrf.mxu0
        %v4112 = vadd.f32 0.0, %v4111
        %v4113 = vpop.f32.mrf.mxu0
        %4114 = vmatprep.mubr.bf16.mxu0 0
        %4115 = vmatmul.mubr.bf16.gmra.mxu0 %v3779
        %v4116 = vpop.f32.mrf.mxu0
        %v4117 = vadd.f32 0.0, %v4116
        %v4118 = vpop.f32.mrf.mxu0
        %v4119 = vpop.f32.mrf.mxu0
        %v4120 = vadd.f32 0.0, %v4119
        %v4121 = vpop.f32.mrf.mxu0
        %4122 = vmatprep.mubr.bf16.mxu0 0
        %4123 = vmatmul.mubr.bf16.gmra.mxu0 %v3782
        %v4124 = vpop.f32.mrf.mxu0
        %v4125 = vadd.f32 0.0, %v4124
        %v4126 = vpop.f32.mrf.mxu0
        %v4127 = vpop.f32.mrf.mxu0
        %v4128 = vadd.f32 0.0, %v4127
        %v4129 = vpop.f32.mrf.mxu0
        %4130 = vmatprep.mubr.bf16.mxu0 0
        %4131 = vmatmul.mubr.bf16.gmra.mxu0 %v3785
        %v4132 = vpop.f32.mrf.mxu0
        %v4133 = vadd.f32 0.0, %v4132
        %v4134 = vpop.f32.mrf.mxu0
        %v4135 = vpop.f32.mrf.mxu0
        %v4136 = vadd.f32 0.0, %v4135
        %v4137 = vpop.f32.mrf.mxu0
        %4138 = vmatprep.mubr.bf16.mxu0 0
        %4139 = vmatmul.mubr.bf16.gmra.mxu0 %v3788
        %v4140 = vpop.f32.mrf.mxu0
        %v4141 = vadd.f32 0.0, %v4140
        %v4142 = vpop.f32.mrf.mxu0
        %v4143 = vpop.f32.mrf.mxu0
        %v4144 = vadd.f32 0.0, %v4143
        %v4145 = vpop.f32.mrf.mxu0
        %4146 = vmatprep.mubr.bf16.mxu0 0
        %4147 = vmatmul.mubr.bf16.gmra.mxu0 %v3791
        %v4148 = vpop.f32.mrf.mxu0
        %v4149 = vadd.f32 0.0, %v4148
        %v4150 = vpop.f32.mrf.mxu0
        %v4151 = vpop.f32.mrf.mxu0
        %v4152 = vadd.f32 0.0, %v4151
        %v4153 = vpop.f32.mrf.mxu0
        %4154 = vmatprep.mubr.bf16.mxu0 0
        %4155 = vmatmul.mubr.bf16.gmra.mxu0 %v3794
        %v4156 = vpop.f32.mrf.mxu0
        %v4157 = vadd.f32 0.0, %v4156
        %v4158 = vpop.f32.mrf.mxu0
        %v4159 = vpop.f32.mrf.mxu0
        %v4160 = vadd.f32 0.0, %v4159
        %v4161 = vpop.f32.mrf.mxu0
        %4162 = vmatprep.mubr.bf16.mxu0 0
        %4163 = vmatmul.mubr.bf16.gmra.mxu0 %v3797
        %v4164 = vpop.f32.mrf.mxu0
        %v4165 = vadd.f32 0.0, %v4164
        %v4166 = vpop.f32.mrf.mxu0
        %v4167 = vpop.f32.mrf.mxu0
        %v4168 = vadd.f32 0.0, %v4167
        %v4169 = vpop.f32.mrf.mxu0
        %4170 = vmatprep.mubr.bf16.mxu0 0
        %4171 = vmatmul.mubr.bf16.gmra.mxu0 %v3800
        %v4172 = vpop.f32.mrf.mxu0
        %v4173 = vadd.f32 0.0, %v4172
        %v4174 = vpop.f32.mrf.mxu0
        %v4175 = vpop.f32.mrf.mxu0
        %v4176 = vadd.f32 0.0, %v4175
        %v4177 = vpop.f32.mrf.mxu0
        %4178 = vmatprep.mubr.bf16.mxu0 0
        %4179 = vmatmul.mubr.bf16.gmra.mxu0 %v3803
        %v4180 = vpop.f32.mrf.mxu0
        %v4181 = vadd.f32 0.0, %v4180
        %v4182 = vpop.f32.mrf.mxu0
        %v4183 = vpop.f32.mrf.mxu0
        %v4184 = vadd.f32 0.0, %v4183
        %v4185 = vpop.f32.mrf.mxu0
        %4186 = vmatprep.mubr.bf16.mxu0 0
        %4187 = vmatmul.mubr.bf16.gmra.mxu0 %v3806
        %v4188 = vpop.f32.mrf.mxu0
        %v4189 = vadd.f32 0.0, %v4188
        %v4190 = vpop.f32.mrf.mxu0
        %v4191 = vpop.f32.mrf.mxu0
        %v4192 = vadd.f32 0.0, %v4191
        %v4193 = vpop.f32.mrf.mxu0
        %4194 = vmatprep.mubr.bf16.mxu0 0
        %4195 = vmatmul.mubr.bf16.gmra.mxu0 %v3809
        %v4196 = vpop.f32.mrf.mxu0
        %v4197 = vadd.f32 0.0, %v4196
        %v4198 = vpop.f32.mrf.mxu0
        %v4199 = vpop.f32.mrf.mxu0
        %v4200 = vadd.f32 0.0, %v4199
        %v4201 = vpop.f32.mrf.mxu0
        %4202 = vmatprep.mubr.bf16.mxu0 0
        %4203 = vmatmul.mubr.bf16.gmra.mxu0 %v3812
        %v4204 = vpop.f32.mrf.mxu0
        %v4205 = vadd.f32 0.0, %v4204
        %v4206 = vpop.f32.mrf.mxu0
        %v4207 = vpop.f32.mrf.mxu0
        %v4208 = vadd.f32 0.0, %v4207
        %v4209 = vpop.f32.mrf.mxu0
        %4210 = vmatprep.mubr.bf16.mxu0 0
        %4211 = vmatmul.mubr.bf16.gmra.mxu0 %v3815
        %v4212 = vpop.f32.mrf.mxu0
        %v4213 = vadd.f32 0.0, %v4212
        %v4214 = vpop.f32.mrf.mxu0
        %v4215 = vpop.f32.mrf.mxu0
        %v4216 = vadd.f32 0.0, %v4215
        %v4217 = vpop.f32.mrf.mxu0
        %4218 = vmatprep.mubr.bf16.mxu0 0
        %4219 = vmatmul.mubr.bf16.gmra.mxu0 %v3818
        %v4220 = vpop.f32.mrf.mxu0
        %v4221 = vadd.f32 0.0, %v4220
        %v4222 = vpop.f32.mrf.mxu0
        %v4223 = vpop.f32.mrf.mxu0
        %v4224 = vadd.f32 0.0, %v4223
        %v4225 = vpop.f32.mrf.mxu0
        %4226 = vmatprep.mubr.bf16.mxu0 0
        %4227 = vmatmul.mubr.bf16.gmra.mxu0 %v3821
        %v4228 = vpop.f32.mrf.mxu0
        %v4229 = vadd.f32 0.0, %v4228
        %v4230 = vpop.f32.mrf.mxu0
        %v4231 = vpop.f32.mrf.mxu0
        %v4232 = vadd.f32 0.0, %v4231
        %v4233 = vpop.f32.mrf.mxu0
        %4234 = vmatprep.mubr.bf16.mxu0 0
        %4235 = vmatmul.mubr.bf16.gmra.mxu0 %v3824
        %v4236 = vpop.f32.mrf.mxu0
        %v4237 = vadd.f32 0.0, %v4236
        %v4238 = vpop.f32.mrf.mxu0
        %v4239 = vpop.f32.mrf.mxu0
        %v4240 = vadd.f32 0.0, %v4239
        %v4241 = vpop.f32.mrf.mxu0
        %4242 = vmatprep.mubr.bf16.mxu0 0
        %4243 = vmatmul.mubr.bf16.gmra.mxu0 %v3827
        %v4244 = vpop.f32.mrf.mxu0
        %v4245 = vadd.f32 0.0, %v4244
        %v4246 = vpop.f32.mrf.mxu0
        %v4247 = vpop.f32.mrf.mxu0
        %v4248 = vadd.f32 0.0, %v4247
        %v4249 = vpop.f32.mrf.mxu0
        %4250 = vmatprep.mubr.bf16.mxu0 0
        %4251 = vmatmul.mubr.bf16.gmra.mxu0 %v3830
        %v4252 = vpop.f32.mrf.mxu0
        %v4253 = vadd.f32 0.0, %v4252
        %v4254 = vpop.f32.mrf.mxu0
        %v4255 = vpop.f32.mrf.mxu0
        %v4256 = vadd.f32 0.0, %v4255
        %v4257 = vpop.f32.mrf.mxu0
        %4258 = vmatprep.mubr.bf16.mxu0 0
        %4259 = vmatmul.mubr.bf16.gmra.mxu0 %v3833
        %v4260 = vpop.f32.mrf.mxu0
        %v4261 = vadd.f32 0.0, %v4260
        %v4262 = vpop.f32.mrf.mxu0
        %v4263 = vpop.f32.mrf.mxu0
        %v4264 = vadd.f32 0.0, %v4263
        %v4265 = vpop.f32.mrf.mxu0
        %4266 = vmatprep.mubr.bf16.mxu0 0
        %4267 = vmatmul.mubr.bf16.gmra.mxu0 %v3836
        %v4268 = vpop.f32.mrf.mxu0
        %v4269 = vadd.f32 0.0, %v4268
        %v4270 = vpop.f32.mrf.mxu0
        %v4271 = vpop.f32.mrf.mxu0
        %v4272 = vadd.f32 0.0, %v4271
        %v4273 = vpop.f32.mrf.mxu0
        %4274 = vmatprep.mubr.bf16.mxu0 0
        %4275 = vmatmul.mubr.bf16.gmra.mxu0 %v3839
        %v4276 = vpop.f32.mrf.mxu0
        %v4277 = vadd.f32 0.0, %v4276
        %v4278 = vpop.f32.mrf.mxu0
        %v4279 = vpop.f32.mrf.mxu0
        %v4280 = vadd.f32 0.0, %v4279
        %v4281 = vpop.f32.mrf.mxu0
        %4282 = vmatprep.mubr.bf16.mxu0 0
        %4283 = vmatmul.mubr.bf16.gmra.mxu0 %v3842
        %v4284 = vpop.f32.mrf.mxu0
        %v4285 = vadd.f32 0.0, %v4284
        %v4286 = vpop.f32.mrf.mxu0
        %v4287 = vpop.f32.mrf.mxu0
        %v4288 = vadd.f32 0.0, %v4287
        %v4289 = vpop.f32.mrf.mxu0
        %4290 = vmatprep.mubr.bf16.mxu0 0
        %4291 = vmatmul.mubr.bf16.gmra.mxu0 %v3845
        %v4292 = vpop.f32.mrf.mxu0
        %v4293 = vadd.f32 0.0, %v4292
        %v4294 = vpop.f32.mrf.mxu0
        %v4295 = vpop.f32.mrf.mxu0
        %v4296 = vadd.f32 0.0, %v4295
        %v4297 = vpop.f32.mrf.mxu0
        %4298 = vmatprep.mubr.bf16.mxu0 0
        %4299 = vmatmul.mubr.bf16.gmra.mxu0 %v3848
        %v4300 = vpop.f32.mrf.mxu0
        %v4301 = vadd.f32 0.0, %v4300
        %v4302 = vpop.f32.mrf.mxu0
        %v4303 = vpop.f32.mrf.mxu0
        %v4304 = vadd.f32 0.0, %v4303
        %v4305 = vpop.f32.mrf.mxu0
        %4306 = vmatprep.mubr.bf16.mxu0 0
        %4307 = vmatmul.mubr.bf16.gmra.mxu0 %v3851
        %v4308 = vpop.f32.mrf.mxu0
        %v4309 = vadd.f32 0.0, %v4308
        %v4310 = vpop.f32.mrf.mxu0
        %v4311 = vpop.f32.mrf.mxu0
        %v4312 = vadd.f32 0.0, %v4311
        %v4313 = vpop.f32.mrf.mxu0
        %4314 = vmatprep.mubr.bf16.mxu0 0
        %4315 = vmatmul.mubr.bf16.gmra.mxu0 %v3854
        %v4316 = vpop.f32.mrf.mxu0
        %v4317 = vadd.f32 0.0, %v4316
        %v4318 = vpop.f32.mrf.mxu0
        %v4319 = vpop.f32.mrf.mxu0
        %v4320 = vadd.f32 0.0, %v4319
        %v4321 = vpop.f32.mrf.mxu0
        %4322 = vmatprep.mubr.bf16.mxu0 0
        %4323 = vmatmul.mubr.bf16.gmra.mxu0 %v3857
        %v4324 = vpop.f32.mrf.mxu0
        %v4325 = vadd.f32 0.0, %v4324
        %v4326 = vpop.f32.mrf.mxu0
        %v4327 = vpop.f32.mrf.mxu0
        %v4328 = vadd.f32 0.0, %v4327
        %v4329 = vpop.f32.mrf.mxu0
        %4330 = vmatprep.mubr.bf16.mxu0 0
        %4331 = vmatmul.mubr.bf16.gmra.mxu0 %v3860
        %v4332 = vpop.f32.mrf.mxu0
        %v4333 = vadd.f32 0.0, %v4332
        %v4334 = vpop.f32.mrf.mxu0
        %v4335 = vpop.f32.mrf.mxu0
        %v4336 = vadd.f32 0.0, %v4335
        %v4337 = vpop.f32.mrf.mxu0
        %4338 = vmatprep.mubr.bf16.mxu0 0
        %4339 = vmatmul.mubr.bf16.gmra.mxu0 %v3863
        %v4340 = vpop.f32.mrf.mxu0
        %v4341 = vadd.f32 0.0, %v4340
        %v4342 = vpop.f32.mrf.mxu0
        %v4343 = vpop.f32.mrf.mxu0
        %v4344 = vadd.f32 0.0, %v4343
        %v4345 = vpop.f32.mrf.mxu0
        %4346 = vmatprep.mubr.bf16.mxu0 0
        %4347 = vmatmul.mubr.bf16.gmra.mxu0 %v3866
        %v4348 = vpop.f32.mrf.mxu0
        %v4349 = vadd.f32 0.0, %v4348
        %v4350 = vpop.f32.mrf.mxu0
        %v4351 = vpop.f32.mrf.mxu0
        %v4352 = vadd.f32 0.0, %v4351
        %v4353 = vpop.f32.mrf.mxu0
        %4354 = vmatprep.mubr.bf16.mxu0 0
        %4355 = vmatmul.mubr.bf16.gmra.mxu0 %v3869
        %v4356 = vpop.f32.mrf.mxu0
        %v4357 = vadd.f32 0.0, %v4356
        %v4358 = vpop.f32.mrf.mxu0
        %v4359 = vpop.f32.mrf.mxu0
        %v4360 = vadd.f32 0.0, %v4359
        %v4361 = vpop.f32.mrf.mxu0
        %4362 = vmatprep.mubr.bf16.mxu0 0
        %4363 = vmatmul.mubr.bf16.gmra.mxu0 %v3872
        %v4364 = vpop.f32.mrf.mxu0
        %v4365 = vadd.f32 0.0, %v4364
        %v4366 = vpop.f32.mrf.mxu0
        %v4367 = vpop.f32.mrf.mxu0
        %v4368 = vpop.f32.mrf.mxu0
        %4369 = vdwg.mxu0
        %v4370 = vadd.f32 %v3166, %v3909
        %v4371 = vadd.f32 %v3167, %v3912
        %v4372 = vadd.f32 %v3168, %v3917
        %v4373 = vadd.f32 %v3169, %v3920
        %v4374 = vadd.f32 %v3170, %v3925
        %v4375 = vadd.f32 %v3171, %v3928
        %v4376 = vadd.f32 %v3172, %v3933
        %v4377 = vadd.f32 %v3173, %v3936
        %v4378 = vadd.f32 %v3174, %v3941
        %v4379 = vadd.f32 %v3175, %v3944
        %v4380 = vadd.f32 %v3176, %v3949
        %v4381 = vadd.f32 %v3177, %v3952
        %v4382 = vadd.f32 %v3178, %v3957
        %v4383 = vadd.f32 %v3179, %v3960
        %v4384 = vadd.f32 %v3180, %v3965
        %v4385 = vadd.f32 %v3181, %v3968
        %v4386 = vadd.f32 %v3182, %v3973
        %v4387 = vadd.f32 %v3183, %v3976
        %v4388 = vadd.f32 %v3184, %v3981
        %v4389 = vadd.f32 %v3185, %v3984
        %v4390 = vadd.f32 %v3186, %v3989
        %v4391 = vadd.f32 %v3187, %v3992
        %v4392 = vadd.f32 %v3188, %v3997
        %v4393 = vadd.f32 %v3189, %v4000
        %v4394 = vadd.f32 %v3190, %v4005
        %v4395 = vadd.f32 %v3191, %v4008
        %v4396 = vadd.f32 %v3192, %v4013
        %v4397 = vadd.f32 %v3193, %v4016
        %v4398 = vadd.f32 %v3194, %v4021
        %v4399 = vadd.f32 %v3195, %v4024
        %v4400 = vadd.f32 %v3196, %v4029
        %v4401 = vadd.f32 %v3197, %v4032
        %v4402 = vadd.f32 %v3198, %v4037
        %v4403 = vadd.f32 %v3199, %v4040
        %v4404 = vadd.f32 %v3200, %v4045
        %v4405 = vadd.f32 %v3201, %v4048
        %v4406 = vadd.f32 %v3202, %v4053
        %v4407 = vadd.f32 %v3203, %v4056
        %v4408 = vadd.f32 %v3204, %v4061
        %v4409 = vadd.f32 %v3205, %v4064
        %v4410 = vadd.f32 %v3206, %v4069
        %v4411 = vadd.f32 %v3207, %v4072
        %v4412 = vadd.f32 %v3208, %v4077
        %v4413 = vadd.f32 %v3209, %v4080
        %v4414 = vadd.f32 %v3210, %v4085
        %v4415 = vadd.f32 %v3211, %v4088
        %v4416 = vadd.f32 %v3212, %v4093
        %v4417 = vadd.f32 %v3213, %v4096
        %v4418 = vadd.f32 %v3214, %v4101
        %v4419 = vadd.f32 %v3215, %v4104
        %v4420 = vadd.f32 %v3216, %v4109
        %v4421 = vadd.f32 %v3217, %v4112
        %v4422 = vadd.f32 %v3218, %v4117
        %v4423 = vadd.f32 %v3219, %v4120
        %v4424 = vadd.f32 %v3220, %v4125
        %v4425 = vadd.f32 %v3221, %v4128
        %v4426 = vadd.f32 %v3222, %v4133
        %v4427 = vadd.f32 %v3223, %v4136
        %v4428 = vadd.f32 %v3224, %v4141
        %v4429 = vadd.f32 %v3225, %v4144
        %v4430 = vadd.f32 %v3226, %v4149
        %v4431 = vadd.f32 %v3227, %v4152
        %v4432 = vadd.f32 %v3228, %v4157
        %v4433 = vadd.f32 %v3229, %v4160
        %v4434 = vadd.f32 %v3230, %v4165
        %v4435 = vadd.f32 %v3231, %v4168
        %v4436 = vadd.f32 %v3232, %v4173
        %v4437 = vadd.f32 %v3233, %v4176
        %v4438 = vadd.f32 %v3234, %v4181
        %v4439 = vadd.f32 %v3235, %v4184
        %v4440 = vadd.f32 %v3236, %v4189
        %v4441 = vadd.f32 %v3237, %v4192
        %v4442 = vadd.f32 %v3238, %v4197
        %v4443 = vadd.f32 %v3239, %v4200
        %v4444 = vadd.f32 %v3240, %v4205
        %v4445 = vadd.f32 %v3241, %v4208
        %v4446 = vadd.f32 %v3242, %v4213
        %v4447 = vadd.f32 %v3243, %v4216
        %v4448 = vadd.f32 %v3244, %v4221
        %v4449 = vadd.f32 %v3245, %v4224
        %v4450 = vadd.f32 %v3246, %v4229
        %v4451 = vadd.f32 %v3247, %v4232
        %v4452 = vadd.f32 %v3248, %v4237
        %v4453 = vadd.f32 %v3249, %v4240
        %v4454 = vadd.f32 %v3250, %v4245
        %v4455 = vadd.f32 %v3251, %v4248
        %v4456 = vadd.f32 %v3252, %v4253
        %v4457 = vadd.f32 %v3253, %v4256
        %v4458 = vadd.f32 %v3254, %v4261
        %v4459 = vadd.f32 %v3255, %v4264
        %v4460 = vadd.f32 %v3256, %v4269
        %v4461 = vadd.f32 %v3257, %v4272
        %v4462 = vadd.f32 %v3258, %v4277
        %v4463 = vadd.f32 %v3259, %v4280
        %v4464 = vadd.f32 %v3260, %v4285
        %v4465 = vadd.f32 %v3261, %v4288
        %v4466 = vadd.f32 %v3262, %v4293
        %v4467 = vadd.f32 %v3263, %v4296
        %v4468 = vadd.f32 %v3264, %v4301
        %v4469 = vadd.f32 %v3265, %v4304
        %v4470 = vadd.f32 %v3266, %v4309
        %v4471 = vadd.f32 %v3267, %v4312
        %v4472 = vadd.f32 %v3268, %v4317
        %v4473 = vadd.f32 %v3269, %v4320
        %v4474 = vadd.f32 %v3270, %v4325
        %v4475 = vadd.f32 %v3271, %v4328
        %v4476 = vadd.f32 %v3272, %v4333
        %v4477 = vadd.f32 %v3273, %v4336
        %v4478 = vadd.f32 %v3274, %v4341
        %v4479 = vadd.f32 %v3275, %v4344
        %v4480 = vadd.f32 %v3276, %v4349
        %v4481 = vadd.f32 %v3277, %v4352
        %v4482 = vadd.f32 %v3278, %v4357
        %v4483 = vadd.f32 %v3279, %v4360
        %v4484 = vadd.f32 %v3280, %v4365
        %v4485 = vld [vmem:[%s169 + $0x8] sm:$0xf]
        %v4486 = vld [vmem:[%s169 + $0xc] sm:$0xf]
        %v4487 = vld [vmem:[%s169 + $0x10] sm:$0xf]
        %v4488 = vld [vmem:[%s169 + $0x14] sm:$0xf]
        %v4489 = vld [vmem:[%s169 + $0x18] sm:$0xf]
        %v4490 = vld [vmem:[%s169 + $0x1c] sm:$0xf]
        %v4491 = vld [vmem:[%s169 + $0x20] sm:$0xf]
        %v4492 = vld [vmem:[%s169 + $0x24] sm:$0xf]
        %v4493 = vld [vmem:[%s169 + $0x28] sm:$0xf]
        %v4494 = vld [vmem:[%s169 + $0x2c] sm:$0xf]
        %v4495 = vld [vmem:[%s169 + $0x30] sm:$0xf]
        %v4496 = vld [vmem:[%s169 + $0x34] sm:$0xf]
        %v4497 = vld [vmem:[%s169 + $0x38] sm:$0xf]
        %v4498 = vld [vmem:[%s169 + $0x3c] sm:$0xf]
        %v4499 = vld [vmem:[%s169 + $0x40] sm:$0xf]
        %v4500 = vld [vmem:[%s169 + $0x44] sm:$0xf]
        %v4501 = vld [vmem:[%s169 + $0x48] sm:$0xf]
        %v4502 = vld [vmem:[%s169 + $0x4c] sm:$0xf]
        %v4503 = vld [vmem:[%s169 + $0x50] sm:$0xf]
        %v4504 = vld [vmem:[%s169 + $0x54] sm:$0xf]
        %v4505 = vld [vmem:[%s169 + $0x58] sm:$0xf]
        %v4506 = vld [vmem:[%s169 + $0x5c] sm:$0xf]
        %v4507 = vld [vmem:[%s169 + $0x60] sm:$0xf]
        %v4508 = vld [vmem:[%s169 + $0x64] sm:$0xf]
        %v4509 = vld [vmem:[%s169 + $0x68] sm:$0xf]
        %v4510 = vld [vmem:[%s169 + $0x6c] sm:$0xf]
        %v4511 = vld [vmem:[%s169 + $0x70] sm:$0xf]
        %v4512 = vld [vmem:[%s169 + $0x74] sm:$0xf]
        %v4513 = vld [vmem:[%s169 + $0x78] sm:$0xf]
        %v4514 = vld [vmem:[%s169 + $0x7c] sm:$0xf]
        %v4515 = vld [vmem:[%s169 + $0x80] sm:$0xf]
        %v4516 = vld [vmem:[%s169 + $0x84] sm:$0xf]
        %v4517 = vld [vmem:[%s169 + $0x88] sm:$0xf]
        %v4518 = vld [vmem:[%s169 + $0x8c] sm:$0xf]
        %v4519 = vld [vmem:[%s169 + $0x90] sm:$0xf]
        %v4520 = vld [vmem:[%s169 + $0x94] sm:$0xf]
        %v4521 = vld [vmem:[%s169 + $0x98] sm:$0xf]
        %v4522 = vld [vmem:[%s169 + $0x9c] sm:$0xf]
        %v4523 = vld [vmem:[%s169 + $0xa0] sm:$0xf]
        %v4524 = vld [vmem:[%s169 + $0xa4] sm:$0xf]
        %v4525 = vld [vmem:[%s169 + $0xa8] sm:$0xf]
        %v4526 = vld [vmem:[%s169 + $0xac] sm:$0xf]
        %v4527 = vld [vmem:[%s169 + $0xb0] sm:$0xf]
        %v4528 = vld [vmem:[%s169 + $0xb4] sm:$0xf]
        %v4529 = vld [vmem:[%s169 + $0xb8] sm:$0xf]
        %v4530 = vld [vmem:[%s169 + $0xbc] sm:$0xf]
        %v4531 = vld [vmem:[%s169 + $0xc0] sm:$0xf]
        %v4532 = vld [vmem:[%s169 + $0xc4] sm:$0xf]
        %v4533 = vld [vmem:[%s169 + $0xc8] sm:$0xf]
        %v4534 = vld [vmem:[%s169 + $0xcc] sm:$0xf]
        %v4535 = vld [vmem:[%s169 + $0xd0] sm:$0xf]
        %v4536 = vld [vmem:[%s169 + $0xd4] sm:$0xf]
        %v4537 = vld [vmem:[%s169 + $0xd8] sm:$0xf]
        %v4538 = vld [vmem:[%s169 + $0xdc] sm:$0xf]
        %v4539 = vld [vmem:[%s169 + $0xe0] sm:$0xf]
        %v4540 = vld [vmem:[%s169 + $0xe4] sm:$0xf]
        %v4541 = vld [vmem:[%s169 + $0xe8] sm:$0xf]
        %v4542 = vld [vmem:[%s169 + $0xec] sm:$0xf]
        %v4543 = vld [vmem:[%s169 + $0xf0] sm:$0xf]
        %v4544 = vld [vmem:[%s169 + $0xf4] sm:$0xf]
        %v4545 = vld [vmem:[%s169 + $0xf8] sm:$0xf]
        %v4546 = vld [vmem:[%s169 + $0xfc] sm:$0xf]
        %v4547 = vld [vmem:[%s169 + $0x100] sm:$0xf]
        %v4548 = vld [vmem:[%s169 + $0x104] sm:$0xf]
        %v4549 = vld [vmem:[%s169 + $0x108] sm:$0xf]
        %v4550 = vld [vmem:[%s169 + $0x10c] sm:$0xf]
        %v4551 = vld [vmem:[%s169 + $0x110] sm:$0xf]
        %v4552 = vld [vmem:[%s169 + $0x114] sm:$0xf]
        %v4553 = vld [vmem:[%s169 + $0x118] sm:$0xf]
        %v4554 = vld [vmem:[%s169 + $0x11c] sm:$0xf]
        %v4555 = vld [vmem:[%s169 + $0x120] sm:$0xf]
        %v4556 = vld [vmem:[%s169 + $0x124] sm:$0xf]
        %v4557 = vld [vmem:[%s169 + $0x128] sm:$0xf]
        %v4558 = vld [vmem:[%s169 + $0x12c] sm:$0xf]
        %v4559 = vld [vmem:[%s169 + $0x130] sm:$0xf]
        %v4560 = vld [vmem:[%s169 + $0x134] sm:$0xf]
        %v4561 = vld [vmem:[%s169 + $0x138] sm:$0xf]
        %v4562 = vld [vmem:[%s169 + $0x13c] sm:$0xf]
        %v4563 = vld [vmem:[%s169 + $0x140] sm:$0xf]
        %v4564 = vld [vmem:[%s169 + $0x144] sm:$0xf]
        %v4565 = vld [vmem:[%s169 + $0x148] sm:$0xf]
        %v4566 = vld [vmem:[%s169 + $0x14c] sm:$0xf]
        %v4567 = vld [vmem:[%s169 + $0x150] sm:$0xf]
        %v4568 = vld [vmem:[%s169 + $0x154] sm:$0xf]
        %v4569 = vld [vmem:[%s169 + $0x158] sm:$0xf]
        %v4570 = vld [vmem:[%s169 + $0x15c] sm:$0xf]
        %v4571 = vld [vmem:[%s169 + $0x160] sm:$0xf]
        %v4572 = vld [vmem:[%s169 + $0x164] sm:$0xf]
        %v4573 = vld [vmem:[%s169 + $0x168] sm:$0xf]
        %v4574 = vld [vmem:[%s169 + $0x16c] sm:$0xf]
        %v4575 = vld [vmem:[%s169 + $0x170] sm:$0xf]
        %v4576 = vld [vmem:[%s169 + $0x174] sm:$0xf]
        %v4577 = vld [vmem:[%s169 + $0x178] sm:$0xf]
        %v4578 = vld [vmem:[%s169 + $0x17c] sm:$0xf]
        %v4579 = vld [vmem:[%s169 + $0x180] sm:$0xf]
        %v4580 = vld [vmem:[%s169 + $0x184] sm:$0xf]
        %v4581 = vld [vmem:[%s169 + $0x188] sm:$0xf]
        %v4582 = vld [vmem:[%s169 + $0x18c] sm:$0xf]
        %v4583 = vld [vmem:[%s169 + $0x190] sm:$0xf]
        %v4584 = vld [vmem:[%s169 + $0x194] sm:$0xf]
        %v4585 = vld [vmem:[%s169 + $0x198] sm:$0xf]
        %v4586 = vld [vmem:[%s169 + $0x19c] sm:$0xf]
        %v4587 = vld [vmem:[%s169 + $0x1a0] sm:$0xf]
        %v4588 = vld [vmem:[%s169 + $0x1a4] sm:$0xf]
        %v4589 = vld [vmem:[%s169 + $0x1a8] sm:$0xf]
        %v4590 = vld [vmem:[%s169 + $0x1ac] sm:$0xf]
        %v4591 = vld [vmem:[%s169 + $0x1b0] sm:$0xf]
        %v4592 = vld [vmem:[%s169 + $0x1b4] sm:$0xf]
        %v4593 = vld [vmem:[%s169 + $0x1b8] sm:$0xf]
        %v4594 = vld [vmem:[%s169 + $0x1bc] sm:$0xf]
        %v4595 = vld [vmem:[%s169 + $0x1c0] sm:$0xf]
        %v4596 = vld [vmem:[%s169 + $0x1c4] sm:$0xf]
        %v4597 = vld [vmem:[%s169 + $0x1c8] sm:$0xf]
        %v4598 = vld [vmem:[%s169 + $0x1cc] sm:$0xf]
        %v4599 = vld [vmem:[%s169 + $0x1d0] sm:$0xf]
        %v4600 = vld [vmem:[%s169 + $0x1d4] sm:$0x1]
        %v4601 = vld [vmem:[%s1 + $0x40] sm:$0xf]
        %v4602 = vld [vmem:[%s1 + $0x44] sm:$0xf]
        %v4603 = vld [vmem:[%s1 + $0x48] sm:$0xf]
        %v4604 = vld [vmem:[%s1 + $0x4c] sm:$0xf]
        %v4721 = vunpack.c.l.b16 %v4485
        %v4722 = vunpack.c.l.b16 %v4486
        %v4723 = vunpack.c.l.b16 %v4487
        %v4724 = vunpack.c.l.b16 %v4488
        %v4725 = vunpack.c.l.b16 %v4489
        %v4726 = vunpack.c.l.b16 %v4490
        %v4727 = vunpack.c.l.b16 %v4491
        %v4728 = vunpack.c.l.b16 %v4492
        %v4729 = vunpack.c.l.b16 %v4493
        %v4730 = vunpack.c.l.b16 %v4494
        %v4731 = vunpack.c.l.b16 %v4495
        %v4732 = vunpack.c.l.b16 %v4496
        %v4733 = vunpack.c.l.b16 %v4497
        %v4734 = vunpack.c.l.b16 %v4498
        %v4735 = vunpack.c.l.b16 %v4499
        %v4736 = vunpack.c.l.b16 %v4500
        %v4737 = vunpack.c.l.b16 %v4501
        %v4738 = vunpack.c.l.b16 %v4502
        %v4739 = vunpack.c.l.b16 %v4503
        %v4740 = vunpack.c.l.b16 %v4504
        %v4741 = vunpack.c.l.b16 %v4505
        %v4742 = vunpack.c.l.b16 %v4506
        %v4743 = vunpack.c.l.b16 %v4507
        %v4744 = vunpack.c.l.b16 %v4508
        %v4745 = vunpack.c.l.b16 %v4509
        %v4746 = vunpack.c.l.b16 %v4510
        %v4747 = vunpack.c.l.b16 %v4511
        %v4748 = vunpack.c.l.b16 %v4512
        %v4749 = vunpack.c.l.b16 %v4513
        %v4750 = vunpack.c.l.b16 %v4514
        %v4751 = vunpack.c.l.b16 %v4515
        %v4752 = vunpack.c.l.b16 %v4516
        %v4753 = vunpack.c.l.b16 %v4517
        %v4754 = vunpack.c.l.b16 %v4518
        %v4755 = vunpack.c.l.b16 %v4519
        %v4756 = vunpack.c.l.b16 %v4520
        %v4757 = vunpack.c.l.b16 %v4521
        %v4758 = vunpack.c.l.b16 %v4522
        %v4759 = vunpack.c.l.b16 %v4523
        %v4760 = vunpack.c.l.b16 %v4524
        %v4761 = vunpack.c.l.b16 %v4525
        %v4762 = vunpack.c.l.b16 %v4526
        %v4763 = vunpack.c.l.b16 %v4527
        %v4764 = vunpack.c.l.b16 %v4528
        %v4765 = vunpack.c.l.b16 %v4529
        %v4766 = vunpack.c.l.b16 %v4530
        %v4767 = vunpack.c.l.b16 %v4531
        %v4768 = vunpack.c.l.b16 %v4532
        %v4769 = vunpack.c.l.b16 %v4533
        %v4770 = vunpack.c.l.b16 %v4534
        %v4771 = vunpack.c.l.b16 %v4535
        %v4772 = vunpack.c.l.b16 %v4536
        %v4773 = vunpack.c.l.b16 %v4537
        %v4774 = vunpack.c.l.b16 %v4538
        %v4775 = vunpack.c.l.b16 %v4539
        %v4776 = vunpack.c.l.b16 %v4540
        %v4777 = vunpack.c.l.b16 %v4541
        %v4778 = vunpack.c.l.b16 %v4542
        %v4779 = vunpack.c.l.b16 %v4543
        %v4780 = vunpack.c.l.b16 %v4544
        %v4781 = vunpack.c.l.b16 %v4545
        %v4782 = vunpack.c.l.b16 %v4546
        %v4783 = vunpack.c.l.b16 %v4547
        %v4784 = vunpack.c.l.b16 %v4548
        %v4785 = vunpack.c.l.b16 %v4549
        %v4786 = vunpack.c.l.b16 %v4550
        %v4787 = vunpack.c.l.b16 %v4551
        %v4788 = vunpack.c.l.b16 %v4552
        %v4789 = vunpack.c.l.b16 %v4553
        %v4790 = vunpack.c.l.b16 %v4554
        %v4791 = vunpack.c.l.b16 %v4555
        %v4792 = vunpack.c.l.b16 %v4556
        %v4793 = vunpack.c.l.b16 %v4557
        %v4794 = vunpack.c.l.b16 %v4558
        %v4795 = vunpack.c.l.b16 %v4559
        %v4796 = vunpack.c.l.b16 %v4560
        %v4797 = vunpack.c.l.b16 %v4561
        %v4798 = vunpack.c.l.b16 %v4562
        %v4799 = vunpack.c.l.b16 %v4563
        %v4800 = vunpack.c.l.b16 %v4564
        %v4801 = vunpack.c.l.b16 %v4565
        %v4802 = vunpack.c.l.b16 %v4566
        %v4803 = vunpack.c.l.b16 %v4567
        %v4804 = vunpack.c.l.b16 %v4568
        %v4805 = vunpack.c.l.b16 %v4569
        %v4806 = vunpack.c.l.b16 %v4570
        %v4807 = vunpack.c.l.b16 %v4571
        %v4808 = vunpack.c.l.b16 %v4572
        %v4809 = vunpack.c.l.b16 %v4573
        %v4810 = vunpack.c.l.b16 %v4574
        %v4811 = vunpack.c.l.b16 %v4575
        %v4812 = vunpack.c.l.b16 %v4576
        %v4813 = vunpack.c.l.b16 %v4577
        %v4814 = vunpack.c.l.b16 %v4578
        %v4815 = vunpack.c.l.b16 %v4579
        %v4816 = vunpack.c.l.b16 %v4580
        %v4817 = vunpack.c.l.b16 %v4581
        %v4818 = vunpack.c.l.b16 %v4582
        %v4819 = vunpack.c.l.b16 %v4583
        %v4820 = vunpack.c.l.b16 %v4584
        %v4821 = vunpack.c.l.b16 %v4585
        %v4822 = vunpack.c.l.b16 %v4586
        %v4823 = vunpack.c.l.b16 %v4587
        %v4824 = vunpack.c.l.b16 %v4588
        %v4825 = vunpack.c.l.b16 %v4589
        %v4826 = vunpack.c.l.b16 %v4590
        %v4827 = vunpack.c.l.b16 %v4591
        %v4828 = vunpack.c.l.b16 %v4592
        %v4829 = vunpack.c.l.b16 %v4593
        %v4830 = vunpack.c.l.b16 %v4594
        %v4831 = vunpack.c.l.b16 %v4595
        %v4832 = vunpack.c.l.b16 %v4596
        %v4833 = vunpack.c.l.b16 %v4597
        %v4834 = vunpack.c.l.b16 %v4598
        %v4835 = vunpack.c.l.b16 %v4599
        %v4836 = vunpack.c.l.b16 %v4600
        %v4837 = vpack.c.b16 %v4722, %v4721
        %v4838 = vpack.c.b16 %v4724, %v4723
        %v4839 = vpack.c.b16 %v4726, %v4725
        %v4840 = vpack.c.b16 %v4728, %v4727
        %v4841 = vpack.c.b16 %v4730, %v4729
        %v4842 = vpack.c.b16 %v4732, %v4731
        %v4843 = vpack.c.b16 %v4734, %v4733
        %v4844 = vpack.c.b16 %v4736, %v4735
        %v4845 = vpack.c.b16 %v4738, %v4737
        %v4846 = vpack.c.b16 %v4740, %v4739
        %v4847 = vpack.c.b16 %v4742, %v4741
        %v4848 = vpack.c.b16 %v4744, %v4743
        %v4849 = vpack.c.b16 %v4746, %v4745
        %v4850 = vpack.c.b16 %v4748, %v4747
        %v4851 = vpack.c.b16 %v4750, %v4749
        %v4852 = vpack.c.b16 %v4752, %v4751
        %v4853 = vpack.c.b16 %v4754, %v4753
        %v4854 = vpack.c.b16 %v4756, %v4755
        %v4855 = vpack.c.b16 %v4758, %v4757
        %v4856 = vpack.c.b16 %v4760, %v4759
        %v4857 = vpack.c.b16 %v4762, %v4761
        %v4858 = vpack.c.b16 %v4764, %v4763
        %v4859 = vpack.c.b16 %v4766, %v4765
        %v4860 = vpack.c.b16 %v4768, %v4767
        %v4861 = vpack.c.b16 %v4770, %v4769
        %v4862 = vpack.c.b16 %v4772, %v4771
        %v4863 = vpack.c.b16 %v4774, %v4773
        %v4864 = vpack.c.b16 %v4776, %v4775
        %v4865 = vpack.c.b16 %v4778, %v4777
        %v4866 = vpack.c.b16 %v4780, %v4779
        %v4867 = vpack.c.b16 %v4782, %v4781
        %v4868 = vpack.c.b16 %v4784, %v4783
        %v4869 = vpack.c.b16 %v4786, %v4785
        %v4870 = vpack.c.b16 %v4788, %v4787
        %v4871 = vpack.c.b16 %v4790, %v4789
        %v4872 = vpack.c.b16 %v4792, %v4791
        %v4873 = vpack.c.b16 %v4794, %v4793
        %v4874 = vpack.c.b16 %v4796, %v4795
        %v4875 = vpack.c.b16 %v4798, %v4797
        %v4876 = vpack.c.b16 %v4800, %v4799
        %v4877 = vpack.c.b16 %v4802, %v4801
        %v4878 = vpack.c.b16 %v4804, %v4803
        %v4879 = vpack.c.b16 %v4806, %v4805
        %v4880 = vpack.c.b16 %v4808, %v4807
        %v4881 = vpack.c.b16 %v4810, %v4809
        %v4882 = vpack.c.b16 %v4812, %v4811
        %v4883 = vpack.c.b16 %v4814, %v4813
        %v4884 = vpack.c.b16 %v4816, %v4815
        %v4885 = vpack.c.b16 %v4818, %v4817
        %v4886 = vpack.c.b16 %v4820, %v4819
        %v4887 = vpack.c.b16 %v4822, %v4821
        %v4888 = vpack.c.b16 %v4824, %v4823
        %v4889 = vpack.c.b16 %v4826, %v4825
        %v4890 = vpack.c.b16 %v4828, %v4827
        %v4891 = vpack.c.b16 %v4830, %v4829
        %v4892 = vpack.c.b16 %v4832, %v4831
        %v4893 = vpack.c.b16 %v4834, %v4833
        %v4894 = vpack.c.b16 %v4836, %v4835
        %v4896 = vshrl.u32 %v4837, 16
        %v4898 = vshll.u32 %v4837, 16
        %v4900 = vrot.slane %v4898, 1
        %v4901 = vor.u32 %v4896, %v4900
        %v4903 = vshll.u32 %v4838, 16
        %v4905 = vrot.slane %v4903, 1
        %v4906 = vsel %vm587, %v4901, %v4905
        %v4907 = vshrl.u32 %v4838, 16
        %v4909 = vor.u32 %v4907, %v4905
        %v4911 = vshll.u32 %v4839, 16
        %v4913 = vrot.slane %v4911, 1
        %v4914 = vsel %vm587, %v4909, %v4913
        %v4915 = vshrl.u32 %v4839, 16
        %v4917 = vor.u32 %v4915, %v4913
        %v4919 = vshll.u32 %v4840, 16
        %v4921 = vrot.slane %v4919, 1
        %v4922 = vsel %vm587, %v4917, %v4921
        %v4923 = vshrl.u32 %v4840, 16
        %v4925 = vor.u32 %v4923, %v4921
        %v4927 = vshll.u32 %v4841, 16
        %v4929 = vrot.slane %v4927, 1
        %v4930 = vsel %vm587, %v4925, %v4929
        %v4931 = vshrl.u32 %v4841, 16
        %v4933 = vor.u32 %v4931, %v4929
        %v4935 = vshll.u32 %v4842, 16
        %v4937 = vrot.slane %v4935, 1
        %v4938 = vsel %vm587, %v4933, %v4937
        %v4939 = vshrl.u32 %v4842, 16
        %v4941 = vor.u32 %v4939, %v4937
        %v4943 = vshll.u32 %v4843, 16
        %v4945 = vrot.slane %v4943, 1
        %v4946 = vsel %vm587, %v4941, %v4945
        %v4947 = vshrl.u32 %v4843, 16
        %v4949 = vor.u32 %v4947, %v4945
        %v4951 = vshll.u32 %v4844, 16
        %v4953 = vrot.slane %v4951, 1
        %v4954 = vsel %vm587, %v4949, %v4953
        %v4955 = vshrl.u32 %v4844, 16
        %v4957 = vor.u32 %v4955, %v4953
        %v4959 = vshll.u32 %v4845, 16
        %v4961 = vrot.slane %v4959, 1
        %v4962 = vsel %vm587, %v4957, %v4961
        %v4963 = vshrl.u32 %v4845, 16
        %v4965 = vor.u32 %v4963, %v4961
        %v4967 = vshll.u32 %v4846, 16
        %v4969 = vrot.slane %v4967, 1
        %v4970 = vsel %vm587, %v4965, %v4969
        %v4971 = vshrl.u32 %v4846, 16
        %v4973 = vor.u32 %v4971, %v4969
        %v4975 = vshll.u32 %v4847, 16
        %v4977 = vrot.slane %v4975, 1
        %v4978 = vsel %vm587, %v4973, %v4977
        %v4979 = vshrl.u32 %v4847, 16
        %v4981 = vor.u32 %v4979, %v4977
        %v4983 = vshll.u32 %v4848, 16
        %v4985 = vrot.slane %v4983, 1
        %v4986 = vsel %vm587, %v4981, %v4985
        %v4987 = vshrl.u32 %v4848, 16
        %v4989 = vor.u32 %v4987, %v4985
        %v4991 = vshll.u32 %v4849, 16
        %v4993 = vrot.slane %v4991, 1
        %v4994 = vsel %vm587, %v4989, %v4993
        %v4995 = vshrl.u32 %v4849, 16
        %v4997 = vor.u32 %v4995, %v4993
        %v4999 = vshll.u32 %v4850, 16
        %v5001 = vrot.slane %v4999, 1
        %v5002 = vsel %vm587, %v4997, %v5001
        %v5003 = vshrl.u32 %v4850, 16
        %v5005 = vor.u32 %v5003, %v5001
        %v5007 = vshll.u32 %v4851, 16
        %v5009 = vrot.slane %v5007, 1
        %v5010 = vsel %vm587, %v5005, %v5009
        %v5011 = vshrl.u32 %v4851, 16
        %v5013 = vor.u32 %v5011, %v5009
        %v5015 = vshll.u32 %v4852, 16
        %v5017 = vrot.slane %v5015, 1
        %v5018 = vsel %vm587, %v5013, %v5017
        %v5019 = vshrl.u32 %v4852, 16
        %v5021 = vor.u32 %v5019, %v5017
        %v5023 = vshll.u32 %v4853, 16
        %v5025 = vrot.slane %v5023, 1
        %v5026 = vsel %vm587, %v5021, %v5025
        %v5027 = vshrl.u32 %v4853, 16
        %v5029 = vor.u32 %v5027, %v5025
        %v5031 = vshll.u32 %v4854, 16
        %v5033 = vrot.slane %v5031, 1
        %v5034 = vsel %vm587, %v5029, %v5033
        %v5035 = vshrl.u32 %v4854, 16
        %v5037 = vor.u32 %v5035, %v5033
        %v5039 = vshll.u32 %v4855, 16
        %v5041 = vrot.slane %v5039, 1
        %v5042 = vsel %vm587, %v5037, %v5041
        %v5043 = vshrl.u32 %v4855, 16
        %v5045 = vor.u32 %v5043, %v5041
        %v5047 = vshll.u32 %v4856, 16
        %v5049 = vrot.slane %v5047, 1
        %v5050 = vsel %vm587, %v5045, %v5049
        %v5051 = vshrl.u32 %v4856, 16
        %v5053 = vor.u32 %v5051, %v5049
        %v5055 = vshll.u32 %v4857, 16
        %v5057 = vrot.slane %v5055, 1
        %v5058 = vsel %vm587, %v5053, %v5057
        %v5059 = vshrl.u32 %v4857, 16
        %v5061 = vor.u32 %v5059, %v5057
        %v5063 = vshll.u32 %v4858, 16
        %v5065 = vrot.slane %v5063, 1
        %v5066 = vsel %vm587, %v5061, %v5065
        %v5067 = vshrl.u32 %v4858, 16
        %v5069 = vor.u32 %v5067, %v5065
        %v5071 = vshll.u32 %v4859, 16
        %v5073 = vrot.slane %v5071, 1
        %v5074 = vsel %vm587, %v5069, %v5073
        %v5075 = vshrl.u32 %v4859, 16
        %v5077 = vor.u32 %v5075, %v5073
        %v5079 = vshll.u32 %v4860, 16
        %v5081 = vrot.slane %v5079, 1
        %v5082 = vsel %vm587, %v5077, %v5081
        %v5083 = vshrl.u32 %v4860, 16
        %v5085 = vor.u32 %v5083, %v5081
        %v5087 = vshll.u32 %v4861, 16
        %v5089 = vrot.slane %v5087, 1
        %v5090 = vsel %vm587, %v5085, %v5089
        %v5091 = vshrl.u32 %v4861, 16
        %v5093 = vor.u32 %v5091, %v5089
        %v5095 = vshll.u32 %v4862, 16
        %v5097 = vrot.slane %v5095, 1
        %v5098 = vsel %vm587, %v5093, %v5097
        %v5099 = vshrl.u32 %v4862, 16
        %v5101 = vor.u32 %v5099, %v5097
        %v5103 = vshll.u32 %v4863, 16
        %v5105 = vrot.slane %v5103, 1
        %v5106 = vsel %vm587, %v5101, %v5105
        %v5107 = vshrl.u32 %v4863, 16
        %v5109 = vor.u32 %v5107, %v5105
        %v5111 = vshll.u32 %v4864, 16
        %v5113 = vrot.slane %v5111, 1
        %v5114 = vsel %vm587, %v5109, %v5113
        %v5115 = vshrl.u32 %v4864, 16
        %v5117 = vor.u32 %v5115, %v5113
        %v5119 = vshll.u32 %v4865, 16
        %v5121 = vrot.slane %v5119, 1
        %v5122 = vsel %vm587, %v5117, %v5121
        %v5123 = vshrl.u32 %v4865, 16
        %v5125 = vor.u32 %v5123, %v5121
        %v5127 = vshll.u32 %v4866, 16
        %v5129 = vrot.slane %v5127, 1
        %v5130 = vsel %vm587, %v5125, %v5129
        %v5131 = vshrl.u32 %v4866, 16
        %v5133 = vor.u32 %v5131, %v5129
        %v5135 = vshll.u32 %v4867, 16
        %v5137 = vrot.slane %v5135, 1
        %v5138 = vsel %vm587, %v5133, %v5137
        %v5139 = vshrl.u32 %v4867, 16
        %v5141 = vor.u32 %v5139, %v5137
        %v5143 = vshll.u32 %v4868, 16
        %v5145 = vrot.slane %v5143, 1
        %v5146 = vsel %vm587, %v5141, %v5145
        %v5147 = vshrl.u32 %v4868, 16
        %v5149 = vor.u32 %v5147, %v5145
        %v5151 = vshll.u32 %v4869, 16
        %v5153 = vrot.slane %v5151, 1
        %v5154 = vsel %vm587, %v5149, %v5153
        %v5155 = vshrl.u32 %v4869, 16
        %v5157 = vor.u32 %v5155, %v5153
        %v5159 = vshll.u32 %v4870, 16
        %v5161 = vrot.slane %v5159, 1
        %v5162 = vsel %vm587, %v5157, %v5161
        %v5163 = vshrl.u32 %v4870, 16
        %v5165 = vor.u32 %v5163, %v5161
        %v5167 = vshll.u32 %v4871, 16
        %v5169 = vrot.slane %v5167, 1
        %v5170 = vsel %vm587, %v5165, %v5169
        %v5171 = vshrl.u32 %v4871, 16
        %v5173 = vor.u32 %v5171, %v5169
        %v5175 = vshll.u32 %v4872, 16
        %v5177 = vrot.slane %v5175, 1
        %v5178 = vsel %vm587, %v5173, %v5177
        %v5179 = vshrl.u32 %v4872, 16
        %v5181 = vor.u32 %v5179, %v5177
        %v5183 = vshll.u32 %v4873, 16
        %v5185 = vrot.slane %v5183, 1
        %v5186 = vsel %vm587, %v5181, %v5185
        %v5187 = vshrl.u32 %v4873, 16
        %v5189 = vor.u32 %v5187, %v5185
        %v5191 = vshll.u32 %v4874, 16
        %v5193 = vrot.slane %v5191, 1
        %v5194 = vsel %vm587, %v5189, %v5193
        %v5195 = vshrl.u32 %v4874, 16
        %v5197 = vor.u32 %v5195, %v5193
        %v5199 = vshll.u32 %v4875, 16
        %v5201 = vrot.slane %v5199, 1
        %v5202 = vsel %vm587, %v5197, %v5201
        %v5203 = vshrl.u32 %v4875, 16
        %v5205 = vor.u32 %v5203, %v5201
        %v5207 = vshll.u32 %v4876, 16
        %v5209 = vrot.slane %v5207, 1
        %v5210 = vsel %vm587, %v5205, %v5209
        %v5211 = vshrl.u32 %v4876, 16
        %v5213 = vor.u32 %v5211, %v5209
        %v5215 = vshll.u32 %v4877, 16
        %v5217 = vrot.slane %v5215, 1
        %v5218 = vsel %vm587, %v5213, %v5217
        %v5219 = vshrl.u32 %v4877, 16
        %v5221 = vor.u32 %v5219, %v5217
        %v5223 = vshll.u32 %v4878, 16
        %v5225 = vrot.slane %v5223, 1
        %v5226 = vsel %vm587, %v5221, %v5225
        %v5227 = vshrl.u32 %v4878, 16
        %v5229 = vor.u32 %v5227, %v5225
        %v5231 = vshll.u32 %v4879, 16
        %v5233 = vrot.slane %v5231, 1
        %v5234 = vsel %vm587, %v5229, %v5233
        %v5235 = vshrl.u32 %v4879, 16
        %v5237 = vor.u32 %v5235, %v5233
        %v5239 = vshll.u32 %v4880, 16
        %v5241 = vrot.slane %v5239, 1
        %v5242 = vsel %vm587, %v5237, %v5241
        %v5243 = vshrl.u32 %v4880, 16
        %v5245 = vor.u32 %v5243, %v5241
        %v5247 = vshll.u32 %v4881, 16
        %v5249 = vrot.slane %v5247, 1
        %v5250 = vsel %vm587, %v5245, %v5249
        %v5251 = vshrl.u32 %v4881, 16
        %v5253 = vor.u32 %v5251, %v5249
        %v5255 = vshll.u32 %v4882, 16
        %v5257 = vrot.slane %v5255, 1
        %v5258 = vsel %vm587, %v5253, %v5257
        %v5259 = vshrl.u32 %v4882, 16
        %v5261 = vor.u32 %v5259, %v5257
        %v5263 = vshll.u32 %v4883, 16
        %v5265 = vrot.slane %v5263, 1
        %v5266 = vsel %vm587, %v5261, %v5265
        %v5267 = vshrl.u32 %v4883, 16
        %v5269 = vor.u32 %v5267, %v5265
        %v5271 = vshll.u32 %v4884, 16
        %v5273 = vrot.slane %v5271, 1
        %v5274 = vsel %vm587, %v5269, %v5273
        %v5275 = vshrl.u32 %v4884, 16
        %v5277 = vor.u32 %v5275, %v5273
        %v5279 = vshll.u32 %v4885, 16
        %v5281 = vrot.slane %v5279, 1
        %v5282 = vsel %vm587, %v5277, %v5281
        %v5283 = vshrl.u32 %v4885, 16
        %v5285 = vor.u32 %v5283, %v5281
        %v5287 = vshll.u32 %v4886, 16
        %v5289 = vrot.slane %v5287, 1
        %v5290 = vsel %vm587, %v5285, %v5289
        %v5291 = vshrl.u32 %v4886, 16
        %v5293 = vor.u32 %v5291, %v5289
        %v5295 = vshll.u32 %v4887, 16
        %v5297 = vrot.slane %v5295, 1
        %v5298 = vsel %vm587, %v5293, %v5297
        %v5299 = vshrl.u32 %v4887, 16
        %v5301 = vor.u32 %v5299, %v5297
        %v5303 = vshll.u32 %v4888, 16
        %v5305 = vrot.slane %v5303, 1
        %v5306 = vsel %vm587, %v5301, %v5305
        %v5307 = vshrl.u32 %v4888, 16
        %v5309 = vor.u32 %v5307, %v5305
        %v5311 = vshll.u32 %v4889, 16
        %v5313 = vrot.slane %v5311, 1
        %v5314 = vsel %vm587, %v5309, %v5313
        %v5315 = vshrl.u32 %v4889, 16
        %v5317 = vor.u32 %v5315, %v5313
        %v5319 = vshll.u32 %v4890, 16
        %v5321 = vrot.slane %v5319, 1
        %v5322 = vsel %vm587, %v5317, %v5321
        %v5323 = vshrl.u32 %v4890, 16
        %v5325 = vor.u32 %v5323, %v5321
        %v5327 = vshll.u32 %v4891, 16
        %v5329 = vrot.slane %v5327, 1
        %v5330 = vsel %vm587, %v5325, %v5329
        %v5331 = vshrl.u32 %v4891, 16
        %v5333 = vor.u32 %v5331, %v5329
        %v5335 = vshll.u32 %v4892, 16
        %v5337 = vrot.slane %v5335, 1
        %v5338 = vsel %vm587, %v5333, %v5337
        %v5339 = vshrl.u32 %v4892, 16
        %v5341 = vor.u32 %v5339, %v5337
        %v5343 = vshll.u32 %v4893, 16
        %v5345 = vrot.slane %v5343, 1
        %v5346 = vsel %vm587, %v5341, %v5345
        %v5347 = vshrl.u32 %v4893, 16
        %v5349 = vor.u32 %v5347, %v5345
        %v5351 = vshll.u32 %v4894, 16
        %v5353 = vrot.slane %v5351, 1
        %v5354 = vsel %vm587, %v5349, %v5353
        %v5355 = vshrl.u32 %v4894, 16
        %v5357 = vor.u32 %v5355, %v5353
        %v5362 = vunpack.c.l.b16 %v4601
        %v5363 = vunpack.c.l.b16 %v4602
        %v5364 = vunpack.c.l.b16 %v4603
        %v5365 = vunpack.c.l.b16 %v4604
        %v5366 = vpack.c.b16 %v5363, %v5362
        %v5367 = vpack.c.b16 %v5365, %v5364
        %v5371 = vsel %vm1063, %v4906, 0
        %v5374 = vsel %vm1063, %v4914, 0
        %v5377 = vsel %vm1063, %v4922, 0
        %v5380 = vsel %vm1063, %v4930, 0
        %v5383 = vsel %vm1063, %v4938, 0
        %v5386 = vsel %vm1063, %v4946, 0
        %v5389 = vsel %vm1063, %v4954, 0
        %v5392 = vsel %vm1063, %v4962, 0
        %v5395 = vsel %vm1063, %v4970, 0
        %v5398 = vsel %vm1063, %v4978, 0
        %v5401 = vsel %vm1063, %v4986, 0
        %v5404 = vsel %vm1063, %v4994, 0
        %v5407 = vsel %vm1063, %v5002, 0
        %v5410 = vsel %vm1063, %v5010, 0
        %v5413 = vsel %vm1063, %v5018, 0
        %v5416 = vsel %vm1063, %v5026, 0
        %v5419 = vsel %vm1063, %v5034, 0
        %v5422 = vsel %vm1063, %v5042, 0
        %v5425 = vsel %vm1063, %v5050, 0
        %v5428 = vsel %vm1063, %v5058, 0
        %v5431 = vsel %vm1063, %v5066, 0
        %v5434 = vsel %vm1063, %v5074, 0
        %v5437 = vsel %vm1063, %v5082, 0
        %v5440 = vsel %vm1063, %v5090, 0
        %v5443 = vsel %vm1063, %v5098, 0
        %v5446 = vsel %vm1063, %v5106, 0
        %v5449 = vsel %vm1063, %v5114, 0
        %v5452 = vsel %vm1063, %v5122, 0
        %v5455 = vsel %vm1063, %v5130, 0
        %v5458 = vsel %vm1063, %v5138, 0
        %v5461 = vsel %vm1063, %v5146, 0
        %v5464 = vsel %vm1063, %v5154, 0
        %v5467 = vsel %vm1063, %v5162, 0
        %v5470 = vsel %vm1063, %v5170, 0
        %v5473 = vsel %vm1063, %v5178, 0
        %v5476 = vsel %vm1063, %v5186, 0
        %v5479 = vsel %vm1063, %v5194, 0
        %v5482 = vsel %vm1063, %v5202, 0
        %v5485 = vsel %vm1063, %v5210, 0
        %v5488 = vsel %vm1063, %v5218, 0
        %v5491 = vsel %vm1063, %v5226, 0
        %v5494 = vsel %vm1063, %v5234, 0
        %v5497 = vsel %vm1063, %v5242, 0
        %v5500 = vsel %vm1063, %v5250, 0
        %v5503 = vsel %vm1063, %v5258, 0
        %v5506 = vsel %vm1063, %v5266, 0
        %v5509 = vsel %vm1063, %v5274, 0
        %v5512 = vsel %vm1063, %v5282, 0
        %v5515 = vsel %vm1063, %v5290, 0
        %v5518 = vsel %vm1063, %v5298, 0
        %v5521 = vsel %vm1063, %v5306, 0
        %v5524 = vsel %vm1063, %v5314, 0
        %v5527 = vsel %vm1063, %v5322, 0
        %v5530 = vsel %vm1063, %v5330, 0
        %v5533 = vsel %vm1063, %v5338, 0
        %v5536 = vsel %vm1063, %v5346, 0
        %v5539 = vsel %vm1063, %v5354, 0
        %v5542 = vsel %vm1063, %v5357, 0
        %5544 = vmatprep.subr.bf16.mxu0 0
        %5545 = vmatpush1.bf16.msra.mxu0 0
        %5546 = vmatprep.subr.bf16.mxu0 0
        %5547 = vmatpush1.bf16.msra.mxu0 0
        %5548 = vmatprep.subr.bf16.mxu0 0
        %5549 = vmatpush1.bf16.msra.mxu0 0
        %5550 = vmatprep.subr.bf16.mxu0 0
        %5551 = vmatpush1.bf16.msra.mxu0 0
        %5552 = vmatprep.subr.bf16.mxu0 0
        %5553 = vmatpush1.bf16.msra.mxu0 0
        %5554 = vmatprep.subr.bf16.mxu0 0
        %5555 = vmatpush1.bf16.msra.mxu0 0
        %5556 = vmatprep.subr.bf16.mxu0 0
        %5557 = vmatpush1.bf16.msra.mxu0 %v5367
        %5558 = vmatprep.subr.bf16.mxu0 0
        %5559 = vmatpush1.bf16.msra.mxu0 %v5366
        %5560 = vmatprep.subr.bf16.mxu0 0
        %5561 = vmatpush2.bf16.msra.mxu0 0
        %5562 = vmatprep.subr.bf16.mxu0 0
        %5563 = vmatpush2.bf16.msra.mxu0 0
        %5564 = vmatprep.subr.bf16.mxu0 0
        %5565 = vmatpush2.bf16.msra.mxu0 0
        %5566 = vmatprep.subr.bf16.mxu0 0
        %5567 = vmatpush2.bf16.msra.mxu0 0
        %5568 = vmatprep.subr.bf16.mxu0 0
        %5569 = vmatpush2.bf16.msra.mxu0 0
        %5570 = vmatprep.subr.bf16.mxu0 0
        %5571 = vmatpush2.bf16.msra.mxu0 0
        %5572 = vmatprep.subr.bf16.mxu0 0
        %5573 = vmatpush2.bf16.msra.mxu0 0
        %5574 = vmatprep.subr.bf16.mxu0 0
        %5575 = vmatpush2.bf16.msra.mxu0 0
        %5576 = vmatprep.mubr.bf16.mxu0 0
        %5577 = vmatmul.mubr.bf16.gmra.mxu0 %v5371
        %v5578 = vpop.f32.mrf.mxu0
        %v5579 = vadd.f32 0.0, %v5578
        %v5580 = vpop.f32.mrf.mxu0
        %v5581 = vpop.f32.mrf.mxu0
        %v5582 = vadd.f32 0.0, %v5581
        %v5583 = vpop.f32.mrf.mxu0
        %5584 = vmatprep.mubr.bf16.mxu0 0
        %5585 = vmatmul.mubr.bf16.gmra.mxu0 %v5374
        %v5586 = vpop.f32.mrf.mxu0
        %v5587 = vadd.f32 0.0, %v5586
        %v5588 = vpop.f32.mrf.mxu0
        %v5589 = vpop.f32.mrf.mxu0
        %v5590 = vadd.f32 0.0, %v5589
        %v5591 = vpop.f32.mrf.mxu0
        %5592 = vmatprep.mubr.bf16.mxu0 0
        %5593 = vmatmul.mubr.bf16.gmra.mxu0 %v5377
        %v5594 = vpop.f32.mrf.mxu0
        %v5595 = vadd.f32 0.0, %v5594
        %v5596 = vpop.f32.mrf.mxu0
        %v5597 = vpop.f32.mrf.mxu0
        %v5598 = vadd.f32 0.0, %v5597
        %v5599 = vpop.f32.mrf.mxu0
        %5600 = vmatprep.mubr.bf16.mxu0 0
        %5601 = vmatmul.mubr.bf16.gmra.mxu0 %v5380
        %v5602 = vpop.f32.mrf.mxu0
        %v5603 = vadd.f32 0.0, %v5602
        %v5604 = vpop.f32.mrf.mxu0
        %v5605 = vpop.f32.mrf.mxu0
        %v5606 = vadd.f32 0.0, %v5605
        %v5607 = vpop.f32.mrf.mxu0
        %5608 = vmatprep.mubr.bf16.mxu0 0
        %5609 = vmatmul.mubr.bf16.gmra.mxu0 %v5383
        %v5610 = vpop.f32.mrf.mxu0
        %v5611 = vadd.f32 0.0, %v5610
        %v5612 = vpop.f32.mrf.mxu0
        %v5613 = vpop.f32.mrf.mxu0
        %v5614 = vadd.f32 0.0, %v5613
        %v5615 = vpop.f32.mrf.mxu0
        %5616 = vmatprep.mubr.bf16.mxu0 0
        %5617 = vmatmul.mubr.bf16.gmra.mxu0 %v5386
        %v5618 = vpop.f32.mrf.mxu0
        %v5619 = vadd.f32 0.0, %v5618
        %v5620 = vpop.f32.mrf.mxu0
        %v5621 = vpop.f32.mrf.mxu0
        %v5622 = vadd.f32 0.0, %v5621
        %v5623 = vpop.f32.mrf.mxu0
        %5624 = vmatprep.mubr.bf16.mxu0 0
        %5625 = vmatmul.mubr.bf16.gmra.mxu0 %v5389
        %v5626 = vpop.f32.mrf.mxu0
        %v5627 = vadd.f32 0.0, %v5626
        %v5628 = vpop.f32.mrf.mxu0
        %v5629 = vpop.f32.mrf.mxu0
        %v5630 = vadd.f32 0.0, %v5629
        %v5631 = vpop.f32.mrf.mxu0
        %5632 = vmatprep.mubr.bf16.mxu0 0
        %5633 = vmatmul.mubr.bf16.gmra.mxu0 %v5392
        %v5634 = vpop.f32.mrf.mxu0
        %v5635 = vadd.f32 0.0, %v5634
        %v5636 = vpop.f32.mrf.mxu0
        %v5637 = vpop.f32.mrf.mxu0
        %v5638 = vadd.f32 0.0, %v5637
        %v5639 = vpop.f32.mrf.mxu0
        %5640 = vmatprep.mubr.bf16.mxu0 0
        %5641 = vmatmul.mubr.bf16.gmra.mxu0 %v5395
        %v5642 = vpop.f32.mrf.mxu0
        %v5643 = vadd.f32 0.0, %v5642
        %v5644 = vpop.f32.mrf.mxu0
        %v5645 = vpop.f32.mrf.mxu0
        %v5646 = vadd.f32 0.0, %v5645
        %v5647 = vpop.f32.mrf.mxu0
        %5648 = vmatprep.mubr.bf16.mxu0 0
        %5649 = vmatmul.mubr.bf16.gmra.mxu0 %v5398
        %v5650 = vpop.f32.mrf.mxu0
        %v5651 = vadd.f32 0.0, %v5650
        %v5652 = vpop.f32.mrf.mxu0
        %v5653 = vpop.f32.mrf.mxu0
        %v5654 = vadd.f32 0.0, %v5653
        %v5655 = vpop.f32.mrf.mxu0
        %5656 = vmatprep.mubr.bf16.mxu0 0
        %5657 = vmatmul.mubr.bf16.gmra.mxu0 %v5401
        %v5658 = vpop.f32.mrf.mxu0
        %v5659 = vadd.f32 0.0, %v5658
        %v5660 = vpop.f32.mrf.mxu0
        %v5661 = vpop.f32.mrf.mxu0
        %v5662 = vadd.f32 0.0, %v5661
        %v5663 = vpop.f32.mrf.mxu0
        %5664 = vmatprep.mubr.bf16.mxu0 0
        %5665 = vmatmul.mubr.bf16.gmra.mxu0 %v5404
        %v5666 = vpop.f32.mrf.mxu0
        %v5667 = vadd.f32 0.0, %v5666
        %v5668 = vpop.f32.mrf.mxu0
        %v5669 = vpop.f32.mrf.mxu0
        %v5670 = vadd.f32 0.0, %v5669
        %v5671 = vpop.f32.mrf.mxu0
        %5672 = vmatprep.mubr.bf16.mxu0 0
        %5673 = vmatmul.mubr.bf16.gmra.mxu0 %v5407
        %v5674 = vpop.f32.mrf.mxu0
        %v5675 = vadd.f32 0.0, %v5674
        %v5676 = vpop.f32.mrf.mxu0
        %v5677 = vpop.f32.mrf.mxu0
        %v5678 = vadd.f32 0.0, %v5677
        %v5679 = vpop.f32.mrf.mxu0
        %5680 = vmatprep.mubr.bf16.mxu0 0
        %5681 = vmatmul.mubr.bf16.gmra.mxu0 %v5410
        %v5682 = vpop.f32.mrf.mxu0
        %v5683 = vadd.f32 0.0, %v5682
        %v5684 = vpop.f32.mrf.mxu0
        %v5685 = vpop.f32.mrf.mxu0
        %v5686 = vadd.f32 0.0, %v5685
        %v5687 = vpop.f32.mrf.mxu0
        %5688 = vmatprep.mubr.bf16.mxu0 0
        %5689 = vmatmul.mubr.bf16.gmra.mxu0 %v5413
        %v5690 = vpop.f32.mrf.mxu0
        %v5691 = vadd.f32 0.0, %v5690
        %v5692 = vpop.f32.mrf.mxu0
        %v5693 = vpop.f32.mrf.mxu0
        %v5694 = vadd.f32 0.0, %v5693
        %v5695 = vpop.f32.mrf.mxu0
        %5696 = vmatprep.mubr.bf16.mxu0 0
        %5697 = vmatmul.mubr.bf16.gmra.mxu0 %v5416
        %v5698 = vpop.f32.mrf.mxu0
        %v5699 = vadd.f32 0.0, %v5698
        %v5700 = vpop.f32.mrf.mxu0
        %v5701 = vpop.f32.mrf.mxu0
        %v5702 = vadd.f32 0.0, %v5701
        %v5703 = vpop.f32.mrf.mxu0
        %5704 = vmatprep.mubr.bf16.mxu0 0
        %5705 = vmatmul.mubr.bf16.gmra.mxu0 %v5419
        %v5706 = vpop.f32.mrf.mxu0
        %v5707 = vadd.f32 0.0, %v5706
        %v5708 = vpop.f32.mrf.mxu0
        %v5709 = vpop.f32.mrf.mxu0
        %v5710 = vadd.f32 0.0, %v5709
        %v5711 = vpop.f32.mrf.mxu0
        %5712 = vmatprep.mubr.bf16.mxu0 0
        %5713 = vmatmul.mubr.bf16.gmra.mxu0 %v5422
        %v5714 = vpop.f32.mrf.mxu0
        %v5715 = vadd.f32 0.0, %v5714
        %v5716 = vpop.f32.mrf.mxu0
        %v5717 = vpop.f32.mrf.mxu0
        %v5718 = vadd.f32 0.0, %v5717
        %v5719 = vpop.f32.mrf.mxu0
        %5720 = vmatprep.mubr.bf16.mxu0 0
        %5721 = vmatmul.mubr.bf16.gmra.mxu0 %v5425
        %v5722 = vpop.f32.mrf.mxu0
        %v5723 = vadd.f32 0.0, %v5722
        %v5724 = vpop.f32.mrf.mxu0
        %v5725 = vpop.f32.mrf.mxu0
        %v5726 = vadd.f32 0.0, %v5725
        %v5727 = vpop.f32.mrf.mxu0
        %5728 = vmatprep.mubr.bf16.mxu0 0
        %5729 = vmatmul.mubr.bf16.gmra.mxu0 %v5428
        %v5730 = vpop.f32.mrf.mxu0
        %v5731 = vadd.f32 0.0, %v5730
        %v5732 = vpop.f32.mrf.mxu0
        %v5733 = vpop.f32.mrf.mxu0
        %v5734 = vadd.f32 0.0, %v5733
        %v5735 = vpop.f32.mrf.mxu0
        %5736 = vmatprep.mubr.bf16.mxu0 0
        %5737 = vmatmul.mubr.bf16.gmra.mxu0 %v5431
        %v5738 = vpop.f32.mrf.mxu0
        %v5739 = vadd.f32 0.0, %v5738
        %v5740 = vpop.f32.mrf.mxu0
        %v5741 = vpop.f32.mrf.mxu0
        %v5742 = vadd.f32 0.0, %v5741
        %v5743 = vpop.f32.mrf.mxu0
        %5744 = vmatprep.mubr.bf16.mxu0 0
        %5745 = vmatmul.mubr.bf16.gmra.mxu0 %v5434
        %v5746 = vpop.f32.mrf.mxu0
        %v5747 = vadd.f32 0.0, %v5746
        %v5748 = vpop.f32.mrf.mxu0
        %v5749 = vpop.f32.mrf.mxu0
        %v5750 = vadd.f32 0.0, %v5749
        %v5751 = vpop.f32.mrf.mxu0
        %5752 = vmatprep.mubr.bf16.mxu0 0
        %5753 = vmatmul.mubr.bf16.gmra.mxu0 %v5437
        %v5754 = vpop.f32.mrf.mxu0
        %v5755 = vadd.f32 0.0, %v5754
        %v5756 = vpop.f32.mrf.mxu0
        %v5757 = vpop.f32.mrf.mxu0
        %v5758 = vadd.f32 0.0, %v5757
        %v5759 = vpop.f32.mrf.mxu0
        %5760 = vmatprep.mubr.bf16.mxu0 0
        %5761 = vmatmul.mubr.bf16.gmra.mxu0 %v5440
        %v5762 = vpop.f32.mrf.mxu0
        %v5763 = vadd.f32 0.0, %v5762
        %v5764 = vpop.f32.mrf.mxu0
        %v5765 = vpop.f32.mrf.mxu0
        %v5766 = vadd.f32 0.0, %v5765
        %v5767 = vpop.f32.mrf.mxu0
        %5768 = vmatprep.mubr.bf16.mxu0 0
        %5769 = vmatmul.mubr.bf16.gmra.mxu0 %v5443
        %v5770 = vpop.f32.mrf.mxu0
        %v5771 = vadd.f32 0.0, %v5770
        %v5772 = vpop.f32.mrf.mxu0
        %v5773 = vpop.f32.mrf.mxu0
        %v5774 = vadd.f32 0.0, %v5773
        %v5775 = vpop.f32.mrf.mxu0
        %5776 = vmatprep.mubr.bf16.mxu0 0
        %5777 = vmatmul.mubr.bf16.gmra.mxu0 %v5446
        %v5778 = vpop.f32.mrf.mxu0
        %v5779 = vadd.f32 0.0, %v5778
        %v5780 = vpop.f32.mrf.mxu0
        %v5781 = vpop.f32.mrf.mxu0
        %v5782 = vadd.f32 0.0, %v5781
        %v5783 = vpop.f32.mrf.mxu0
        %5784 = vmatprep.mubr.bf16.mxu0 0
        %5785 = vmatmul.mubr.bf16.gmra.mxu0 %v5449
        %v5786 = vpop.f32.mrf.mxu0
        %v5787 = vadd.f32 0.0, %v5786
        %v5788 = vpop.f32.mrf.mxu0
        %v5789 = vpop.f32.mrf.mxu0
        %v5790 = vadd.f32 0.0, %v5789
        %v5791 = vpop.f32.mrf.mxu0
        %5792 = vmatprep.mubr.bf16.mxu0 0
        %5793 = vmatmul.mubr.bf16.gmra.mxu0 %v5452
        %v5794 = vpop.f32.mrf.mxu0
        %v5795 = vadd.f32 0.0, %v5794
        %v5796 = vpop.f32.mrf.mxu0
        %v5797 = vpop.f32.mrf.mxu0
        %v5798 = vadd.f32 0.0, %v5797
        %v5799 = vpop.f32.mrf.mxu0
        %5800 = vmatprep.mubr.bf16.mxu0 0
        %5801 = vmatmul.mubr.bf16.gmra.mxu0 %v5455
        %v5802 = vpop.f32.mrf.mxu0
        %v5803 = vadd.f32 0.0, %v5802
        %v5804 = vpop.f32.mrf.mxu0
        %v5805 = vpop.f32.mrf.mxu0
        %v5806 = vadd.f32 0.0, %v5805
        %v5807 = vpop.f32.mrf.mxu0
        %5808 = vmatprep.mubr.bf16.mxu0 0
        %5809 = vmatmul.mubr.bf16.gmra.mxu0 %v5458
        %v5810 = vpop.f32.mrf.mxu0
        %v5811 = vadd.f32 0.0, %v5810
        %v5812 = vpop.f32.mrf.mxu0
        %v5813 = vpop.f32.mrf.mxu0
        %v5814 = vadd.f32 0.0, %v5813
        %v5815 = vpop.f32.mrf.mxu0
        %5816 = vmatprep.mubr.bf16.mxu0 0
        %5817 = vmatmul.mubr.bf16.gmra.mxu0 %v5461
        %v5818 = vpop.f32.mrf.mxu0
        %v5819 = vadd.f32 0.0, %v5818
        %v5820 = vpop.f32.mrf.mxu0
        %v5821 = vpop.f32.mrf.mxu0
        %v5822 = vadd.f32 0.0, %v5821
        %v5823 = vpop.f32.mrf.mxu0
        %5824 = vmatprep.mubr.bf16.mxu0 0
        %5825 = vmatmul.mubr.bf16.gmra.mxu0 %v5464
        %v5826 = vpop.f32.mrf.mxu0
        %v5827 = vadd.f32 0.0, %v5826
        %v5828 = vpop.f32.mrf.mxu0
        %v5829 = vpop.f32.mrf.mxu0
        %v5830 = vadd.f32 0.0, %v5829
        %v5831 = vpop.f32.mrf.mxu0
        %5832 = vmatprep.mubr.bf16.mxu0 0
        %5833 = vmatmul.mubr.bf16.gmra.mxu0 %v5467
        %v5834 = vpop.f32.mrf.mxu0
        %v5835 = vadd.f32 0.0, %v5834
        %v5836 = vpop.f32.mrf.mxu0
        %v5837 = vpop.f32.mrf.mxu0
        %v5838 = vadd.f32 0.0, %v5837
        %v5839 = vpop.f32.mrf.mxu0
        %5840 = vmatprep.mubr.bf16.mxu0 0
        %5841 = vmatmul.mubr.bf16.gmra.mxu0 %v5470
        %v5842 = vpop.f32.mrf.mxu0
        %v5843 = vadd.f32 0.0, %v5842
        %v5844 = vpop.f32.mrf.mxu0
        %v5845 = vpop.f32.mrf.mxu0
        %v5846 = vadd.f32 0.0, %v5845
        %v5847 = vpop.f32.mrf.mxu0
        %5848 = vmatprep.mubr.bf16.mxu0 0
        %5849 = vmatmul.mubr.bf16.gmra.mxu0 %v5473
        %v5850 = vpop.f32.mrf.mxu0
        %v5851 = vadd.f32 0.0, %v5850
        %v5852 = vpop.f32.mrf.mxu0
        %v5853 = vpop.f32.mrf.mxu0
        %v5854 = vadd.f32 0.0, %v5853
        %v5855 = vpop.f32.mrf.mxu0
        %5856 = vmatprep.mubr.bf16.mxu0 0
        %5857 = vmatmul.mubr.bf16.gmra.mxu0 %v5476
        %v5858 = vpop.f32.mrf.mxu0
        %v5859 = vadd.f32 0.0, %v5858
        %v5860 = vpop.f32.mrf.mxu0
        %v5861 = vpop.f32.mrf.mxu0
        %v5862 = vadd.f32 0.0, %v5861
        %v5863 = vpop.f32.mrf.mxu0
        %5864 = vmatprep.mubr.bf16.mxu0 0
        %5865 = vmatmul.mubr.bf16.gmra.mxu0 %v5479
        %v5866 = vpop.f32.mrf.mxu0
        %v5867 = vadd.f32 0.0, %v5866
        %v5868 = vpop.f32.mrf.mxu0
        %v5869 = vpop.f32.mrf.mxu0
        %v5870 = vadd.f32 0.0, %v5869
        %v5871 = vpop.f32.mrf.mxu0
        %5872 = vmatprep.mubr.bf16.mxu0 0
        %5873 = vmatmul.mubr.bf16.gmra.mxu0 %v5482
        %v5874 = vpop.f32.mrf.mxu0
        %v5875 = vadd.f32 0.0, %v5874
        %v5876 = vpop.f32.mrf.mxu0
        %v5877 = vpop.f32.mrf.mxu0
        %v5878 = vadd.f32 0.0, %v5877
        %v5879 = vpop.f32.mrf.mxu0
        %5880 = vmatprep.mubr.bf16.mxu0 0
        %5881 = vmatmul.mubr.bf16.gmra.mxu0 %v5485
        %v5882 = vpop.f32.mrf.mxu0
        %v5883 = vadd.f32 0.0, %v5882
        %v5884 = vpop.f32.mrf.mxu0
        %v5885 = vpop.f32.mrf.mxu0
        %v5886 = vadd.f32 0.0, %v5885
        %v5887 = vpop.f32.mrf.mxu0
        %5888 = vmatprep.mubr.bf16.mxu0 0
        %5889 = vmatmul.mubr.bf16.gmra.mxu0 %v5488
        %v5890 = vpop.f32.mrf.mxu0
        %v5891 = vadd.f32 0.0, %v5890
        %v5892 = vpop.f32.mrf.mxu0
        %v5893 = vpop.f32.mrf.mxu0
        %v5894 = vadd.f32 0.0, %v5893
        %v5895 = vpop.f32.mrf.mxu0
        %5896 = vmatprep.mubr.bf16.mxu0 0
        %5897 = vmatmul.mubr.bf16.gmra.mxu0 %v5491
        %v5898 = vpop.f32.mrf.mxu0
        %v5899 = vadd.f32 0.0, %v5898
        %v5900 = vpop.f32.mrf.mxu0
        %v5901 = vpop.f32.mrf.mxu0
        %v5902 = vadd.f32 0.0, %v5901
        %v5903 = vpop.f32.mrf.mxu0
        %5904 = vmatprep.mubr.bf16.mxu0 0
        %5905 = vmatmul.mubr.bf16.gmra.mxu0 %v5494
        %v5906 = vpop.f32.mrf.mxu0
        %v5907 = vadd.f32 0.0, %v5906
        %v5908 = vpop.f32.mrf.mxu0
        %v5909 = vpop.f32.mrf.mxu0
        %v5910 = vadd.f32 0.0, %v5909
        %v5911 = vpop.f32.mrf.mxu0
        %5912 = vmatprep.mubr.bf16.mxu0 0
        %5913 = vmatmul.mubr.bf16.gmra.mxu0 %v5497
        %v5914 = vpop.f32.mrf.mxu0
        %v5915 = vadd.f32 0.0, %v5914
        %v5916 = vpop.f32.mrf.mxu0
        %v5917 = vpop.f32.mrf.mxu0
        %v5918 = vadd.f32 0.0, %v5917
        %v5919 = vpop.f32.mrf.mxu0
        %5920 = vmatprep.mubr.bf16.mxu0 0
        %5921 = vmatmul.mubr.bf16.gmra.mxu0 %v5500
        %v5922 = vpop.f32.mrf.mxu0
        %v5923 = vadd.f32 0.0, %v5922
        %v5924 = vpop.f32.mrf.mxu0
        %v5925 = vpop.f32.mrf.mxu0
        %v5926 = vadd.f32 0.0, %v5925
        %v5927 = vpop.f32.mrf.mxu0
        %5928 = vmatprep.mubr.bf16.mxu0 0
        %5929 = vmatmul.mubr.bf16.gmra.mxu0 %v5503
        %v5930 = vpop.f32.mrf.mxu0
        %v5931 = vadd.f32 0.0, %v5930
        %v5932 = vpop.f32.mrf.mxu0
        %v5933 = vpop.f32.mrf.mxu0
        %v5934 = vadd.f32 0.0, %v5933
        %v5935 = vpop.f32.mrf.mxu0
        %5936 = vmatprep.mubr.bf16.mxu0 0
        %5937 = vmatmul.mubr.bf16.gmra.mxu0 %v5506
        %v5938 = vpop.f32.mrf.mxu0
        %v5939 = vadd.f32 0.0, %v5938
        %v5940 = vpop.f32.mrf.mxu0
        %v5941 = vpop.f32.mrf.mxu0
        %v5942 = vadd.f32 0.0, %v5941
        %v5943 = vpop.f32.mrf.mxu0
        %5944 = vmatprep.mubr.bf16.mxu0 0
        %5945 = vmatmul.mubr.bf16.gmra.mxu0 %v5509
        %v5946 = vpop.f32.mrf.mxu0
        %v5947 = vadd.f32 0.0, %v5946
        %v5948 = vpop.f32.mrf.mxu0
        %v5949 = vpop.f32.mrf.mxu0
        %v5950 = vadd.f32 0.0, %v5949
        %v5951 = vpop.f32.mrf.mxu0
        %5952 = vmatprep.mubr.bf16.mxu0 0
        %5953 = vmatmul.mubr.bf16.gmra.mxu0 %v5512
        %v5954 = vpop.f32.mrf.mxu0
        %v5955 = vadd.f32 0.0, %v5954
        %v5956 = vpop.f32.mrf.mxu0
        %v5957 = vpop.f32.mrf.mxu0
        %v5958 = vadd.f32 0.0, %v5957
        %v5959 = vpop.f32.mrf.mxu0
        %5960 = vmatprep.mubr.bf16.mxu0 0
        %5961 = vmatmul.mubr.bf16.gmra.mxu0 %v5515
        %v5962 = vpop.f32.mrf.mxu0
        %v5963 = vadd.f32 0.0, %v5962
        %v5964 = vpop.f32.mrf.mxu0
        %v5965 = vpop.f32.mrf.mxu0
        %v5966 = vadd.f32 0.0, %v5965
        %v5967 = vpop.f32.mrf.mxu0
        %5968 = vmatprep.mubr.bf16.mxu0 0
        %5969 = vmatmul.mubr.bf16.gmra.mxu0 %v5518
        %v5970 = vpop.f32.mrf.mxu0
        %v5971 = vadd.f32 0.0, %v5970
        %v5972 = vpop.f32.mrf.mxu0
        %v5973 = vpop.f32.mrf.mxu0
        %v5974 = vadd.f32 0.0, %v5973
        %v5975 = vpop.f32.mrf.mxu0
        %5976 = vmatprep.mubr.bf16.mxu0 0
        %5977 = vmatmul.mubr.bf16.gmra.mxu0 %v5521
        %v5978 = vpop.f32.mrf.mxu0
        %v5979 = vadd.f32 0.0, %v5978
        %v5980 = vpop.f32.mrf.mxu0
        %v5981 = vpop.f32.mrf.mxu0
        %v5982 = vadd.f32 0.0, %v5981
        %v5983 = vpop.f32.mrf.mxu0
        %5984 = vmatprep.mubr.bf16.mxu0 0
        %5985 = vmatmul.mubr.bf16.gmra.mxu0 %v5524
        %v5986 = vpop.f32.mrf.mxu0
        %v5987 = vadd.f32 0.0, %v5986
        %v5988 = vpop.f32.mrf.mxu0
        %v5989 = vpop.f32.mrf.mxu0
        %v5990 = vadd.f32 0.0, %v5989
        %v5991 = vpop.f32.mrf.mxu0
        %5992 = vmatprep.mubr.bf16.mxu0 0
        %5993 = vmatmul.mubr.bf16.gmra.mxu0 %v5527
        %v5994 = vpop.f32.mrf.mxu0
        %v5995 = vadd.f32 0.0, %v5994
        %v5996 = vpop.f32.mrf.mxu0
        %v5997 = vpop.f32.mrf.mxu0
        %v5998 = vadd.f32 0.0, %v5997
        %v5999 = vpop.f32.mrf.mxu0
        %6000 = vmatprep.mubr.bf16.mxu0 0
        %6001 = vmatmul.mubr.bf16.gmra.mxu0 %v5530
        %v6002 = vpop.f32.mrf.mxu0
        %v6003 = vadd.f32 0.0, %v6002
        %v6004 = vpop.f32.mrf.mxu0
        %v6005 = vpop.f32.mrf.mxu0
        %v6006 = vadd.f32 0.0, %v6005
        %v6007 = vpop.f32.mrf.mxu0
        %6008 = vmatprep.mubr.bf16.mxu0 0
        %6009 = vmatmul.mubr.bf16.gmra.mxu0 %v5533
        %v6010 = vpop.f32.mrf.mxu0
        %v6011 = vadd.f32 0.0, %v6010
        %v6012 = vpop.f32.mrf.mxu0
        %v6013 = vpop.f32.mrf.mxu0
        %v6014 = vadd.f32 0.0, %v6013
        %v6015 = vpop.f32.mrf.mxu0
        %6016 = vmatprep.mubr.bf16.mxu0 0
        %6017 = vmatmul.mubr.bf16.gmra.mxu0 %v5536
        %v6018 = vpop.f32.mrf.mxu0
        %v6019 = vadd.f32 0.0, %v6018
        %v6020 = vpop.f32.mrf.mxu0
        %v6021 = vpop.f32.mrf.mxu0
        %v6022 = vadd.f32 0.0, %v6021
        %v6023 = vpop.f32.mrf.mxu0
        %6024 = vmatprep.mubr.bf16.mxu0 0
        %6025 = vmatmul.mubr.bf16.gmra.mxu0 %v5539
        %v6026 = vpop.f32.mrf.mxu0
        %v6027 = vadd.f32 0.0, %v6026
        %v6028 = vpop.f32.mrf.mxu0
        %v6029 = vpop.f32.mrf.mxu0
        %v6030 = vadd.f32 0.0, %v6029
        %v6031 = vpop.f32.mrf.mxu0
        %6032 = vmatprep.mubr.bf16.mxu0 0
        %6033 = vmatmul.mubr.bf16.gmra.mxu0 %v5542
        %v6034 = vpop.f32.mrf.mxu0
        %v6035 = vadd.f32 0.0, %v6034
        %v6036 = vpop.f32.mrf.mxu0
        %v6037 = vpop.f32.mrf.mxu0
        %v6038 = vpop.f32.mrf.mxu0
        %6039 = vdwg.mxu0
        %v6040 = vadd.f32 %v4370, %v5579
        %v6041 = vadd.f32 %v4371, %v5582
        %v6042 = vadd.f32 %v4372, %v5587
        %v6043 = vadd.f32 %v4373, %v5590
        %v6044 = vadd.f32 %v4374, %v5595
        %v6045 = vadd.f32 %v4375, %v5598
        %v6046 = vadd.f32 %v4376, %v5603
        %v6047 = vadd.f32 %v4377, %v5606
        %v6048 = vadd.f32 %v4378, %v5611
        %v6049 = vadd.f32 %v4379, %v5614
        %v6050 = vadd.f32 %v4380, %v5619
        %v6051 = vadd.f32 %v4381, %v5622
        %v6052 = vadd.f32 %v4382, %v5627
        %v6053 = vadd.f32 %v4383, %v5630
        %v6054 = vadd.f32 %v4384, %v5635
        %v6055 = vadd.f32 %v4385, %v5638
        %v6056 = vadd.f32 %v4386, %v5643
        %v6057 = vadd.f32 %v4387, %v5646
        %v6058 = vadd.f32 %v4388, %v5651
        %v6059 = vadd.f32 %v4389, %v5654
        %v6060 = vadd.f32 %v4390, %v5659
        %v6061 = vadd.f32 %v4391, %v5662
        %v6062 = vadd.f32 %v4392, %v5667
        %v6063 = vadd.f32 %v4393, %v5670
        %v6064 = vadd.f32 %v4394, %v5675
        %v6065 = vadd.f32 %v4395, %v5678
        %v6066 = vadd.f32 %v4396, %v5683
        %v6067 = vadd.f32 %v4397, %v5686
        %v6068 = vadd.f32 %v4398, %v5691
        %v6069 = vadd.f32 %v4399, %v5694
        %v6070 = vadd.f32 %v4400, %v5699
        %v6071 = vadd.f32 %v4401, %v5702
        %v6072 = vadd.f32 %v4402, %v5707
        %v6073 = vadd.f32 %v4403, %v5710
        %v6074 = vadd.f32 %v4404, %v5715
        %v6075 = vadd.f32 %v4405, %v5718
        %v6076 = vadd.f32 %v4406, %v5723
        %v6077 = vadd.f32 %v4407, %v5726
        %v6078 = vadd.f32 %v4408, %v5731
        %v6079 = vadd.f32 %v4409, %v5734
        %v6080 = vadd.f32 %v4410, %v5739
        %v6081 = vadd.f32 %v4411, %v5742
        %v6082 = vadd.f32 %v4412, %v5747
        %v6083 = vadd.f32 %v4413, %v5750
        %v6084 = vadd.f32 %v4414, %v5755
        %v6085 = vadd.f32 %v4415, %v5758
        %v6086 = vadd.f32 %v4416, %v5763
        %v6087 = vadd.f32 %v4417, %v5766
        %v6088 = vadd.f32 %v4418, %v5771
        %v6089 = vadd.f32 %v4419, %v5774
        %v6090 = vadd.f32 %v4420, %v5779
        %v6091 = vadd.f32 %v4421, %v5782
        %v6092 = vadd.f32 %v4422, %v5787
        %v6093 = vadd.f32 %v4423, %v5790
        %v6094 = vadd.f32 %v4424, %v5795
        %v6095 = vadd.f32 %v4425, %v5798
        %v6096 = vadd.f32 %v4426, %v5803
        %v6097 = vadd.f32 %v4427, %v5806
        %v6098 = vadd.f32 %v4428, %v5811
        %v6099 = vadd.f32 %v4429, %v5814
        %v6100 = vadd.f32 %v4430, %v5819
        %v6101 = vadd.f32 %v4431, %v5822
        %v6102 = vadd.f32 %v4432, %v5827
        %v6103 = vadd.f32 %v4433, %v5830
        %v6104 = vadd.f32 %v4434, %v5835
        %v6105 = vadd.f32 %v4435, %v5838
        %v6106 = vadd.f32 %v4436, %v5843
        %v6107 = vadd.f32 %v4437, %v5846
        %v6108 = vadd.f32 %v4438, %v5851
        %v6109 = vadd.f32 %v4439, %v5854
        %v6110 = vadd.f32 %v4440, %v5859
        %v6111 = vadd.f32 %v4441, %v5862
        %v6112 = vadd.f32 %v4442, %v5867
        %v6113 = vadd.f32 %v4443, %v5870
        %v6114 = vadd.f32 %v4444, %v5875
        %v6115 = vadd.f32 %v4445, %v5878
        %v6116 = vadd.f32 %v4446, %v5883
        %v6117 = vadd.f32 %v4447, %v5886
        %v6118 = vadd.f32 %v4448, %v5891
        %v6119 = vadd.f32 %v4449, %v5894
        %v6120 = vadd.f32 %v4450, %v5899
        %v6121 = vadd.f32 %v4451, %v5902
        %v6122 = vadd.f32 %v4452, %v5907
        %v6123 = vadd.f32 %v4453, %v5910
        %v6124 = vadd.f32 %v4454, %v5915
        %v6125 = vadd.f32 %v4455, %v5918
        %v6126 = vadd.f32 %v4456, %v5923
        %v6127 = vadd.f32 %v4457, %v5926
        %v6128 = vadd.f32 %v4458, %v5931
        %v6129 = vadd.f32 %v4459, %v5934
        %v6130 = vadd.f32 %v4460, %v5939
        %v6131 = vadd.f32 %v4461, %v5942
        %v6132 = vadd.f32 %v4462, %v5947
        %v6133 = vadd.f32 %v4463, %v5950
        %v6134 = vadd.f32 %v4464, %v5955
        %v6135 = vadd.f32 %v4465, %v5958
        %v6136 = vadd.f32 %v4466, %v5963
        %v6137 = vadd.f32 %v4467, %v5966
        %v6138 = vadd.f32 %v4468, %v5971
        %v6139 = vadd.f32 %v4469, %v5974
        %v6140 = vadd.f32 %v4470, %v5979
        %v6141 = vadd.f32 %v4471, %v5982
        %v6142 = vadd.f32 %v4472, %v5987
        %v6143 = vadd.f32 %v4473, %v5990
        %v6144 = vadd.f32 %v4474, %v5995
        %v6145 = vadd.f32 %v4475, %v5998
        %v6146 = vadd.f32 %v4476, %v6003
        %v6147 = vadd.f32 %v4477, %v6006
        %v6148 = vadd.f32 %v4478, %v6011
        %v6149 = vadd.f32 %v4479, %v6014
        %v6150 = vadd.f32 %v4480, %v6019
        %v6151 = vadd.f32 %v4481, %v6022
        %v6152 = vadd.f32 %v4482, %v6027
        %v6153 = vadd.f32 %v4483, %v6030
        %v6154 = vadd.f32 %v4484, %v6035
        %v6155 = vld [vmem:[%s169 + $0x8] sm:$0xe]
        %v6156 = vld [vmem:[%s1 + $0x50] sm:$0xf]
        %v6157 = vld [vmem:[%s1 + $0x54] sm:$0xf]
        %v6158 = vld [vmem:[%s1 + $0x58] sm:$0xf]
        %v6159 = vld [vmem:[%s1 + $0x5c] sm:$0xf]
        %v6161 = vunpack.c.l.b16 %v6155
        %v6162 = vpack.c.b16 %v4722, %v6161
        %v6163 = vrot.slane %v6162, 1
        %v6164 = vrot.slane %v4838, 1
        %v6165 = vsel %vm2368, %v6163, %v6164
        %v6166 = vrot.slane %v4839, 1
        %v6167 = vsel %vm2368, %v6164, %v6166
        %v6168 = vrot.slane %v4840, 1
        %v6169 = vsel %vm2368, %v6166, %v6168
        %v6170 = vrot.slane %v4841, 1
        %v6171 = vsel %vm2368, %v6168, %v6170
        %v6172 = vrot.slane %v4842, 1
        %v6173 = vsel %vm2368, %v6170, %v6172
        %v6174 = vrot.slane %v4843, 1
        %v6175 = vsel %vm2368, %v6172, %v6174
        %v6176 = vrot.slane %v4844, 1
        %v6177 = vsel %vm2368, %v6174, %v6176
        %v6178 = vrot.slane %v4845, 1
        %v6179 = vsel %vm2368, %v6176, %v6178
        %v6180 = vrot.slane %v4846, 1
        %v6181 = vsel %vm2368, %v6178, %v6180
        %v6182 = vrot.slane %v4847, 1
        %v6183 = vsel %vm2368, %v6180, %v6182
        %v6184 = vrot.slane %v4848, 1
        %v6185 = vsel %vm2368, %v6182, %v6184
        %v6186 = vrot.slane %v4849, 1
        %v6187 = vsel %vm2368, %v6184, %v6186
        %v6188 = vrot.slane %v4850, 1
        %v6189 = vsel %vm2368, %v6186, %v6188
        %v6190 = vrot.slane %v4851, 1
        %v6191 = vsel %vm2368, %v6188, %v6190
        %v6192 = vrot.slane %v4852, 1
        %v6193 = vsel %vm2368, %v6190, %v6192
        %v6194 = vrot.slane %v4853, 1
        %v6195 = vsel %vm2368, %v6192, %v6194
        %v6196 = vrot.slane %v4854, 1
        %v6197 = vsel %vm2368, %v6194, %v6196
        %v6198 = vrot.slane %v4855, 1
        %v6199 = vsel %vm2368, %v6196, %v6198
        %v6200 = vrot.slane %v4856, 1
        %v6201 = vsel %vm2368, %v6198, %v6200
        %v6202 = vrot.slane %v4857, 1
        %v6203 = vsel %vm2368, %v6200, %v6202
        %v6204 = vrot.slane %v4858, 1
        %v6205 = vsel %vm2368, %v6202, %v6204
        %v6206 = vrot.slane %v4859, 1
        %v6207 = vsel %vm2368, %v6204, %v6206
        %v6208 = vrot.slane %v4860, 1
        %v6209 = vsel %vm2368, %v6206, %v6208
        %v6210 = vrot.slane %v4861, 1
        %v6211 = vsel %vm2368, %v6208, %v6210
        %v6212 = vrot.slane %v4862, 1
        %v6213 = vsel %vm2368, %v6210, %v6212
        %v6214 = vrot.slane %v4863, 1
        %v6215 = vsel %vm2368, %v6212, %v6214
        %v6216 = vrot.slane %v4864, 1
        %v6217 = vsel %vm2368, %v6214, %v6216
        %v6218 = vrot.slane %v4865, 1
        %v6219 = vsel %vm2368, %v6216, %v6218
        %v6220 = vrot.slane %v4866, 1
        %v6221 = vsel %vm2368, %v6218, %v6220
        %v6222 = vrot.slane %v4867, 1
        %v6223 = vsel %vm2368, %v6220, %v6222
        %v6224 = vrot.slane %v4868, 1
        %v6225 = vsel %vm2368, %v6222, %v6224
        %v6226 = vrot.slane %v4869, 1
        %v6227 = vsel %vm2368, %v6224, %v6226
        %v6228 = vrot.slane %v4870, 1
        %v6229 = vsel %vm2368, %v6226, %v6228
        %v6230 = vrot.slane %v4871, 1
        %v6231 = vsel %vm2368, %v6228, %v6230
        %v6232 = vrot.slane %v4872, 1
        %v6233 = vsel %vm2368, %v6230, %v6232
        %v6234 = vrot.slane %v4873, 1
        %v6235 = vsel %vm2368, %v6232, %v6234
        %v6236 = vrot.slane %v4874, 1
        %v6237 = vsel %vm2368, %v6234, %v6236
        %v6238 = vrot.slane %v4875, 1
        %v6239 = vsel %vm2368, %v6236, %v6238
        %v6240 = vrot.slane %v4876, 1
        %v6241 = vsel %vm2368, %v6238, %v6240
        %v6242 = vrot.slane %v4877, 1
        %v6243 = vsel %vm2368, %v6240, %v6242
        %v6244 = vrot.slane %v4878, 1
        %v6245 = vsel %vm2368, %v6242, %v6244
        %v6246 = vrot.slane %v4879, 1
        %v6247 = vsel %vm2368, %v6244, %v6246
        %v6248 = vrot.slane %v4880, 1
        %v6249 = vsel %vm2368, %v6246, %v6248
        %v6250 = vrot.slane %v4881, 1
        %v6251 = vsel %vm2368, %v6248, %v6250
        %v6252 = vrot.slane %v4882, 1
        %v6253 = vsel %vm2368, %v6250, %v6252
        %v6254 = vrot.slane %v4883, 1
        %v6255 = vsel %vm2368, %v6252, %v6254
        %v6256 = vrot.slane %v4884, 1
        %v6257 = vsel %vm2368, %v6254, %v6256
        %v6258 = vrot.slane %v4885, 1
        %v6259 = vsel %vm2368, %v6256, %v6258
        %v6260 = vrot.slane %v4886, 1
        %v6261 = vsel %vm2368, %v6258, %v6260
        %v6262 = vrot.slane %v4887, 1
        %v6263 = vsel %vm2368, %v6260, %v6262
        %v6264 = vrot.slane %v4888, 1
        %v6265 = vsel %vm2368, %v6262, %v6264
        %v6266 = vrot.slane %v4889, 1
        %v6267 = vsel %vm2368, %v6264, %v6266
        %v6268 = vrot.slane %v4890, 1
        %v6269 = vsel %vm2368, %v6266, %v6268
        %v6270 = vrot.slane %v4891, 1
        %v6271 = vsel %vm2368, %v6268, %v6270
        %v6272 = vrot.slane %v4892, 1
        %v6273 = vsel %vm2368, %v6270, %v6272
        %v6274 = vrot.slane %v4893, 1
        %v6275 = vsel %vm2368, %v6272, %v6274
        %v6276 = vrot.slane %v4894, 1
        %v6277 = vsel %vm2368, %v6274, %v6276
        %v6282 = vunpack.c.l.b16 %v6156
        %v6283 = vunpack.c.l.b16 %v6157
        %v6284 = vunpack.c.l.b16 %v6158
        %v6285 = vunpack.c.l.b16 %v6159
        %v6286 = vpack.c.b16 %v6283, %v6282
        %v6287 = vpack.c.b16 %v6285, %v6284
        %v6291 = vsel %vm1063, %v6165, 0
        %v6294 = vsel %vm1063, %v6167, 0
        %v6297 = vsel %vm1063, %v6169, 0
        %v6300 = vsel %vm1063, %v6171, 0
        %v6303 = vsel %vm1063, %v6173, 0
        %v6306 = vsel %vm1063, %v6175, 0
        %v6309 = vsel %vm1063, %v6177, 0
        %v6312 = vsel %vm1063, %v6179, 0
        %v6315 = vsel %vm1063, %v6181, 0
        %v6318 = vsel %vm1063, %v6183, 0
        %v6321 = vsel %vm1063, %v6185, 0
        %v6324 = vsel %vm1063, %v6187, 0
        %v6327 = vsel %vm1063, %v6189, 0
        %v6330 = vsel %vm1063, %v6191, 0
        %v6333 = vsel %vm1063, %v6193, 0
        %v6336 = vsel %vm1063, %v6195, 0
        %v6339 = vsel %vm1063, %v6197, 0
        %v6342 = vsel %vm1063, %v6199, 0
        %v6345 = vsel %vm1063, %v6201, 0
        %v6348 = vsel %vm1063, %v6203, 0
        %v6351 = vsel %vm1063, %v6205, 0
        %v6354 = vsel %vm1063, %v6207, 0
        %v6357 = vsel %vm1063, %v6209, 0
        %v6360 = vsel %vm1063, %v6211, 0
        %v6363 = vsel %vm1063, %v6213, 0
        %v6366 = vsel %vm1063, %v6215, 0
        %v6369 = vsel %vm1063, %v6217, 0
        %v6372 = vsel %vm1063, %v6219, 0
        %v6375 = vsel %vm1063, %v6221, 0
        %v6378 = vsel %vm1063, %v6223, 0
        %v6381 = vsel %vm1063, %v6225, 0
        %v6384 = vsel %vm1063, %v6227, 0
        %v6387 = vsel %vm1063, %v6229, 0
        %v6390 = vsel %vm1063, %v6231, 0
        %v6393 = vsel %vm1063, %v6233, 0
        %v6396 = vsel %vm1063, %v6235, 0
        %v6399 = vsel %vm1063, %v6237, 0
        %v6402 = vsel %vm1063, %v6239, 0
        %v6405 = vsel %vm1063, %v6241, 0
        %v6408 = vsel %vm1063, %v6243, 0
        %v6411 = vsel %vm1063, %v6245, 0
        %v6414 = vsel %vm1063, %v6247, 0
        %v6417 = vsel %vm1063, %v6249, 0
        %v6420 = vsel %vm1063, %v6251, 0
        %v6423 = vsel %vm1063, %v6253, 0
        %v6426 = vsel %vm1063, %v6255, 0
        %v6429 = vsel %vm1063, %v6257, 0
        %v6432 = vsel %vm1063, %v6259, 0
        %v6435 = vsel %vm1063, %v6261, 0
        %v6438 = vsel %vm1063, %v6263, 0
        %v6441 = vsel %vm1063, %v6265, 0
        %v6444 = vsel %vm1063, %v6267, 0
        %v6447 = vsel %vm1063, %v6269, 0
        %v6450 = vsel %vm1063, %v6271, 0
        %v6453 = vsel %vm1063, %v6273, 0
        %v6456 = vsel %vm1063, %v6275, 0
        %v6459 = vsel %vm1063, %v6277, 0
        %v6462 = vsel %vm1063, %v6276, 0
        %6464 = vmatprep.subr.bf16.mxu0 0
        %6465 = vmatpush1.bf16.msra.mxu0 0
        %6466 = vmatprep.subr.bf16.mxu0 0
        %6467 = vmatpush1.bf16.msra.mxu0 0
        %6468 = vmatprep.subr.bf16.mxu0 0
        %6469 = vmatpush1.bf16.msra.mxu0 0
        %6470 = vmatprep.subr.bf16.mxu0 0
        %6471 = vmatpush1.bf16.msra.mxu0 0
        %6472 = vmatprep.subr.bf16.mxu0 0
        %6473 = vmatpush1.bf16.msra.mxu0 0
        %6474 = vmatprep.subr.bf16.mxu0 0
        %6475 = vmatpush1.bf16.msra.mxu0 0
        %6476 = vmatprep.subr.bf16.mxu0 0
        %6477 = vmatpush1.bf16.msra.mxu0 %v6287
        %6478 = vmatprep.subr.bf16.mxu0 0
        %6479 = vmatpush1.bf16.msra.mxu0 %v6286
        %6480 = vmatprep.subr.bf16.mxu0 0
        %6481 = vmatpush2.bf16.msra.mxu0 0
        %6482 = vmatprep.subr.bf16.mxu0 0
        %6483 = vmatpush2.bf16.msra.mxu0 0
        %6484 = vmatprep.subr.bf16.mxu0 0
        %6485 = vmatpush2.bf16.msra.mxu0 0
        %6486 = vmatprep.subr.bf16.mxu0 0
        %6487 = vmatpush2.bf16.msra.mxu0 0
        %6488 = vmatprep.subr.bf16.mxu0 0
        %6489 = vmatpush2.bf16.msra.mxu0 0
        %6490 = vmatprep.subr.bf16.mxu0 0
        %6491 = vmatpush2.bf16.msra.mxu0 0
        %6492 = vmatprep.subr.bf16.mxu0 0
        %6493 = vmatpush2.bf16.msra.mxu0 0
        %6494 = vmatprep.subr.bf16.mxu0 0
        %6495 = vmatpush2.bf16.msra.mxu0 0
        %6496 = vmatprep.mubr.bf16.mxu0 0
        %6497 = vmatmul.mubr.bf16.gmra.mxu0 %v6291
        %v6498 = vpop.f32.mrf.mxu0
        %v6499 = vadd.f32 0.0, %v6498
        %v6500 = vpop.f32.mrf.mxu0
        %v6501 = vpop.f32.mrf.mxu0
        %v6502 = vadd.f32 0.0, %v6501
        %v6503 = vpop.f32.mrf.mxu0
        %6504 = vmatprep.mubr.bf16.mxu0 0
        %6505 = vmatmul.mubr.bf16.gmra.mxu0 %v6294
        %v6506 = vpop.f32.mrf.mxu0
        %v6507 = vadd.f32 0.0, %v6506
        %v6508 = vpop.f32.mrf.mxu0
        %v6509 = vpop.f32.mrf.mxu0
        %v6510 = vadd.f32 0.0, %v6509
        %v6511 = vpop.f32.mrf.mxu0
        %6512 = vmatprep.mubr.bf16.mxu0 0
        %6513 = vmatmul.mubr.bf16.gmra.mxu0 %v6297
        %v6514 = vpop.f32.mrf.mxu0
        %v6515 = vadd.f32 0.0, %v6514
        %v6516 = vpop.f32.mrf.mxu0
        %v6517 = vpop.f32.mrf.mxu0
        %v6518 = vadd.f32 0.0, %v6517
        %v6519 = vpop.f32.mrf.mxu0
        %6520 = vmatprep.mubr.bf16.mxu0 0
        %6521 = vmatmul.mubr.bf16.gmra.mxu0 %v6300
        %v6522 = vpop.f32.mrf.mxu0
        %v6523 = vadd.f32 0.0, %v6522
        %v6524 = vpop.f32.mrf.mxu0
        %v6525 = vpop.f32.mrf.mxu0
        %v6526 = vadd.f32 0.0, %v6525
        %v6527 = vpop.f32.mrf.mxu0
        %6528 = vmatprep.mubr.bf16.mxu0 0
        %6529 = vmatmul.mubr.bf16.gmra.mxu0 %v6303
        %v6530 = vpop.f32.mrf.mxu0
        %v6531 = vadd.f32 0.0, %v6530
        %v6532 = vpop.f32.mrf.mxu0
        %v6533 = vpop.f32.mrf.mxu0
        %v6534 = vadd.f32 0.0, %v6533
        %v6535 = vpop.f32.mrf.mxu0
        %6536 = vmatprep.mubr.bf16.mxu0 0
        %6537 = vmatmul.mubr.bf16.gmra.mxu0 %v6306
        %v6538 = vpop.f32.mrf.mxu0
        %v6539 = vadd.f32 0.0, %v6538
        %v6540 = vpop.f32.mrf.mxu0
        %v6541 = vpop.f32.mrf.mxu0
        %v6542 = vadd.f32 0.0, %v6541
        %v6543 = vpop.f32.mrf.mxu0
        %6544 = vmatprep.mubr.bf16.mxu0 0
        %6545 = vmatmul.mubr.bf16.gmra.mxu0 %v6309
        %v6546 = vpop.f32.mrf.mxu0
        %v6547 = vadd.f32 0.0, %v6546
        %v6548 = vpop.f32.mrf.mxu0
        %v6549 = vpop.f32.mrf.mxu0
        %v6550 = vadd.f32 0.0, %v6549
        %v6551 = vpop.f32.mrf.mxu0
        %6552 = vmatprep.mubr.bf16.mxu0 0
        %6553 = vmatmul.mubr.bf16.gmra.mxu0 %v6312
        %v6554 = vpop.f32.mrf.mxu0
        %v6555 = vadd.f32 0.0, %v6554
        %v6556 = vpop.f32.mrf.mxu0
        %v6557 = vpop.f32.mrf.mxu0
        %v6558 = vadd.f32 0.0, %v6557
        %v6559 = vpop.f32.mrf.mxu0
        %6560 = vmatprep.mubr.bf16.mxu0 0
        %6561 = vmatmul.mubr.bf16.gmra.mxu0 %v6315
        %v6562 = vpop.f32.mrf.mxu0
        %v6563 = vadd.f32 0.0, %v6562
        %v6564 = vpop.f32.mrf.mxu0
        %v6565 = vpop.f32.mrf.mxu0
        %v6566 = vadd.f32 0.0, %v6565
        %v6567 = vpop.f32.mrf.mxu0
        %6568 = vmatprep.mubr.bf16.mxu0 0
        %6569 = vmatmul.mubr.bf16.gmra.mxu0 %v6318
        %v6570 = vpop.f32.mrf.mxu0
        %v6571 = vadd.f32 0.0, %v6570
        %v6572 = vpop.f32.mrf.mxu0
        %v6573 = vpop.f32.mrf.mxu0
        %v6574 = vadd.f32 0.0, %v6573
        %v6575 = vpop.f32.mrf.mxu0
        %6576 = vmatprep.mubr.bf16.mxu0 0
        %6577 = vmatmul.mubr.bf16.gmra.mxu0 %v6321
        %v6578 = vpop.f32.mrf.mxu0
        %v6579 = vadd.f32 0.0, %v6578
        %v6580 = vpop.f32.mrf.mxu0
        %v6581 = vpop.f32.mrf.mxu0
        %v6582 = vadd.f32 0.0, %v6581
        %v6583 = vpop.f32.mrf.mxu0
        %6584 = vmatprep.mubr.bf16.mxu0 0
        %6585 = vmatmul.mubr.bf16.gmra.mxu0 %v6324
        %v6586 = vpop.f32.mrf.mxu0
        %v6587 = vadd.f32 0.0, %v6586
        %v6588 = vpop.f32.mrf.mxu0
        %v6589 = vpop.f32.mrf.mxu0
        %v6590 = vadd.f32 0.0, %v6589
        %v6591 = vpop.f32.mrf.mxu0
        %6592 = vmatprep.mubr.bf16.mxu0 0
        %6593 = vmatmul.mubr.bf16.gmra.mxu0 %v6327
        %v6594 = vpop.f32.mrf.mxu0
        %v6595 = vadd.f32 0.0, %v6594
        %v6596 = vpop.f32.mrf.mxu0
        %v6597 = vpop.f32.mrf.mxu0
        %v6598 = vadd.f32 0.0, %v6597
        %v6599 = vpop.f32.mrf.mxu0
        %6600 = vmatprep.mubr.bf16.mxu0 0
        %6601 = vmatmul.mubr.bf16.gmra.mxu0 %v6330
        %v6602 = vpop.f32.mrf.mxu0
        %v6603 = vadd.f32 0.0, %v6602
        %v6604 = vpop.f32.mrf.mxu0
        %v6605 = vpop.f32.mrf.mxu0
        %v6606 = vadd.f32 0.0, %v6605
        %v6607 = vpop.f32.mrf.mxu0
        %6608 = vmatprep.mubr.bf16.mxu0 0
        %6609 = vmatmul.mubr.bf16.gmra.mxu0 %v6333
        %v6610 = vpop.f32.mrf.mxu0
        %v6611 = vadd.f32 0.0, %v6610
        %v6612 = vpop.f32.mrf.mxu0
        %v6613 = vpop.f32.mrf.mxu0
        %v6614 = vadd.f32 0.0, %v6613
        %v6615 = vpop.f32.mrf.mxu0
        %6616 = vmatprep.mubr.bf16.mxu0 0
        %6617 = vmatmul.mubr.bf16.gmra.mxu0 %v6336
        %v6618 = vpop.f32.mrf.mxu0
        %v6619 = vadd.f32 0.0, %v6618
        %v6620 = vpop.f32.mrf.mxu0
        %v6621 = vpop.f32.mrf.mxu0
        %v6622 = vadd.f32 0.0, %v6621
        %v6623 = vpop.f32.mrf.mxu0
        %6624 = vmatprep.mubr.bf16.mxu0 0
        %6625 = vmatmul.mubr.bf16.gmra.mxu0 %v6339
        %v6626 = vpop.f32.mrf.mxu0
        %v6627 = vadd.f32 0.0, %v6626
        %v6628 = vpop.f32.mrf.mxu0
        %v6629 = vpop.f32.mrf.mxu0
        %v6630 = vadd.f32 0.0, %v6629
        %v6631 = vpop.f32.mrf.mxu0
        %6632 = vmatprep.mubr.bf16.mxu0 0
        %6633 = vmatmul.mubr.bf16.gmra.mxu0 %v6342
        %v6634 = vpop.f32.mrf.mxu0
        %v6635 = vadd.f32 0.0, %v6634
        %v6636 = vpop.f32.mrf.mxu0
        %v6637 = vpop.f32.mrf.mxu0
        %v6638 = vadd.f32 0.0, %v6637
        %v6639 = vpop.f32.mrf.mxu0
        %6640 = vmatprep.mubr.bf16.mxu0 0
        %6641 = vmatmul.mubr.bf16.gmra.mxu0 %v6345
        %v6642 = vpop.f32.mrf.mxu0
        %v6643 = vadd.f32 0.0, %v6642
        %v6644 = vpop.f32.mrf.mxu0
        %v6645 = vpop.f32.mrf.mxu0
        %v6646 = vadd.f32 0.0, %v6645
        %v6647 = vpop.f32.mrf.mxu0
        %6648 = vmatprep.mubr.bf16.mxu0 0
        %6649 = vmatmul.mubr.bf16.gmra.mxu0 %v6348
        %v6650 = vpop.f32.mrf.mxu0
        %v6651 = vadd.f32 0.0, %v6650
        %v6652 = vpop.f32.mrf.mxu0
        %v6653 = vpop.f32.mrf.mxu0
        %v6654 = vadd.f32 0.0, %v6653
        %v6655 = vpop.f32.mrf.mxu0
        %6656 = vmatprep.mubr.bf16.mxu0 0
        %6657 = vmatmul.mubr.bf16.gmra.mxu0 %v6351
        %v6658 = vpop.f32.mrf.mxu0
        %v6659 = vadd.f32 0.0, %v6658
        %v6660 = vpop.f32.mrf.mxu0
        %v6661 = vpop.f32.mrf.mxu0
        %v6662 = vadd.f32 0.0, %v6661
        %v6663 = vpop.f32.mrf.mxu0
        %6664 = vmatprep.mubr.bf16.mxu0 0
        %6665 = vmatmul.mubr.bf16.gmra.mxu0 %v6354
        %v6666 = vpop.f32.mrf.mxu0
        %v6667 = vadd.f32 0.0, %v6666
        %v6668 = vpop.f32.mrf.mxu0
        %v6669 = vpop.f32.mrf.mxu0
        %v6670 = vadd.f32 0.0, %v6669
        %v6671 = vpop.f32.mrf.mxu0
        %6672 = vmatprep.mubr.bf16.mxu0 0
        %6673 = vmatmul.mubr.bf16.gmra.mxu0 %v6357
        %v6674 = vpop.f32.mrf.mxu0
        %v6675 = vadd.f32 0.0, %v6674
        %v6676 = vpop.f32.mrf.mxu0
        %v6677 = vpop.f32.mrf.mxu0
        %v6678 = vadd.f32 0.0, %v6677
        %v6679 = vpop.f32.mrf.mxu0
        %6680 = vmatprep.mubr.bf16.mxu0 0
        %6681 = vmatmul.mubr.bf16.gmra.mxu0 %v6360
        %v6682 = vpop.f32.mrf.mxu0
        %v6683 = vadd.f32 0.0, %v6682
        %v6684 = vpop.f32.mrf.mxu0
        %v6685 = vpop.f32.mrf.mxu0
        %v6686 = vadd.f32 0.0, %v6685
        %v6687 = vpop.f32.mrf.mxu0
        %6688 = vmatprep.mubr.bf16.mxu0 0
        %6689 = vmatmul.mubr.bf16.gmra.mxu0 %v6363
        %v6690 = vpop.f32.mrf.mxu0
        %v6691 = vadd.f32 0.0, %v6690
        %v6692 = vpop.f32.mrf.mxu0
        %v6693 = vpop.f32.mrf.mxu0
        %v6694 = vadd.f32 0.0, %v6693
        %v6695 = vpop.f32.mrf.mxu0
        %6696 = vmatprep.mubr.bf16.mxu0 0
        %6697 = vmatmul.mubr.bf16.gmra.mxu0 %v6366
        %v6698 = vpop.f32.mrf.mxu0
        %v6699 = vadd.f32 0.0, %v6698
        %v6700 = vpop.f32.mrf.mxu0
        %v6701 = vpop.f32.mrf.mxu0
        %v6702 = vadd.f32 0.0, %v6701
        %v6703 = vpop.f32.mrf.mxu0
        %6704 = vmatprep.mubr.bf16.mxu0 0
        %6705 = vmatmul.mubr.bf16.gmra.mxu0 %v6369
        %v6706 = vpop.f32.mrf.mxu0
        %v6707 = vadd.f32 0.0, %v6706
        %v6708 = vpop.f32.mrf.mxu0
        %v6709 = vpop.f32.mrf.mxu0
        %v6710 = vadd.f32 0.0, %v6709
        %v6711 = vpop.f32.mrf.mxu0
        %6712 = vmatprep.mubr.bf16.mxu0 0
        %6713 = vmatmul.mubr.bf16.gmra.mxu0 %v6372
        %v6714 = vpop.f32.mrf.mxu0
        %v6715 = vadd.f32 0.0, %v6714
        %v6716 = vpop.f32.mrf.mxu0
        %v6717 = vpop.f32.mrf.mxu0
        %v6718 = vadd.f32 0.0, %v6717
        %v6719 = vpop.f32.mrf.mxu0
        %6720 = vmatprep.mubr.bf16.mxu0 0
        %6721 = vmatmul.mubr.bf16.gmra.mxu0 %v6375
        %v6722 = vpop.f32.mrf.mxu0
        %v6723 = vadd.f32 0.0, %v6722
        %v6724 = vpop.f32.mrf.mxu0
        %v6725 = vpop.f32.mrf.mxu0
        %v6726 = vadd.f32 0.0, %v6725
        %v6727 = vpop.f32.mrf.mxu0
        %6728 = vmatprep.mubr.bf16.mxu0 0
        %6729 = vmatmul.mubr.bf16.gmra.mxu0 %v6378
        %v6730 = vpop.f32.mrf.mxu0
        %v6731 = vadd.f32 0.0, %v6730
        %v6732 = vpop.f32.mrf.mxu0
        %v6733 = vpop.f32.mrf.mxu0
        %v6734 = vadd.f32 0.0, %v6733
        %v6735 = vpop.f32.mrf.mxu0
        %6736 = vmatprep.mubr.bf16.mxu0 0
        %6737 = vmatmul.mubr.bf16.gmra.mxu0 %v6381
        %v6738 = vpop.f32.mrf.mxu0
        %v6739 = vadd.f32 0.0, %v6738
        %v6740 = vpop.f32.mrf.mxu0
        %v6741 = vpop.f32.mrf.mxu0
        %v6742 = vadd.f32 0.0, %v6741
        %v6743 = vpop.f32.mrf.mxu0
        %6744 = vmatprep.mubr.bf16.mxu0 0
        %6745 = vmatmul.mubr.bf16.gmra.mxu0 %v6384
        %v6746 = vpop.f32.mrf.mxu0
        %v6747 = vadd.f32 0.0, %v6746
        %v6748 = vpop.f32.mrf.mxu0
        %v6749 = vpop.f32.mrf.mxu0
        %v6750 = vadd.f32 0.0, %v6749
        %v6751 = vpop.f32.mrf.mxu0
        %6752 = vmatprep.mubr.bf16.mxu0 0
        %6753 = vmatmul.mubr.bf16.gmra.mxu0 %v6387
        %v6754 = vpop.f32.mrf.mxu0
        %v6755 = vadd.f32 0.0, %v6754
        %v6756 = vpop.f32.mrf.mxu0
        %v6757 = vpop.f32.mrf.mxu0
        %v6758 = vadd.f32 0.0, %v6757
        %v6759 = vpop.f32.mrf.mxu0
        %6760 = vmatprep.mubr.bf16.mxu0 0
        %6761 = vmatmul.mubr.bf16.gmra.mxu0 %v6390
        %v6762 = vpop.f32.mrf.mxu0
        %v6763 = vadd.f32 0.0, %v6762
        %v6764 = vpop.f32.mrf.mxu0
        %v6765 = vpop.f32.mrf.mxu0
        %v6766 = vadd.f32 0.0, %v6765
        %v6767 = vpop.f32.mrf.mxu0
        %6768 = vmatprep.mubr.bf16.mxu0 0
        %6769 = vmatmul.mubr.bf16.gmra.mxu0 %v6393
        %v6770 = vpop.f32.mrf.mxu0
        %v6771 = vadd.f32 0.0, %v6770
        %v6772 = vpop.f32.mrf.mxu0
        %v6773 = vpop.f32.mrf.mxu0
        %v6774 = vadd.f32 0.0, %v6773
        %v6775 = vpop.f32.mrf.mxu0
        %6776 = vmatprep.mubr.bf16.mxu0 0
        %6777 = vmatmul.mubr.bf16.gmra.mxu0 %v6396
        %v6778 = vpop.f32.mrf.mxu0
        %v6779 = vadd.f32 0.0, %v6778
        %v6780 = vpop.f32.mrf.mxu0
        %v6781 = vpop.f32.mrf.mxu0
        %v6782 = vadd.f32 0.0, %v6781
        %v6783 = vpop.f32.mrf.mxu0
        %6784 = vmatprep.mubr.bf16.mxu0 0
        %6785 = vmatmul.mubr.bf16.gmra.mxu0 %v6399
        %v6786 = vpop.f32.mrf.mxu0
        %v6787 = vadd.f32 0.0, %v6786
        %v6788 = vpop.f32.mrf.mxu0
        %v6789 = vpop.f32.mrf.mxu0
        %v6790 = vadd.f32 0.0, %v6789
        %v6791 = vpop.f32.mrf.mxu0
        %6792 = vmatprep.mubr.bf16.mxu0 0
        %6793 = vmatmul.mubr.bf16.gmra.mxu0 %v6402
        %v6794 = vpop.f32.mrf.mxu0
        %v6795 = vadd.f32 0.0, %v6794
        %v6796 = vpop.f32.mrf.mxu0
        %v6797 = vpop.f32.mrf.mxu0
        %v6798 = vadd.f32 0.0, %v6797
        %v6799 = vpop.f32.mrf.mxu0
        %6800 = vmatprep.mubr.bf16.mxu0 0
        %6801 = vmatmul.mubr.bf16.gmra.mxu0 %v6405
        %v6802 = vpop.f32.mrf.mxu0
        %v6803 = vadd.f32 0.0, %v6802
        %v6804 = vpop.f32.mrf.mxu0
        %v6805 = vpop.f32.mrf.mxu0
        %v6806 = vadd.f32 0.0, %v6805
        %v6807 = vpop.f32.mrf.mxu0
        %6808 = vmatprep.mubr.bf16.mxu0 0
        %6809 = vmatmul.mubr.bf16.gmra.mxu0 %v6408
        %v6810 = vpop.f32.mrf.mxu0
        %v6811 = vadd.f32 0.0, %v6810
        %v6812 = vpop.f32.mrf.mxu0
        %v6813 = vpop.f32.mrf.mxu0
        %v6814 = vadd.f32 0.0, %v6813
        %v6815 = vpop.f32.mrf.mxu0
        %6816 = vmatprep.mubr.bf16.mxu0 0
        %6817 = vmatmul.mubr.bf16.gmra.mxu0 %v6411
        %v6818 = vpop.f32.mrf.mxu0
        %v6819 = vadd.f32 0.0, %v6818
        %v6820 = vpop.f32.mrf.mxu0
        %v6821 = vpop.f32.mrf.mxu0
        %v6822 = vadd.f32 0.0, %v6821
        %v6823 = vpop.f32.mrf.mxu0
        %6824 = vmatprep.mubr.bf16.mxu0 0
        %6825 = vmatmul.mubr.bf16.gmra.mxu0 %v6414
        %v6826 = vpop.f32.mrf.mxu0
        %v6827 = vadd.f32 0.0, %v6826
        %v6828 = vpop.f32.mrf.mxu0
        %v6829 = vpop.f32.mrf.mxu0
        %v6830 = vadd.f32 0.0, %v6829
        %v6831 = vpop.f32.mrf.mxu0
        %6832 = vmatprep.mubr.bf16.mxu0 0
        %6833 = vmatmul.mubr.bf16.gmra.mxu0 %v6417
        %v6834 = vpop.f32.mrf.mxu0
        %v6835 = vadd.f32 0.0, %v6834
        %v6836 = vpop.f32.mrf.mxu0
        %v6837 = vpop.f32.mrf.mxu0
        %v6838 = vadd.f32 0.0, %v6837
        %v6839 = vpop.f32.mrf.mxu0
        %6840 = vmatprep.mubr.bf16.mxu0 0
        %6841 = vmatmul.mubr.bf16.gmra.mxu0 %v6420
        %v6842 = vpop.f32.mrf.mxu0
        %v6843 = vadd.f32 0.0, %v6842
        %v6844 = vpop.f32.mrf.mxu0
        %v6845 = vpop.f32.mrf.mxu0
        %v6846 = vadd.f32 0.0, %v6845
        %v6847 = vpop.f32.mrf.mxu0
        %6848 = vmatprep.mubr.bf16.mxu0 0
        %6849 = vmatmul.mubr.bf16.gmra.mxu0 %v6423
        %v6850 = vpop.f32.mrf.mxu0
        %v6851 = vadd.f32 0.0, %v6850
        %v6852 = vpop.f32.mrf.mxu0
        %v6853 = vpop.f32.mrf.mxu0
        %v6854 = vadd.f32 0.0, %v6853
        %v6855 = vpop.f32.mrf.mxu0
        %6856 = vmatprep.mubr.bf16.mxu0 0
        %6857 = vmatmul.mubr.bf16.gmra.mxu0 %v6426
        %v6858 = vpop.f32.mrf.mxu0
        %v6859 = vadd.f32 0.0, %v6858
        %v6860 = vpop.f32.mrf.mxu0
        %v6861 = vpop.f32.mrf.mxu0
        %v6862 = vadd.f32 0.0, %v6861
        %v6863 = vpop.f32.mrf.mxu0
        %6864 = vmatprep.mubr.bf16.mxu0 0
        %6865 = vmatmul.mubr.bf16.gmra.mxu0 %v6429
        %v6866 = vpop.f32.mrf.mxu0
        %v6867 = vadd.f32 0.0, %v6866
        %v6868 = vpop.f32.mrf.mxu0
        %v6869 = vpop.f32.mrf.mxu0
        %v6870 = vadd.f32 0.0, %v6869
        %v6871 = vpop.f32.mrf.mxu0
        %6872 = vmatprep.mubr.bf16.mxu0 0
        %6873 = vmatmul.mubr.bf16.gmra.mxu0 %v6432
        %v6874 = vpop.f32.mrf.mxu0
        %v6875 = vadd.f32 0.0, %v6874
        %v6876 = vpop.f32.mrf.mxu0
        %v6877 = vpop.f32.mrf.mxu0
        %v6878 = vadd.f32 0.0, %v6877
        %v6879 = vpop.f32.mrf.mxu0
        %6880 = vmatprep.mubr.bf16.mxu0 0
        %6881 = vmatmul.mubr.bf16.gmra.mxu0 %v6435
        %v6882 = vpop.f32.mrf.mxu0
        %v6883 = vadd.f32 0.0, %v6882
        %v6884 = vpop.f32.mrf.mxu0
        %v6885 = vpop.f32.mrf.mxu0
        %v6886 = vadd.f32 0.0, %v6885
        %v6887 = vpop.f32.mrf.mxu0
        %6888 = vmatprep.mubr.bf16.mxu0 0
        %6889 = vmatmul.mubr.bf16.gmra.mxu0 %v6438
        %v6890 = vpop.f32.mrf.mxu0
        %v6891 = vadd.f32 0.0, %v6890
        %v6892 = vpop.f32.mrf.mxu0
        %v6893 = vpop.f32.mrf.mxu0
        %v6894 = vadd.f32 0.0, %v6893
        %v6895 = vpop.f32.mrf.mxu0
        %6896 = vmatprep.mubr.bf16.mxu0 0
        %6897 = vmatmul.mubr.bf16.gmra.mxu0 %v6441
        %v6898 = vpop.f32.mrf.mxu0
        %v6899 = vadd.f32 0.0, %v6898
        %v6900 = vpop.f32.mrf.mxu0
        %v6901 = vpop.f32.mrf.mxu0
        %v6902 = vadd.f32 0.0, %v6901
        %v6903 = vpop.f32.mrf.mxu0
        %6904 = vmatprep.mubr.bf16.mxu0 0
        %6905 = vmatmul.mubr.bf16.gmra.mxu0 %v6444
        %v6906 = vpop.f32.mrf.mxu0
        %v6907 = vadd.f32 0.0, %v6906
        %v6908 = vpop.f32.mrf.mxu0
        %v6909 = vpop.f32.mrf.mxu0
        %v6910 = vadd.f32 0.0, %v6909
        %v6911 = vpop.f32.mrf.mxu0
        %6912 = vmatprep.mubr.bf16.mxu0 0
        %6913 = vmatmul.mubr.bf16.gmra.mxu0 %v6447
        %v6914 = vpop.f32.mrf.mxu0
        %v6915 = vadd.f32 0.0, %v6914
        %v6916 = vpop.f32.mrf.mxu0
        %v6917 = vpop.f32.mrf.mxu0
        %v6918 = vadd.f32 0.0, %v6917
        %v6919 = vpop.f32.mrf.mxu0
        %6920 = vmatprep.mubr.bf16.mxu0 0
        %6921 = vmatmul.mubr.bf16.gmra.mxu0 %v6450
        %v6922 = vpop.f32.mrf.mxu0
        %v6923 = vadd.f32 0.0, %v6922
        %v6924 = vpop.f32.mrf.mxu0
        %v6925 = vpop.f32.mrf.mxu0
        %v6926 = vadd.f32 0.0, %v6925
        %v6927 = vpop.f32.mrf.mxu0
        %6928 = vmatprep.mubr.bf16.mxu0 0
        %6929 = vmatmul.mubr.bf16.gmra.mxu0 %v6453
        %v6930 = vpop.f32.mrf.mxu0
        %v6931 = vadd.f32 0.0, %v6930
        %v6932 = vpop.f32.mrf.mxu0
        %v6933 = vpop.f32.mrf.mxu0
        %v6934 = vadd.f32 0.0, %v6933
        %v6935 = vpop.f32.mrf.mxu0
        %6936 = vmatprep.mubr.bf16.mxu0 0
        %6937 = vmatmul.mubr.bf16.gmra.mxu0 %v6456
        %v6938 = vpop.f32.mrf.mxu0
        %v6939 = vadd.f32 0.0, %v6938
        %v6940 = vpop.f32.mrf.mxu0
        %v6941 = vpop.f32.mrf.mxu0
        %v6942 = vadd.f32 0.0, %v6941
        %v6943 = vpop.f32.mrf.mxu0
        %6944 = vmatprep.mubr.bf16.mxu0 0
        %6945 = vmatmul.mubr.bf16.gmra.mxu0 %v6459
        %v6946 = vpop.f32.mrf.mxu0
        %v6947 = vadd.f32 0.0, %v6946
        %v6948 = vpop.f32.mrf.mxu0
        %v6949 = vpop.f32.mrf.mxu0
        %v6950 = vadd.f32 0.0, %v6949
        %v6951 = vpop.f32.mrf.mxu0
        %6952 = vmatprep.mubr.bf16.mxu0 0
        %6953 = vmatmul.mubr.bf16.gmra.mxu0 %v6462
        %v6954 = vpop.f32.mrf.mxu0
        %v6955 = vadd.f32 0.0, %v6954
        %v6956 = vpop.f32.mrf.mxu0
        %v6957 = vpop.f32.mrf.mxu0
        %v6958 = vpop.f32.mrf.mxu0
        %6959 = vdwg.mxu0
        %v6960 = vadd.f32 %v6040, %v6499
        %v6961 = vadd.f32 %v6041, %v6502
        %v6962 = vadd.f32 %v6042, %v6507
        %v6963 = vadd.f32 %v6043, %v6510
        %v6964 = vadd.f32 %v6044, %v6515
        %v6965 = vadd.f32 %v6045, %v6518
        %v6966 = vadd.f32 %v6046, %v6523
        %v6967 = vadd.f32 %v6047, %v6526
        %v6968 = vadd.f32 %v6048, %v6531
        %v6969 = vadd.f32 %v6049, %v6534
        %v6970 = vadd.f32 %v6050, %v6539
        %v6971 = vadd.f32 %v6051, %v6542
        %v6972 = vadd.f32 %v6052, %v6547
        %v6973 = vadd.f32 %v6053, %v6550
        %v6974 = vadd.f32 %v6054, %v6555
        %v6975 = vadd.f32 %v6055, %v6558
        %v6976 = vadd.f32 %v6056, %v6563
        %v6977 = vadd.f32 %v6057, %v6566
        %v6978 = vadd.f32 %v6058, %v6571
        %v6979 = vadd.f32 %v6059, %v6574
        %v6980 = vadd.f32 %v6060, %v6579
        %v6981 = vadd.f32 %v6061, %v6582
        %v6982 = vadd.f32 %v6062, %v6587
        %v6983 = vadd.f32 %v6063, %v6590
        %v6984 = vadd.f32 %v6064, %v6595
        %v6985 = vadd.f32 %v6065, %v6598
        %v6986 = vadd.f32 %v6066, %v6603
        %v6987 = vadd.f32 %v6067, %v6606
        %v6988 = vadd.f32 %v6068, %v6611
        %v6989 = vadd.f32 %v6069, %v6614
        %v6990 = vadd.f32 %v6070, %v6619
        %v6991 = vadd.f32 %v6071, %v6622
        %v6992 = vadd.f32 %v6072, %v6627
        %v6993 = vadd.f32 %v6073, %v6630
        %v6994 = vadd.f32 %v6074, %v6635
        %v6995 = vadd.f32 %v6075, %v6638
        %v6996 = vadd.f32 %v6076, %v6643
        %v6997 = vadd.f32 %v6077, %v6646
        %v6998 = vadd.f32 %v6078, %v6651
        %v6999 = vadd.f32 %v6079, %v6654
        %v7000 = vadd.f32 %v6080, %v6659
        %v7001 = vadd.f32 %v6081, %v6662
        %v7002 = vadd.f32 %v6082, %v6667
        %v7003 = vadd.f32 %v6083, %v6670
        %v7004 = vadd.f32 %v6084, %v6675
        %v7005 = vadd.f32 %v6085, %v6678
        %v7006 = vadd.f32 %v6086, %v6683
        %v7007 = vadd.f32 %v6087, %v6686
        %v7008 = vadd.f32 %v6088, %v6691
        %v7009 = vadd.f32 %v6089, %v6694
        %v7010 = vadd.f32 %v6090, %v6699
        %v7011 = vadd.f32 %v6091, %v6702
        %v7012 = vadd.f32 %v6092, %v6707
        %v7013 = vadd.f32 %v6093, %v6710
        %v7014 = vadd.f32 %v6094, %v6715
        %v7015 = vadd.f32 %v6095, %v6718
        %v7016 = vadd.f32 %v6096, %v6723
        %v7017 = vadd.f32 %v6097, %v6726
        %v7018 = vadd.f32 %v6098, %v6731
        %v7019 = vadd.f32 %v6099, %v6734
        %v7020 = vadd.f32 %v6100, %v6739
        %v7021 = vadd.f32 %v6101, %v6742
        %v7022 = vadd.f32 %v6102, %v6747
        %v7023 = vadd.f32 %v6103, %v6750
        %v7024 = vadd.f32 %v6104, %v6755
        %v7025 = vadd.f32 %v6105, %v6758
        %v7026 = vadd.f32 %v6106, %v6763
        %v7027 = vadd.f32 %v6107, %v6766
        %v7028 = vadd.f32 %v6108, %v6771
        %v7029 = vadd.f32 %v6109, %v6774
        %v7030 = vadd.f32 %v6110, %v6779
        %v7031 = vadd.f32 %v6111, %v6782
        %v7032 = vadd.f32 %v6112, %v6787
        %v7033 = vadd.f32 %v6113, %v6790
        %v7034 = vadd.f32 %v6114, %v6795
        %v7035 = vadd.f32 %v6115, %v6798
        %v7036 = vadd.f32 %v6116, %v6803
        %v7037 = vadd.f32 %v6117, %v6806
        %v7038 = vadd.f32 %v6118, %v6811
        %v7039 = vadd.f32 %v6119, %v6814
        %v7040 = vadd.f32 %v6120, %v6819
        %v7041 = vadd.f32 %v6121, %v6822
        %v7042 = vadd.f32 %v6122, %v6827
        %v7043 = vadd.f32 %v6123, %v6830
        %v7044 = vadd.f32 %v6124, %v6835
        %v7045 = vadd.f32 %v6125, %v6838
        %v7046 = vadd.f32 %v6126, %v6843
        %v7047 = vadd.f32 %v6127, %v6846
        %v7048 = vadd.f32 %v6128, %v6851
        %v7049 = vadd.f32 %v6129, %v6854
        %v7050 = vadd.f32 %v6130, %v6859
        %v7051 = vadd.f32 %v6131, %v6862
        %v7052 = vadd.f32 %v6132, %v6867
        %v7053 = vadd.f32 %v6133, %v6870
        %v7054 = vadd.f32 %v6134, %v6875
        %v7055 = vadd.f32 %v6135, %v6878
        %v7056 = vadd.f32 %v6136, %v6883
        %v7057 = vadd.f32 %v6137, %v6886
        %v7058 = vadd.f32 %v6138, %v6891
        %v7059 = vadd.f32 %v6139, %v6894
        %v7060 = vadd.f32 %v6140, %v6899
        %v7061 = vadd.f32 %v6141, %v6902
        %v7062 = vadd.f32 %v6142, %v6907
        %v7063 = vadd.f32 %v6143, %v6910
        %v7064 = vadd.f32 %v6144, %v6915
        %v7065 = vadd.f32 %v6145, %v6918
        %v7066 = vadd.f32 %v6146, %v6923
        %v7067 = vadd.f32 %v6147, %v6926
        %v7068 = vadd.f32 %v6148, %v6931
        %v7069 = vadd.f32 %v6149, %v6934
        %v7070 = vadd.f32 %v6150, %v6939
        %v7071 = vadd.f32 %v6151, %v6942
        %v7072 = vadd.f32 %v6152, %v6947
        %v7073 = vadd.f32 %v6153, %v6950
        %v7074 = vadd.f32 %v6154, %v6955
        %v7075 = vld [vmem:[%s169 + $0x10] sm:$0xf]
        %v7076 = vld [vmem:[%s169 + $0x14] sm:$0xf]
        %v7077 = vld [vmem:[%s169 + $0x18] sm:$0xf]
        %v7078 = vld [vmem:[%s169 + $0x1c] sm:$0xf]
        %v7079 = vld [vmem:[%s169 + $0x20] sm:$0xf]
        %v7080 = vld [vmem:[%s169 + $0x24] sm:$0xf]
        %v7081 = vld [vmem:[%s169 + $0x28] sm:$0xf]
        %v7082 = vld [vmem:[%s169 + $0x2c] sm:$0xf]
        %v7083 = vld [vmem:[%s169 + $0x30] sm:$0xf]
        %v7084 = vld [vmem:[%s169 + $0x34] sm:$0xf]
        %v7085 = vld [vmem:[%s169 + $0x38] sm:$0xf]
        %v7086 = vld [vmem:[%s169 + $0x3c] sm:$0xf]
        %v7087 = vld [vmem:[%s169 + $0x40] sm:$0xf]
        %v7088 = vld [vmem:[%s169 + $0x44] sm:$0xf]
        %v7089 = vld [vmem:[%s169 + $0x48] sm:$0xf]
        %v7090 = vld [vmem:[%s169 + $0x4c] sm:$0xf]
        %v7091 = vld [vmem:[%s169 + $0x50] sm:$0xf]
        %v7092 = vld [vmem:[%s169 + $0x54] sm:$0xf]
        %v7093 = vld [vmem:[%s169 + $0x58] sm:$0xf]
        %v7094 = vld [vmem:[%s169 + $0x5c] sm:$0xf]
        %v7095 = vld [vmem:[%s169 + $0x60] sm:$0xf]
        %v7096 = vld [vmem:[%s169 + $0x64] sm:$0xf]
        %v7097 = vld [vmem:[%s169 + $0x68] sm:$0xf]
        %v7098 = vld [vmem:[%s169 + $0x6c] sm:$0xf]
        %v7099 = vld [vmem:[%s169 + $0x70] sm:$0xf]
        %v7100 = vld [vmem:[%s169 + $0x74] sm:$0xf]
        %v7101 = vld [vmem:[%s169 + $0x78] sm:$0xf]
        %v7102 = vld [vmem:[%s169 + $0x7c] sm:$0xf]
        %v7103 = vld [vmem:[%s169 + $0x80] sm:$0xf]
        %v7104 = vld [vmem:[%s169 + $0x84] sm:$0xf]
        %v7105 = vld [vmem:[%s169 + $0x88] sm:$0xf]
        %v7106 = vld [vmem:[%s169 + $0x8c] sm:$0xf]
        %v7107 = vld [vmem:[%s169 + $0x90] sm:$0xf]
        %v7108 = vld [vmem:[%s169 + $0x94] sm:$0xf]
        %v7109 = vld [vmem:[%s169 + $0x98] sm:$0xf]
        %v7110 = vld [vmem:[%s169 + $0x9c] sm:$0xf]
        %v7111 = vld [vmem:[%s169 + $0xa0] sm:$0xf]
        %v7112 = vld [vmem:[%s169 + $0xa4] sm:$0xf]
        %v7113 = vld [vmem:[%s169 + $0xa8] sm:$0xf]
        %v7114 = vld [vmem:[%s169 + $0xac] sm:$0xf]
        %v7115 = vld [vmem:[%s169 + $0xb0] sm:$0xf]
        %v7116 = vld [vmem:[%s169 + $0xb4] sm:$0xf]
        %v7117 = vld [vmem:[%s169 + $0xb8] sm:$0xf]
        %v7118 = vld [vmem:[%s169 + $0xbc] sm:$0xf]
        %v7119 = vld [vmem:[%s169 + $0xc0] sm:$0xf]
        %v7120 = vld [vmem:[%s169 + $0xc4] sm:$0xf]
        %v7121 = vld [vmem:[%s169 + $0xc8] sm:$0xf]
        %v7122 = vld [vmem:[%s169 + $0xcc] sm:$0xf]
        %v7123 = vld [vmem:[%s169 + $0xd0] sm:$0xf]
        %v7124 = vld [vmem:[%s169 + $0xd4] sm:$0xf]
        %v7125 = vld [vmem:[%s169 + $0xd8] sm:$0xf]
        %v7126 = vld [vmem:[%s169 + $0xdc] sm:$0xf]
        %v7127 = vld [vmem:[%s169 + $0xe0] sm:$0xf]
        %v7128 = vld [vmem:[%s169 + $0xe4] sm:$0xf]
        %v7129 = vld [vmem:[%s169 + $0xe8] sm:$0xf]
        %v7130 = vld [vmem:[%s169 + $0xec] sm:$0xf]
        %v7131 = vld [vmem:[%s169 + $0xf0] sm:$0xf]
        %v7132 = vld [vmem:[%s169 + $0xf4] sm:$0xf]
        %v7133 = vld [vmem:[%s169 + $0xf8] sm:$0xf]
        %v7134 = vld [vmem:[%s169 + $0xfc] sm:$0xf]
        %v7135 = vld [vmem:[%s169 + $0x100] sm:$0xf]
        %v7136 = vld [vmem:[%s169 + $0x104] sm:$0xf]
        %v7137 = vld [vmem:[%s169 + $0x108] sm:$0xf]
        %v7138 = vld [vmem:[%s169 + $0x10c] sm:$0xf]
        %v7139 = vld [vmem:[%s169 + $0x110] sm:$0xf]
        %v7140 = vld [vmem:[%s169 + $0x114] sm:$0xf]
        %v7141 = vld [vmem:[%s169 + $0x118] sm:$0xf]
        %v7142 = vld [vmem:[%s169 + $0x11c] sm:$0xf]
        %v7143 = vld [vmem:[%s169 + $0x120] sm:$0xf]
        %v7144 = vld [vmem:[%s169 + $0x124] sm:$0xf]
        %v7145 = vld [vmem:[%s169 + $0x128] sm:$0xf]
        %v7146 = vld [vmem:[%s169 + $0x12c] sm:$0xf]
        %v7147 = vld [vmem:[%s169 + $0x130] sm:$0xf]
        %v7148 = vld [vmem:[%s169 + $0x134] sm:$0xf]
        %v7149 = vld [vmem:[%s169 + $0x138] sm:$0xf]
        %v7150 = vld [vmem:[%s169 + $0x13c] sm:$0xf]
        %v7151 = vld [vmem:[%s169 + $0x140] sm:$0xf]
        %v7152 = vld [vmem:[%s169 + $0x144] sm:$0xf]
        %v7153 = vld [vmem:[%s169 + $0x148] sm:$0xf]
        %v7154 = vld [vmem:[%s169 + $0x14c] sm:$0xf]
        %v7155 = vld [vmem:[%s169 + $0x150] sm:$0xf]
        %v7156 = vld [vmem:[%s169 + $0x154] sm:$0xf]
        %v7157 = vld [vmem:[%s169 + $0x158] sm:$0xf]
        %v7158 = vld [vmem:[%s169 + $0x15c] sm:$0xf]
        %v7159 = vld [vmem:[%s169 + $0x160] sm:$0xf]
        %v7160 = vld [vmem:[%s169 + $0x164] sm:$0xf]
        %v7161 = vld [vmem:[%s169 + $0x168] sm:$0xf]
        %v7162 = vld [vmem:[%s169 + $0x16c] sm:$0xf]
        %v7163 = vld [vmem:[%s169 + $0x170] sm:$0xf]
        %v7164 = vld [vmem:[%s169 + $0x174] sm:$0xf]
        %v7165 = vld [vmem:[%s169 + $0x178] sm:$0xf]
        %v7166 = vld [vmem:[%s169 + $0x17c] sm:$0xf]
        %v7167 = vld [vmem:[%s169 + $0x180] sm:$0xf]
        %v7168 = vld [vmem:[%s169 + $0x184] sm:$0xf]
        %v7169 = vld [vmem:[%s169 + $0x188] sm:$0xf]
        %v7170 = vld [vmem:[%s169 + $0x18c] sm:$0xf]
        %v7171 = vld [vmem:[%s169 + $0x190] sm:$0xf]
        %v7172 = vld [vmem:[%s169 + $0x194] sm:$0xf]
        %v7173 = vld [vmem:[%s169 + $0x198] sm:$0xf]
        %v7174 = vld [vmem:[%s169 + $0x19c] sm:$0xf]
        %v7175 = vld [vmem:[%s169 + $0x1a0] sm:$0xf]
        %v7176 = vld [vmem:[%s169 + $0x1a4] sm:$0xf]
        %v7177 = vld [vmem:[%s169 + $0x1a8] sm:$0xf]
        %v7178 = vld [vmem:[%s169 + $0x1ac] sm:$0xf]
        %v7179 = vld [vmem:[%s169 + $0x1b0] sm:$0xf]
        %v7180 = vld [vmem:[%s169 + $0x1b4] sm:$0xf]
        %v7181 = vld [vmem:[%s169 + $0x1b8] sm:$0xf]
        %v7182 = vld [vmem:[%s169 + $0x1bc] sm:$0xf]
        %v7183 = vld [vmem:[%s169 + $0x1c0] sm:$0xf]
        %v7184 = vld [vmem:[%s169 + $0x1c4] sm:$0xf]
        %v7185 = vld [vmem:[%s169 + $0x1c8] sm:$0xf]
        %v7186 = vld [vmem:[%s169 + $0x1cc] sm:$0xf]
        %v7187 = vld [vmem:[%s169 + $0x1d0] sm:$0xf]
        %v7188 = vld [vmem:[%s169 + $0x1d4] sm:$0xf]
        %v7189 = vld [vmem:[%s169 + $0x1d8] sm:$0xf]
        %v7190 = vld [vmem:[%s1 + $0x60] sm:$0xf]
        %v7191 = vld [vmem:[%s1 + $0x64] sm:$0xf]
        %v7192 = vld [vmem:[%s1 + $0x68] sm:$0xf]
        %v7193 = vld [vmem:[%s1 + $0x6c] sm:$0xf]
        %v7309 = vunpack.c.l.b16 %v7075
        %v7310 = vunpack.c.l.b16 %v7076
        %v7311 = vunpack.c.l.b16 %v7077
        %v7312 = vunpack.c.l.b16 %v7078
        %v7313 = vunpack.c.l.b16 %v7079
        %v7314 = vunpack.c.l.b16 %v7080
        %v7315 = vunpack.c.l.b16 %v7081
        %v7316 = vunpack.c.l.b16 %v7082
        %v7317 = vunpack.c.l.b16 %v7083
        %v7318 = vunpack.c.l.b16 %v7084
        %v7319 = vunpack.c.l.b16 %v7085
        %v7320 = vunpack.c.l.b16 %v7086
        %v7321 = vunpack.c.l.b16 %v7087
        %v7322 = vunpack.c.l.b16 %v7088
        %v7323 = vunpack.c.l.b16 %v7089
        %v7324 = vunpack.c.l.b16 %v7090
        %v7325 = vunpack.c.l.b16 %v7091
        %v7326 = vunpack.c.l.b16 %v7092
        %v7327 = vunpack.c.l.b16 %v7093
        %v7328 = vunpack.c.l.b16 %v7094
        %v7329 = vunpack.c.l.b16 %v7095
        %v7330 = vunpack.c.l.b16 %v7096
        %v7331 = vunpack.c.l.b16 %v7097
        %v7332 = vunpack.c.l.b16 %v7098
        %v7333 = vunpack.c.l.b16 %v7099
        %v7334 = vunpack.c.l.b16 %v7100
        %v7335 = vunpack.c.l.b16 %v7101
        %v7336 = vunpack.c.l.b16 %v7102
        %v7337 = vunpack.c.l.b16 %v7103
        %v7338 = vunpack.c.l.b16 %v7104
        %v7339 = vunpack.c.l.b16 %v7105
        %v7340 = vunpack.c.l.b16 %v7106
        %v7341 = vunpack.c.l.b16 %v7107
        %v7342 = vunpack.c.l.b16 %v7108
        %v7343 = vunpack.c.l.b16 %v7109
        %v7344 = vunpack.c.l.b16 %v7110
        %v7345 = vunpack.c.l.b16 %v7111
        %v7346 = vunpack.c.l.b16 %v7112
        %v7347 = vunpack.c.l.b16 %v7113
        %v7348 = vunpack.c.l.b16 %v7114
        %v7349 = vunpack.c.l.b16 %v7115
        %v7350 = vunpack.c.l.b16 %v7116
        %v7351 = vunpack.c.l.b16 %v7117
        %v7352 = vunpack.c.l.b16 %v7118
        %v7353 = vunpack.c.l.b16 %v7119
        %v7354 = vunpack.c.l.b16 %v7120
        %v7355 = vunpack.c.l.b16 %v7121
        %v7356 = vunpack.c.l.b16 %v7122
        %v7357 = vunpack.c.l.b16 %v7123
        %v7358 = vunpack.c.l.b16 %v7124
        %v7359 = vunpack.c.l.b16 %v7125
        %v7360 = vunpack.c.l.b16 %v7126
        %v7361 = vunpack.c.l.b16 %v7127
        %v7362 = vunpack.c.l.b16 %v7128
        %v7363 = vunpack.c.l.b16 %v7129
        %v7364 = vunpack.c.l.b16 %v7130
        %v7365 = vunpack.c.l.b16 %v7131
        %v7366 = vunpack.c.l.b16 %v7132
        %v7367 = vunpack.c.l.b16 %v7133
        %v7368 = vunpack.c.l.b16 %v7134
        %v7369 = vunpack.c.l.b16 %v7135
        %v7370 = vunpack.c.l.b16 %v7136
        %v7371 = vunpack.c.l.b16 %v7137
        %v7372 = vunpack.c.l.b16 %v7138
        %v7373 = vunpack.c.l.b16 %v7139
        %v7374 = vunpack.c.l.b16 %v7140
        %v7375 = vunpack.c.l.b16 %v7141
        %v7376 = vunpack.c.l.b16 %v7142
        %v7377 = vunpack.c.l.b16 %v7143
        %v7378 = vunpack.c.l.b16 %v7144
        %v7379 = vunpack.c.l.b16 %v7145
        %v7380 = vunpack.c.l.b16 %v7146
        %v7381 = vunpack.c.l.b16 %v7147
        %v7382 = vunpack.c.l.b16 %v7148
        %v7383 = vunpack.c.l.b16 %v7149
        %v7384 = vunpack.c.l.b16 %v7150
        %v7385 = vunpack.c.l.b16 %v7151
        %v7386 = vunpack.c.l.b16 %v7152
        %v7387 = vunpack.c.l.b16 %v7153
        %v7388 = vunpack.c.l.b16 %v7154
        %v7389 = vunpack.c.l.b16 %v7155
        %v7390 = vunpack.c.l.b16 %v7156
        %v7391 = vunpack.c.l.b16 %v7157
        %v7392 = vunpack.c.l.b16 %v7158
        %v7393 = vunpack.c.l.b16 %v7159
        %v7394 = vunpack.c.l.b16 %v7160
        %v7395 = vunpack.c.l.b16 %v7161
        %v7396 = vunpack.c.l.b16 %v7162
        %v7397 = vunpack.c.l.b16 %v7163
        %v7398 = vunpack.c.l.b16 %v7164
        %v7399 = vunpack.c.l.b16 %v7165
        %v7400 = vunpack.c.l.b16 %v7166
        %v7401 = vunpack.c.l.b16 %v7167
        %v7402 = vunpack.c.l.b16 %v7168
        %v7403 = vunpack.c.l.b16 %v7169
        %v7404 = vunpack.c.l.b16 %v7170
        %v7405 = vunpack.c.l.b16 %v7171
        %v7406 = vunpack.c.l.b16 %v7172
        %v7407 = vunpack.c.l.b16 %v7173
        %v7408 = vunpack.c.l.b16 %v7174
        %v7409 = vunpack.c.l.b16 %v7175
        %v7410 = vunpack.c.l.b16 %v7176
        %v7411 = vunpack.c.l.b16 %v7177
        %v7412 = vunpack.c.l.b16 %v7178
        %v7413 = vunpack.c.l.b16 %v7179
        %v7414 = vunpack.c.l.b16 %v7180
        %v7415 = vunpack.c.l.b16 %v7181
        %v7416 = vunpack.c.l.b16 %v7182
        %v7417 = vunpack.c.l.b16 %v7183
        %v7418 = vunpack.c.l.b16 %v7184
        %v7419 = vunpack.c.l.b16 %v7185
        %v7420 = vunpack.c.l.b16 %v7186
        %v7421 = vunpack.c.l.b16 %v7187
        %v7422 = vunpack.c.l.b16 %v7188
        %v7423 = vunpack.c.l.b16 %v7189
        %v7424 = vpack.c.b16 %v7310, %v7309
        %v7425 = vpack.c.b16 %v7312, %v7311
        %v7426 = vpack.c.b16 %v7314, %v7313
        %v7427 = vpack.c.b16 %v7316, %v7315
        %v7428 = vpack.c.b16 %v7318, %v7317
        %v7429 = vpack.c.b16 %v7320, %v7319
        %v7430 = vpack.c.b16 %v7322, %v7321
        %v7431 = vpack.c.b16 %v7324, %v7323
        %v7432 = vpack.c.b16 %v7326, %v7325
        %v7433 = vpack.c.b16 %v7328, %v7327
        %v7434 = vpack.c.b16 %v7330, %v7329
        %v7435 = vpack.c.b16 %v7332, %v7331
        %v7436 = vpack.c.b16 %v7334, %v7333
        %v7437 = vpack.c.b16 %v7336, %v7335
        %v7438 = vpack.c.b16 %v7338, %v7337
        %v7439 = vpack.c.b16 %v7340, %v7339
        %v7440 = vpack.c.b16 %v7342, %v7341
        %v7441 = vpack.c.b16 %v7344, %v7343
        %v7442 = vpack.c.b16 %v7346, %v7345
        %v7443 = vpack.c.b16 %v7348, %v7347
        %v7444 = vpack.c.b16 %v7350, %v7349
        %v7445 = vpack.c.b16 %v7352, %v7351
        %v7446 = vpack.c.b16 %v7354, %v7353
        %v7447 = vpack.c.b16 %v7356, %v7355
        %v7448 = vpack.c.b16 %v7358, %v7357
        %v7449 = vpack.c.b16 %v7360, %v7359
        %v7450 = vpack.c.b16 %v7362, %v7361
        %v7451 = vpack.c.b16 %v7364, %v7363
        %v7452 = vpack.c.b16 %v7366, %v7365
        %v7453 = vpack.c.b16 %v7368, %v7367
        %v7454 = vpack.c.b16 %v7370, %v7369
        %v7455 = vpack.c.b16 %v7372, %v7371
        %v7456 = vpack.c.b16 %v7374, %v7373
        %v7457 = vpack.c.b16 %v7376, %v7375
        %v7458 = vpack.c.b16 %v7378, %v7377
        %v7459 = vpack.c.b16 %v7380, %v7379
        %v7460 = vpack.c.b16 %v7382, %v7381
        %v7461 = vpack.c.b16 %v7384, %v7383
        %v7462 = vpack.c.b16 %v7386, %v7385
        %v7463 = vpack.c.b16 %v7388, %v7387
        %v7464 = vpack.c.b16 %v7390, %v7389
        %v7465 = vpack.c.b16 %v7392, %v7391
        %v7466 = vpack.c.b16 %v7394, %v7393
        %v7467 = vpack.c.b16 %v7396, %v7395
        %v7468 = vpack.c.b16 %v7398, %v7397
        %v7469 = vpack.c.b16 %v7400, %v7399
        %v7470 = vpack.c.b16 %v7402, %v7401
        %v7471 = vpack.c.b16 %v7404, %v7403
        %v7472 = vpack.c.b16 %v7406, %v7405
        %v7473 = vpack.c.b16 %v7408, %v7407
        %v7474 = vpack.c.b16 %v7410, %v7409
        %v7475 = vpack.c.b16 %v7412, %v7411
        %v7476 = vpack.c.b16 %v7414, %v7413
        %v7477 = vpack.c.b16 %v7416, %v7415
        %v7478 = vpack.c.b16 %v7418, %v7417
        %v7479 = vpack.c.b16 %v7420, %v7419
        %v7480 = vpack.c.b16 %v7422, %v7421
        %v7481 = vpack.c.b16 %v7423, %v7423
        %v7486 = vunpack.c.l.b16 %v7190
        %v7487 = vunpack.c.l.b16 %v7191
        %v7488 = vunpack.c.l.b16 %v7192
        %v7489 = vunpack.c.l.b16 %v7193
        %v7490 = vpack.c.b16 %v7487, %v7486
        %v7491 = vpack.c.b16 %v7489, %v7488
        %v7495 = vsel %vm1063, %v7424, 0
        %v7498 = vsel %vm1063, %v7425, 0
        %v7501 = vsel %vm1063, %v7426, 0
        %v7504 = vsel %vm1063, %v7427, 0
        %v7507 = vsel %vm1063, %v7428, 0
        %v7510 = vsel %vm1063, %v7429, 0
        %v7513 = vsel %vm1063, %v7430, 0
        %v7516 = vsel %vm1063, %v7431, 0
        %v7519 = vsel %vm1063, %v7432, 0
        %v7522 = vsel %vm1063, %v7433, 0
        %v7525 = vsel %vm1063, %v7434, 0
        %v7528 = vsel %vm1063, %v7435, 0
        %v7531 = vsel %vm1063, %v7436, 0
        %v7534 = vsel %vm1063, %v7437, 0
        %v7537 = vsel %vm1063, %v7438, 0
        %v7540 = vsel %vm1063, %v7439, 0
        %v7543 = vsel %vm1063, %v7440, 0
        %v7546 = vsel %vm1063, %v7441, 0
        %v7549 = vsel %vm1063, %v7442, 0
        %v7552 = vsel %vm1063, %v7443, 0
        %v7555 = vsel %vm1063, %v7444, 0
        %v7558 = vsel %vm1063, %v7445, 0
        %v7561 = vsel %vm1063, %v7446, 0
        %v7564 = vsel %vm1063, %v7447, 0
        %v7567 = vsel %vm1063, %v7448, 0
        %v7570 = vsel %vm1063, %v7449, 0
        %v7573 = vsel %vm1063, %v7450, 0
        %v7576 = vsel %vm1063, %v7451, 0
        %v7579 = vsel %vm1063, %v7452, 0
        %v7582 = vsel %vm1063, %v7453, 0
        %v7585 = vsel %vm1063, %v7454, 0
        %v7588 = vsel %vm1063, %v7455, 0
        %v7591 = vsel %vm1063, %v7456, 0
        %v7594 = vsel %vm1063, %v7457, 0
        %v7597 = vsel %vm1063, %v7458, 0
        %v7600 = vsel %vm1063, %v7459, 0
        %v7603 = vsel %vm1063, %v7460, 0
        %v7606 = vsel %vm1063, %v7461, 0
        %v7609 = vsel %vm1063, %v7462, 0
        %v7612 = vsel %vm1063, %v7463, 0
        %v7615 = vsel %vm1063, %v7464, 0
        %v7618 = vsel %vm1063, %v7465, 0
        %v7621 = vsel %vm1063, %v7466, 0
        %v7624 = vsel %vm1063, %v7467, 0
        %v7627 = vsel %vm1063, %v7468, 0
        %v7630 = vsel %vm1063, %v7469, 0
        %v7633 = vsel %vm1063, %v7470, 0
        %v7636 = vsel %vm1063, %v7471, 0
        %v7639 = vsel %vm1063, %v7472, 0
        %v7642 = vsel %vm1063, %v7473, 0
        %v7645 = vsel %vm1063, %v7474, 0
        %v7648 = vsel %vm1063, %v7475, 0
        %v7651 = vsel %vm1063, %v7476, 0
        %v7654 = vsel %vm1063, %v7477, 0
        %v7657 = vsel %vm1063, %v7478, 0
        %v7660 = vsel %vm1063, %v7479, 0
        %v7663 = vsel %vm1063, %v7480, 0
        %v7666 = vsel %vm1063, %v7481, 0
        %7668 = vmatprep.subr.bf16.mxu0 0
        %7669 = vmatpush1.bf16.msra.mxu0 0
        %7670 = vmatprep.subr.bf16.mxu0 0
        %7671 = vmatpush1.bf16.msra.mxu0 0
        %7672 = vmatprep.subr.bf16.mxu0 0
        %7673 = vmatpush1.bf16.msra.mxu0 0
        %7674 = vmatprep.subr.bf16.mxu0 0
        %7675 = vmatpush1.bf16.msra.mxu0 0
        %7676 = vmatprep.subr.bf16.mxu0 0
        %7677 = vmatpush1.bf16.msra.mxu0 0
        %7678 = vmatprep.subr.bf16.mxu0 0
        %7679 = vmatpush1.bf16.msra.mxu0 0
        %7680 = vmatprep.subr.bf16.mxu0 0
        %7681 = vmatpush1.bf16.msra.mxu0 %v7491
        %7682 = vmatprep.subr.bf16.mxu0 0
        %7683 = vmatpush1.bf16.msra.mxu0 %v7490
        %7684 = vmatprep.subr.bf16.mxu0 0
        %7685 = vmatpush2.bf16.msra.mxu0 0
        %7686 = vmatprep.subr.bf16.mxu0 0
        %7687 = vmatpush2.bf16.msra.mxu0 0
        %7688 = vmatprep.subr.bf16.mxu0 0
        %7689 = vmatpush2.bf16.msra.mxu0 0
        %7690 = vmatprep.subr.bf16.mxu0 0
        %7691 = vmatpush2.bf16.msra.mxu0 0
        %7692 = vmatprep.subr.bf16.mxu0 0
        %7693 = vmatpush2.bf16.msra.mxu0 0
        %7694 = vmatprep.subr.bf16.mxu0 0
        %7695 = vmatpush2.bf16.msra.mxu0 0
        %7696 = vmatprep.subr.bf16.mxu0 0
        %7697 = vmatpush2.bf16.msra.mxu0 0
        %7698 = vmatprep.subr.bf16.mxu0 0
        %7699 = vmatpush2.bf16.msra.mxu0 0
        %7700 = vmatprep.mubr.bf16.mxu0 0
        %7701 = vmatmul.mubr.bf16.gmra.mxu0 %v7495
        %v7702 = vpop.f32.mrf.mxu0
        %v7703 = vadd.f32 0.0, %v7702
        %v7704 = vpop.f32.mrf.mxu0
        %v7705 = vpop.f32.mrf.mxu0
        %v7706 = vadd.f32 0.0, %v7705
        %v7707 = vpop.f32.mrf.mxu0
        %7708 = vmatprep.mubr.bf16.mxu0 0
        %7709 = vmatmul.mubr.bf16.gmra.mxu0 %v7498
        %v7710 = vpop.f32.mrf.mxu0
        %v7711 = vadd.f32 0.0, %v7710
        %v7712 = vpop.f32.mrf.mxu0
        %v7713 = vpop.f32.mrf.mxu0
        %v7714 = vadd.f32 0.0, %v7713
        %v7715 = vpop.f32.mrf.mxu0
        %7716 = vmatprep.mubr.bf16.mxu0 0
        %7717 = vmatmul.mubr.bf16.gmra.mxu0 %v7501
        %v7718 = vpop.f32.mrf.mxu0
        %v7719 = vadd.f32 0.0, %v7718
        %v7720 = vpop.f32.mrf.mxu0
        %v7721 = vpop.f32.mrf.mxu0
        %v7722 = vadd.f32 0.0, %v7721
        %v7723 = vpop.f32.mrf.mxu0
        %7724 = vmatprep.mubr.bf16.mxu0 0
        %7725 = vmatmul.mubr.bf16.gmra.mxu0 %v7504
        %v7726 = vpop.f32.mrf.mxu0
        %v7727 = vadd.f32 0.0, %v7726
        %v7728 = vpop.f32.mrf.mxu0
        %v7729 = vpop.f32.mrf.mxu0
        %v7730 = vadd.f32 0.0, %v7729
        %v7731 = vpop.f32.mrf.mxu0
        %7732 = vmatprep.mubr.bf16.mxu0 0
        %7733 = vmatmul.mubr.bf16.gmra.mxu0 %v7507
        %v7734 = vpop.f32.mrf.mxu0
        %v7735 = vadd.f32 0.0, %v7734
        %v7736 = vpop.f32.mrf.mxu0
        %v7737 = vpop.f32.mrf.mxu0
        %v7738 = vadd.f32 0.0, %v7737
        %v7739 = vpop.f32.mrf.mxu0
        %7740 = vmatprep.mubr.bf16.mxu0 0
        %7741 = vmatmul.mubr.bf16.gmra.mxu0 %v7510
        %v7742 = vpop.f32.mrf.mxu0
        %v7743 = vadd.f32 0.0, %v7742
        %v7744 = vpop.f32.mrf.mxu0
        %v7745 = vpop.f32.mrf.mxu0
        %v7746 = vadd.f32 0.0, %v7745
        %v7747 = vpop.f32.mrf.mxu0
        %7748 = vmatprep.mubr.bf16.mxu0 0
        %7749 = vmatmul.mubr.bf16.gmra.mxu0 %v7513
        %v7750 = vpop.f32.mrf.mxu0
        %v7751 = vadd.f32 0.0, %v7750
        %v7752 = vpop.f32.mrf.mxu0
        %v7753 = vpop.f32.mrf.mxu0
        %v7754 = vadd.f32 0.0, %v7753
        %v7755 = vpop.f32.mrf.mxu0
        %7756 = vmatprep.mubr.bf16.mxu0 0
        %7757 = vmatmul.mubr.bf16.gmra.mxu0 %v7516
        %v7758 = vpop.f32.mrf.mxu0
        %v7759 = vadd.f32 0.0, %v7758
        %v7760 = vpop.f32.mrf.mxu0
        %v7761 = vpop.f32.mrf.mxu0
        %v7762 = vadd.f32 0.0, %v7761
        %v7763 = vpop.f32.mrf.mxu0
        %7764 = vmatprep.mubr.bf16.mxu0 0
        %7765 = vmatmul.mubr.bf16.gmra.mxu0 %v7519
        %v7766 = vpop.f32.mrf.mxu0
        %v7767 = vadd.f32 0.0, %v7766
        %v7768 = vpop.f32.mrf.mxu0
        %v7769 = vpop.f32.mrf.mxu0
        %v7770 = vadd.f32 0.0, %v7769
        %v7771 = vpop.f32.mrf.mxu0
        %7772 = vmatprep.mubr.bf16.mxu0 0
        %7773 = vmatmul.mubr.bf16.gmra.mxu0 %v7522
        %v7774 = vpop.f32.mrf.mxu0
        %v7775 = vadd.f32 0.0, %v7774
        %v7776 = vpop.f32.mrf.mxu0
        %v7777 = vpop.f32.mrf.mxu0
        %v7778 = vadd.f32 0.0, %v7777
        %v7779 = vpop.f32.mrf.mxu0
        %7780 = vmatprep.mubr.bf16.mxu0 0
        %7781 = vmatmul.mubr.bf16.gmra.mxu0 %v7525
        %v7782 = vpop.f32.mrf.mxu0
        %v7783 = vadd.f32 0.0, %v7782
        %v7784 = vpop.f32.mrf.mxu0
        %v7785 = vpop.f32.mrf.mxu0
        %v7786 = vadd.f32 0.0, %v7785
        %v7787 = vpop.f32.mrf.mxu0
        %7788 = vmatprep.mubr.bf16.mxu0 0
        %7789 = vmatmul.mubr.bf16.gmra.mxu0 %v7528
        %v7790 = vpop.f32.mrf.mxu0
        %v7791 = vadd.f32 0.0, %v7790
        %v7792 = vpop.f32.mrf.mxu0
        %v7793 = vpop.f32.mrf.mxu0
        %v7794 = vadd.f32 0.0, %v7793
        %v7795 = vpop.f32.mrf.mxu0
        %7796 = vmatprep.mubr.bf16.mxu0 0
        %7797 = vmatmul.mubr.bf16.gmra.mxu0 %v7531
        %v7798 = vpop.f32.mrf.mxu0
        %v7799 = vadd.f32 0.0, %v7798
        %v7800 = vpop.f32.mrf.mxu0
        %v7801 = vpop.f32.mrf.mxu0
        %v7802 = vadd.f32 0.0, %v7801
        %v7803 = vpop.f32.mrf.mxu0
        %7804 = vmatprep.mubr.bf16.mxu0 0
        %7805 = vmatmul.mubr.bf16.gmra.mxu0 %v7534
        %v7806 = vpop.f32.mrf.mxu0
        %v7807 = vadd.f32 0.0, %v7806
        %v7808 = vpop.f32.mrf.mxu0
        %v7809 = vpop.f32.mrf.mxu0
        %v7810 = vadd.f32 0.0, %v7809
        %v7811 = vpop.f32.mrf.mxu0
        %7812 = vmatprep.mubr.bf16.mxu0 0
        %7813 = vmatmul.mubr.bf16.gmra.mxu0 %v7537
        %v7814 = vpop.f32.mrf.mxu0
        %v7815 = vadd.f32 0.0, %v7814
        %v7816 = vpop.f32.mrf.mxu0
        %v7817 = vpop.f32.mrf.mxu0
        %v7818 = vadd.f32 0.0, %v7817
        %v7819 = vpop.f32.mrf.mxu0
        %7820 = vmatprep.mubr.bf16.mxu0 0
        %7821 = vmatmul.mubr.bf16.gmra.mxu0 %v7540
        %v7822 = vpop.f32.mrf.mxu0
        %v7823 = vadd.f32 0.0, %v7822
        %v7824 = vpop.f32.mrf.mxu0
        %v7825 = vpop.f32.mrf.mxu0
        %v7826 = vadd.f32 0.0, %v7825
        %v7827 = vpop.f32.mrf.mxu0
        %7828 = vmatprep.mubr.bf16.mxu0 0
        %7829 = vmatmul.mubr.bf16.gmra.mxu0 %v7543
        %v7830 = vpop.f32.mrf.mxu0
        %v7831 = vadd.f32 0.0, %v7830
        %v7832 = vpop.f32.mrf.mxu0
        %v7833 = vpop.f32.mrf.mxu0
        %v7834 = vadd.f32 0.0, %v7833
        %v7835 = vpop.f32.mrf.mxu0
        %7836 = vmatprep.mubr.bf16.mxu0 0
        %7837 = vmatmul.mubr.bf16.gmra.mxu0 %v7546
        %v7838 = vpop.f32.mrf.mxu0
        %v7839 = vadd.f32 0.0, %v7838
        %v7840 = vpop.f32.mrf.mxu0
        %v7841 = vpop.f32.mrf.mxu0
        %v7842 = vadd.f32 0.0, %v7841
        %v7843 = vpop.f32.mrf.mxu0
        %7844 = vmatprep.mubr.bf16.mxu0 0
        %7845 = vmatmul.mubr.bf16.gmra.mxu0 %v7549
        %v7846 = vpop.f32.mrf.mxu0
        %v7847 = vadd.f32 0.0, %v7846
        %v7848 = vpop.f32.mrf.mxu0
        %v7849 = vpop.f32.mrf.mxu0
        %v7850 = vadd.f32 0.0, %v7849
        %v7851 = vpop.f32.mrf.mxu0
        %7852 = vmatprep.mubr.bf16.mxu0 0
        %7853 = vmatmul.mubr.bf16.gmra.mxu0 %v7552
        %v7854 = vpop.f32.mrf.mxu0
        %v7855 = vadd.f32 0.0, %v7854
        %v7856 = vpop.f32.mrf.mxu0
        %v7857 = vpop.f32.mrf.mxu0
        %v7858 = vadd.f32 0.0, %v7857
        %v7859 = vpop.f32.mrf.mxu0
        %7860 = vmatprep.mubr.bf16.mxu0 0
        %7861 = vmatmul.mubr.bf16.gmra.mxu0 %v7555
        %v7862 = vpop.f32.mrf.mxu0
        %v7863 = vadd.f32 0.0, %v7862
        %v7864 = vpop.f32.mrf.mxu0
        %v7865 = vpop.f32.mrf.mxu0
        %v7866 = vadd.f32 0.0, %v7865
        %v7867 = vpop.f32.mrf.mxu0
        %7868 = vmatprep.mubr.bf16.mxu0 0
        %7869 = vmatmul.mubr.bf16.gmra.mxu0 %v7558
        %v7870 = vpop.f32.mrf.mxu0
        %v7871 = vadd.f32 0.0, %v7870
        %v7872 = vpop.f32.mrf.mxu0
        %v7873 = vpop.f32.mrf.mxu0
        %v7874 = vadd.f32 0.0, %v7873
        %v7875 = vpop.f32.mrf.mxu0
        %7876 = vmatprep.mubr.bf16.mxu0 0
        %7877 = vmatmul.mubr.bf16.gmra.mxu0 %v7561
        %v7878 = vpop.f32.mrf.mxu0
        %v7879 = vadd.f32 0.0, %v7878
        %v7880 = vpop.f32.mrf.mxu0
        %v7881 = vpop.f32.mrf.mxu0
        %v7882 = vadd.f32 0.0, %v7881
        %v7883 = vpop.f32.mrf.mxu0
        %7884 = vmatprep.mubr.bf16.mxu0 0
        %7885 = vmatmul.mubr.bf16.gmra.mxu0 %v7564
        %v7886 = vpop.f32.mrf.mxu0
        %v7887 = vadd.f32 0.0, %v7886
        %v7888 = vpop.f32.mrf.mxu0
        %v7889 = vpop.f32.mrf.mxu0
        %v7890 = vadd.f32 0.0, %v7889
        %v7891 = vpop.f32.mrf.mxu0
        %7892 = vmatprep.mubr.bf16.mxu0 0
        %7893 = vmatmul.mubr.bf16.gmra.mxu0 %v7567
        %v7894 = vpop.f32.mrf.mxu0
        %v7895 = vadd.f32 0.0, %v7894
        %v7896 = vpop.f32.mrf.mxu0
        %v7897 = vpop.f32.mrf.mxu0
        %v7898 = vadd.f32 0.0, %v7897
        %v7899 = vpop.f32.mrf.mxu0
        %7900 = vmatprep.mubr.bf16.mxu0 0
        %7901 = vmatmul.mubr.bf16.gmra.mxu0 %v7570
        %v7902 = vpop.f32.mrf.mxu0
        %v7903 = vadd.f32 0.0, %v7902
        %v7904 = vpop.f32.mrf.mxu0
        %v7905 = vpop.f32.mrf.mxu0
        %v7906 = vadd.f32 0.0, %v7905
        %v7907 = vpop.f32.mrf.mxu0
        %7908 = vmatprep.mubr.bf16.mxu0 0
        %7909 = vmatmul.mubr.bf16.gmra.mxu0 %v7573
        %v7910 = vpop.f32.mrf.mxu0
        %v7911 = vadd.f32 0.0, %v7910
        %v7912 = vpop.f32.mrf.mxu0
        %v7913 = vpop.f32.mrf.mxu0
        %v7914 = vadd.f32 0.0, %v7913
        %v7915 = vpop.f32.mrf.mxu0
        %7916 = vmatprep.mubr.bf16.mxu0 0
        %7917 = vmatmul.mubr.bf16.gmra.mxu0 %v7576
        %v7918 = vpop.f32.mrf.mxu0
        %v7919 = vadd.f32 0.0, %v7918
        %v7920 = vpop.f32.mrf.mxu0
        %v7921 = vpop.f32.mrf.mxu0
        %v7922 = vadd.f32 0.0, %v7921
        %v7923 = vpop.f32.mrf.mxu0
        %7924 = vmatprep.mubr.bf16.mxu0 0
        %7925 = vmatmul.mubr.bf16.gmra.mxu0 %v7579
        %v7926 = vpop.f32.mrf.mxu0
        %v7927 = vadd.f32 0.0, %v7926
        %v7928 = vpop.f32.mrf.mxu0
        %v7929 = vpop.f32.mrf.mxu0
        %v7930 = vadd.f32 0.0, %v7929
        %v7931 = vpop.f32.mrf.mxu0
        %7932 = vmatprep.mubr.bf16.mxu0 0
        %7933 = vmatmul.mubr.bf16.gmra.mxu0 %v7582
        %v7934 = vpop.f32.mrf.mxu0
        %v7935 = vadd.f32 0.0, %v7934
        %v7936 = vpop.f32.mrf.mxu0
        %v7937 = vpop.f32.mrf.mxu0
        %v7938 = vadd.f32 0.0, %v7937
        %v7939 = vpop.f32.mrf.mxu0
        %7940 = vmatprep.mubr.bf16.mxu0 0
        %7941 = vmatmul.mubr.bf16.gmra.mxu0 %v7585
        %v7942 = vpop.f32.mrf.mxu0
        %v7943 = vadd.f32 0.0, %v7942
        %v7944 = vpop.f32.mrf.mxu0
        %v7945 = vpop.f32.mrf.mxu0
        %v7946 = vadd.f32 0.0, %v7945
        %v7947 = vpop.f32.mrf.mxu0
        %7948 = vmatprep.mubr.bf16.mxu0 0
        %7949 = vmatmul.mubr.bf16.gmra.mxu0 %v7588
        %v7950 = vpop.f32.mrf.mxu0
        %v7951 = vadd.f32 0.0, %v7950
        %v7952 = vpop.f32.mrf.mxu0
        %v7953 = vpop.f32.mrf.mxu0
        %v7954 = vadd.f32 0.0, %v7953
        %v7955 = vpop.f32.mrf.mxu0
        %7956 = vmatprep.mubr.bf16.mxu0 0
        %7957 = vmatmul.mubr.bf16.gmra.mxu0 %v7591
        %v7958 = vpop.f32.mrf.mxu0
        %v7959 = vadd.f32 0.0, %v7958
        %v7960 = vpop.f32.mrf.mxu0
        %v7961 = vpop.f32.mrf.mxu0
        %v7962 = vadd.f32 0.0, %v7961
        %v7963 = vpop.f32.mrf.mxu0
        %7964 = vmatprep.mubr.bf16.mxu0 0
        %7965 = vmatmul.mubr.bf16.gmra.mxu0 %v7594
        %v7966 = vpop.f32.mrf.mxu0
        %v7967 = vadd.f32 0.0, %v7966
        %v7968 = vpop.f32.mrf.mxu0
        %v7969 = vpop.f32.mrf.mxu0
        %v7970 = vadd.f32 0.0, %v7969
        %v7971 = vpop.f32.mrf.mxu0
        %7972 = vmatprep.mubr.bf16.mxu0 0
        %7973 = vmatmul.mubr.bf16.gmra.mxu0 %v7597
        %v7974 = vpop.f32.mrf.mxu0
        %v7975 = vadd.f32 0.0, %v7974
        %v7976 = vpop.f32.mrf.mxu0
        %v7977 = vpop.f32.mrf.mxu0
        %v7978 = vadd.f32 0.0, %v7977
        %v7979 = vpop.f32.mrf.mxu0
        %7980 = vmatprep.mubr.bf16.mxu0 0
        %7981 = vmatmul.mubr.bf16.gmra.mxu0 %v7600
        %v7982 = vpop.f32.mrf.mxu0
        %v7983 = vadd.f32 0.0, %v7982
        %v7984 = vpop.f32.mrf.mxu0
        %v7985 = vpop.f32.mrf.mxu0
        %v7986 = vadd.f32 0.0, %v7985
        %v7987 = vpop.f32.mrf.mxu0
        %7988 = vmatprep.mubr.bf16.mxu0 0
        %7989 = vmatmul.mubr.bf16.gmra.mxu0 %v7603
        %v7990 = vpop.f32.mrf.mxu0
        %v7991 = vadd.f32 0.0, %v7990
        %v7992 = vpop.f32.mrf.mxu0
        %v7993 = vpop.f32.mrf.mxu0
        %v7994 = vadd.f32 0.0, %v7993
        %v7995 = vpop.f32.mrf.mxu0
        %7996 = vmatprep.mubr.bf16.mxu0 0
        %7997 = vmatmul.mubr.bf16.gmra.mxu0 %v7606
        %v7998 = vpop.f32.mrf.mxu0
        %v7999 = vadd.f32 0.0, %v7998
        %v8000 = vpop.f32.mrf.mxu0
        %v8001 = vpop.f32.mrf.mxu0
        %v8002 = vadd.f32 0.0, %v8001
        %v8003 = vpop.f32.mrf.mxu0
        %8004 = vmatprep.mubr.bf16.mxu0 0
        %8005 = vmatmul.mubr.bf16.gmra.mxu0 %v7609
        %v8006 = vpop.f32.mrf.mxu0
        %v8007 = vadd.f32 0.0, %v8006
        %v8008 = vpop.f32.mrf.mxu0
        %v8009 = vpop.f32.mrf.mxu0
        %v8010 = vadd.f32 0.0, %v8009
        %v8011 = vpop.f32.mrf.mxu0
        %8012 = vmatprep.mubr.bf16.mxu0 0
        %8013 = vmatmul.mubr.bf16.gmra.mxu0 %v7612
        %v8014 = vpop.f32.mrf.mxu0
        %v8015 = vadd.f32 0.0, %v8014
        %v8016 = vpop.f32.mrf.mxu0
        %v8017 = vpop.f32.mrf.mxu0
        %v8018 = vadd.f32 0.0, %v8017
        %v8019 = vpop.f32.mrf.mxu0
        %8020 = vmatprep.mubr.bf16.mxu0 0
        %8021 = vmatmul.mubr.bf16.gmra.mxu0 %v7615
        %v8022 = vpop.f32.mrf.mxu0
        %v8023 = vadd.f32 0.0, %v8022
        %v8024 = vpop.f32.mrf.mxu0
        %v8025 = vpop.f32.mrf.mxu0
        %v8026 = vadd.f32 0.0, %v8025
        %v8027 = vpop.f32.mrf.mxu0
        %8028 = vmatprep.mubr.bf16.mxu0 0
        %8029 = vmatmul.mubr.bf16.gmra.mxu0 %v7618
        %v8030 = vpop.f32.mrf.mxu0
        %v8031 = vadd.f32 0.0, %v8030
        %v8032 = vpop.f32.mrf.mxu0
        %v8033 = vpop.f32.mrf.mxu0
        %v8034 = vadd.f32 0.0, %v8033
        %v8035 = vpop.f32.mrf.mxu0
        %8036 = vmatprep.mubr.bf16.mxu0 0
        %8037 = vmatmul.mubr.bf16.gmra.mxu0 %v7621
        %v8038 = vpop.f32.mrf.mxu0
        %v8039 = vadd.f32 0.0, %v8038
        %v8040 = vpop.f32.mrf.mxu0
        %v8041 = vpop.f32.mrf.mxu0
        %v8042 = vadd.f32 0.0, %v8041
        %v8043 = vpop.f32.mrf.mxu0
        %8044 = vmatprep.mubr.bf16.mxu0 0
        %8045 = vmatmul.mubr.bf16.gmra.mxu0 %v7624
        %v8046 = vpop.f32.mrf.mxu0
        %v8047 = vadd.f32 0.0, %v8046
        %v8048 = vpop.f32.mrf.mxu0
        %v8049 = vpop.f32.mrf.mxu0
        %v8050 = vadd.f32 0.0, %v8049
        %v8051 = vpop.f32.mrf.mxu0
        %8052 = vmatprep.mubr.bf16.mxu0 0
        %8053 = vmatmul.mubr.bf16.gmra.mxu0 %v7627
        %v8054 = vpop.f32.mrf.mxu0
        %v8055 = vadd.f32 0.0, %v8054
        %v8056 = vpop.f32.mrf.mxu0
        %v8057 = vpop.f32.mrf.mxu0
        %v8058 = vadd.f32 0.0, %v8057
        %v8059 = vpop.f32.mrf.mxu0
        %8060 = vmatprep.mubr.bf16.mxu0 0
        %8061 = vmatmul.mubr.bf16.gmra.mxu0 %v7630
        %v8062 = vpop.f32.mrf.mxu0
        %v8063 = vadd.f32 0.0, %v8062
        %v8064 = vpop.f32.mrf.mxu0
        %v8065 = vpop.f32.mrf.mxu0
        %v8066 = vadd.f32 0.0, %v8065
        %v8067 = vpop.f32.mrf.mxu0
        %8068 = vmatprep.mubr.bf16.mxu0 0
        %8069 = vmatmul.mubr.bf16.gmra.mxu0 %v7633
        %v8070 = vpop.f32.mrf.mxu0
        %v8071 = vadd.f32 0.0, %v8070
        %v8072 = vpop.f32.mrf.mxu0
        %v8073 = vpop.f32.mrf.mxu0
        %v8074 = vadd.f32 0.0, %v8073
        %v8075 = vpop.f32.mrf.mxu0
        %8076 = vmatprep.mubr.bf16.mxu0 0
        %8077 = vmatmul.mubr.bf16.gmra.mxu0 %v7636
        %v8078 = vpop.f32.mrf.mxu0
        %v8079 = vadd.f32 0.0, %v8078
        %v8080 = vpop.f32.mrf.mxu0
        %v8081 = vpop.f32.mrf.mxu0
        %v8082 = vadd.f32 0.0, %v8081
        %v8083 = vpop.f32.mrf.mxu0
        %8084 = vmatprep.mubr.bf16.mxu0 0
        %8085 = vmatmul.mubr.bf16.gmra.mxu0 %v7639
        %v8086 = vpop.f32.mrf.mxu0
        %v8087 = vadd.f32 0.0, %v8086
        %v8088 = vpop.f32.mrf.mxu0
        %v8089 = vpop.f32.mrf.mxu0
        %v8090 = vadd.f32 0.0, %v8089
        %v8091 = vpop.f32.mrf.mxu0
        %8092 = vmatprep.mubr.bf16.mxu0 0
        %8093 = vmatmul.mubr.bf16.gmra.mxu0 %v7642
        %v8094 = vpop.f32.mrf.mxu0
        %v8095 = vadd.f32 0.0, %v8094
        %v8096 = vpop.f32.mrf.mxu0
        %v8097 = vpop.f32.mrf.mxu0
        %v8098 = vadd.f32 0.0, %v8097
        %v8099 = vpop.f32.mrf.mxu0
        %8100 = vmatprep.mubr.bf16.mxu0 0
        %8101 = vmatmul.mubr.bf16.gmra.mxu0 %v7645
        %v8102 = vpop.f32.mrf.mxu0
        %v8103 = vadd.f32 0.0, %v8102
        %v8104 = vpop.f32.mrf.mxu0
        %v8105 = vpop.f32.mrf.mxu0
        %v8106 = vadd.f32 0.0, %v8105
        %v8107 = vpop.f32.mrf.mxu0
        %8108 = vmatprep.mubr.bf16.mxu0 0
        %8109 = vmatmul.mubr.bf16.gmra.mxu0 %v7648
        %v8110 = vpop.f32.mrf.mxu0
        %v8111 = vadd.f32 0.0, %v8110
        %v8112 = vpop.f32.mrf.mxu0
        %v8113 = vpop.f32.mrf.mxu0
        %v8114 = vadd.f32 0.0, %v8113
        %v8115 = vpop.f32.mrf.mxu0
        %8116 = vmatprep.mubr.bf16.mxu0 0
        %8117 = vmatmul.mubr.bf16.gmra.mxu0 %v7651
        %v8118 = vpop.f32.mrf.mxu0
        %v8119 = vadd.f32 0.0, %v8118
        %v8120 = vpop.f32.mrf.mxu0
        %v8121 = vpop.f32.mrf.mxu0
        %v8122 = vadd.f32 0.0, %v8121
        %v8123 = vpop.f32.mrf.mxu0
        %8124 = vmatprep.mubr.bf16.mxu0 0
        %8125 = vmatmul.mubr.bf16.gmra.mxu0 %v7654
        %v8126 = vpop.f32.mrf.mxu0
        %v8127 = vadd.f32 0.0, %v8126
        %v8128 = vpop.f32.mrf.mxu0
        %v8129 = vpop.f32.mrf.mxu0
        %v8130 = vadd.f32 0.0, %v8129
        %v8131 = vpop.f32.mrf.mxu0
        %8132 = vmatprep.mubr.bf16.mxu0 0
        %8133 = vmatmul.mubr.bf16.gmra.mxu0 %v7657
        %v8134 = vpop.f32.mrf.mxu0
        %v8135 = vadd.f32 0.0, %v8134
        %v8136 = vpop.f32.mrf.mxu0
        %v8137 = vpop.f32.mrf.mxu0
        %v8138 = vadd.f32 0.0, %v8137
        %v8139 = vpop.f32.mrf.mxu0
        %8140 = vmatprep.mubr.bf16.mxu0 0
        %8141 = vmatmul.mubr.bf16.gmra.mxu0 %v7660
        %v8142 = vpop.f32.mrf.mxu0
        %v8143 = vadd.f32 0.0, %v8142
        %v8144 = vpop.f32.mrf.mxu0
        %v8145 = vpop.f32.mrf.mxu0
        %v8146 = vadd.f32 0.0, %v8145
        %v8147 = vpop.f32.mrf.mxu0
        %8148 = vmatprep.mubr.bf16.mxu0 0
        %8149 = vmatmul.mubr.bf16.gmra.mxu0 %v7663
        %v8150 = vpop.f32.mrf.mxu0
        %v8151 = vadd.f32 0.0, %v8150
        %v8152 = vpop.f32.mrf.mxu0
        %v8153 = vpop.f32.mrf.mxu0
        %v8154 = vadd.f32 0.0, %v8153
        %v8155 = vpop.f32.mrf.mxu0
        %8156 = vmatprep.mubr.bf16.mxu0 0
        %8157 = vmatmul.mubr.bf16.gmra.mxu0 %v7666
        %v8158 = vpop.f32.mrf.mxu0
        %v8159 = vadd.f32 0.0, %v8158
        %v8160 = vpop.f32.mrf.mxu0
        %v8161 = vpop.f32.mrf.mxu0
        %v8162 = vpop.f32.mrf.mxu0
        %8163 = vdwg.mxu0
        %v8164 = vadd.f32 %v6960, %v7703
        %v8165 = vadd.f32 %v6961, %v7706
        %v8166 = vadd.f32 %v6962, %v7711
        %v8167 = vadd.f32 %v6963, %v7714
        %v8168 = vadd.f32 %v6964, %v7719
        %v8169 = vadd.f32 %v6965, %v7722
        %v8170 = vadd.f32 %v6966, %v7727
        %v8171 = vadd.f32 %v6967, %v7730
        %v8172 = vadd.f32 %v6968, %v7735
        %v8173 = vadd.f32 %v6969, %v7738
        %v8174 = vadd.f32 %v6970, %v7743
        %v8175 = vadd.f32 %v6971, %v7746
        %v8176 = vadd.f32 %v6972, %v7751
        %v8177 = vadd.f32 %v6973, %v7754
        %v8178 = vadd.f32 %v6974, %v7759
        %v8179 = vadd.f32 %v6975, %v7762
        %v8180 = vadd.f32 %v6976, %v7767
        %v8181 = vadd.f32 %v6977, %v7770
        %v8182 = vadd.f32 %v6978, %v7775
        %v8183 = vadd.f32 %v6979, %v7778
        %v8184 = vadd.f32 %v6980, %v7783
        %v8185 = vadd.f32 %v6981, %v7786
        %v8186 = vadd.f32 %v6982, %v7791
        %v8187 = vadd.f32 %v6983, %v7794
        %v8188 = vadd.f32 %v6984, %v7799
        %v8189 = vadd.f32 %v6985, %v7802
        %v8190 = vadd.f32 %v6986, %v7807
        %v8191 = vadd.f32 %v6987, %v7810
        %v8192 = vadd.f32 %v6988, %v7815
        %v8193 = vadd.f32 %v6989, %v7818
        %v8194 = vadd.f32 %v6990, %v7823
        %v8195 = vadd.f32 %v6991, %v7826
        %v8196 = vadd.f32 %v6992, %v7831
        %v8197 = vadd.f32 %v6993, %v7834
        %v8198 = vadd.f32 %v6994, %v7839
        %v8199 = vadd.f32 %v6995, %v7842
        %v8200 = vadd.f32 %v6996, %v7847
        %v8201 = vadd.f32 %v6997, %v7850
        %v8202 = vadd.f32 %v6998, %v7855
        %v8203 = vadd.f32 %v6999, %v7858
        %v8204 = vadd.f32 %v7000, %v7863
        %v8205 = vadd.f32 %v7001, %v7866
        %v8206 = vadd.f32 %v7002, %v7871
        %v8207 = vadd.f32 %v7003, %v7874
        %v8208 = vadd.f32 %v7004, %v7879
        %v8209 = vadd.f32 %v7005, %v7882
        %v8210 = vadd.f32 %v7006, %v7887
        %v8211 = vadd.f32 %v7007, %v7890
        %v8212 = vadd.f32 %v7008, %v7895
        %v8213 = vadd.f32 %v7009, %v7898
        %v8214 = vadd.f32 %v7010, %v7903
        %v8215 = vadd.f32 %v7011, %v7906
        %v8216 = vadd.f32 %v7012, %v7911
        %v8217 = vadd.f32 %v7013, %v7914
        %v8218 = vadd.f32 %v7014, %v7919
        %v8219 = vadd.f32 %v7015, %v7922
        %v8220 = vadd.f32 %v7016, %v7927
        %v8221 = vadd.f32 %v7017, %v7930
        %v8222 = vadd.f32 %v7018, %v7935
        %v8223 = vadd.f32 %v7019, %v7938
        %v8224 = vadd.f32 %v7020, %v7943
        %v8225 = vadd.f32 %v7021, %v7946
        %v8226 = vadd.f32 %v7022, %v7951
        %v8227 = vadd.f32 %v7023, %v7954
        %v8228 = vadd.f32 %v7024, %v7959
        %v8229 = vadd.f32 %v7025, %v7962
        %v8230 = vadd.f32 %v7026, %v7967
        %v8231 = vadd.f32 %v7027, %v7970
        %v8232 = vadd.f32 %v7028, %v7975
        %v8233 = vadd.f32 %v7029, %v7978
        %v8234 = vadd.f32 %v7030, %v7983
        %v8235 = vadd.f32 %v7031, %v7986
        %v8236 = vadd.f32 %v7032, %v7991
        %v8237 = vadd.f32 %v7033, %v7994
        %v8238 = vadd.f32 %v7034, %v7999
        %v8239 = vadd.f32 %v7035, %v8002
        %v8240 = vadd.f32 %v7036, %v8007
        %v8241 = vadd.f32 %v7037, %v8010
        %v8242 = vadd.f32 %v7038, %v8015
        %v8243 = vadd.f32 %v7039, %v8018
        %v8244 = vadd.f32 %v7040, %v8023
        %v8245 = vadd.f32 %v7041, %v8026
        %v8246 = vadd.f32 %v7042, %v8031
        %v8247 = vadd.f32 %v7043, %v8034
        %v8248 = vadd.f32 %v7044, %v8039
        %v8249 = vadd.f32 %v7045, %v8042
        %v8250 = vadd.f32 %v7046, %v8047
        %v8251 = vadd.f32 %v7047, %v8050
        %v8252 = vadd.f32 %v7048, %v8055
        %v8253 = vadd.f32 %v7049, %v8058
        %v8254 = vadd.f32 %v7050, %v8063
        %v8255 = vadd.f32 %v7051, %v8066
        %v8256 = vadd.f32 %v7052, %v8071
        %v8257 = vadd.f32 %v7053, %v8074
        %v8258 = vadd.f32 %v7054, %v8079
        %v8259 = vadd.f32 %v7055, %v8082
        %v8260 = vadd.f32 %v7056, %v8087
        %v8261 = vadd.f32 %v7057, %v8090
        %v8262 = vadd.f32 %v7058, %v8095
        %v8263 = vadd.f32 %v7059, %v8098
        %v8264 = vadd.f32 %v7060, %v8103
        %v8265 = vadd.f32 %v7061, %v8106
        %v8266 = vadd.f32 %v7062, %v8111
        %v8267 = vadd.f32 %v7063, %v8114
        %v8268 = vadd.f32 %v7064, %v8119
        %v8269 = vadd.f32 %v7065, %v8122
        %v8270 = vadd.f32 %v7066, %v8127
        %v8271 = vadd.f32 %v7067, %v8130
        %v8272 = vadd.f32 %v7068, %v8135
        %v8273 = vadd.f32 %v7069, %v8138
        %v8274 = vadd.f32 %v7070, %v8143
        %v8275 = vadd.f32 %v7071, %v8146
        %v8276 = vadd.f32 %v7072, %v8151
        %v8277 = vadd.f32 %v7073, %v8154
        %v8278 = vadd.f32 %v7074, %v8159
        %v8279 = vld [vmem:[%s169 + $0x10] sm:$0xf]
        %v8280 = vld [vmem:[%s169 + $0x14] sm:$0xf]
        %v8281 = vld [vmem:[%s169 + $0x18] sm:$0xf]
        %v8282 = vld [vmem:[%s169 + $0x1c] sm:$0xf]
        %v8283 = vld [vmem:[%s169 + $0x20] sm:$0xf]
        %v8284 = vld [vmem:[%s169 + $0x24] sm:$0xf]
        %v8285 = vld [vmem:[%s169 + $0x28] sm:$0xf]
        %v8286 = vld [vmem:[%s169 + $0x2c] sm:$0xf]
        %v8287 = vld [vmem:[%s169 + $0x30] sm:$0xf]
        %v8288 = vld [vmem:[%s169 + $0x34] sm:$0xf]
        %v8289 = vld [vmem:[%s169 + $0x38] sm:$0xf]
        %v8290 = vld [vmem:[%s169 + $0x3c] sm:$0xf]
        %v8291 = vld [vmem:[%s169 + $0x40] sm:$0xf]
        %v8292 = vld [vmem:[%s169 + $0x44] sm:$0xf]
        %v8293 = vld [vmem:[%s169 + $0x48] sm:$0xf]
        %v8294 = vld [vmem:[%s169 + $0x4c] sm:$0xf]
        %v8295 = vld [vmem:[%s169 + $0x50] sm:$0xf]
        %v8296 = vld [vmem:[%s169 + $0x54] sm:$0xf]
        %v8297 = vld [vmem:[%s169 + $0x58] sm:$0xf]
        %v8298 = vld [vmem:[%s169 + $0x5c] sm:$0xf]
        %v8299 = vld [vmem:[%s169 + $0x60] sm:$0xf]
        %v8300 = vld [vmem:[%s169 + $0x64] sm:$0xf]
        %v8301 = vld [vmem:[%s169 + $0x68] sm:$0xf]
        %v8302 = vld [vmem:[%s169 + $0x6c] sm:$0xf]
        %v8303 = vld [vmem:[%s169 + $0x70] sm:$0xf]
        %v8304 = vld [vmem:[%s169 + $0x74] sm:$0xf]
        %v8305 = vld [vmem:[%s169 + $0x78] sm:$0xf]
        %v8306 = vld [vmem:[%s169 + $0x7c] sm:$0xf]
        %v8307 = vld [vmem:[%s169 + $0x80] sm:$0xf]
        %v8308 = vld [vmem:[%s169 + $0x84] sm:$0xf]
        %v8309 = vld [vmem:[%s169 + $0x88] sm:$0xf]
        %v8310 = vld [vmem:[%s169 + $0x8c] sm:$0xf]
        %v8311 = vld [vmem:[%s169 + $0x90] sm:$0xf]
        %v8312 = vld [vmem:[%s169 + $0x94] sm:$0xf]
        %v8313 = vld [vmem:[%s169 + $0x98] sm:$0xf]
        %v8314 = vld [vmem:[%s169 + $0x9c] sm:$0xf]
        %v8315 = vld [vmem:[%s169 + $0xa0] sm:$0xf]
        %v8316 = vld [vmem:[%s169 + $0xa4] sm:$0xf]
        %v8317 = vld [vmem:[%s169 + $0xa8] sm:$0xf]
        %v8318 = vld [vmem:[%s169 + $0xac] sm:$0xf]
        %v8319 = vld [vmem:[%s169 + $0xb0] sm:$0xf]
        %v8320 = vld [vmem:[%s169 + $0xb4] sm:$0xf]
        %v8321 = vld [vmem:[%s169 + $0xb8] sm:$0xf]
        %v8322 = vld [vmem:[%s169 + $0xbc] sm:$0xf]
        %v8323 = vld [vmem:[%s169 + $0xc0] sm:$0xf]
        %v8324 = vld [vmem:[%s169 + $0xc4] sm:$0xf]
        %v8325 = vld [vmem:[%s169 + $0xc8] sm:$0xf]
        %v8326 = vld [vmem:[%s169 + $0xcc] sm:$0xf]
        %v8327 = vld [vmem:[%s169 + $0xd0] sm:$0xf]
        %v8328 = vld [vmem:[%s169 + $0xd4] sm:$0xf]
        %v8329 = vld [vmem:[%s169 + $0xd8] sm:$0xf]
        %v8330 = vld [vmem:[%s169 + $0xdc] sm:$0xf]
        %v8331 = vld [vmem:[%s169 + $0xe0] sm:$0xf]
        %v8332 = vld [vmem:[%s169 + $0xe4] sm:$0xf]
        %v8333 = vld [vmem:[%s169 + $0xe8] sm:$0xf]
        %v8334 = vld [vmem:[%s169 + $0xec] sm:$0xf]
        %v8335 = vld [vmem:[%s169 + $0xf0] sm:$0xf]
        %v8336 = vld [vmem:[%s169 + $0xf4] sm:$0xf]
        %v8337 = vld [vmem:[%s169 + $0xf8] sm:$0xf]
        %v8338 = vld [vmem:[%s169 + $0xfc] sm:$0xf]
        %v8339 = vld [vmem:[%s169 + $0x100] sm:$0xf]
        %v8340 = vld [vmem:[%s169 + $0x104] sm:$0xf]
        %v8341 = vld [vmem:[%s169 + $0x108] sm:$0xf]
        %v8342 = vld [vmem:[%s169 + $0x10c] sm:$0xf]
        %v8343 = vld [vmem:[%s169 + $0x110] sm:$0xf]
        %v8344 = vld [vmem:[%s169 + $0x114] sm:$0xf]
        %v8345 = vld [vmem:[%s169 + $0x118] sm:$0xf]
        %v8346 = vld [vmem:[%s169 + $0x11c] sm:$0xf]
        %v8347 = vld [vmem:[%s169 + $0x120] sm:$0xf]
        %v8348 = vld [vmem:[%s169 + $0x124] sm:$0xf]
        %v8349 = vld [vmem:[%s169 + $0x128] sm:$0xf]
        %v8350 = vld [vmem:[%s169 + $0x12c] sm:$0xf]
        %v8351 = vld [vmem:[%s169 + $0x130] sm:$0xf]
        %v8352 = vld [vmem:[%s169 + $0x134] sm:$0xf]
        %v8353 = vld [vmem:[%s169 + $0x138] sm:$0xf]
        %v8354 = vld [vmem:[%s169 + $0x13c] sm:$0xf]
        %v8355 = vld [vmem:[%s169 + $0x140] sm:$0xf]
        %v8356 = vld [vmem:[%s169 + $0x144] sm:$0xf]
        %v8357 = vld [vmem:[%s169 + $0x148] sm:$0xf]
        %v8358 = vld [vmem:[%s169 + $0x14c] sm:$0xf]
        %v8359 = vld [vmem:[%s169 + $0x150] sm:$0xf]
        %v8360 = vld [vmem:[%s169 + $0x154] sm:$0xf]
        %v8361 = vld [vmem:[%s169 + $0x158] sm:$0xf]
        %v8362 = vld [vmem:[%s169 + $0x15c] sm:$0xf]
        %v8363 = vld [vmem:[%s169 + $0x160] sm:$0xf]
        %v8364 = vld [vmem:[%s169 + $0x164] sm:$0xf]
        %v8365 = vld [vmem:[%s169 + $0x168] sm:$0xf]
        %v8366 = vld [vmem:[%s169 + $0x16c] sm:$0xf]
        %v8367 = vld [vmem:[%s169 + $0x170] sm:$0xf]
        %v8368 = vld [vmem:[%s169 + $0x174] sm:$0xf]
        %v8369 = vld [vmem:[%s169 + $0x178] sm:$0xf]
        %v8370 = vld [vmem:[%s169 + $0x17c] sm:$0xf]
        %v8371 = vld [vmem:[%s169 + $0x180] sm:$0xf]
        %v8372 = vld [vmem:[%s169 + $0x184] sm:$0xf]
        %v8373 = vld [vmem:[%s169 + $0x188] sm:$0xf]
        %v8374 = vld [vmem:[%s169 + $0x18c] sm:$0xf]
        %v8375 = vld [vmem:[%s169 + $0x190] sm:$0xf]
        %v8376 = vld [vmem:[%s169 + $0x194] sm:$0xf]
        %v8377 = vld [vmem:[%s169 + $0x198] sm:$0xf]
        %v8378 = vld [vmem:[%s169 + $0x19c] sm:$0xf]
        %v8379 = vld [vmem:[%s169 + $0x1a0] sm:$0xf]
        %v8380 = vld [vmem:[%s169 + $0x1a4] sm:$0xf]
        %v8381 = vld [vmem:[%s169 + $0x1a8] sm:$0xf]
        %v8382 = vld [vmem:[%s169 + $0x1ac] sm:$0xf]
        %v8383 = vld [vmem:[%s169 + $0x1b0] sm:$0xf]
        %v8384 = vld [vmem:[%s169 + $0x1b4] sm:$0xf]
        %v8385 = vld [vmem:[%s169 + $0x1b8] sm:$0xf]
        %v8386 = vld [vmem:[%s169 + $0x1bc] sm:$0xf]
        %v8387 = vld [vmem:[%s169 + $0x1c0] sm:$0xf]
        %v8388 = vld [vmem:[%s169 + $0x1c4] sm:$0xf]
        %v8389 = vld [vmem:[%s169 + $0x1c8] sm:$0xf]
        %v8390 = vld [vmem:[%s169 + $0x1cc] sm:$0xf]
        %v8391 = vld [vmem:[%s169 + $0x1d0] sm:$0xf]
        %v8392 = vld [vmem:[%s169 + $0x1d4] sm:$0xf]
        %v8393 = vld [vmem:[%s169 + $0x1d8] sm:$0xf]
        %v8394 = vld [vmem:[%s169 + $0x1dc] sm:$0x1]
        %v8395 = vld [vmem:[%s1 + $0x70] sm:$0xf]
        %v8396 = vld [vmem:[%s1 + $0x74] sm:$0xf]
        %v8397 = vld [vmem:[%s1 + $0x78] sm:$0xf]
        %v8398 = vld [vmem:[%s1 + $0x7c] sm:$0xf]
        %v8515 = vunpack.c.l.b16 %v8279
        %v8516 = vunpack.c.l.b16 %v8280
        %v8517 = vunpack.c.l.b16 %v8281
        %v8518 = vunpack.c.l.b16 %v8282
        %v8519 = vunpack.c.l.b16 %v8283
        %v8520 = vunpack.c.l.b16 %v8284
        %v8521 = vunpack.c.l.b16 %v8285
        %v8522 = vunpack.c.l.b16 %v8286
        %v8523 = vunpack.c.l.b16 %v8287
        %v8524 = vunpack.c.l.b16 %v8288
        %v8525 = vunpack.c.l.b16 %v8289
        %v8526 = vunpack.c.l.b16 %v8290
        %v8527 = vunpack.c.l.b16 %v8291
        %v8528 = vunpack.c.l.b16 %v8292
        %v8529 = vunpack.c.l.b16 %v8293
        %v8530 = vunpack.c.l.b16 %v8294
        %v8531 = vunpack.c.l.b16 %v8295
        %v8532 = vunpack.c.l.b16 %v8296
        %v8533 = vunpack.c.l.b16 %v8297
        %v8534 = vunpack.c.l.b16 %v8298
        %v8535 = vunpack.c.l.b16 %v8299
        %v8536 = vunpack.c.l.b16 %v8300
        %v8537 = vunpack.c.l.b16 %v8301
        %v8538 = vunpack.c.l.b16 %v8302
        %v8539 = vunpack.c.l.b16 %v8303
        %v8540 = vunpack.c.l.b16 %v8304
        %v8541 = vunpack.c.l.b16 %v8305
        %v8542 = vunpack.c.l.b16 %v8306
        %v8543 = vunpack.c.l.b16 %v8307
        %v8544 = vunpack.c.l.b16 %v8308
        %v8545 = vunpack.c.l.b16 %v8309
        %v8546 = vunpack.c.l.b16 %v8310
        %v8547 = vunpack.c.l.b16 %v8311
        %v8548 = vunpack.c.l.b16 %v8312
        %v8549 = vunpack.c.l.b16 %v8313
        %v8550 = vunpack.c.l.b16 %v8314
        %v8551 = vunpack.c.l.b16 %v8315
        %v8552 = vunpack.c.l.b16 %v8316
        %v8553 = vunpack.c.l.b16 %v8317
        %v8554 = vunpack.c.l.b16 %v8318
        %v8555 = vunpack.c.l.b16 %v8319
        %v8556 = vunpack.c.l.b16 %v8320
        %v8557 = vunpack.c.l.b16 %v8321
        %v8558 = vunpack.c.l.b16 %v8322
        %v8559 = vunpack.c.l.b16 %v8323
        %v8560 = vunpack.c.l.b16 %v8324
        %v8561 = vunpack.c.l.b16 %v8325
        %v8562 = vunpack.c.l.b16 %v8326
        %v8563 = vunpack.c.l.b16 %v8327
        %v8564 = vunpack.c.l.b16 %v8328
        %v8565 = vunpack.c.l.b16 %v8329
        %v8566 = vunpack.c.l.b16 %v8330
        %v8567 = vunpack.c.l.b16 %v8331
        %v8568 = vunpack.c.l.b16 %v8332
        %v8569 = vunpack.c.l.b16 %v8333
        %v8570 = vunpack.c.l.b16 %v8334
        %v8571 = vunpack.c.l.b16 %v8335
        %v8572 = vunpack.c.l.b16 %v8336
        %v8573 = vunpack.c.l.b16 %v8337
        %v8574 = vunpack.c.l.b16 %v8338
        %v8575 = vunpack.c.l.b16 %v8339
        %v8576 = vunpack.c.l.b16 %v8340
        %v8577 = vunpack.c.l.b16 %v8341
        %v8578 = vunpack.c.l.b16 %v8342
        %v8579 = vunpack.c.l.b16 %v8343
        %v8580 = vunpack.c.l.b16 %v8344
        %v8581 = vunpack.c.l.b16 %v8345
        %v8582 = vunpack.c.l.b16 %v8346
        %v8583 = vunpack.c.l.b16 %v8347
        %v8584 = vunpack.c.l.b16 %v8348
        %v8585 = vunpack.c.l.b16 %v8349
        %v8586 = vunpack.c.l.b16 %v8350
        %v8587 = vunpack.c.l.b16 %v8351
        %v8588 = vunpack.c.l.b16 %v8352
        %v8589 = vunpack.c.l.b16 %v8353
        %v8590 = vunpack.c.l.b16 %v8354
        %v8591 = vunpack.c.l.b16 %v8355
        %v8592 = vunpack.c.l.b16 %v8356
        %v8593 = vunpack.c.l.b16 %v8357
        %v8594 = vunpack.c.l.b16 %v8358
        %v8595 = vunpack.c.l.b16 %v8359
        %v8596 = vunpack.c.l.b16 %v8360
        %v8597 = vunpack.c.l.b16 %v8361
        %v8598 = vunpack.c.l.b16 %v8362
        %v8599 = vunpack.c.l.b16 %v8363
        %v8600 = vunpack.c.l.b16 %v8364
        %v8601 = vunpack.c.l.b16 %v8365
        %v8602 = vunpack.c.l.b16 %v8366
        %v8603 = vunpack.c.l.b16 %v8367
        %v8604 = vunpack.c.l.b16 %v8368
        %v8605 = vunpack.c.l.b16 %v8369
        %v8606 = vunpack.c.l.b16 %v8370
        %v8607 = vunpack.c.l.b16 %v8371
        %v8608 = vunpack.c.l.b16 %v8372
        %v8609 = vunpack.c.l.b16 %v8373
        %v8610 = vunpack.c.l.b16 %v8374
        %v8611 = vunpack.c.l.b16 %v8375
        %v8612 = vunpack.c.l.b16 %v8376
        %v8613 = vunpack.c.l.b16 %v8377
        %v8614 = vunpack.c.l.b16 %v8378
        %v8615 = vunpack.c.l.b16 %v8379
        %v8616 = vunpack.c.l.b16 %v8380
        %v8617 = vunpack.c.l.b16 %v8381
        %v8618 = vunpack.c.l.b16 %v8382
        %v8619 = vunpack.c.l.b16 %v8383
        %v8620 = vunpack.c.l.b16 %v8384
        %v8621 = vunpack.c.l.b16 %v8385
        %v8622 = vunpack.c.l.b16 %v8386
        %v8623 = vunpack.c.l.b16 %v8387
        %v8624 = vunpack.c.l.b16 %v8388
        %v8625 = vunpack.c.l.b16 %v8389
        %v8626 = vunpack.c.l.b16 %v8390
        %v8627 = vunpack.c.l.b16 %v8391
        %v8628 = vunpack.c.l.b16 %v8392
        %v8629 = vunpack.c.l.b16 %v8393
        %v8630 = vunpack.c.l.b16 %v8394
        %v8631 = vpack.c.b16 %v8516, %v8515
        %v8632 = vpack.c.b16 %v8518, %v8517
        %v8633 = vpack.c.b16 %v8520, %v8519
        %v8634 = vpack.c.b16 %v8522, %v8521
        %v8635 = vpack.c.b16 %v8524, %v8523
        %v8636 = vpack.c.b16 %v8526, %v8525
        %v8637 = vpack.c.b16 %v8528, %v8527
        %v8638 = vpack.c.b16 %v8530, %v8529
        %v8639 = vpack.c.b16 %v8532, %v8531
        %v8640 = vpack.c.b16 %v8534, %v8533
        %v8641 = vpack.c.b16 %v8536, %v8535
        %v8642 = vpack.c.b16 %v8538, %v8537
        %v8643 = vpack.c.b16 %v8540, %v8539
        %v8644 = vpack.c.b16 %v8542, %v8541
        %v8645 = vpack.c.b16 %v8544, %v8543
        %v8646 = vpack.c.b16 %v8546, %v8545
        %v8647 = vpack.c.b16 %v8548, %v8547
        %v8648 = vpack.c.b16 %v8550, %v8549
        %v8649 = vpack.c.b16 %v8552, %v8551
        %v8650 = vpack.c.b16 %v8554, %v8553
        %v8651 = vpack.c.b16 %v8556, %v8555
        %v8652 = vpack.c.b16 %v8558, %v8557
        %v8653 = vpack.c.b16 %v8560, %v8559
        %v8654 = vpack.c.b16 %v8562, %v8561
        %v8655 = vpack.c.b16 %v8564, %v8563
        %v8656 = vpack.c.b16 %v8566, %v8565
        %v8657 = vpack.c.b16 %v8568, %v8567
        %v8658 = vpack.c.b16 %v8570, %v8569
        %v8659 = vpack.c.b16 %v8572, %v8571
        %v8660 = vpack.c.b16 %v8574, %v8573
        %v8661 = vpack.c.b16 %v8576, %v8575
        %v8662 = vpack.c.b16 %v8578, %v8577
        %v8663 = vpack.c.b16 %v8580, %v8579
        %v8664 = vpack.c.b16 %v8582, %v8581
        %v8665 = vpack.c.b16 %v8584, %v8583
        %v8666 = vpack.c.b16 %v8586, %v8585
        %v8667 = vpack.c.b16 %v8588, %v8587
        %v8668 = vpack.c.b16 %v8590, %v8589
        %v8669 = vpack.c.b16 %v8592, %v8591
        %v8670 = vpack.c.b16 %v8594, %v8593
        %v8671 = vpack.c.b16 %v8596, %v8595
        %v8672 = vpack.c.b16 %v8598, %v8597
        %v8673 = vpack.c.b16 %v8600, %v8599
        %v8674 = vpack.c.b16 %v8602, %v8601
        %v8675 = vpack.c.b16 %v8604, %v8603
        %v8676 = vpack.c.b16 %v8606, %v8605
        %v8677 = vpack.c.b16 %v8608, %v8607
        %v8678 = vpack.c.b16 %v8610, %v8609
        %v8679 = vpack.c.b16 %v8612, %v8611
        %v8680 = vpack.c.b16 %v8614, %v8613
        %v8681 = vpack.c.b16 %v8616, %v8615
        %v8682 = vpack.c.b16 %v8618, %v8617
        %v8683 = vpack.c.b16 %v8620, %v8619
        %v8684 = vpack.c.b16 %v8622, %v8621
        %v8685 = vpack.c.b16 %v8624, %v8623
        %v8686 = vpack.c.b16 %v8626, %v8625
        %v8687 = vpack.c.b16 %v8628, %v8627
        %v8688 = vpack.c.b16 %v8630, %v8629
        %v8690 = vshrl.u32 %v8631, 16
        %v8692 = vshll.u32 %v8631, 16
        %v8694 = vrot.slane %v8692, 1
        %v8695 = vor.u32 %v8690, %v8694
        %v8697 = vshll.u32 %v8632, 16
        %v8699 = vrot.slane %v8697, 1
        %v8700 = vsel %vm587, %v8695, %v8699
        %v8701 = vshrl.u32 %v8632, 16
        %v8703 = vor.u32 %v8701, %v8699
        %v8705 = vshll.u32 %v8633, 16
        %v8707 = vrot.slane %v8705, 1
        %v8708 = vsel %vm587, %v8703, %v8707
        %v8709 = vshrl.u32 %v8633, 16
        %v8711 = vor.u32 %v8709, %v8707
        %v8713 = vshll.u32 %v8634, 16
        %v8715 = vrot.slane %v8713, 1
        %v8716 = vsel %vm587, %v8711, %v8715
        %v8717 = vshrl.u32 %v8634, 16
        %v8719 = vor.u32 %v8717, %v8715
        %v8721 = vshll.u32 %v8635, 16
        %v8723 = vrot.slane %v8721, 1
        %v8724 = vsel %vm587, %v8719, %v8723
        %v8725 = vshrl.u32 %v8635, 16
        %v8727 = vor.u32 %v8725, %v8723
        %v8729 = vshll.u32 %v8636, 16
        %v8731 = vrot.slane %v8729, 1
        %v8732 = vsel %vm587, %v8727, %v8731
        %v8733 = vshrl.u32 %v8636, 16
        %v8735 = vor.u32 %v8733, %v8731
        %v8737 = vshll.u32 %v8637, 16
        %v8739 = vrot.slane %v8737, 1
        %v8740 = vsel %vm587, %v8735, %v8739
        %v8741 = vshrl.u32 %v8637, 16
        %v8743 = vor.u32 %v8741, %v8739
        %v8745 = vshll.u32 %v8638, 16
        %v8747 = vrot.slane %v8745, 1
        %v8748 = vsel %vm587, %v8743, %v8747
        %v8749 = vshrl.u32 %v8638, 16
        %v8751 = vor.u32 %v8749, %v8747
        %v8753 = vshll.u32 %v8639, 16
        %v8755 = vrot.slane %v8753, 1
        %v8756 = vsel %vm587, %v8751, %v8755
        %v8757 = vshrl.u32 %v8639, 16
        %v8759 = vor.u32 %v8757, %v8755
        %v8761 = vshll.u32 %v8640, 16
        %v8763 = vrot.slane %v8761, 1
        %v8764 = vsel %vm587, %v8759, %v8763
        %v8765 = vshrl.u32 %v8640, 16
        %v8767 = vor.u32 %v8765, %v8763
        %v8769 = vshll.u32 %v8641, 16
        %v8771 = vrot.slane %v8769, 1
        %v8772 = vsel %vm587, %v8767, %v8771
        %v8773 = vshrl.u32 %v8641, 16
        %v8775 = vor.u32 %v8773, %v8771
        %v8777 = vshll.u32 %v8642, 16
        %v8779 = vrot.slane %v8777, 1
        %v8780 = vsel %vm587, %v8775, %v8779
        %v8781 = vshrl.u32 %v8642, 16
        %v8783 = vor.u32 %v8781, %v8779
        %v8785 = vshll.u32 %v8643, 16
        %v8787 = vrot.slane %v8785, 1
        %v8788 = vsel %vm587, %v8783, %v8787
        %v8789 = vshrl.u32 %v8643, 16
        %v8791 = vor.u32 %v8789, %v8787
        %v8793 = vshll.u32 %v8644, 16
        %v8795 = vrot.slane %v8793, 1
        %v8796 = vsel %vm587, %v8791, %v8795
        %v8797 = vshrl.u32 %v8644, 16
        %v8799 = vor.u32 %v8797, %v8795
        %v8801 = vshll.u32 %v8645, 16
        %v8803 = vrot.slane %v8801, 1
        %v8804 = vsel %vm587, %v8799, %v8803
        %v8805 = vshrl.u32 %v8645, 16
        %v8807 = vor.u32 %v8805, %v8803
        %v8809 = vshll.u32 %v8646, 16
        %v8811 = vrot.slane %v8809, 1
        %v8812 = vsel %vm587, %v8807, %v8811
        %v8813 = vshrl.u32 %v8646, 16
        %v8815 = vor.u32 %v8813, %v8811
        %v8817 = vshll.u32 %v8647, 16
        %v8819 = vrot.slane %v8817, 1
        %v8820 = vsel %vm587, %v8815, %v8819
        %v8821 = vshrl.u32 %v8647, 16
        %v8823 = vor.u32 %v8821, %v8819
        %v8825 = vshll.u32 %v8648, 16
        %v8827 = vrot.slane %v8825, 1
        %v8828 = vsel %vm587, %v8823, %v8827
        %v8829 = vshrl.u32 %v8648, 16
        %v8831 = vor.u32 %v8829, %v8827
        %v8833 = vshll.u32 %v8649, 16
        %v8835 = vrot.slane %v8833, 1
        %v8836 = vsel %vm587, %v8831, %v8835
        %v8837 = vshrl.u32 %v8649, 16
        %v8839 = vor.u32 %v8837, %v8835
        %v8841 = vshll.u32 %v8650, 16
        %v8843 = vrot.slane %v8841, 1
        %v8844 = vsel %vm587, %v8839, %v8843
        %v8845 = vshrl.u32 %v8650, 16
        %v8847 = vor.u32 %v8845, %v8843
        %v8849 = vshll.u32 %v8651, 16
        %v8851 = vrot.slane %v8849, 1
        %v8852 = vsel %vm587, %v8847, %v8851
        %v8853 = vshrl.u32 %v8651, 16
        %v8855 = vor.u32 %v8853, %v8851
        %v8857 = vshll.u32 %v8652, 16
        %v8859 = vrot.slane %v8857, 1
        %v8860 = vsel %vm587, %v8855, %v8859
        %v8861 = vshrl.u32 %v8652, 16
        %v8863 = vor.u32 %v8861, %v8859
        %v8865 = vshll.u32 %v8653, 16
        %v8867 = vrot.slane %v8865, 1
        %v8868 = vsel %vm587, %v8863, %v8867
        %v8869 = vshrl.u32 %v8653, 16
        %v8871 = vor.u32 %v8869, %v8867
        %v8873 = vshll.u32 %v8654, 16
        %v8875 = vrot.slane %v8873, 1
        %v8876 = vsel %vm587, %v8871, %v8875
        %v8877 = vshrl.u32 %v8654, 16
        %v8879 = vor.u32 %v8877, %v8875
        %v8881 = vshll.u32 %v8655, 16
        %v8883 = vrot.slane %v8881, 1
        %v8884 = vsel %vm587, %v8879, %v8883
        %v8885 = vshrl.u32 %v8655, 16
        %v8887 = vor.u32 %v8885, %v8883
        %v8889 = vshll.u32 %v8656, 16
        %v8891 = vrot.slane %v8889, 1
        %v8892 = vsel %vm587, %v8887, %v8891
        %v8893 = vshrl.u32 %v8656, 16
        %v8895 = vor.u32 %v8893, %v8891
        %v8897 = vshll.u32 %v8657, 16
        %v8899 = vrot.slane %v8897, 1
        %v8900 = vsel %vm587, %v8895, %v8899
        %v8901 = vshrl.u32 %v8657, 16
        %v8903 = vor.u32 %v8901, %v8899
        %v8905 = vshll.u32 %v8658, 16
        %v8907 = vrot.slane %v8905, 1
        %v8908 = vsel %vm587, %v8903, %v8907
        %v8909 = vshrl.u32 %v8658, 16
        %v8911 = vor.u32 %v8909, %v8907
        %v8913 = vshll.u32 %v8659, 16
        %v8915 = vrot.slane %v8913, 1
        %v8916 = vsel %vm587, %v8911, %v8915
        %v8917 = vshrl.u32 %v8659, 16
        %v8919 = vor.u32 %v8917, %v8915
        %v8921 = vshll.u32 %v8660, 16
        %v8923 = vrot.slane %v8921, 1
        %v8924 = vsel %vm587, %v8919, %v8923
        %v8925 = vshrl.u32 %v8660, 16
        %v8927 = vor.u32 %v8925, %v8923
        %v8929 = vshll.u32 %v8661, 16
        %v8931 = vrot.slane %v8929, 1
        %v8932 = vsel %vm587, %v8927, %v8931
        %v8933 = vshrl.u32 %v8661, 16
        %v8935 = vor.u32 %v8933, %v8931
        %v8937 = vshll.u32 %v8662, 16
        %v8939 = vrot.slane %v8937, 1
        %v8940 = vsel %vm587, %v8935, %v8939
        %v8941 = vshrl.u32 %v8662, 16
        %v8943 = vor.u32 %v8941, %v8939
        %v8945 = vshll.u32 %v8663, 16
        %v8947 = vrot.slane %v8945, 1
        %v8948 = vsel %vm587, %v8943, %v8947
        %v8949 = vshrl.u32 %v8663, 16
        %v8951 = vor.u32 %v8949, %v8947
        %v8953 = vshll.u32 %v8664, 16
        %v8955 = vrot.slane %v8953, 1
        %v8956 = vsel %vm587, %v8951, %v8955
        %v8957 = vshrl.u32 %v8664, 16
        %v8959 = vor.u32 %v8957, %v8955
        %v8961 = vshll.u32 %v8665, 16
        %v8963 = vrot.slane %v8961, 1
        %v8964 = vsel %vm587, %v8959, %v8963
        %v8965 = vshrl.u32 %v8665, 16
        %v8967 = vor.u32 %v8965, %v8963
        %v8969 = vshll.u32 %v8666, 16
        %v8971 = vrot.slane %v8969, 1
        %v8972 = vsel %vm587, %v8967, %v8971
        %v8973 = vshrl.u32 %v8666, 16
        %v8975 = vor.u32 %v8973, %v8971
        %v8977 = vshll.u32 %v8667, 16
        %v8979 = vrot.slane %v8977, 1
        %v8980 = vsel %vm587, %v8975, %v8979
        %v8981 = vshrl.u32 %v8667, 16
        %v8983 = vor.u32 %v8981, %v8979
        %v8985 = vshll.u32 %v8668, 16
        %v8987 = vrot.slane %v8985, 1
        %v8988 = vsel %vm587, %v8983, %v8987
        %v8989 = vshrl.u32 %v8668, 16
        %v8991 = vor.u32 %v8989, %v8987
        %v8993 = vshll.u32 %v8669, 16
        %v8995 = vrot.slane %v8993, 1
        %v8996 = vsel %vm587, %v8991, %v8995
        %v8997 = vshrl.u32 %v8669, 16
        %v8999 = vor.u32 %v8997, %v8995
        %v9001 = vshll.u32 %v8670, 16
        %v9003 = vrot.slane %v9001, 1
        %v9004 = vsel %vm587, %v8999, %v9003
        %v9005 = vshrl.u32 %v8670, 16
        %v9007 = vor.u32 %v9005, %v9003
        %v9009 = vshll.u32 %v8671, 16
        %v9011 = vrot.slane %v9009, 1
        %v9012 = vsel %vm587, %v9007, %v9011
        %v9013 = vshrl.u32 %v8671, 16
        %v9015 = vor.u32 %v9013, %v9011
        %v9017 = vshll.u32 %v8672, 16
        %v9019 = vrot.slane %v9017, 1
        %v9020 = vsel %vm587, %v9015, %v9019
        %v9021 = vshrl.u32 %v8672, 16
        %v9023 = vor.u32 %v9021, %v9019
        %v9025 = vshll.u32 %v8673, 16
        %v9027 = vrot.slane %v9025, 1
        %v9028 = vsel %vm587, %v9023, %v9027
        %v9029 = vshrl.u32 %v8673, 16
        %v9031 = vor.u32 %v9029, %v9027
        %v9033 = vshll.u32 %v8674, 16
        %v9035 = vrot.slane %v9033, 1
        %v9036 = vsel %vm587, %v9031, %v9035
        %v9037 = vshrl.u32 %v8674, 16
        %v9039 = vor.u32 %v9037, %v9035
        %v9041 = vshll.u32 %v8675, 16
        %v9043 = vrot.slane %v9041, 1
        %v9044 = vsel %vm587, %v9039, %v9043
        %v9045 = vshrl.u32 %v8675, 16
        %v9047 = vor.u32 %v9045, %v9043
        %v9049 = vshll.u32 %v8676, 16
        %v9051 = vrot.slane %v9049, 1
        %v9052 = vsel %vm587, %v9047, %v9051
        %v9053 = vshrl.u32 %v8676, 16
        %v9055 = vor.u32 %v9053, %v9051
        %v9057 = vshll.u32 %v8677, 16
        %v9059 = vrot.slane %v9057, 1
        %v9060 = vsel %vm587, %v9055, %v9059
        %v9061 = vshrl.u32 %v8677, 16
        %v9063 = vor.u32 %v9061, %v9059
        %v9065 = vshll.u32 %v8678, 16
        %v9067 = vrot.slane %v9065, 1
        %v9068 = vsel %vm587, %v9063, %v9067
        %v9069 = vshrl.u32 %v8678, 16
        %v9071 = vor.u32 %v9069, %v9067
        %v9073 = vshll.u32 %v8679, 16
        %v9075 = vrot.slane %v9073, 1
        %v9076 = vsel %vm587, %v9071, %v9075
        %v9077 = vshrl.u32 %v8679, 16
        %v9079 = vor.u32 %v9077, %v9075
        %v9081 = vshll.u32 %v8680, 16
        %v9083 = vrot.slane %v9081, 1
        %v9084 = vsel %vm587, %v9079, %v9083
        %v9085 = vshrl.u32 %v8680, 16
        %v9087 = vor.u32 %v9085, %v9083
        %v9089 = vshll.u32 %v8681, 16
        %v9091 = vrot.slane %v9089, 1
        %v9092 = vsel %vm587, %v9087, %v9091
        %v9093 = vshrl.u32 %v8681, 16
        %v9095 = vor.u32 %v9093, %v9091
        %v9097 = vshll.u32 %v8682, 16
        %v9099 = vrot.slane %v9097, 1
        %v9100 = vsel %vm587, %v9095, %v9099
        %v9101 = vshrl.u32 %v8682, 16
        %v9103 = vor.u32 %v9101, %v9099
        %v9105 = vshll.u32 %v8683, 16
        %v9107 = vrot.slane %v9105, 1
        %v9108 = vsel %vm587, %v9103, %v9107
        %v9109 = vshrl.u32 %v8683, 16
        %v9111 = vor.u32 %v9109, %v9107
        %v9113 = vshll.u32 %v8684, 16
        %v9115 = vrot.slane %v9113, 1
        %v9116 = vsel %vm587, %v9111, %v9115
        %v9117 = vshrl.u32 %v8684, 16
        %v9119 = vor.u32 %v9117, %v9115
        %v9121 = vshll.u32 %v8685, 16
        %v9123 = vrot.slane %v9121, 1
        %v9124 = vsel %vm587, %v9119, %v9123
        %v9125 = vshrl.u32 %v8685, 16
        %v9127 = vor.u32 %v9125, %v9123
        %v9129 = vshll.u32 %v8686, 16
        %v9131 = vrot.slane %v9129, 1
        %v9132 = vsel %vm587, %v9127, %v9131
        %v9133 = vshrl.u32 %v8686, 16
        %v9135 = vor.u32 %v9133, %v9131
        %v9137 = vshll.u32 %v8687, 16
        %v9139 = vrot.slane %v9137, 1
        %v9140 = vsel %vm587, %v9135, %v9139
        %v9141 = vshrl.u32 %v8687, 16
        %v9143 = vor.u32 %v9141, %v9139
        %v9145 = vshll.u32 %v8688, 16
        %v9147 = vrot.slane %v9145, 1
        %v9148 = vsel %vm587, %v9143, %v9147
        %v9149 = vshrl.u32 %v8688, 16
        %v9151 = vor.u32 %v9149, %v9147
        %v9156 = vunpack.c.l.b16 %v8395
        %v9157 = vunpack.c.l.b16 %v8396
        %v9158 = vunpack.c.l.b16 %v8397
        %v9159 = vunpack.c.l.b16 %v8398
        %v9160 = vpack.c.b16 %v9157, %v9156
        %v9161 = vpack.c.b16 %v9159, %v9158
        %v9165 = vsel %vm1063, %v8700, 0
        %v9168 = vsel %vm1063, %v8708, 0
        %v9171 = vsel %vm1063, %v8716, 0
        %v9174 = vsel %vm1063, %v8724, 0
        %v9177 = vsel %vm1063, %v8732, 0
        %v9180 = vsel %vm1063, %v8740, 0
        %v9183 = vsel %vm1063, %v8748, 0
        %v9186 = vsel %vm1063, %v8756, 0
        %v9189 = vsel %vm1063, %v8764, 0
        %v9192 = vsel %vm1063, %v8772, 0
        %v9195 = vsel %vm1063, %v8780, 0
        %v9198 = vsel %vm1063, %v8788, 0
        %v9201 = vsel %vm1063, %v8796, 0
        %v9204 = vsel %vm1063, %v8804, 0
        %v9207 = vsel %vm1063, %v8812, 0
        %v9210 = vsel %vm1063, %v8820, 0
        %v9213 = vsel %vm1063, %v8828, 0
        %v9216 = vsel %vm1063, %v8836, 0
        %v9219 = vsel %vm1063, %v8844, 0
        %v9222 = vsel %vm1063, %v8852, 0
        %v9225 = vsel %vm1063, %v8860, 0
        %v9228 = vsel %vm1063, %v8868, 0
        %v9231 = vsel %vm1063, %v8876, 0
        %v9234 = vsel %vm1063, %v8884, 0
        %v9237 = vsel %vm1063, %v8892, 0
        %v9240 = vsel %vm1063, %v8900, 0
        %v9243 = vsel %vm1063, %v8908, 0
        %v9246 = vsel %vm1063, %v8916, 0
        %v9249 = vsel %vm1063, %v8924, 0
        %v9252 = vsel %vm1063, %v8932, 0
        %v9255 = vsel %vm1063, %v8940, 0
        %v9258 = vsel %vm1063, %v8948, 0
        %v9261 = vsel %vm1063, %v8956, 0
        %v9264 = vsel %vm1063, %v8964, 0
        %v9267 = vsel %vm1063, %v8972, 0
        %v9270 = vsel %vm1063, %v8980, 0
        %v9273 = vsel %vm1063, %v8988, 0
        %v9276 = vsel %vm1063, %v8996, 0
        %v9279 = vsel %vm1063, %v9004, 0
        %v9282 = vsel %vm1063, %v9012, 0
        %v9285 = vsel %vm1063, %v9020, 0
        %v9288 = vsel %vm1063, %v9028, 0
        %v9291 = vsel %vm1063, %v9036, 0
        %v9294 = vsel %vm1063, %v9044, 0
        %v9297 = vsel %vm1063, %v9052, 0
        %v9300 = vsel %vm1063, %v9060, 0
        %v9303 = vsel %vm1063, %v9068, 0
        %v9306 = vsel %vm1063, %v9076, 0
        %v9309 = vsel %vm1063, %v9084, 0
        %v9312 = vsel %vm1063, %v9092, 0
        %v9315 = vsel %vm1063, %v9100, 0
        %v9318 = vsel %vm1063, %v9108, 0
        %v9321 = vsel %vm1063, %v9116, 0
        %v9324 = vsel %vm1063, %v9124, 0
        %v9327 = vsel %vm1063, %v9132, 0
        %v9330 = vsel %vm1063, %v9140, 0
        %v9333 = vsel %vm1063, %v9148, 0
        %v9336 = vsel %vm1063, %v9151, 0
        %9338 = vmatprep.subr.bf16.mxu0 0
        %9339 = vmatpush1.bf16.msra.mxu0 0
        %9340 = vmatprep.subr.bf16.mxu0 0
        %9341 = vmatpush1.bf16.msra.mxu0 0
        %9342 = vmatprep.subr.bf16.mxu0 0
        %9343 = vmatpush1.bf16.msra.mxu0 0
        %9344 = vmatprep.subr.bf16.mxu0 0
        %9345 = vmatpush1.bf16.msra.mxu0 0
        %9346 = vmatprep.subr.bf16.mxu0 0
        %9347 = vmatpush1.bf16.msra.mxu0 0
        %9348 = vmatprep.subr.bf16.mxu0 0
        %9349 = vmatpush1.bf16.msra.mxu0 0
        %9350 = vmatprep.subr.bf16.mxu0 0
        %9351 = vmatpush1.bf16.msra.mxu0 %v9161
        %9352 = vmatprep.subr.bf16.mxu0 0
        %9353 = vmatpush1.bf16.msra.mxu0 %v9160
        %9354 = vmatprep.subr.bf16.mxu0 0
        %9355 = vmatpush2.bf16.msra.mxu0 0
        %9356 = vmatprep.subr.bf16.mxu0 0
        %9357 = vmatpush2.bf16.msra.mxu0 0
        %9358 = vmatprep.subr.bf16.mxu0 0
        %9359 = vmatpush2.bf16.msra.mxu0 0
        %9360 = vmatprep.subr.bf16.mxu0 0
        %9361 = vmatpush2.bf16.msra.mxu0 0
        %9362 = vmatprep.subr.bf16.mxu0 0
        %9363 = vmatpush2.bf16.msra.mxu0 0
        %9364 = vmatprep.subr.bf16.mxu0 0
        %9365 = vmatpush2.bf16.msra.mxu0 0
        %9366 = vmatprep.subr.bf16.mxu0 0
        %9367 = vmatpush2.bf16.msra.mxu0 0
        %9368 = vmatprep.subr.bf16.mxu0 0
        %9369 = vmatpush2.bf16.msra.mxu0 0
        %9370 = vmatprep.mubr.bf16.mxu0 0
        %9371 = vmatmul.mubr.bf16.gmra.mxu0 %v9165
        %v9372 = vpop.f32.mrf.mxu0
        %v9373 = vadd.f32 0.0, %v9372
        %v9374 = vpop.f32.mrf.mxu0
        %v9375 = vpop.f32.mrf.mxu0
        %v9376 = vadd.f32 0.0, %v9375
        %v9377 = vpop.f32.mrf.mxu0
        %9378 = vmatprep.mubr.bf16.mxu0 0
        %9379 = vmatmul.mubr.bf16.gmra.mxu0 %v9168
        %v9380 = vpop.f32.mrf.mxu0
        %v9381 = vadd.f32 0.0, %v9380
        %v9382 = vpop.f32.mrf.mxu0
        %v9383 = vpop.f32.mrf.mxu0
        %v9384 = vadd.f32 0.0, %v9383
        %v9385 = vpop.f32.mrf.mxu0
        %9386 = vmatprep.mubr.bf16.mxu0 0
        %9387 = vmatmul.mubr.bf16.gmra.mxu0 %v9171
        %v9388 = vpop.f32.mrf.mxu0
        %v9389 = vadd.f32 0.0, %v9388
        %v9390 = vpop.f32.mrf.mxu0
        %v9391 = vpop.f32.mrf.mxu0
        %v9392 = vadd.f32 0.0, %v9391
        %v9393 = vpop.f32.mrf.mxu0
        %9394 = vmatprep.mubr.bf16.mxu0 0
        %9395 = vmatmul.mubr.bf16.gmra.mxu0 %v9174
        %v9396 = vpop.f32.mrf.mxu0
        %v9397 = vadd.f32 0.0, %v9396
        %v9398 = vpop.f32.mrf.mxu0
        %v9399 = vpop.f32.mrf.mxu0
        %v9400 = vadd.f32 0.0, %v9399
        %v9401 = vpop.f32.mrf.mxu0
        %9402 = vmatprep.mubr.bf16.mxu0 0
        %9403 = vmatmul.mubr.bf16.gmra.mxu0 %v9177
        %v9404 = vpop.f32.mrf.mxu0
        %v9405 = vadd.f32 0.0, %v9404
        %v9406 = vpop.f32.mrf.mxu0
        %v9407 = vpop.f32.mrf.mxu0
        %v9408 = vadd.f32 0.0, %v9407
        %v9409 = vpop.f32.mrf.mxu0
        %9410 = vmatprep.mubr.bf16.mxu0 0
        %9411 = vmatmul.mubr.bf16.gmra.mxu0 %v9180
        %v9412 = vpop.f32.mrf.mxu0
        %v9413 = vadd.f32 0.0, %v9412
        %v9414 = vpop.f32.mrf.mxu0
        %v9415 = vpop.f32.mrf.mxu0
        %v9416 = vadd.f32 0.0, %v9415
        %v9417 = vpop.f32.mrf.mxu0
        %9418 = vmatprep.mubr.bf16.mxu0 0
        %9419 = vmatmul.mubr.bf16.gmra.mxu0 %v9183
        %v9420 = vpop.f32.mrf.mxu0
        %v9421 = vadd.f32 0.0, %v9420
        %v9422 = vpop.f32.mrf.mxu0
        %v9423 = vpop.f32.mrf.mxu0
        %v9424 = vadd.f32 0.0, %v9423
        %v9425 = vpop.f32.mrf.mxu0
        %9426 = vmatprep.mubr.bf16.mxu0 0
        %9427 = vmatmul.mubr.bf16.gmra.mxu0 %v9186
        %v9428 = vpop.f32.mrf.mxu0
        %v9429 = vadd.f32 0.0, %v9428
        %v9430 = vpop.f32.mrf.mxu0
        %v9431 = vpop.f32.mrf.mxu0
        %v9432 = vadd.f32 0.0, %v9431
        %v9433 = vpop.f32.mrf.mxu0
        %9434 = vmatprep.mubr.bf16.mxu0 0
        %9435 = vmatmul.mubr.bf16.gmra.mxu0 %v9189
        %v9436 = vpop.f32.mrf.mxu0
        %v9437 = vadd.f32 0.0, %v9436
        %v9438 = vpop.f32.mrf.mxu0
        %v9439 = vpop.f32.mrf.mxu0
        %v9440 = vadd.f32 0.0, %v9439
        %v9441 = vpop.f32.mrf.mxu0
        %9442 = vmatprep.mubr.bf16.mxu0 0
        %9443 = vmatmul.mubr.bf16.gmra.mxu0 %v9192
        %v9444 = vpop.f32.mrf.mxu0
        %v9445 = vadd.f32 0.0, %v9444
        %v9446 = vpop.f32.mrf.mxu0
        %v9447 = vpop.f32.mrf.mxu0
        %v9448 = vadd.f32 0.0, %v9447
        %v9449 = vpop.f32.mrf.mxu0
        %9450 = vmatprep.mubr.bf16.mxu0 0
        %9451 = vmatmul.mubr.bf16.gmra.mxu0 %v9195
        %v9452 = vpop.f32.mrf.mxu0
        %v9453 = vadd.f32 0.0, %v9452
        %v9454 = vpop.f32.mrf.mxu0
        %v9455 = vpop.f32.mrf.mxu0
        %v9456 = vadd.f32 0.0, %v9455
        %v9457 = vpop.f32.mrf.mxu0
        %9458 = vmatprep.mubr.bf16.mxu0 0
        %9459 = vmatmul.mubr.bf16.gmra.mxu0 %v9198
        %v9460 = vpop.f32.mrf.mxu0
        %v9461 = vadd.f32 0.0, %v9460
        %v9462 = vpop.f32.mrf.mxu0
        %v9463 = vpop.f32.mrf.mxu0
        %v9464 = vadd.f32 0.0, %v9463
        %v9465 = vpop.f32.mrf.mxu0
        %9466 = vmatprep.mubr.bf16.mxu0 0
        %9467 = vmatmul.mubr.bf16.gmra.mxu0 %v9201
        %v9468 = vpop.f32.mrf.mxu0
        %v9469 = vadd.f32 0.0, %v9468
        %v9470 = vpop.f32.mrf.mxu0
        %v9471 = vpop.f32.mrf.mxu0
        %v9472 = vadd.f32 0.0, %v9471
        %v9473 = vpop.f32.mrf.mxu0
        %9474 = vmatprep.mubr.bf16.mxu0 0
        %9475 = vmatmul.mubr.bf16.gmra.mxu0 %v9204
        %v9476 = vpop.f32.mrf.mxu0
        %v9477 = vadd.f32 0.0, %v9476
        %v9478 = vpop.f32.mrf.mxu0
        %v9479 = vpop.f32.mrf.mxu0
        %v9480 = vadd.f32 0.0, %v9479
        %v9481 = vpop.f32.mrf.mxu0
        %9482 = vmatprep.mubr.bf16.mxu0 0
        %9483 = vmatmul.mubr.bf16.gmra.mxu0 %v9207
        %v9484 = vpop.f32.mrf.mxu0
        %v9485 = vadd.f32 0.0, %v9484
        %v9486 = vpop.f32.mrf.mxu0
        %v9487 = vpop.f32.mrf.mxu0
        %v9488 = vadd.f32 0.0, %v9487
        %v9489 = vpop.f32.mrf.mxu0
        %9490 = vmatprep.mubr.bf16.mxu0 0
        %9491 = vmatmul.mubr.bf16.gmra.mxu0 %v9210
        %v9492 = vpop.f32.mrf.mxu0
        %v9493 = vadd.f32 0.0, %v9492
        %v9494 = vpop.f32.mrf.mxu0
        %v9495 = vpop.f32.mrf.mxu0
        %v9496 = vadd.f32 0.0, %v9495
        %v9497 = vpop.f32.mrf.mxu0
        %9498 = vmatprep.mubr.bf16.mxu0 0
        %9499 = vmatmul.mubr.bf16.gmra.mxu0 %v9213
        %v9500 = vpop.f32.mrf.mxu0
        %v9501 = vadd.f32 0.0, %v9500
        %v9502 = vpop.f32.mrf.mxu0
        %v9503 = vpop.f32.mrf.mxu0
        %v9504 = vadd.f32 0.0, %v9503
        %v9505 = vpop.f32.mrf.mxu0
        %9506 = vmatprep.mubr.bf16.mxu0 0
        %9507 = vmatmul.mubr.bf16.gmra.mxu0 %v9216
        %v9508 = vpop.f32.mrf.mxu0
        %v9509 = vadd.f32 0.0, %v9508
        %v9510 = vpop.f32.mrf.mxu0
        %v9511 = vpop.f32.mrf.mxu0
        %v9512 = vadd.f32 0.0, %v9511
        %v9513 = vpop.f32.mrf.mxu0
        %9514 = vmatprep.mubr.bf16.mxu0 0
        %9515 = vmatmul.mubr.bf16.gmra.mxu0 %v9219
        %v9516 = vpop.f32.mrf.mxu0
        %v9517 = vadd.f32 0.0, %v9516
        %v9518 = vpop.f32.mrf.mxu0
        %v9519 = vpop.f32.mrf.mxu0
        %v9520 = vadd.f32 0.0, %v9519
        %v9521 = vpop.f32.mrf.mxu0
        %9522 = vmatprep.mubr.bf16.mxu0 0
        %9523 = vmatmul.mubr.bf16.gmra.mxu0 %v9222
        %v9524 = vpop.f32.mrf.mxu0
        %v9525 = vadd.f32 0.0, %v9524
        %v9526 = vpop.f32.mrf.mxu0
        %v9527 = vpop.f32.mrf.mxu0
        %v9528 = vadd.f32 0.0, %v9527
        %v9529 = vpop.f32.mrf.mxu0
        %9530 = vmatprep.mubr.bf16.mxu0 0
        %9531 = vmatmul.mubr.bf16.gmra.mxu0 %v9225
        %v9532 = vpop.f32.mrf.mxu0
        %v9533 = vadd.f32 0.0, %v9532
        %v9534 = vpop.f32.mrf.mxu0
        %v9535 = vpop.f32.mrf.mxu0
        %v9536 = vadd.f32 0.0, %v9535
        %v9537 = vpop.f32.mrf.mxu0
        %9538 = vmatprep.mubr.bf16.mxu0 0
        %9539 = vmatmul.mubr.bf16.gmra.mxu0 %v9228
        %v9540 = vpop.f32.mrf.mxu0
        %v9541 = vadd.f32 0.0, %v9540
        %v9542 = vpop.f32.mrf.mxu0
        %v9543 = vpop.f32.mrf.mxu0
        %v9544 = vadd.f32 0.0, %v9543
        %v9545 = vpop.f32.mrf.mxu0
        %9546 = vmatprep.mubr.bf16.mxu0 0
        %9547 = vmatmul.mubr.bf16.gmra.mxu0 %v9231
        %v9548 = vpop.f32.mrf.mxu0
        %v9549 = vadd.f32 0.0, %v9548
        %v9550 = vpop.f32.mrf.mxu0
        %v9551 = vpop.f32.mrf.mxu0
        %v9552 = vadd.f32 0.0, %v9551
        %v9553 = vpop.f32.mrf.mxu0
        %9554 = vmatprep.mubr.bf16.mxu0 0
        %9555 = vmatmul.mubr.bf16.gmra.mxu0 %v9234
        %v9556 = vpop.f32.mrf.mxu0
        %v9557 = vadd.f32 0.0, %v9556
        %v9558 = vpop.f32.mrf.mxu0
        %v9559 = vpop.f32.mrf.mxu0
        %v9560 = vadd.f32 0.0, %v9559
        %v9561 = vpop.f32.mrf.mxu0
        %9562 = vmatprep.mubr.bf16.mxu0 0
        %9563 = vmatmul.mubr.bf16.gmra.mxu0 %v9237
        %v9564 = vpop.f32.mrf.mxu0
        %v9565 = vadd.f32 0.0, %v9564
        %v9566 = vpop.f32.mrf.mxu0
        %v9567 = vpop.f32.mrf.mxu0
        %v9568 = vadd.f32 0.0, %v9567
        %v9569 = vpop.f32.mrf.mxu0
        %9570 = vmatprep.mubr.bf16.mxu0 0
        %9571 = vmatmul.mubr.bf16.gmra.mxu0 %v9240
        %v9572 = vpop.f32.mrf.mxu0
        %v9573 = vadd.f32 0.0, %v9572
        %v9574 = vpop.f32.mrf.mxu0
        %v9575 = vpop.f32.mrf.mxu0
        %v9576 = vadd.f32 0.0, %v9575
        %v9577 = vpop.f32.mrf.mxu0
        %9578 = vmatprep.mubr.bf16.mxu0 0
        %9579 = vmatmul.mubr.bf16.gmra.mxu0 %v9243
        %v9580 = vpop.f32.mrf.mxu0
        %v9581 = vadd.f32 0.0, %v9580
        %v9582 = vpop.f32.mrf.mxu0
        %v9583 = vpop.f32.mrf.mxu0
        %v9584 = vadd.f32 0.0, %v9583
        %v9585 = vpop.f32.mrf.mxu0
        %9586 = vmatprep.mubr.bf16.mxu0 0
        %9587 = vmatmul.mubr.bf16.gmra.mxu0 %v9246
        %v9588 = vpop.f32.mrf.mxu0
        %v9589 = vadd.f32 0.0, %v9588
        %v9590 = vpop.f32.mrf.mxu0
        %v9591 = vpop.f32.mrf.mxu0
        %v9592 = vadd.f32 0.0, %v9591
        %v9593 = vpop.f32.mrf.mxu0
        %9594 = vmatprep.mubr.bf16.mxu0 0
        %9595 = vmatmul.mubr.bf16.gmra.mxu0 %v9249
        %v9596 = vpop.f32.mrf.mxu0
        %v9597 = vadd.f32 0.0, %v9596
        %v9598 = vpop.f32.mrf.mxu0
        %v9599 = vpop.f32.mrf.mxu0
        %v9600 = vadd.f32 0.0, %v9599
        %v9601 = vpop.f32.mrf.mxu0
        %9602 = vmatprep.mubr.bf16.mxu0 0
        %9603 = vmatmul.mubr.bf16.gmra.mxu0 %v9252
        %v9604 = vpop.f32.mrf.mxu0
        %v9605 = vadd.f32 0.0, %v9604
        %v9606 = vpop.f32.mrf.mxu0
        %v9607 = vpop.f32.mrf.mxu0
        %v9608 = vadd.f32 0.0, %v9607
        %v9609 = vpop.f32.mrf.mxu0
        %9610 = vmatprep.mubr.bf16.mxu0 0
        %9611 = vmatmul.mubr.bf16.gmra.mxu0 %v9255
        %v9612 = vpop.f32.mrf.mxu0
        %v9613 = vadd.f32 0.0, %v9612
        %v9614 = vpop.f32.mrf.mxu0
        %v9615 = vpop.f32.mrf.mxu0
        %v9616 = vadd.f32 0.0, %v9615
        %v9617 = vpop.f32.mrf.mxu0
        %9618 = vmatprep.mubr.bf16.mxu0 0
        %9619 = vmatmul.mubr.bf16.gmra.mxu0 %v9258
        %v9620 = vpop.f32.mrf.mxu0
        %v9621 = vadd.f32 0.0, %v9620
        %v9622 = vpop.f32.mrf.mxu0
        %v9623 = vpop.f32.mrf.mxu0
        %v9624 = vadd.f32 0.0, %v9623
        %v9625 = vpop.f32.mrf.mxu0
        %9626 = vmatprep.mubr.bf16.mxu0 0
        %9627 = vmatmul.mubr.bf16.gmra.mxu0 %v9261
        %v9628 = vpop.f32.mrf.mxu0
        %v9629 = vadd.f32 0.0, %v9628
        %v9630 = vpop.f32.mrf.mxu0
        %v9631 = vpop.f32.mrf.mxu0
        %v9632 = vadd.f32 0.0, %v9631
        %v9633 = vpop.f32.mrf.mxu0
        %9634 = vmatprep.mubr.bf16.mxu0 0
        %9635 = vmatmul.mubr.bf16.gmra.mxu0 %v9264
        %v9636 = vpop.f32.mrf.mxu0
        %v9637 = vadd.f32 0.0, %v9636
        %v9638 = vpop.f32.mrf.mxu0
        %v9639 = vpop.f32.mrf.mxu0
        %v9640 = vadd.f32 0.0, %v9639
        %v9641 = vpop.f32.mrf.mxu0
        %9642 = vmatprep.mubr.bf16.mxu0 0
        %9643 = vmatmul.mubr.bf16.gmra.mxu0 %v9267
        %v9644 = vpop.f32.mrf.mxu0
        %v9645 = vadd.f32 0.0, %v9644
        %v9646 = vpop.f32.mrf.mxu0
        %v9647 = vpop.f32.mrf.mxu0
        %v9648 = vadd.f32 0.0, %v9647
        %v9649 = vpop.f32.mrf.mxu0
        %9650 = vmatprep.mubr.bf16.mxu0 0
        %9651 = vmatmul.mubr.bf16.gmra.mxu0 %v9270
        %v9652 = vpop.f32.mrf.mxu0
        %v9653 = vadd.f32 0.0, %v9652
        %v9654 = vpop.f32.mrf.mxu0
        %v9655 = vpop.f32.mrf.mxu0
        %v9656 = vadd.f32 0.0, %v9655
        %v9657 = vpop.f32.mrf.mxu0
        %9658 = vmatprep.mubr.bf16.mxu0 0
        %9659 = vmatmul.mubr.bf16.gmra.mxu0 %v9273
        %v9660 = vpop.f32.mrf.mxu0
        %v9661 = vadd.f32 0.0, %v9660
        %v9662 = vpop.f32.mrf.mxu0
        %v9663 = vpop.f32.mrf.mxu0
        %v9664 = vadd.f32 0.0, %v9663
        %v9665 = vpop.f32.mrf.mxu0
        %9666 = vmatprep.mubr.bf16.mxu0 0
        %9667 = vmatmul.mubr.bf16.gmra.mxu0 %v9276
        %v9668 = vpop.f32.mrf.mxu0
        %v9669 = vadd.f32 0.0, %v9668
        %v9670 = vpop.f32.mrf.mxu0
        %v9671 = vpop.f32.mrf.mxu0
        %v9672 = vadd.f32 0.0, %v9671
        %v9673 = vpop.f32.mrf.mxu0
        %9674 = vmatprep.mubr.bf16.mxu0 0
        %9675 = vmatmul.mubr.bf16.gmra.mxu0 %v9279
        %v9676 = vpop.f32.mrf.mxu0
        %v9677 = vadd.f32 0.0, %v9676
        %v9678 = vpop.f32.mrf.mxu0
        %v9679 = vpop.f32.mrf.mxu0
        %v9680 = vadd.f32 0.0, %v9679
        %v9681 = vpop.f32.mrf.mxu0
        %9682 = vmatprep.mubr.bf16.mxu0 0
        %9683 = vmatmul.mubr.bf16.gmra.mxu0 %v9282
        %v9684 = vpop.f32.mrf.mxu0
        %v9685 = vadd.f32 0.0, %v9684
        %v9686 = vpop.f32.mrf.mxu0
        %v9687 = vpop.f32.mrf.mxu0
        %v9688 = vadd.f32 0.0, %v9687
        %v9689 = vpop.f32.mrf.mxu0
        %9690 = vmatprep.mubr.bf16.mxu0 0
        %9691 = vmatmul.mubr.bf16.gmra.mxu0 %v9285
        %v9692 = vpop.f32.mrf.mxu0
        %v9693 = vadd.f32 0.0, %v9692
        %v9694 = vpop.f32.mrf.mxu0
        %v9695 = vpop.f32.mrf.mxu0
        %v9696 = vadd.f32 0.0, %v9695
        %v9697 = vpop.f32.mrf.mxu0
        %9698 = vmatprep.mubr.bf16.mxu0 0
        %9699 = vmatmul.mubr.bf16.gmra.mxu0 %v9288
        %v9700 = vpop.f32.mrf.mxu0
        %v9701 = vadd.f32 0.0, %v9700
        %v9702 = vpop.f32.mrf.mxu0
        %v9703 = vpop.f32.mrf.mxu0
        %v9704 = vadd.f32 0.0, %v9703
        %v9705 = vpop.f32.mrf.mxu0
        %9706 = vmatprep.mubr.bf16.mxu0 0
        %9707 = vmatmul.mubr.bf16.gmra.mxu0 %v9291
        %v9708 = vpop.f32.mrf.mxu0
        %v9709 = vadd.f32 0.0, %v9708
        %v9710 = vpop.f32.mrf.mxu0
        %v9711 = vpop.f32.mrf.mxu0
        %v9712 = vadd.f32 0.0, %v9711
        %v9713 = vpop.f32.mrf.mxu0
        %9714 = vmatprep.mubr.bf16.mxu0 0
        %9715 = vmatmul.mubr.bf16.gmra.mxu0 %v9294
        %v9716 = vpop.f32.mrf.mxu0
        %v9717 = vadd.f32 0.0, %v9716
        %v9718 = vpop.f32.mrf.mxu0
        %v9719 = vpop.f32.mrf.mxu0
        %v9720 = vadd.f32 0.0, %v9719
        %v9721 = vpop.f32.mrf.mxu0
        %9722 = vmatprep.mubr.bf16.mxu0 0
        %9723 = vmatmul.mubr.bf16.gmra.mxu0 %v9297
        %v9724 = vpop.f32.mrf.mxu0
        %v9725 = vadd.f32 0.0, %v9724
        %v9726 = vpop.f32.mrf.mxu0
        %v9727 = vpop.f32.mrf.mxu0
        %v9728 = vadd.f32 0.0, %v9727
        %v9729 = vpop.f32.mrf.mxu0
        %9730 = vmatprep.mubr.bf16.mxu0 0
        %9731 = vmatmul.mubr.bf16.gmra.mxu0 %v9300
        %v9732 = vpop.f32.mrf.mxu0
        %v9733 = vadd.f32 0.0, %v9732
        %v9734 = vpop.f32.mrf.mxu0
        %v9735 = vpop.f32.mrf.mxu0
        %v9736 = vadd.f32 0.0, %v9735
        %v9737 = vpop.f32.mrf.mxu0
        %9738 = vmatprep.mubr.bf16.mxu0 0
        %9739 = vmatmul.mubr.bf16.gmra.mxu0 %v9303
        %v9740 = vpop.f32.mrf.mxu0
        %v9741 = vadd.f32 0.0, %v9740
        %v9742 = vpop.f32.mrf.mxu0
        %v9743 = vpop.f32.mrf.mxu0
        %v9744 = vadd.f32 0.0, %v9743
        %v9745 = vpop.f32.mrf.mxu0
        %9746 = vmatprep.mubr.bf16.mxu0 0
        %9747 = vmatmul.mubr.bf16.gmra.mxu0 %v9306
        %v9748 = vpop.f32.mrf.mxu0
        %v9749 = vadd.f32 0.0, %v9748
        %v9750 = vpop.f32.mrf.mxu0
        %v9751 = vpop.f32.mrf.mxu0
        %v9752 = vadd.f32 0.0, %v9751
        %v9753 = vpop.f32.mrf.mxu0
        %9754 = vmatprep.mubr.bf16.mxu0 0
        %9755 = vmatmul.mubr.bf16.gmra.mxu0 %v9309
        %v9756 = vpop.f32.mrf.mxu0
        %v9757 = vadd.f32 0.0, %v9756
        %v9758 = vpop.f32.mrf.mxu0
        %v9759 = vpop.f32.mrf.mxu0
        %v9760 = vadd.f32 0.0, %v9759
        %v9761 = vpop.f32.mrf.mxu0
        %9762 = vmatprep.mubr.bf16.mxu0 0
        %9763 = vmatmul.mubr.bf16.gmra.mxu0 %v9312
        %v9764 = vpop.f32.mrf.mxu0
        %v9765 = vadd.f32 0.0, %v9764
        %v9766 = vpop.f32.mrf.mxu0
        %v9767 = vpop.f32.mrf.mxu0
        %v9768 = vadd.f32 0.0, %v9767
        %v9769 = vpop.f32.mrf.mxu0
        %9770 = vmatprep.mubr.bf16.mxu0 0
        %9771 = vmatmul.mubr.bf16.gmra.mxu0 %v9315
        %v9772 = vpop.f32.mrf.mxu0
        %v9773 = vadd.f32 0.0, %v9772
        %v9774 = vpop.f32.mrf.mxu0
        %v9775 = vpop.f32.mrf.mxu0
        %v9776 = vadd.f32 0.0, %v9775
        %v9777 = vpop.f32.mrf.mxu0
        %9778 = vmatprep.mubr.bf16.mxu0 0
        %9779 = vmatmul.mubr.bf16.gmra.mxu0 %v9318
        %v9780 = vpop.f32.mrf.mxu0
        %v9781 = vadd.f32 0.0, %v9780
        %v9782 = vpop.f32.mrf.mxu0
        %v9783 = vpop.f32.mrf.mxu0
        %v9784 = vadd.f32 0.0, %v9783
        %v9785 = vpop.f32.mrf.mxu0
        %9786 = vmatprep.mubr.bf16.mxu0 0
        %9787 = vmatmul.mubr.bf16.gmra.mxu0 %v9321
        %v9788 = vpop.f32.mrf.mxu0
        %v9789 = vadd.f32 0.0, %v9788
        %v9790 = vpop.f32.mrf.mxu0
        %v9791 = vpop.f32.mrf.mxu0
        %v9792 = vadd.f32 0.0, %v9791
        %v9793 = vpop.f32.mrf.mxu0
        %9794 = vmatprep.mubr.bf16.mxu0 0
        %9795 = vmatmul.mubr.bf16.gmra.mxu0 %v9324
        %v9796 = vpop.f32.mrf.mxu0
        %v9797 = vadd.f32 0.0, %v9796
        %v9798 = vpop.f32.mrf.mxu0
        %v9799 = vpop.f32.mrf.mxu0
        %v9800 = vadd.f32 0.0, %v9799
        %v9801 = vpop.f32.mrf.mxu0
        %9802 = vmatprep.mubr.bf16.mxu0 0
        %9803 = vmatmul.mubr.bf16.gmra.mxu0 %v9327
        %v9804 = vpop.f32.mrf.mxu0
        %v9805 = vadd.f32 0.0, %v9804
        %v9806 = vpop.f32.mrf.mxu0
        %v9807 = vpop.f32.mrf.mxu0
        %v9808 = vadd.f32 0.0, %v9807
        %v9809 = vpop.f32.mrf.mxu0
        %9810 = vmatprep.mubr.bf16.mxu0 0
        %9811 = vmatmul.mubr.bf16.gmra.mxu0 %v9330
        %v9812 = vpop.f32.mrf.mxu0
        %v9813 = vadd.f32 0.0, %v9812
        %v9814 = vpop.f32.mrf.mxu0
        %v9815 = vpop.f32.mrf.mxu0
        %v9816 = vadd.f32 0.0, %v9815
        %v9817 = vpop.f32.mrf.mxu0
        %9818 = vmatprep.mubr.bf16.mxu0 0
        %9819 = vmatmul.mubr.bf16.gmra.mxu0 %v9333
        %v9820 = vpop.f32.mrf.mxu0
        %v9821 = vadd.f32 0.0, %v9820
        %v9822 = vpop.f32.mrf.mxu0
        %v9823 = vpop.f32.mrf.mxu0
        %v9824 = vadd.f32 0.0, %v9823
        %v9825 = vpop.f32.mrf.mxu0
        %9826 = vmatprep.mubr.bf16.mxu0 0
        %9827 = vmatmul.mubr.bf16.gmra.mxu0 %v9336
        %v9828 = vpop.f32.mrf.mxu0
        %v9829 = vadd.f32 0.0, %v9828
        %v9830 = vpop.f32.mrf.mxu0
        %v9831 = vpop.f32.mrf.mxu0
        %v9832 = vpop.f32.mrf.mxu0
        %9833 = vdwg.mxu0
        %v9834 = vadd.f32 %v8164, %v9373
        %v9835 = vadd.f32 %v8165, %v9376
        %v9836 = vadd.f32 %v8166, %v9381
        %v9837 = vadd.f32 %v8167, %v9384
        %v9838 = vadd.f32 %v8168, %v9389
        %v9839 = vadd.f32 %v8169, %v9392
        %v9840 = vadd.f32 %v8170, %v9397
        %v9841 = vadd.f32 %v8171, %v9400
        %v9842 = vadd.f32 %v8172, %v9405
        %v9843 = vadd.f32 %v8173, %v9408
        %v9844 = vadd.f32 %v8174, %v9413
        %v9845 = vadd.f32 %v8175, %v9416
        %v9846 = vadd.f32 %v8176, %v9421
        %v9847 = vadd.f32 %v8177, %v9424
        %v9848 = vadd.f32 %v8178, %v9429
        %v9849 = vadd.f32 %v8179, %v9432
        %v9850 = vadd.f32 %v8180, %v9437
        %v9851 = vadd.f32 %v8181, %v9440
        %v9852 = vadd.f32 %v8182, %v9445
        %v9853 = vadd.f32 %v8183, %v9448
        %v9854 = vadd.f32 %v8184, %v9453
        %v9855 = vadd.f32 %v8185, %v9456
        %v9856 = vadd.f32 %v8186, %v9461
        %v9857 = vadd.f32 %v8187, %v9464
        %v9858 = vadd.f32 %v8188, %v9469
        %v9859 = vadd.f32 %v8189, %v9472
        %v9860 = vadd.f32 %v8190, %v9477
        %v9861 = vadd.f32 %v8191, %v9480
        %v9862 = vadd.f32 %v8192, %v9485
        %v9863 = vadd.f32 %v8193, %v9488
        %v9864 = vadd.f32 %v8194, %v9493
        %v9865 = vadd.f32 %v8195, %v9496
        %v9866 = vadd.f32 %v8196, %v9501
        %v9867 = vadd.f32 %v8197, %v9504
        %v9868 = vadd.f32 %v8198, %v9509
        %v9869 = vadd.f32 %v8199, %v9512
        %v9870 = vadd.f32 %v8200, %v9517
        %v9871 = vadd.f32 %v8201, %v9520
        %v9872 = vadd.f32 %v8202, %v9525
        %v9873 = vadd.f32 %v8203, %v9528
        %v9874 = vadd.f32 %v8204, %v9533
        %v9875 = vadd.f32 %v8205, %v9536
        %v9876 = vadd.f32 %v8206, %v9541
        %v9877 = vadd.f32 %v8207, %v9544
        %v9878 = vadd.f32 %v8208, %v9549
        %v9879 = vadd.f32 %v8209, %v9552
        %v9880 = vadd.f32 %v8210, %v9557
        %v9881 = vadd.f32 %v8211, %v9560
        %v9882 = vadd.f32 %v8212, %v9565
        %v9883 = vadd.f32 %v8213, %v9568
        %v9884 = vadd.f32 %v8214, %v9573
        %v9885 = vadd.f32 %v8215, %v9576
        %v9886 = vadd.f32 %v8216, %v9581
        %v9887 = vadd.f32 %v8217, %v9584
        %v9888 = vadd.f32 %v8218, %v9589
        %v9889 = vadd.f32 %v8219, %v9592
        %v9890 = vadd.f32 %v8220, %v9597
        %v9891 = vadd.f32 %v8221, %v9600
        %v9892 = vadd.f32 %v8222, %v9605
        %v9893 = vadd.f32 %v8223, %v9608
        %v9894 = vadd.f32 %v8224, %v9613
        %v9895 = vadd.f32 %v8225, %v9616
        %v9896 = vadd.f32 %v8226, %v9621
        %v9897 = vadd.f32 %v8227, %v9624
        %v9898 = vadd.f32 %v8228, %v9629
        %v9899 = vadd.f32 %v8229, %v9632
        %v9900 = vadd.f32 %v8230, %v9637
        %v9901 = vadd.f32 %v8231, %v9640
        %v9902 = vadd.f32 %v8232, %v9645
        %v9903 = vadd.f32 %v8233, %v9648
        %v9904 = vadd.f32 %v8234, %v9653
        %v9905 = vadd.f32 %v8235, %v9656
        %v9906 = vadd.f32 %v8236, %v9661
        %v9907 = vadd.f32 %v8237, %v9664
        %v9908 = vadd.f32 %v8238, %v9669
        %v9909 = vadd.f32 %v8239, %v9672
        %v9910 = vadd.f32 %v8240, %v9677
        %v9911 = vadd.f32 %v8241, %v9680
        %v9912 = vadd.f32 %v8242, %v9685
        %v9913 = vadd.f32 %v8243, %v9688
        %v9914 = vadd.f32 %v8244, %v9693
        %v9915 = vadd.f32 %v8245, %v9696
        %v9916 = vadd.f32 %v8246, %v9701
        %v9917 = vadd.f32 %v8247, %v9704
        %v9918 = vadd.f32 %v8248, %v9709
        %v9919 = vadd.f32 %v8249, %v9712
        %v9920 = vadd.f32 %v8250, %v9717
        %v9921 = vadd.f32 %v8251, %v9720
        %v9922 = vadd.f32 %v8252, %v9725
        %v9923 = vadd.f32 %v8253, %v9728
        %v9924 = vadd.f32 %v8254, %v9733
        %v9925 = vadd.f32 %v8255, %v9736
        %v9926 = vadd.f32 %v8256, %v9741
        %v9927 = vadd.f32 %v8257, %v9744
        %v9928 = vadd.f32 %v8258, %v9749
        %v9929 = vadd.f32 %v8259, %v9752
        %v9930 = vadd.f32 %v8260, %v9757
        %v9931 = vadd.f32 %v8261, %v9760
        %v9932 = vadd.f32 %v8262, %v9765
        %v9933 = vadd.f32 %v8263, %v9768
        %v9934 = vadd.f32 %v8264, %v9773
        %v9935 = vadd.f32 %v8265, %v9776
        %v9936 = vadd.f32 %v8266, %v9781
        %v9937 = vadd.f32 %v8267, %v9784
        %v9938 = vadd.f32 %v8268, %v9789
        %v9939 = vadd.f32 %v8269, %v9792
        %v9940 = vadd.f32 %v8270, %v9797
        %v9941 = vadd.f32 %v8271, %v9800
        %v9942 = vadd.f32 %v8272, %v9805
        %v9943 = vadd.f32 %v8273, %v9808
        %v9944 = vadd.f32 %v8274, %v9813
        %v9945 = vadd.f32 %v8275, %v9816
        %v9946 = vadd.f32 %v8276, %v9821
        %v9947 = vadd.f32 %v8277, %v9824
        %v9948 = vadd.f32 %v8278, %v9829
        %v9949 = vld [vmem:[%s169 + $0x10] sm:$0xe]
        %v9950 = vld [vmem:[%s1 + $0x80] sm:$0xf]
        %v9951 = vld [vmem:[%s1 + $0x84] sm:$0xf]
        %v9952 = vld [vmem:[%s1 + $0x88] sm:$0xf]
        %v9953 = vld [vmem:[%s1 + $0x8c] sm:$0xf]
        %v9955 = vunpack.c.l.b16 %v9949
        %v9956 = vpack.c.b16 %v8516, %v9955
        %v9957 = vrot.slane %v9956, 1
        %v9958 = vrot.slane %v8632, 1
        %v9959 = vsel %vm2368, %v9957, %v9958
        %v9960 = vrot.slane %v8633, 1
        %v9961 = vsel %vm2368, %v9958, %v9960
        %v9962 = vrot.slane %v8634, 1
        %v9963 = vsel %vm2368, %v9960, %v9962
        %v9964 = vrot.slane %v8635, 1
        %v9965 = vsel %vm2368, %v9962, %v9964
        %v9966 = vrot.slane %v8636, 1
        %v9967 = vsel %vm2368, %v9964, %v9966
        %v9968 = vrot.slane %v8637, 1
        %v9969 = vsel %vm2368, %v9966, %v9968
        %v9970 = vrot.slane %v8638, 1
        %v9971 = vsel %vm2368, %v9968, %v9970
        %v9972 = vrot.slane %v8639, 1
        %v9973 = vsel %vm2368, %v9970, %v9972
        %v9974 = vrot.slane %v8640, 1
        %v9975 = vsel %vm2368, %v9972, %v9974
        %v9976 = vrot.slane %v8641, 1
        %v9977 = vsel %vm2368, %v9974, %v9976
        %v9978 = vrot.slane %v8642, 1
        %v9979 = vsel %vm2368, %v9976, %v9978
        %v9980 = vrot.slane %v8643, 1
        %v9981 = vsel %vm2368, %v9978, %v9980
        %v9982 = vrot.slane %v8644, 1
        %v9983 = vsel %vm2368, %v9980, %v9982
        %v9984 = vrot.slane %v8645, 1
        %v9985 = vsel %vm2368, %v9982, %v9984
        %v9986 = vrot.slane %v8646, 1
        %v9987 = vsel %vm2368, %v9984, %v9986
        %v9988 = vrot.slane %v8647, 1
        %v9989 = vsel %vm2368, %v9986, %v9988
        %v9990 = vrot.slane %v8648, 1
        %v9991 = vsel %vm2368, %v9988, %v9990
        %v9992 = vrot.slane %v8649, 1
        %v9993 = vsel %vm2368, %v9990, %v9992
        %v9994 = vrot.slane %v8650, 1
        %v9995 = vsel %vm2368, %v9992, %v9994
        %v9996 = vrot.slane %v8651, 1
        %v9997 = vsel %vm2368, %v9994, %v9996
        %v9998 = vrot.slane %v8652, 1
        %v9999 = vsel %vm2368, %v9996, %v9998
        %v10000 = vrot.slane %v8653, 1
        %v10001 = vsel %vm2368, %v9998, %v10000
        %v10002 = vrot.slane %v8654, 1
        %v10003 = vsel %vm2368, %v10000, %v10002
        %v10004 = vrot.slane %v8655, 1
        %v10005 = vsel %vm2368, %v10002, %v10004
        %v10006 = vrot.slane %v8656, 1
        %v10007 = vsel %vm2368, %v10004, %v10006
        %v10008 = vrot.slane %v8657, 1
        %v10009 = vsel %vm2368, %v10006, %v10008
        %v10010 = vrot.slane %v8658, 1
        %v10011 = vsel %vm2368, %v10008, %v10010
        %v10012 = vrot.slane %v8659, 1
        %v10013 = vsel %vm2368, %v10010, %v10012
        %v10014 = vrot.slane %v8660, 1
        %v10015 = vsel %vm2368, %v10012, %v10014
        %v10016 = vrot.slane %v8661, 1
        %v10017 = vsel %vm2368, %v10014, %v10016
        %v10018 = vrot.slane %v8662, 1
        %v10019 = vsel %vm2368, %v10016, %v10018
        %v10020 = vrot.slane %v8663, 1
        %v10021 = vsel %vm2368, %v10018, %v10020
        %v10022 = vrot.slane %v8664, 1
        %v10023 = vsel %vm2368, %v10020, %v10022
        %v10024 = vrot.slane %v8665, 1
        %v10025 = vsel %vm2368, %v10022, %v10024
        %v10026 = vrot.slane %v8666, 1
        %v10027 = vsel %vm2368, %v10024, %v10026
        %v10028 = vrot.slane %v8667, 1
        %v10029 = vsel %vm2368, %v10026, %v10028
        %v10030 = vrot.slane %v8668, 1
        %v10031 = vsel %vm2368, %v10028, %v10030
        %v10032 = vrot.slane %v8669, 1
        %v10033 = vsel %vm2368, %v10030, %v10032
        %v10034 = vrot.slane %v8670, 1
        %v10035 = vsel %vm2368, %v10032, %v10034
        %v10036 = vrot.slane %v8671, 1
        %v10037 = vsel %vm2368, %v10034, %v10036
        %v10038 = vrot.slane %v8672, 1
        %v10039 = vsel %vm2368, %v10036, %v10038
        %v10040 = vrot.slane %v8673, 1
        %v10041 = vsel %vm2368, %v10038, %v10040
        %v10042 = vrot.slane %v8674, 1
        %v10043 = vsel %vm2368, %v10040, %v10042
        %v10044 = vrot.slane %v8675, 1
        %v10045 = vsel %vm2368, %v10042, %v10044
        %v10046 = vrot.slane %v8676, 1
        %v10047 = vsel %vm2368, %v10044, %v10046
        %v10048 = vrot.slane %v8677, 1
        %v10049 = vsel %vm2368, %v10046, %v10048
        %v10050 = vrot.slane %v8678, 1
        %v10051 = vsel %vm2368, %v10048, %v10050
        %v10052 = vrot.slane %v8679, 1
        %v10053 = vsel %vm2368, %v10050, %v10052
        %v10054 = vrot.slane %v8680, 1
        %v10055 = vsel %vm2368, %v10052, %v10054
        %v10056 = vrot.slane %v8681, 1
        %v10057 = vsel %vm2368, %v10054, %v10056
        %v10058 = vrot.slane %v8682, 1
        %v10059 = vsel %vm2368, %v10056, %v10058
        %v10060 = vrot.slane %v8683, 1
        %v10061 = vsel %vm2368, %v10058, %v10060
        %v10062 = vrot.slane %v8684, 1
        %v10063 = vsel %vm2368, %v10060, %v10062
        %v10064 = vrot.slane %v8685, 1
        %v10065 = vsel %vm2368, %v10062, %v10064
        %v10066 = vrot.slane %v8686, 1
        %v10067 = vsel %vm2368, %v10064, %v10066
        %v10068 = vrot.slane %v8687, 1
        %v10069 = vsel %vm2368, %v10066, %v10068
        %v10070 = vrot.slane %v8688, 1
        %v10071 = vsel %vm2368, %v10068, %v10070
        %v10076 = vunpack.c.l.b16 %v9950
        %v10077 = vunpack.c.l.b16 %v9951
        %v10078 = vunpack.c.l.b16 %v9952
        %v10079 = vunpack.c.l.b16 %v9953
        %v10080 = vpack.c.b16 %v10077, %v10076
        %v10081 = vpack.c.b16 %v10079, %v10078
        %v10085 = vsel %vm1063, %v9959, 0
        %v10088 = vsel %vm1063, %v9961, 0
        %v10091 = vsel %vm1063, %v9963, 0
        %v10094 = vsel %vm1063, %v9965, 0
        %v10097 = vsel %vm1063, %v9967, 0
        %v10100 = vsel %vm1063, %v9969, 0
        %v10103 = vsel %vm1063, %v9971, 0
        %v10106 = vsel %vm1063, %v9973, 0
        %v10109 = vsel %vm1063, %v9975, 0
        %v10112 = vsel %vm1063, %v9977, 0
        %v10115 = vsel %vm1063, %v9979, 0
        %v10118 = vsel %vm1063, %v9981, 0
        %v10121 = vsel %vm1063, %v9983, 0
        %v10124 = vsel %vm1063, %v9985, 0
        %v10127 = vsel %vm1063, %v9987, 0
        %v10130 = vsel %vm1063, %v9989, 0
        %v10133 = vsel %vm1063, %v9991, 0
        %v10136 = vsel %vm1063, %v9993, 0
        %v10139 = vsel %vm1063, %v9995, 0
        %v10142 = vsel %vm1063, %v9997, 0
        %v10145 = vsel %vm1063, %v9999, 0
        %v10148 = vsel %vm1063, %v10001, 0
        %v10151 = vsel %vm1063, %v10003, 0
        %v10154 = vsel %vm1063, %v10005, 0
        %v10157 = vsel %vm1063, %v10007, 0
        %v10160 = vsel %vm1063, %v10009, 0
        %v10163 = vsel %vm1063, %v10011, 0
        %v10166 = vsel %vm1063, %v10013, 0
        %v10169 = vsel %vm1063, %v10015, 0
        %v10172 = vsel %vm1063, %v10017, 0
        %v10175 = vsel %vm1063, %v10019, 0
        %v10178 = vsel %vm1063, %v10021, 0
        %v10181 = vsel %vm1063, %v10023, 0
        %v10184 = vsel %vm1063, %v10025, 0
        %v10187 = vsel %vm1063, %v10027, 0
        %v10190 = vsel %vm1063, %v10029, 0
        %v10193 = vsel %vm1063, %v10031, 0
        %v10196 = vsel %vm1063, %v10033, 0
        %v10199 = vsel %vm1063, %v10035, 0
        %v10202 = vsel %vm1063, %v10037, 0
        %v10205 = vsel %vm1063, %v10039, 0
        %v10208 = vsel %vm1063, %v10041, 0
        %v10211 = vsel %vm1063, %v10043, 0
        %v10214 = vsel %vm1063, %v10045, 0
        %v10217 = vsel %vm1063, %v10047, 0
        %v10220 = vsel %vm1063, %v10049, 0
        %v10223 = vsel %vm1063, %v10051, 0
        %v10226 = vsel %vm1063, %v10053, 0
        %v10229 = vsel %vm1063, %v10055, 0
        %v10232 = vsel %vm1063, %v10057, 0
        %v10235 = vsel %vm1063, %v10059, 0
        %v10238 = vsel %vm1063, %v10061, 0
        %v10241 = vsel %vm1063, %v10063, 0
        %v10244 = vsel %vm1063, %v10065, 0
        %v10247 = vsel %vm1063, %v10067, 0
        %v10250 = vsel %vm1063, %v10069, 0
        %v10253 = vsel %vm1063, %v10071, 0
        %v10256 = vsel %vm1063, %v10070, 0
        %10258 = vmatprep.subr.bf16.mxu0 0
        %10259 = vmatpush1.bf16.msra.mxu0 0
        %10260 = vmatprep.subr.bf16.mxu0 0
        %10261 = vmatpush1.bf16.msra.mxu0 0
        %10262 = vmatprep.subr.bf16.mxu0 0
        %10263 = vmatpush1.bf16.msra.mxu0 0
        %10264 = vmatprep.subr.bf16.mxu0 0
        %10265 = vmatpush1.bf16.msra.mxu0 0
        %10266 = vmatprep.subr.bf16.mxu0 0
        %10267 = vmatpush1.bf16.msra.mxu0 0
        %10268 = vmatprep.subr.bf16.mxu0 0
        %10269 = vmatpush1.bf16.msra.mxu0 0
        %10270 = vmatprep.subr.bf16.mxu0 0
        %10271 = vmatpush1.bf16.msra.mxu0 %v10081
        %10272 = vmatprep.subr.bf16.mxu0 0
        %10273 = vmatpush1.bf16.msra.mxu0 %v10080
        %10274 = vmatprep.subr.bf16.mxu0 0
        %10275 = vmatpush2.bf16.msra.mxu0 0
        %10276 = vmatprep.subr.bf16.mxu0 0
        %10277 = vmatpush2.bf16.msra.mxu0 0
        %10278 = vmatprep.subr.bf16.mxu0 0
        %10279 = vmatpush2.bf16.msra.mxu0 0
        %10280 = vmatprep.subr.bf16.mxu0 0
        %10281 = vmatpush2.bf16.msra.mxu0 0
        %10282 = vmatprep.subr.bf16.mxu0 0
        %10283 = vmatpush2.bf16.msra.mxu0 0
        %10284 = vmatprep.subr.bf16.mxu0 0
        %10285 = vmatpush2.bf16.msra.mxu0 0
        %10286 = vmatprep.subr.bf16.mxu0 0
        %10287 = vmatpush2.bf16.msra.mxu0 0
        %10288 = vmatprep.subr.bf16.mxu0 0
        %10289 = vmatpush2.bf16.msra.mxu0 0
        %10290 = vmatprep.mubr.bf16.mxu0 0
        %10291 = vmatmul.mubr.bf16.gmra.mxu0 %v10085
        %v10292 = vpop.f32.mrf.mxu0
        %v10293 = vadd.f32 0.0, %v10292
        %v10294 = vpop.f32.mrf.mxu0
        %v10295 = vpop.f32.mrf.mxu0
        %v10296 = vadd.f32 0.0, %v10295
        %v10297 = vpop.f32.mrf.mxu0
        %10298 = vmatprep.mubr.bf16.mxu0 0
        %10299 = vmatmul.mubr.bf16.gmra.mxu0 %v10088
        %v10300 = vpop.f32.mrf.mxu0
        %v10301 = vadd.f32 0.0, %v10300
        %v10302 = vpop.f32.mrf.mxu0
        %v10303 = vpop.f32.mrf.mxu0
        %v10304 = vadd.f32 0.0, %v10303
        %v10305 = vpop.f32.mrf.mxu0
        %10306 = vmatprep.mubr.bf16.mxu0 0
        %10307 = vmatmul.mubr.bf16.gmra.mxu0 %v10091
        %v10308 = vpop.f32.mrf.mxu0
        %v10309 = vadd.f32 0.0, %v10308
        %v10310 = vpop.f32.mrf.mxu0
        %v10311 = vpop.f32.mrf.mxu0
        %v10312 = vadd.f32 0.0, %v10311
        %v10313 = vpop.f32.mrf.mxu0
        %10314 = vmatprep.mubr.bf16.mxu0 0
        %10315 = vmatmul.mubr.bf16.gmra.mxu0 %v10094
        %v10316 = vpop.f32.mrf.mxu0
        %v10317 = vadd.f32 0.0, %v10316
        %v10318 = vpop.f32.mrf.mxu0
        %v10319 = vpop.f32.mrf.mxu0
        %v10320 = vadd.f32 0.0, %v10319
        %v10321 = vpop.f32.mrf.mxu0
        %10322 = vmatprep.mubr.bf16.mxu0 0
        %10323 = vmatmul.mubr.bf16.gmra.mxu0 %v10097
        %v10324 = vpop.f32.mrf.mxu0
        %v10325 = vadd.f32 0.0, %v10324
        %v10326 = vpop.f32.mrf.mxu0
        %v10327 = vpop.f32.mrf.mxu0
        %v10328 = vadd.f32 0.0, %v10327
        %v10329 = vpop.f32.mrf.mxu0
        %10330 = vmatprep.mubr.bf16.mxu0 0
        %10331 = vmatmul.mubr.bf16.gmra.mxu0 %v10100
        %v10332 = vpop.f32.mrf.mxu0
        %v10333 = vadd.f32 0.0, %v10332
        %v10334 = vpop.f32.mrf.mxu0
        %v10335 = vpop.f32.mrf.mxu0
        %v10336 = vadd.f32 0.0, %v10335
        %v10337 = vpop.f32.mrf.mxu0
        %10338 = vmatprep.mubr.bf16.mxu0 0
        %10339 = vmatmul.mubr.bf16.gmra.mxu0 %v10103
        %v10340 = vpop.f32.mrf.mxu0
        %v10341 = vadd.f32 0.0, %v10340
        %v10342 = vpop.f32.mrf.mxu0
        %v10343 = vpop.f32.mrf.mxu0
        %v10344 = vadd.f32 0.0, %v10343
        %v10345 = vpop.f32.mrf.mxu0
        %10346 = vmatprep.mubr.bf16.mxu0 0
        %10347 = vmatmul.mubr.bf16.gmra.mxu0 %v10106
        %v10348 = vpop.f32.mrf.mxu0
        %v10349 = vadd.f32 0.0, %v10348
        %v10350 = vpop.f32.mrf.mxu0
        %v10351 = vpop.f32.mrf.mxu0
        %v10352 = vadd.f32 0.0, %v10351
        %v10353 = vpop.f32.mrf.mxu0
        %10354 = vmatprep.mubr.bf16.mxu0 0
        %10355 = vmatmul.mubr.bf16.gmra.mxu0 %v10109
        %v10356 = vpop.f32.mrf.mxu0
        %v10357 = vadd.f32 0.0, %v10356
        %v10358 = vpop.f32.mrf.mxu0
        %v10359 = vpop.f32.mrf.mxu0
        %v10360 = vadd.f32 0.0, %v10359
        %v10361 = vpop.f32.mrf.mxu0
        %10362 = vmatprep.mubr.bf16.mxu0 0
        %10363 = vmatmul.mubr.bf16.gmra.mxu0 %v10112
        %v10364 = vpop.f32.mrf.mxu0
        %v10365 = vadd.f32 0.0, %v10364
        %v10366 = vpop.f32.mrf.mxu0
        %v10367 = vpop.f32.mrf.mxu0
        %v10368 = vadd.f32 0.0, %v10367
        %v10369 = vpop.f32.mrf.mxu0
        %10370 = vmatprep.mubr.bf16.mxu0 0
        %10371 = vmatmul.mubr.bf16.gmra.mxu0 %v10115
        %v10372 = vpop.f32.mrf.mxu0
        %v10373 = vadd.f32 0.0, %v10372
        %v10374 = vpop.f32.mrf.mxu0
        %v10375 = vpop.f32.mrf.mxu0
        %v10376 = vadd.f32 0.0, %v10375
        %v10377 = vpop.f32.mrf.mxu0
        %10378 = vmatprep.mubr.bf16.mxu0 0
        %10379 = vmatmul.mubr.bf16.gmra.mxu0 %v10118
        %v10380 = vpop.f32.mrf.mxu0
        %v10381 = vadd.f32 0.0, %v10380
        %v10382 = vpop.f32.mrf.mxu0
        %v10383 = vpop.f32.mrf.mxu0
        %v10384 = vadd.f32 0.0, %v10383
        %v10385 = vpop.f32.mrf.mxu0
        %10386 = vmatprep.mubr.bf16.mxu0 0
        %10387 = vmatmul.mubr.bf16.gmra.mxu0 %v10121
        %v10388 = vpop.f32.mrf.mxu0
        %v10389 = vadd.f32 0.0, %v10388
        %v10390 = vpop.f32.mrf.mxu0
        %v10391 = vpop.f32.mrf.mxu0
        %v10392 = vadd.f32 0.0, %v10391
        %v10393 = vpop.f32.mrf.mxu0
        %10394 = vmatprep.mubr.bf16.mxu0 0
        %10395 = vmatmul.mubr.bf16.gmra.mxu0 %v10124
        %v10396 = vpop.f32.mrf.mxu0
        %v10397 = vadd.f32 0.0, %v10396
        %v10398 = vpop.f32.mrf.mxu0
        %v10399 = vpop.f32.mrf.mxu0
        %v10400 = vadd.f32 0.0, %v10399
        %v10401 = vpop.f32.mrf.mxu0
        %10402 = vmatprep.mubr.bf16.mxu0 0
        %10403 = vmatmul.mubr.bf16.gmra.mxu0 %v10127
        %v10404 = vpop.f32.mrf.mxu0
        %v10405 = vadd.f32 0.0, %v10404
        %v10406 = vpop.f32.mrf.mxu0
        %v10407 = vpop.f32.mrf.mxu0
        %v10408 = vadd.f32 0.0, %v10407
        %v10409 = vpop.f32.mrf.mxu0
        %10410 = vmatprep.mubr.bf16.mxu0 0
        %10411 = vmatmul.mubr.bf16.gmra.mxu0 %v10130
        %v10412 = vpop.f32.mrf.mxu0
        %v10413 = vadd.f32 0.0, %v10412
        %v10414 = vpop.f32.mrf.mxu0
        %v10415 = vpop.f32.mrf.mxu0
        %v10416 = vadd.f32 0.0, %v10415
        %v10417 = vpop.f32.mrf.mxu0
        %10418 = vmatprep.mubr.bf16.mxu0 0
        %10419 = vmatmul.mubr.bf16.gmra.mxu0 %v10133
        %v10420 = vpop.f32.mrf.mxu0
        %v10421 = vadd.f32 0.0, %v10420
        %v10422 = vpop.f32.mrf.mxu0
        %v10423 = vpop.f32.mrf.mxu0
        %v10424 = vadd.f32 0.0, %v10423
        %v10425 = vpop.f32.mrf.mxu0
        %10426 = vmatprep.mubr.bf16.mxu0 0
        %10427 = vmatmul.mubr.bf16.gmra.mxu0 %v10136
        %v10428 = vpop.f32.mrf.mxu0
        %v10429 = vadd.f32 0.0, %v10428
        %v10430 = vpop.f32.mrf.mxu0
        %v10431 = vpop.f32.mrf.mxu0
        %v10432 = vadd.f32 0.0, %v10431
        %v10433 = vpop.f32.mrf.mxu0
        %10434 = vmatprep.mubr.bf16.mxu0 0
        %10435 = vmatmul.mubr.bf16.gmra.mxu0 %v10139
        %v10436 = vpop.f32.mrf.mxu0
        %v10437 = vadd.f32 0.0, %v10436
        %v10438 = vpop.f32.mrf.mxu0
        %v10439 = vpop.f32.mrf.mxu0
        %v10440 = vadd.f32 0.0, %v10439
        %v10441 = vpop.f32.mrf.mxu0
        %10442 = vmatprep.mubr.bf16.mxu0 0
        %10443 = vmatmul.mubr.bf16.gmra.mxu0 %v10142
        %v10444 = vpop.f32.mrf.mxu0
        %v10445 = vadd.f32 0.0, %v10444
        %v10446 = vpop.f32.mrf.mxu0
        %v10447 = vpop.f32.mrf.mxu0
        %v10448 = vadd.f32 0.0, %v10447
        %v10449 = vpop.f32.mrf.mxu0
        %10450 = vmatprep.mubr.bf16.mxu0 0
        %10451 = vmatmul.mubr.bf16.gmra.mxu0 %v10145
        %v10452 = vpop.f32.mrf.mxu0
        %v10453 = vadd.f32 0.0, %v10452
        %v10454 = vpop.f32.mrf.mxu0
        %v10455 = vpop.f32.mrf.mxu0
        %v10456 = vadd.f32 0.0, %v10455
        %v10457 = vpop.f32.mrf.mxu0
        %10458 = vmatprep.mubr.bf16.mxu0 0
        %10459 = vmatmul.mubr.bf16.gmra.mxu0 %v10148
        %v10460 = vpop.f32.mrf.mxu0
        %v10461 = vadd.f32 0.0, %v10460
        %v10462 = vpop.f32.mrf.mxu0
        %v10463 = vpop.f32.mrf.mxu0
        %v10464 = vadd.f32 0.0, %v10463
        %v10465 = vpop.f32.mrf.mxu0
        %10466 = vmatprep.mubr.bf16.mxu0 0
        %10467 = vmatmul.mubr.bf16.gmra.mxu0 %v10151
        %v10468 = vpop.f32.mrf.mxu0
        %v10469 = vadd.f32 0.0, %v10468
        %v10470 = vpop.f32.mrf.mxu0
        %v10471 = vpop.f32.mrf.mxu0
        %v10472 = vadd.f32 0.0, %v10471
        %v10473 = vpop.f32.mrf.mxu0
        %10474 = vmatprep.mubr.bf16.mxu0 0
        %10475 = vmatmul.mubr.bf16.gmra.mxu0 %v10154
        %v10476 = vpop.f32.mrf.mxu0
        %v10477 = vadd.f32 0.0, %v10476
        %v10478 = vpop.f32.mrf.mxu0
        %v10479 = vpop.f32.mrf.mxu0
        %v10480 = vadd.f32 0.0, %v10479
        %v10481 = vpop.f32.mrf.mxu0
        %10482 = vmatprep.mubr.bf16.mxu0 0
        %10483 = vmatmul.mubr.bf16.gmra.mxu0 %v10157
        %v10484 = vpop.f32.mrf.mxu0
        %v10485 = vadd.f32 0.0, %v10484
        %v10486 = vpop.f32.mrf.mxu0
        %v10487 = vpop.f32.mrf.mxu0
        %v10488 = vadd.f32 0.0, %v10487
        %v10489 = vpop.f32.mrf.mxu0
        %10490 = vmatprep.mubr.bf16.mxu0 0
        %10491 = vmatmul.mubr.bf16.gmra.mxu0 %v10160
        %v10492 = vpop.f32.mrf.mxu0
        %v10493 = vadd.f32 0.0, %v10492
        %v10494 = vpop.f32.mrf.mxu0
        %v10495 = vpop.f32.mrf.mxu0
        %v10496 = vadd.f32 0.0, %v10495
        %v10497 = vpop.f32.mrf.mxu0
        %10498 = vmatprep.mubr.bf16.mxu0 0
        %10499 = vmatmul.mubr.bf16.gmra.mxu0 %v10163
        %v10500 = vpop.f32.mrf.mxu0
        %v10501 = vadd.f32 0.0, %v10500
        %v10502 = vpop.f32.mrf.mxu0
        %v10503 = vpop.f32.mrf.mxu0
        %v10504 = vadd.f32 0.0, %v10503
        %v10505 = vpop.f32.mrf.mxu0
        %10506 = vmatprep.mubr.bf16.mxu0 0
        %10507 = vmatmul.mubr.bf16.gmra.mxu0 %v10166
        %v10508 = vpop.f32.mrf.mxu0
        %v10509 = vadd.f32 0.0, %v10508
        %v10510 = vpop.f32.mrf.mxu0
        %v10511 = vpop.f32.mrf.mxu0
        %v10512 = vadd.f32 0.0, %v10511
        %v10513 = vpop.f32.mrf.mxu0
        %10514 = vmatprep.mubr.bf16.mxu0 0
        %10515 = vmatmul.mubr.bf16.gmra.mxu0 %v10169
        %v10516 = vpop.f32.mrf.mxu0
        %v10517 = vadd.f32 0.0, %v10516
        %v10518 = vpop.f32.mrf.mxu0
        %v10519 = vpop.f32.mrf.mxu0
        %v10520 = vadd.f32 0.0, %v10519
        %v10521 = vpop.f32.mrf.mxu0
        %10522 = vmatprep.mubr.bf16.mxu0 0
        %10523 = vmatmul.mubr.bf16.gmra.mxu0 %v10172
        %v10524 = vpop.f32.mrf.mxu0
        %v10525 = vadd.f32 0.0, %v10524
        %v10526 = vpop.f32.mrf.mxu0
        %v10527 = vpop.f32.mrf.mxu0
        %v10528 = vadd.f32 0.0, %v10527
        %v10529 = vpop.f32.mrf.mxu0
        %10530 = vmatprep.mubr.bf16.mxu0 0
        %10531 = vmatmul.mubr.bf16.gmra.mxu0 %v10175
        %v10532 = vpop.f32.mrf.mxu0
        %v10533 = vadd.f32 0.0, %v10532
        %v10534 = vpop.f32.mrf.mxu0
        %v10535 = vpop.f32.mrf.mxu0
        %v10536 = vadd.f32 0.0, %v10535
        %v10537 = vpop.f32.mrf.mxu0
        %10538 = vmatprep.mubr.bf16.mxu0 0
        %10539 = vmatmul.mubr.bf16.gmra.mxu0 %v10178
        %v10540 = vpop.f32.mrf.mxu0
        %v10541 = vadd.f32 0.0, %v10540
        %v10542 = vpop.f32.mrf.mxu0
        %v10543 = vpop.f32.mrf.mxu0
        %v10544 = vadd.f32 0.0, %v10543
        %v10545 = vpop.f32.mrf.mxu0
        %10546 = vmatprep.mubr.bf16.mxu0 0
        %10547 = vmatmul.mubr.bf16.gmra.mxu0 %v10181
        %v10548 = vpop.f32.mrf.mxu0
        %v10549 = vadd.f32 0.0, %v10548
        %v10550 = vpop.f32.mrf.mxu0
        %v10551 = vpop.f32.mrf.mxu0
        %v10552 = vadd.f32 0.0, %v10551
        %v10553 = vpop.f32.mrf.mxu0
        %10554 = vmatprep.mubr.bf16.mxu0 0
        %10555 = vmatmul.mubr.bf16.gmra.mxu0 %v10184
        %v10556 = vpop.f32.mrf.mxu0
        %v10557 = vadd.f32 0.0, %v10556
        %v10558 = vpop.f32.mrf.mxu0
        %v10559 = vpop.f32.mrf.mxu0
        %v10560 = vadd.f32 0.0, %v10559
        %v10561 = vpop.f32.mrf.mxu0
        %10562 = vmatprep.mubr.bf16.mxu0 0
        %10563 = vmatmul.mubr.bf16.gmra.mxu0 %v10187
        %v10564 = vpop.f32.mrf.mxu0
        %v10565 = vadd.f32 0.0, %v10564
        %v10566 = vpop.f32.mrf.mxu0
        %v10567 = vpop.f32.mrf.mxu0
        %v10568 = vadd.f32 0.0, %v10567
        %v10569 = vpop.f32.mrf.mxu0
        %10570 = vmatprep.mubr.bf16.mxu0 0
        %10571 = vmatmul.mubr.bf16.gmra.mxu0 %v10190
        %v10572 = vpop.f32.mrf.mxu0
        %v10573 = vadd.f32 0.0, %v10572
        %v10574 = vpop.f32.mrf.mxu0
        %v10575 = vpop.f32.mrf.mxu0
        %v10576 = vadd.f32 0.0, %v10575
        %v10577 = vpop.f32.mrf.mxu0
        %10578 = vmatprep.mubr.bf16.mxu0 0
        %10579 = vmatmul.mubr.bf16.gmra.mxu0 %v10193
        %v10580 = vpop.f32.mrf.mxu0
        %v10581 = vadd.f32 0.0, %v10580
        %v10582 = vpop.f32.mrf.mxu0
        %v10583 = vpop.f32.mrf.mxu0
        %v10584 = vadd.f32 0.0, %v10583
        %v10585 = vpop.f32.mrf.mxu0
        %10586 = vmatprep.mubr.bf16.mxu0 0
        %10587 = vmatmul.mubr.bf16.gmra.mxu0 %v10196
        %v10588 = vpop.f32.mrf.mxu0
        %v10589 = vadd.f32 0.0, %v10588
        %v10590 = vpop.f32.mrf.mxu0
        %v10591 = vpop.f32.mrf.mxu0
        %v10592 = vadd.f32 0.0, %v10591
        %v10593 = vpop.f32.mrf.mxu0
        %10594 = vmatprep.mubr.bf16.mxu0 0
        %10595 = vmatmul.mubr.bf16.gmra.mxu0 %v10199
        %v10596 = vpop.f32.mrf.mxu0
        %v10597 = vadd.f32 0.0, %v10596
        %v10598 = vpop.f32.mrf.mxu0
        %v10599 = vpop.f32.mrf.mxu0
        %v10600 = vadd.f32 0.0, %v10599
        %v10601 = vpop.f32.mrf.mxu0
        %10602 = vmatprep.mubr.bf16.mxu0 0
        %10603 = vmatmul.mubr.bf16.gmra.mxu0 %v10202
        %v10604 = vpop.f32.mrf.mxu0
        %v10605 = vadd.f32 0.0, %v10604
        %v10606 = vpop.f32.mrf.mxu0
        %v10607 = vpop.f32.mrf.mxu0
        %v10608 = vadd.f32 0.0, %v10607
        %v10609 = vpop.f32.mrf.mxu0
        %10610 = vmatprep.mubr.bf16.mxu0 0
        %10611 = vmatmul.mubr.bf16.gmra.mxu0 %v10205
        %v10612 = vpop.f32.mrf.mxu0
        %v10613 = vadd.f32 0.0, %v10612
        %v10614 = vpop.f32.mrf.mxu0
        %v10615 = vpop.f32.mrf.mxu0
        %v10616 = vadd.f32 0.0, %v10615
        %v10617 = vpop.f32.mrf.mxu0
        %10618 = vmatprep.mubr.bf16.mxu0 0
        %10619 = vmatmul.mubr.bf16.gmra.mxu0 %v10208
        %v10620 = vpop.f32.mrf.mxu0
        %v10621 = vadd.f32 0.0, %v10620
        %v10622 = vpop.f32.mrf.mxu0
        %v10623 = vpop.f32.mrf.mxu0
        %v10624 = vadd.f32 0.0, %v10623
        %v10625 = vpop.f32.mrf.mxu0
        %10626 = vmatprep.mubr.bf16.mxu0 0
        %10627 = vmatmul.mubr.bf16.gmra.mxu0 %v10211
        %v10628 = vpop.f32.mrf.mxu0
        %v10629 = vadd.f32 0.0, %v10628
        %v10630 = vpop.f32.mrf.mxu0
        %v10631 = vpop.f32.mrf.mxu0
        %v10632 = vadd.f32 0.0, %v10631
        %v10633 = vpop.f32.mrf.mxu0
        %10634 = vmatprep.mubr.bf16.mxu0 0
        %10635 = vmatmul.mubr.bf16.gmra.mxu0 %v10214
        %v10636 = vpop.f32.mrf.mxu0
        %v10637 = vadd.f32 0.0, %v10636
        %v10638 = vpop.f32.mrf.mxu0
        %v10639 = vpop.f32.mrf.mxu0
        %v10640 = vadd.f32 0.0, %v10639
        %v10641 = vpop.f32.mrf.mxu0
        %10642 = vmatprep.mubr.bf16.mxu0 0
        %10643 = vmatmul.mubr.bf16.gmra.mxu0 %v10217
        %v10644 = vpop.f32.mrf.mxu0
        %v10645 = vadd.f32 0.0, %v10644
        %v10646 = vpop.f32.mrf.mxu0
        %v10647 = vpop.f32.mrf.mxu0
        %v10648 = vadd.f32 0.0, %v10647
        %v10649 = vpop.f32.mrf.mxu0
        %10650 = vmatprep.mubr.bf16.mxu0 0
        %10651 = vmatmul.mubr.bf16.gmra.mxu0 %v10220
        %v10652 = vpop.f32.mrf.mxu0
        %v10653 = vadd.f32 0.0, %v10652
        %v10654 = vpop.f32.mrf.mxu0
        %v10655 = vpop.f32.mrf.mxu0
        %v10656 = vadd.f32 0.0, %v10655
        %v10657 = vpop.f32.mrf.mxu0
        %10658 = vmatprep.mubr.bf16.mxu0 0
        %10659 = vmatmul.mubr.bf16.gmra.mxu0 %v10223
        %v10660 = vpop.f32.mrf.mxu0
        %v10661 = vadd.f32 0.0, %v10660
        %v10662 = vpop.f32.mrf.mxu0
        %v10663 = vpop.f32.mrf.mxu0
        %v10664 = vadd.f32 0.0, %v10663
        %v10665 = vpop.f32.mrf.mxu0
        %10666 = vmatprep.mubr.bf16.mxu0 0
        %10667 = vmatmul.mubr.bf16.gmra.mxu0 %v10226
        %v10668 = vpop.f32.mrf.mxu0
        %v10669 = vadd.f32 0.0, %v10668
        %v10670 = vpop.f32.mrf.mxu0
        %v10671 = vpop.f32.mrf.mxu0
        %v10672 = vadd.f32 0.0, %v10671
        %v10673 = vpop.f32.mrf.mxu0
        %10674 = vmatprep.mubr.bf16.mxu0 0
        %10675 = vmatmul.mubr.bf16.gmra.mxu0 %v10229
        %v10676 = vpop.f32.mrf.mxu0
        %v10677 = vadd.f32 0.0, %v10676
        %v10678 = vpop.f32.mrf.mxu0
        %v10679 = vpop.f32.mrf.mxu0
        %v10680 = vadd.f32 0.0, %v10679
        %v10681 = vpop.f32.mrf.mxu0
        %10682 = vmatprep.mubr.bf16.mxu0 0
        %10683 = vmatmul.mubr.bf16.gmra.mxu0 %v10232
        %v10684 = vpop.f32.mrf.mxu0
        %v10685 = vadd.f32 0.0, %v10684
        %v10686 = vpop.f32.mrf.mxu0
        %v10687 = vpop.f32.mrf.mxu0
        %v10688 = vadd.f32 0.0, %v10687
        %v10689 = vpop.f32.mrf.mxu0
        %10690 = vmatprep.mubr.bf16.mxu0 0
        %10691 = vmatmul.mubr.bf16.gmra.mxu0 %v10235
        %v10692 = vpop.f32.mrf.mxu0
        %v10693 = vadd.f32 0.0, %v10692
        %v10694 = vpop.f32.mrf.mxu0
        %v10695 = vpop.f32.mrf.mxu0
        %v10696 = vadd.f32 0.0, %v10695
        %v10697 = vpop.f32.mrf.mxu0
        %10698 = vmatprep.mubr.bf16.mxu0 0
        %10699 = vmatmul.mubr.bf16.gmra.mxu0 %v10238
        %v10700 = vpop.f32.mrf.mxu0
        %v10701 = vadd.f32 0.0, %v10700
        %v10702 = vpop.f32.mrf.mxu0
        %v10703 = vpop.f32.mrf.mxu0
        %v10704 = vadd.f32 0.0, %v10703
        %v10705 = vpop.f32.mrf.mxu0
        %10706 = vmatprep.mubr.bf16.mxu0 0
        %10707 = vmatmul.mubr.bf16.gmra.mxu0 %v10241
        %v10708 = vpop.f32.mrf.mxu0
        %v10709 = vadd.f32 0.0, %v10708
        %v10710 = vpop.f32.mrf.mxu0
        %v10711 = vpop.f32.mrf.mxu0
        %v10712 = vadd.f32 0.0, %v10711
        %v10713 = vpop.f32.mrf.mxu0
        %10714 = vmatprep.mubr.bf16.mxu0 0
        %10715 = vmatmul.mubr.bf16.gmra.mxu0 %v10244
        %v10716 = vpop.f32.mrf.mxu0
        %v10717 = vadd.f32 0.0, %v10716
        %v10718 = vpop.f32.mrf.mxu0
        %v10719 = vpop.f32.mrf.mxu0
        %v10720 = vadd.f32 0.0, %v10719
        %v10721 = vpop.f32.mrf.mxu0
        %10722 = vmatprep.mubr.bf16.mxu0 0
        %10723 = vmatmul.mubr.bf16.gmra.mxu0 %v10247
        %v10724 = vpop.f32.mrf.mxu0
        %v10725 = vadd.f32 0.0, %v10724
        %v10726 = vpop.f32.mrf.mxu0
        %v10727 = vpop.f32.mrf.mxu0
        %v10728 = vadd.f32 0.0, %v10727
        %v10729 = vpop.f32.mrf.mxu0
        %10730 = vmatprep.mubr.bf16.mxu0 0
        %10731 = vmatmul.mubr.bf16.gmra.mxu0 %v10250
        %v10732 = vpop.f32.mrf.mxu0
        %v10733 = vadd.f32 0.0, %v10732
        %v10734 = vpop.f32.mrf.mxu0
        %v10735 = vpop.f32.mrf.mxu0
        %v10736 = vadd.f32 0.0, %v10735
        %v10737 = vpop.f32.mrf.mxu0
        %10738 = vmatprep.mubr.bf16.mxu0 0
        %10739 = vmatmul.mubr.bf16.gmra.mxu0 %v10253
        %v10740 = vpop.f32.mrf.mxu0
        %v10741 = vadd.f32 0.0, %v10740
        %v10742 = vpop.f32.mrf.mxu0
        %v10743 = vpop.f32.mrf.mxu0
        %v10744 = vadd.f32 0.0, %v10743
        %v10745 = vpop.f32.mrf.mxu0
        %10746 = vmatprep.mubr.bf16.mxu0 0
        %10747 = vmatmul.mubr.bf16.gmra.mxu0 %v10256
        %v10748 = vpop.f32.mrf.mxu0
        %v10749 = vadd.f32 0.0, %v10748
        %v10750 = vpop.f32.mrf.mxu0
        %v10751 = vpop.f32.mrf.mxu0
        %v10752 = vpop.f32.mrf.mxu0
        %10753 = vdwg.mxu0
        %v10754 = vadd.f32 %v9834, %v10293
        %v10755 = vadd.f32 %v9835, %v10296
        %v10756 = vadd.f32 %v9836, %v10301
        %v10757 = vadd.f32 %v9837, %v10304
        %v10758 = vadd.f32 %v9838, %v10309
        %v10759 = vadd.f32 %v9839, %v10312
        %v10760 = vadd.f32 %v9840, %v10317
        %v10761 = vadd.f32 %v9841, %v10320
        %v10762 = vadd.f32 %v9842, %v10325
        %v10763 = vadd.f32 %v9843, %v10328
        %v10764 = vadd.f32 %v9844, %v10333
        %v10765 = vadd.f32 %v9845, %v10336
        %v10766 = vadd.f32 %v9846, %v10341
        %v10767 = vadd.f32 %v9847, %v10344
        %v10768 = vadd.f32 %v9848, %v10349
        %v10769 = vadd.f32 %v9849, %v10352
        %v10770 = vadd.f32 %v9850, %v10357
        %v10771 = vadd.f32 %v9851, %v10360
        %v10772 = vadd.f32 %v9852, %v10365
        %v10773 = vadd.f32 %v9853, %v10368
        %v10774 = vadd.f32 %v9854, %v10373
        %v10775 = vadd.f32 %v9855, %v10376
        %v10776 = vadd.f32 %v9856, %v10381
        %v10777 = vadd.f32 %v9857, %v10384
        %v10778 = vadd.f32 %v9858, %v10389
        %v10779 = vadd.f32 %v9859, %v10392
        %v10780 = vadd.f32 %v9860, %v10397
        %v10781 = vadd.f32 %v9861, %v10400
        %v10782 = vadd.f32 %v9862, %v10405
        %v10783 = vadd.f32 %v9863, %v10408
        %v10784 = vadd.f32 %v9864, %v10413
        %v10785 = vadd.f32 %v9865, %v10416
        %v10786 = vadd.f32 %v9866, %v10421
        %v10787 = vadd.f32 %v9867, %v10424
        %v10788 = vadd.f32 %v9868, %v10429
        %v10789 = vadd.f32 %v9869, %v10432
        %v10790 = vadd.f32 %v9870, %v10437
        %v10791 = vadd.f32 %v9871, %v10440
        %v10792 = vadd.f32 %v9872, %v10445
        %v10793 = vadd.f32 %v9873, %v10448
        %v10794 = vadd.f32 %v9874, %v10453
        %v10795 = vadd.f32 %v9875, %v10456
        %v10796 = vadd.f32 %v9876, %v10461
        %v10797 = vadd.f32 %v9877, %v10464
        %v10798 = vadd.f32 %v9878, %v10469
        %v10799 = vadd.f32 %v9879, %v10472
        %v10800 = vadd.f32 %v9880, %v10477
        %v10801 = vadd.f32 %v9881, %v10480
        %v10802 = vadd.f32 %v9882, %v10485
        %v10803 = vadd.f32 %v9883, %v10488
        %v10804 = vadd.f32 %v9884, %v10493
        %v10805 = vadd.f32 %v9885, %v10496
        %v10806 = vadd.f32 %v9886, %v10501
        %v10807 = vadd.f32 %v9887, %v10504
        %v10808 = vadd.f32 %v9888, %v10509
        %v10809 = vadd.f32 %v9889, %v10512
        %v10810 = vadd.f32 %v9890, %v10517
        %v10811 = vadd.f32 %v9891, %v10520
        %v10812 = vadd.f32 %v9892, %v10525
        %v10813 = vadd.f32 %v9893, %v10528
        %v10814 = vadd.f32 %v9894, %v10533
        %v10815 = vadd.f32 %v9895, %v10536
        %v10816 = vadd.f32 %v9896, %v10541
        %v10817 = vadd.f32 %v9897, %v10544
        %v10818 = vadd.f32 %v9898, %v10549
        %v10819 = vadd.f32 %v9899, %v10552
        %v10820 = vadd.f32 %v9900, %v10557
        %v10821 = vadd.f32 %v9901, %v10560
        %v10822 = vadd.f32 %v9902, %v10565
        %v10823 = vadd.f32 %v9903, %v10568
        %v10824 = vadd.f32 %v9904, %v10573
        %v10825 = vadd.f32 %v9905, %v10576
        %v10826 = vadd.f32 %v9906, %v10581
        %v10827 = vadd.f32 %v9907, %v10584
        %v10828 = vadd.f32 %v9908, %v10589
        %v10829 = vadd.f32 %v9909, %v10592
        %v10830 = vadd.f32 %v9910, %v10597
        %v10831 = vadd.f32 %v9911, %v10600
        %v10832 = vadd.f32 %v9912, %v10605
        %v10833 = vadd.f32 %v9913, %v10608
        %v10834 = vadd.f32 %v9914, %v10613
        %v10835 = vadd.f32 %v9915, %v10616
        %v10836 = vadd.f32 %v9916, %v10621
        %v10837 = vadd.f32 %v9917, %v10624
        %v10838 = vadd.f32 %v9918, %v10629
        %v10839 = vadd.f32 %v9919, %v10632
        %v10840 = vadd.f32 %v9920, %v10637
        %v10841 = vadd.f32 %v9921, %v10640
        %v10842 = vadd.f32 %v9922, %v10645
        %v10843 = vadd.f32 %v9923, %v10648
        %v10844 = vadd.f32 %v9924, %v10653
        %v10845 = vadd.f32 %v9925, %v10656
        %v10846 = vadd.f32 %v9926, %v10661
        %v10847 = vadd.f32 %v9927, %v10664
        %v10848 = vadd.f32 %v9928, %v10669
        %v10849 = vadd.f32 %v9929, %v10672
        %v10850 = vadd.f32 %v9930, %v10677
        %v10851 = vadd.f32 %v9931, %v10680
        %v10852 = vadd.f32 %v9932, %v10685
        %v10853 = vadd.f32 %v9933, %v10688
        %v10854 = vadd.f32 %v9934, %v10693
        %v10855 = vadd.f32 %v9935, %v10696
        %v10856 = vadd.f32 %v9936, %v10701
        %v10857 = vadd.f32 %v9937, %v10704
        %v10858 = vadd.f32 %v9938, %v10709
        %v10859 = vadd.f32 %v9939, %v10712
        %v10860 = vadd.f32 %v9940, %v10717
        %v10861 = vadd.f32 %v9941, %v10720
        %v10862 = vadd.f32 %v9942, %v10725
        %v10863 = vadd.f32 %v9943, %v10728
        %v10864 = vadd.f32 %v9944, %v10733
        %v10865 = vadd.f32 %v9945, %v10736
        %v10866 = vadd.f32 %v9946, %v10741
        %v10867 = vadd.f32 %v9947, %v10744
        %v10868 = vadd.f32 %v9948, %v10749
        %v10869 = vld [vmem:[%s2] sm:$0x1]
        %v10871 = vlaneseq
        %v10872 = vshrl.u32 %v10871, 7
        %v10873 = vsub.s32 0, %v10872
        %v10874 = vrot.slane %v10869, %v10873
        %v10876 = vadd.f32 %v10754, %v10874
        %v10877 = vadd.f32 %v10755, %v10874
        %v10878 = vadd.f32 %v10756, %v10874
        %v10879 = vadd.f32 %v10757, %v10874
        %v10880 = vadd.f32 %v10758, %v10874
        %v10881 = vadd.f32 %v10759, %v10874
        %v10882 = vadd.f32 %v10760, %v10874
        %v10883 = vadd.f32 %v10761, %v10874
        %v10884 = vadd.f32 %v10762, %v10874
        %v10885 = vadd.f32 %v10763, %v10874
        %v10886 = vadd.f32 %v10764, %v10874
        %v10887 = vadd.f32 %v10765, %v10874
        %v10888 = vadd.f32 %v10766, %v10874
        %v10889 = vadd.f32 %v10767, %v10874
        %v10890 = vadd.f32 %v10768, %v10874
        %v10891 = vadd.f32 %v10769, %v10874
        %v10892 = vadd.f32 %v10770, %v10874
        %v10893 = vadd.f32 %v10771, %v10874
        %v10894 = vadd.f32 %v10772, %v10874
        %v10895 = vadd.f32 %v10773, %v10874
        %v10896 = vadd.f32 %v10774, %v10874
        %v10897 = vadd.f32 %v10775, %v10874
        %v10898 = vadd.f32 %v10776, %v10874
        %v10899 = vadd.f32 %v10777, %v10874
        %v10900 = vadd.f32 %v10778, %v10874
        %v10901 = vadd.f32 %v10779, %v10874
        %v10902 = vadd.f32 %v10780, %v10874
        %v10903 = vadd.f32 %v10781, %v10874
        %v10904 = vadd.f32 %v10782, %v10874
        %v10905 = vadd.f32 %v10783, %v10874
        %v10906 = vadd.f32 %v10784, %v10874
        %v10907 = vadd.f32 %v10785, %v10874
        %v10908 = vadd.f32 %v10786, %v10874
        %v10909 = vadd.f32 %v10787, %v10874
        %v10910 = vadd.f32 %v10788, %v10874
        %v10911 = vadd.f32 %v10789, %v10874
        %v10912 = vadd.f32 %v10790, %v10874
        %v10913 = vadd.f32 %v10791, %v10874
        %v10914 = vadd.f32 %v10792, %v10874
        %v10915 = vadd.f32 %v10793, %v10874
        %v10916 = vadd.f32 %v10794, %v10874
        %v10917 = vadd.f32 %v10795, %v10874
        %v10918 = vadd.f32 %v10796, %v10874
        %v10919 = vadd.f32 %v10797, %v10874
        %v10920 = vadd.f32 %v10798, %v10874
        %v10921 = vadd.f32 %v10799, %v10874
        %v10922 = vadd.f32 %v10800, %v10874
        %v10923 = vadd.f32 %v10801, %v10874
        %v10924 = vadd.f32 %v10802, %v10874
        %v10925 = vadd.f32 %v10803, %v10874
        %v10926 = vadd.f32 %v10804, %v10874
        %v10927 = vadd.f32 %v10805, %v10874
        %v10928 = vadd.f32 %v10806, %v10874
        %v10929 = vadd.f32 %v10807, %v10874
        %v10930 = vadd.f32 %v10808, %v10874
        %v10931 = vadd.f32 %v10809, %v10874
        %v10932 = vadd.f32 %v10810, %v10874
        %v10933 = vadd.f32 %v10811, %v10874
        %v10934 = vadd.f32 %v10812, %v10874
        %v10935 = vadd.f32 %v10813, %v10874
        %v10936 = vadd.f32 %v10814, %v10874
        %v10937 = vadd.f32 %v10815, %v10874
        %v10938 = vadd.f32 %v10816, %v10874
        %v10939 = vadd.f32 %v10817, %v10874
        %v10940 = vadd.f32 %v10818, %v10874
        %v10941 = vadd.f32 %v10819, %v10874
        %v10942 = vadd.f32 %v10820, %v10874
        %v10943 = vadd.f32 %v10821, %v10874
        %v10944 = vadd.f32 %v10822, %v10874
        %v10945 = vadd.f32 %v10823, %v10874
        %v10946 = vadd.f32 %v10824, %v10874
        %v10947 = vadd.f32 %v10825, %v10874
        %v10948 = vadd.f32 %v10826, %v10874
        %v10949 = vadd.f32 %v10827, %v10874
        %v10950 = vadd.f32 %v10828, %v10874
        %v10951 = vadd.f32 %v10829, %v10874
        %v10952 = vadd.f32 %v10830, %v10874
        %v10953 = vadd.f32 %v10831, %v10874
        %v10954 = vadd.f32 %v10832, %v10874
        %v10955 = vadd.f32 %v10833, %v10874
        %v10956 = vadd.f32 %v10834, %v10874
        %v10957 = vadd.f32 %v10835, %v10874
        %v10958 = vadd.f32 %v10836, %v10874
        %v10959 = vadd.f32 %v10837, %v10874
        %v10960 = vadd.f32 %v10838, %v10874
        %v10961 = vadd.f32 %v10839, %v10874
        %v10962 = vadd.f32 %v10840, %v10874
        %v10963 = vadd.f32 %v10841, %v10874
        %v10964 = vadd.f32 %v10842, %v10874
        %v10965 = vadd.f32 %v10843, %v10874
        %v10966 = vadd.f32 %v10844, %v10874
        %v10967 = vadd.f32 %v10845, %v10874
        %v10968 = vadd.f32 %v10846, %v10874
        %v10969 = vadd.f32 %v10847, %v10874
        %v10970 = vadd.f32 %v10848, %v10874
        %v10971 = vadd.f32 %v10849, %v10874
        %v10972 = vadd.f32 %v10850, %v10874
        %v10973 = vadd.f32 %v10851, %v10874
        %v10974 = vadd.f32 %v10852, %v10874
        %v10975 = vadd.f32 %v10853, %v10874
        %v10976 = vadd.f32 %v10854, %v10874
        %v10977 = vadd.f32 %v10855, %v10874
        %v10978 = vadd.f32 %v10856, %v10874
        %v10979 = vadd.f32 %v10857, %v10874
        %v10980 = vadd.f32 %v10858, %v10874
        %v10981 = vadd.f32 %v10859, %v10874
        %v10982 = vadd.f32 %v10860, %v10874
        %v10983 = vadd.f32 %v10861, %v10874
        %v10984 = vadd.f32 %v10862, %v10874
        %v10985 = vadd.f32 %v10863, %v10874
        %v10986 = vadd.f32 %v10864, %v10874
        %v10987 = vadd.f32 %v10865, %v10874
        %v10988 = vadd.f32 %v10866, %v10874
        %v10989 = vadd.f32 %v10867, %v10874
        %v10990 = vadd.f32 %v10868, %v10874
        %v10991 = vmax.f32 %v10876, 0.0
        %v10992 = vmax.f32 %v10877, 0.0
        %v10993 = vmax.f32 %v10878, 0.0
        %v10994 = vmax.f32 %v10879, 0.0
        %v10995 = vmax.f32 %v10880, 0.0
        %v10996 = vmax.f32 %v10881, 0.0
        %v10997 = vmax.f32 %v10882, 0.0
        %v10998 = vmax.f32 %v10883, 0.0
        %v10999 = vmax.f32 %v10884, 0.0
        %v11000 = vmax.f32 %v10885, 0.0
        %v11001 = vmax.f32 %v10886, 0.0
        %v11002 = vmax.f32 %v10887, 0.0
        %v11003 = vmax.f32 %v10888, 0.0
        %v11004 = vmax.f32 %v10889, 0.0
        %v11005 = vmax.f32 %v10890, 0.0
        %v11006 = vmax.f32 %v10891, 0.0
        %v11007 = vmax.f32 %v10892, 0.0
        %v11008 = vmax.f32 %v10893, 0.0
        %v11009 = vmax.f32 %v10894, 0.0
        %v11010 = vmax.f32 %v10895, 0.0
        %v11011 = vmax.f32 %v10896, 0.0
        %v11012 = vmax.f32 %v10897, 0.0
        %v11013 = vmax.f32 %v10898, 0.0
        %v11014 = vmax.f32 %v10899, 0.0
        %v11015 = vmax.f32 %v10900, 0.0
        %v11016 = vmax.f32 %v10901, 0.0
        %v11017 = vmax.f32 %v10902, 0.0
        %v11018 = vmax.f32 %v10903, 0.0
        %v11019 = vmax.f32 %v10904, 0.0
        %v11020 = vmax.f32 %v10905, 0.0
        %v11021 = vmax.f32 %v10906, 0.0
        %v11022 = vmax.f32 %v10907, 0.0
        %v11023 = vmax.f32 %v10908, 0.0
        %v11024 = vmax.f32 %v10909, 0.0
        %v11025 = vmax.f32 %v10910, 0.0
        %v11026 = vmax.f32 %v10911, 0.0
        %v11027 = vmax.f32 %v10912, 0.0
        %v11028 = vmax.f32 %v10913, 0.0
        %v11029 = vmax.f32 %v10914, 0.0
        %v11030 = vmax.f32 %v10915, 0.0
        %v11031 = vmax.f32 %v10916, 0.0
        %v11032 = vmax.f32 %v10917, 0.0
        %v11033 = vmax.f32 %v10918, 0.0
        %v11034 = vmax.f32 %v10919, 0.0
        %v11035 = vmax.f32 %v10920, 0.0
        %v11036 = vmax.f32 %v10921, 0.0
        %v11037 = vmax.f32 %v10922, 0.0
        %v11038 = vmax.f32 %v10923, 0.0
        %v11039 = vmax.f32 %v10924, 0.0
        %v11040 = vmax.f32 %v10925, 0.0
        %v11041 = vmax.f32 %v10926, 0.0
        %v11042 = vmax.f32 %v10927, 0.0
        %v11043 = vmax.f32 %v10928, 0.0
        %v11044 = vmax.f32 %v10929, 0.0
        %v11045 = vmax.f32 %v10930, 0.0
        %v11046 = vmax.f32 %v10931, 0.0
        %v11047 = vmax.f32 %v10932, 0.0
        %v11048 = vmax.f32 %v10933, 0.0
        %v11049 = vmax.f32 %v10934, 0.0
        %v11050 = vmax.f32 %v10935, 0.0
        %v11051 = vmax.f32 %v10936, 0.0
        %v11052 = vmax.f32 %v10937, 0.0
        %v11053 = vmax.f32 %v10938, 0.0
        %v11054 = vmax.f32 %v10939, 0.0
        %v11055 = vmax.f32 %v10940, 0.0
        %v11056 = vmax.f32 %v10941, 0.0
        %v11057 = vmax.f32 %v10942, 0.0
        %v11058 = vmax.f32 %v10943, 0.0
        %v11059 = vmax.f32 %v10944, 0.0
        %v11060 = vmax.f32 %v10945, 0.0
        %v11061 = vmax.f32 %v10946, 0.0
        %v11062 = vmax.f32 %v10947, 0.0
        %v11063 = vmax.f32 %v10948, 0.0
        %v11064 = vmax.f32 %v10949, 0.0
        %v11065 = vmax.f32 %v10950, 0.0
        %v11066 = vmax.f32 %v10951, 0.0
        %v11067 = vmax.f32 %v10952, 0.0
        %v11068 = vmax.f32 %v10953, 0.0
        %v11069 = vmax.f32 %v10954, 0.0
        %v11070 = vmax.f32 %v10955, 0.0
        %v11071 = vmax.f32 %v10956, 0.0
        %v11072 = vmax.f32 %v10957, 0.0
        %v11073 = vmax.f32 %v10958, 0.0
        %v11074 = vmax.f32 %v10959, 0.0
        %v11075 = vmax.f32 %v10960, 0.0
        %v11076 = vmax.f32 %v10961, 0.0
        %v11077 = vmax.f32 %v10962, 0.0
        %v11078 = vmax.f32 %v10963, 0.0
        %v11079 = vmax.f32 %v10964, 0.0
        %v11080 = vmax.f32 %v10965, 0.0
        %v11081 = vmax.f32 %v10966, 0.0
        %v11082 = vmax.f32 %v10967, 0.0
        %v11083 = vmax.f32 %v10968, 0.0
        %v11084 = vmax.f32 %v10969, 0.0
        %v11085 = vmax.f32 %v10970, 0.0
        %v11086 = vmax.f32 %v10971, 0.0
        %v11087 = vmax.f32 %v10972, 0.0
        %v11088 = vmax.f32 %v10973, 0.0
        %v11089 = vmax.f32 %v10974, 0.0
        %v11090 = vmax.f32 %v10975, 0.0
        %v11091 = vmax.f32 %v10976, 0.0
        %v11092 = vmax.f32 %v10977, 0.0
        %v11093 = vmax.f32 %v10978, 0.0
        %v11094 = vmax.f32 %v10979, 0.0
        %v11095 = vmax.f32 %v10980, 0.0
        %v11096 = vmax.f32 %v10981, 0.0
        %v11097 = vmax.f32 %v10982, 0.0
        %v11098 = vmax.f32 %v10983, 0.0
        %v11099 = vmax.f32 %v10984, 0.0
        %v11100 = vmax.f32 %v10985, 0.0
        %v11101 = vmax.f32 %v10986, 0.0
        %v11102 = vmax.f32 %v10987, 0.0
        %v11103 = vmax.f32 %v10988, 0.0
        %v11104 = vmax.f32 %v10989, 0.0
        %v11105 = vmax.f32 %v10990, 0.0
        %v11106 = vpack.c.bf16 %v10992, %v10991
        %v11107 = vpack.c.bf16 %v10994, %v10993
        %v11108 = vpack.c.bf16 %v10996, %v10995
        %v11109 = vpack.c.bf16 %v10998, %v10997
        %v11110 = vpack.c.bf16 %v11000, %v10999
        %v11111 = vpack.c.bf16 %v11002, %v11001
        %v11112 = vpack.c.bf16 %v11004, %v11003
        %v11113 = vpack.c.bf16 %v11006, %v11005
        %v11114 = vpack.c.bf16 %v11008, %v11007
        %v11115 = vpack.c.bf16 %v11010, %v11009
        %v11116 = vpack.c.bf16 %v11012, %v11011
        %v11117 = vpack.c.bf16 %v11014, %v11013
        %v11118 = vpack.c.bf16 %v11016, %v11015
        %v11119 = vpack.c.bf16 %v11018, %v11017
        %v11120 = vpack.c.bf16 %v11020, %v11019
        %v11121 = vpack.c.bf16 %v11022, %v11021
        %v11122 = vpack.c.bf16 %v11024, %v11023
        %v11123 = vpack.c.bf16 %v11026, %v11025
        %v11124 = vpack.c.bf16 %v11028, %v11027
        %v11125 = vpack.c.bf16 %v11030, %v11029
        %v11126 = vpack.c.bf16 %v11032, %v11031
        %v11127 = vpack.c.bf16 %v11034, %v11033
        %v11128 = vpack.c.bf16 %v11036, %v11035
        %v11129 = vpack.c.bf16 %v11038, %v11037
        %v11130 = vpack.c.bf16 %v11040, %v11039
        %v11131 = vpack.c.bf16 %v11042, %v11041
        %v11132 = vpack.c.bf16 %v11044, %v11043
        %v11133 = vpack.c.bf16 %v11046, %v11045
        %v11134 = vpack.c.bf16 %v11048, %v11047
        %v11135 = vpack.c.bf16 %v11050, %v11049
        %v11136 = vpack.c.bf16 %v11052, %v11051
        %v11137 = vpack.c.bf16 %v11054, %v11053
        %v11138 = vpack.c.bf16 %v11056, %v11055
        %v11139 = vpack.c.bf16 %v11058, %v11057
        %v11140 = vpack.c.bf16 %v11060, %v11059
        %v11141 = vpack.c.bf16 %v11062, %v11061
        %v11142 = vpack.c.bf16 %v11064, %v11063
        %v11143 = vpack.c.bf16 %v11066, %v11065
        %v11144 = vpack.c.bf16 %v11068, %v11067
        %v11145 = vpack.c.bf16 %v11070, %v11069
        %v11146 = vpack.c.bf16 %v11072, %v11071
        %v11147 = vpack.c.bf16 %v11074, %v11073
        %v11148 = vpack.c.bf16 %v11076, %v11075
        %v11149 = vpack.c.bf16 %v11078, %v11077
        %v11150 = vpack.c.bf16 %v11080, %v11079
        %v11151 = vpack.c.bf16 %v11082, %v11081
        %v11152 = vpack.c.bf16 %v11084, %v11083
        %v11153 = vpack.c.bf16 %v11086, %v11085
        %v11154 = vpack.c.bf16 %v11088, %v11087
        %v11155 = vpack.c.bf16 %v11090, %v11089
        %v11156 = vpack.c.bf16 %v11092, %v11091
        %v11157 = vpack.c.bf16 %v11094, %v11093
        %v11158 = vpack.c.bf16 %v11096, %v11095
        %v11159 = vpack.c.bf16 %v11098, %v11097
        %v11160 = vpack.c.bf16 %v11100, %v11099
        %v11161 = vpack.c.bf16 %v11102, %v11101
        %v11162 = vpack.c.bf16 %v11104, %v11103
        %v11163 = vpack.c.bf16 %v11105, %v11105
        %vm11164 = vcmask 1043456
        %v11167 = vsel %vm11164, %v11163, 0
        %v11227 = vunpack.c.l.b16 %v11106
        %v11228 = vunpack.c.h.b16 %v11106
        %v11229 = vunpack.c.l.b16 %v11107
        %v11230 = vunpack.c.h.b16 %v11107
        %v11231 = vunpack.c.l.b16 %v11108
        %v11232 = vunpack.c.h.b16 %v11108
        %v11233 = vunpack.c.l.b16 %v11109
        %v11234 = vunpack.c.h.b16 %v11109
        %v11235 = vunpack.c.l.b16 %v11110
        %v11236 = vunpack.c.h.b16 %v11110
        %v11237 = vunpack.c.l.b16 %v11111
        %v11238 = vunpack.c.h.b16 %v11111
        %v11239 = vunpack.c.l.b16 %v11112
        %v11240 = vunpack.c.h.b16 %v11112
        %v11241 = vunpack.c.l.b16 %v11113
        %v11242 = vunpack.c.h.b16 %v11113
        %v11243 = vunpack.c.l.b16 %v11114
        %v11244 = vunpack.c.h.b16 %v11114
        %v11245 = vunpack.c.l.b16 %v11115
        %v11246 = vunpack.c.h.b16 %v11115
        %v11247 = vunpack.c.l.b16 %v11116
        %v11248 = vunpack.c.h.b16 %v11116
        %v11249 = vunpack.c.l.b16 %v11117
        %v11250 = vunpack.c.h.b16 %v11117
        %v11251 = vunpack.c.l.b16 %v11118
        %v11252 = vunpack.c.h.b16 %v11118
        %v11253 = vunpack.c.l.b16 %v11119
        %v11254 = vunpack.c.h.b16 %v11119
        %v11255 = vunpack.c.l.b16 %v11120
        %v11256 = vunpack.c.h.b16 %v11120
        %v11257 = vunpack.c.l.b16 %v11121
        %v11258 = vunpack.c.h.b16 %v11121
        %v11259 = vunpack.c.l.b16 %v11122
        %v11260 = vunpack.c.h.b16 %v11122
        %v11261 = vunpack.c.l.b16 %v11123
        %v11262 = vunpack.c.h.b16 %v11123
        %v11263 = vunpack.c.l.b16 %v11124
        %v11264 = vunpack.c.h.b16 %v11124
        %v11265 = vunpack.c.l.b16 %v11125
        %v11266 = vunpack.c.h.b16 %v11125
        %v11267 = vunpack.c.l.b16 %v11126
        %v11268 = vunpack.c.h.b16 %v11126
        %v11269 = vunpack.c.l.b16 %v11127
        %v11270 = vunpack.c.h.b16 %v11127
        %v11271 = vunpack.c.l.b16 %v11128
        %v11272 = vunpack.c.h.b16 %v11128
        %v11273 = vunpack.c.l.b16 %v11129
        %v11274 = vunpack.c.h.b16 %v11129
        %v11275 = vunpack.c.l.b16 %v11130
        %v11276 = vunpack.c.h.b16 %v11130
        %v11277 = vunpack.c.l.b16 %v11131
        %v11278 = vunpack.c.h.b16 %v11131
        %v11279 = vunpack.c.l.b16 %v11132
        %v11280 = vunpack.c.h.b16 %v11132
        %v11281 = vunpack.c.l.b16 %v11133
        %v11282 = vunpack.c.h.b16 %v11133
        %v11283 = vunpack.c.l.b16 %v11134
        %v11284 = vunpack.c.h.b16 %v11134
        %v11285 = vunpack.c.l.b16 %v11135
        %v11286 = vunpack.c.h.b16 %v11135
        %v11287 = vunpack.c.l.b16 %v11136
        %v11288 = vunpack.c.h.b16 %v11136
        %v11289 = vunpack.c.l.b16 %v11137
        %v11290 = vunpack.c.h.b16 %v11137
        %v11291 = vunpack.c.l.b16 %v11138
        %v11292 = vunpack.c.h.b16 %v11138
        %v11293 = vunpack.c.l.b16 %v11139
        %v11294 = vunpack.c.h.b16 %v11139
        %v11295 = vunpack.c.l.b16 %v11140
        %v11296 = vunpack.c.h.b16 %v11140
        %v11297 = vunpack.c.l.b16 %v11141
        %v11298 = vunpack.c.h.b16 %v11141
        %v11299 = vunpack.c.l.b16 %v11142
        %v11300 = vunpack.c.h.b16 %v11142
        %v11301 = vunpack.c.l.b16 %v11143
        %v11302 = vunpack.c.h.b16 %v11143
        %v11303 = vunpack.c.l.b16 %v11144
        %v11304 = vunpack.c.h.b16 %v11144
        %v11305 = vunpack.c.l.b16 %v11145
        %v11306 = vunpack.c.h.b16 %v11145
        %v11307 = vunpack.c.l.b16 %v11146
        %v11308 = vunpack.c.h.b16 %v11146
        %v11309 = vunpack.c.l.b16 %v11147
        %v11310 = vunpack.c.h.b16 %v11147
        %v11311 = vunpack.c.l.b16 %v11148
        %v11312 = vunpack.c.h.b16 %v11148
        %v11313 = vunpack.c.l.b16 %v11149
        %v11314 = vunpack.c.h.b16 %v11149
        %v11315 = vunpack.c.l.b16 %v11150
        %v11316 = vunpack.c.h.b16 %v11150
        %v11317 = vunpack.c.l.b16 %v11151
        %v11318 = vunpack.c.h.b16 %v11151
        %v11319 = vunpack.c.l.b16 %v11152
        %v11320 = vunpack.c.h.b16 %v11152
        %v11321 = vunpack.c.l.b16 %v11153
        %v11322 = vunpack.c.h.b16 %v11153
        %v11323 = vunpack.c.l.b16 %v11154
        %v11324 = vunpack.c.h.b16 %v11154
        %v11325 = vunpack.c.l.b16 %v11155
        %v11326 = vunpack.c.h.b16 %v11155
        %v11327 = vunpack.c.l.b16 %v11156
        %v11328 = vunpack.c.h.b16 %v11156
        %v11329 = vunpack.c.l.b16 %v11157
        %v11330 = vunpack.c.h.b16 %v11157
        %v11331 = vunpack.c.l.b16 %v11158
        %v11332 = vunpack.c.h.b16 %v11158
        %v11333 = vunpack.c.l.b16 %v11159
        %v11334 = vunpack.c.h.b16 %v11159
        %v11335 = vunpack.c.l.b16 %v11160
        %v11336 = vunpack.c.h.b16 %v11160
        %v11337 = vunpack.c.l.b16 %v11161
        %v11338 = vunpack.c.h.b16 %v11161
        %v11339 = vunpack.c.l.b16 %v11162
        %v11340 = vunpack.c.h.b16 %v11162
        %v11341 = vunpack.c.l.b16 %v11167
        %v11342 = vunpack.c.h.b16 %v11167
        %v11343 = vunpack.c.l.b16 0
        %v11344 = vunpack.c.h.b16 0
        %v11345 = vpack.c.b16 %v11227, %v11227
        %v11346 = vpack.c.b16 %v11228, %v11228
        %v11347 = vpack.c.b16 %v11229, %v11229
        %v11348 = vpack.c.b16 %v11230, %v11230
        %v11349 = vpack.c.b16 %v11231, %v11231
        %v11350 = vpack.c.b16 %v11232, %v11232
        %v11351 = vpack.c.b16 %v11233, %v11233
        %v11352 = vpack.c.b16 %v11234, %v11234
        %v11353 = vpack.c.b16 %v11235, %v11235
        %v11354 = vpack.c.b16 %v11236, %v11236
        %v11355 = vpack.c.b16 %v11237, %v11237
        %v11356 = vpack.c.b16 %v11238, %v11238
        %v11357 = vpack.c.b16 %v11239, %v11239
        %v11358 = vpack.c.b16 %v11240, %v11240
        %v11359 = vpack.c.b16 %v11241, %v11241
        %v11360 = vpack.c.b16 %v11242, %v11242
        %v11361 = vpack.c.b16 %v11243, %v11243
        %v11362 = vpack.c.b16 %v11244, %v11244
        %v11363 = vpack.c.b16 %v11245, %v11245
        %v11364 = vpack.c.b16 %v11246, %v11246
        %v11365 = vpack.c.b16 %v11247, %v11247
        %v11366 = vpack.c.b16 %v11248, %v11248
        %v11367 = vpack.c.b16 %v11249, %v11249
        %v11368 = vpack.c.b16 %v11250, %v11250
        %v11369 = vpack.c.b16 %v11251, %v11251
        %v11370 = vpack.c.b16 %v11252, %v11252
        %v11371 = vpack.c.b16 %v11253, %v11253
        %v11372 = vpack.c.b16 %v11254, %v11254
        %v11373 = vpack.c.b16 %v11255, %v11255
        %v11374 = vpack.c.b16 %v11256, %v11256
        %v11375 = vpack.c.b16 %v11257, %v11257
        %v11376 = vpack.c.b16 %v11258, %v11258
        %v11377 = vpack.c.b16 %v11259, %v11259
        %v11378 = vpack.c.b16 %v11260, %v11260
        %v11379 = vpack.c.b16 %v11261, %v11261
        %v11380 = vpack.c.b16 %v11262, %v11262
        %v11381 = vpack.c.b16 %v11263, %v11263
        %v11382 = vpack.c.b16 %v11264, %v11264
        %v11383 = vpack.c.b16 %v11265, %v11265
        %v11384 = vpack.c.b16 %v11266, %v11266
        %v11385 = vpack.c.b16 %v11267, %v11267
        %v11386 = vpack.c.b16 %v11268, %v11268
        %v11387 = vpack.c.b16 %v11269, %v11269
        %v11388 = vpack.c.b16 %v11270, %v11270
        %v11389 = vpack.c.b16 %v11271, %v11271
        %v11390 = vpack.c.b16 %v11272, %v11272
        %v11391 = vpack.c.b16 %v11273, %v11273
        %v11392 = vpack.c.b16 %v11274, %v11274
        %v11393 = vpack.c.b16 %v11275, %v11275
        %v11394 = vpack.c.b16 %v11276, %v11276
        %v11395 = vpack.c.b16 %v11277, %v11277
        %v11396 = vpack.c.b16 %v11278, %v11278
        %v11397 = vpack.c.b16 %v11279, %v11279
        %v11398 = vpack.c.b16 %v11280, %v11280
        %v11399 = vpack.c.b16 %v11281, %v11281
        %v11400 = vpack.c.b16 %v11282, %v11282
        %v11401 = vpack.c.b16 %v11283, %v11283
        %v11402 = vpack.c.b16 %v11284, %v11284
        %v11403 = vpack.c.b16 %v11285, %v11285
        %v11404 = vpack.c.b16 %v11286, %v11286
        %v11405 = vpack.c.b16 %v11287, %v11287
        %v11406 = vpack.c.b16 %v11288, %v11288
        %v11407 = vpack.c.b16 %v11289, %v11289
        %v11408 = vpack.c.b16 %v11290, %v11290
        %v11409 = vpack.c.b16 %v11291, %v11291
        %v11410 = vpack.c.b16 %v11292, %v11292
        %v11411 = vpack.c.b16 %v11293, %v11293
        %v11412 = vpack.c.b16 %v11294, %v11294
        %v11413 = vpack.c.b16 %v11295, %v11295
        %v11414 = vpack.c.b16 %v11296, %v11296
        %v11415 = vpack.c.b16 %v11297, %v11297
        %v11416 = vpack.c.b16 %v11298, %v11298
        %v11417 = vpack.c.b16 %v11299, %v11299
        %v11418 = vpack.c.b16 %v11300, %v11300
        %v11419 = vpack.c.b16 %v11301, %v11301
        %v11420 = vpack.c.b16 %v11302, %v11302
        %v11421 = vpack.c.b16 %v11303, %v11303
        %v11422 = vpack.c.b16 %v11304, %v11304
        %v11423 = vpack.c.b16 %v11305, %v11305
        %v11424 = vpack.c.b16 %v11306, %v11306
        %v11425 = vpack.c.b16 %v11307, %v11307
        %v11426 = vpack.c.b16 %v11308, %v11308
        %v11427 = vpack.c.b16 %v11309, %v11309
        %v11428 = vpack.c.b16 %v11310, %v11310
        %v11429 = vpack.c.b16 %v11311, %v11311
        %v11430 = vpack.c.b16 %v11312, %v11312
        %v11431 = vpack.c.b16 %v11313, %v11313
        %v11432 = vpack.c.b16 %v11314, %v11314
        %v11433 = vpack.c.b16 %v11315, %v11315
        %v11434 = vpack.c.b16 %v11316, %v11316
        %v11435 = vpack.c.b16 %v11317, %v11317
        %v11436 = vpack.c.b16 %v11318, %v11318
        %v11437 = vpack.c.b16 %v11319, %v11319
        %v11438 = vpack.c.b16 %v11320, %v11320
        %v11439 = vpack.c.b16 %v11321, %v11321
        %v11440 = vpack.c.b16 %v11322, %v11322
        %v11441 = vpack.c.b16 %v11323, %v11323
        %v11442 = vpack.c.b16 %v11324, %v11324
        %v11443 = vpack.c.b16 %v11325, %v11325
        %v11444 = vpack.c.b16 %v11326, %v11326
        %v11445 = vpack.c.b16 %v11327, %v11327
        %v11446 = vpack.c.b16 %v11328, %v11328
        %v11447 = vpack.c.b16 %v11329, %v11329
        %v11448 = vpack.c.b16 %v11330, %v11330
        %v11449 = vpack.c.b16 %v11331, %v11331
        %v11450 = vpack.c.b16 %v11332, %v11332
        %v11451 = vpack.c.b16 %v11333, %v11333
        %v11452 = vpack.c.b16 %v11334, %v11334
        %v11453 = vpack.c.b16 %v11335, %v11335
        %v11454 = vpack.c.b16 %v11336, %v11336
        %v11455 = vpack.c.b16 %v11337, %v11337
        %v11456 = vpack.c.b16 %v11338, %v11338
        %v11457 = vpack.c.b16 %v11339, %v11339
        %v11458 = vpack.c.b16 %v11340, %v11340
        %v11459 = vpack.c.b16 %v11341, %v11341
        %v11460 = vpack.c.b16 %v11342, %v11342
        %v11461 = vpack.c.b16 %v11343, %v11343
        %v11462 = vpack.c.b16 %v11344, %v11344
        %11581 = vst [vmem:[%s164] sm:$0xf] %v11345
        %11582 = vst [vmem:[%s164 + $0x4] sm:$0xf] %v11346
        %11583 = vst [vmem:[%s164 + $0x8] sm:$0xf] %v11347
        %11584 = vst [vmem:[%s164 + $0xc] sm:$0xf] %v11348
        %11585 = vst [vmem:[%s164 + $0x10] sm:$0xf] %v11349
        %11586 = vst [vmem:[%s164 + $0x14] sm:$0xf] %v11350
        %11587 = vst [vmem:[%s164 + $0x18] sm:$0xf] %v11351
        %11588 = vst [vmem:[%s164 + $0x1c] sm:$0xf] %v11352
        %11589 = vst [vmem:[%s164 + $0x20] sm:$0xf] %v11353
        %11590 = vst [vmem:[%s164 + $0x24] sm:$0xf] %v11354
        %11591 = vst [vmem:[%s164 + $0x28] sm:$0xf] %v11355
        %11592 = vst [vmem:[%s164 + $0x2c] sm:$0xf] %v11356
        %11593 = vst [vmem:[%s164 + $0x30] sm:$0xf] %v11357
        %11594 = vst [vmem:[%s164 + $0x34] sm:$0xf] %v11358
        %11595 = vst [vmem:[%s164 + $0x38] sm:$0xf] %v11359
        %11596 = vst [vmem:[%s164 + $0x3c] sm:$0xf] %v11360
        %11597 = vst [vmem:[%s164 + $0x40] sm:$0xf] %v11361
        %11598 = vst [vmem:[%s164 + $0x44] sm:$0xf] %v11362
        %11599 = vst [vmem:[%s164 + $0x48] sm:$0xf] %v11363
        %11600 = vst [vmem:[%s164 + $0x4c] sm:$0xf] %v11364
        %11601 = vst [vmem:[%s164 + $0x50] sm:$0xf] %v11365
        %11602 = vst [vmem:[%s164 + $0x54] sm:$0xf] %v11366
        %11603 = vst [vmem:[%s164 + $0x58] sm:$0xf] %v11367
        %11604 = vst [vmem:[%s164 + $0x5c] sm:$0xf] %v11368
        %11605 = vst [vmem:[%s164 + $0x60] sm:$0xf] %v11369
        %11606 = vst [vmem:[%s164 + $0x64] sm:$0xf] %v11370
        %11607 = vst [vmem:[%s164 + $0x68] sm:$0xf] %v11371
        %11608 = vst [vmem:[%s164 + $0x6c] sm:$0xf] %v11372
        %11609 = vst [vmem:[%s164 + $0x70] sm:$0xf] %v11373
        %11610 = vst [vmem:[%s164 + $0x74] sm:$0xf] %v11374
        %11611 = vst [vmem:[%s164 + $0x78] sm:$0xf] %v11375
        %11612 = vst [vmem:[%s164 + $0x7c] sm:$0xf] %v11376
        %11613 = vst [vmem:[%s164 + $0x80] sm:$0xf] %v11377
        %11614 = vst [vmem:[%s164 + $0x84] sm:$0xf] %v11378
        %11615 = vst [vmem:[%s164 + $0x88] sm:$0xf] %v11379
        %11616 = vst [vmem:[%s164 + $0x8c] sm:$0xf] %v11380
        %11617 = vst [vmem:[%s164 + $0x90] sm:$0xf] %v11381
        %11618 = vst [vmem:[%s164 + $0x94] sm:$0xf] %v11382
        %11619 = vst [vmem:[%s164 + $0x98] sm:$0xf] %v11383
        %11620 = vst [vmem:[%s164 + $0x9c] sm:$0xf] %v11384
        %11621 = vst [vmem:[%s164 + $0xa0] sm:$0xf] %v11385
        %11622 = vst [vmem:[%s164 + $0xa4] sm:$0xf] %v11386
        %11623 = vst [vmem:[%s164 + $0xa8] sm:$0xf] %v11387
        %11624 = vst [vmem:[%s164 + $0xac] sm:$0xf] %v11388
        %11625 = vst [vmem:[%s164 + $0xb0] sm:$0xf] %v11389
        %11626 = vst [vmem:[%s164 + $0xb4] sm:$0xf] %v11390
        %11627 = vst [vmem:[%s164 + $0xb8] sm:$0xf] %v11391
        %11628 = vst [vmem:[%s164 + $0xbc] sm:$0xf] %v11392
        %11629 = vst [vmem:[%s164 + $0xc0] sm:$0xf] %v11393
        %11630 = vst [vmem:[%s164 + $0xc4] sm:$0xf] %v11394
        %11631 = vst [vmem:[%s164 + $0xc8] sm:$0xf] %v11395
        %11632 = vst [vmem:[%s164 + $0xcc] sm:$0xf] %v11396
        %11633 = vst [vmem:[%s164 + $0xd0] sm:$0xf] %v11397
        %11634 = vst [vmem:[%s164 + $0xd4] sm:$0xf] %v11398
        %11635 = vst [vmem:[%s164 + $0xd8] sm:$0xf] %v11399
        %11636 = vst [vmem:[%s164 + $0xdc] sm:$0xf] %v11400
        %11637 = vst [vmem:[%s164 + $0xe0] sm:$0xf] %v11401
        %11638 = vst [vmem:[%s164 + $0xe4] sm:$0xf] %v11402
        %11639 = vst [vmem:[%s164 + $0xe8] sm:$0xf] %v11403
        %11640 = vst [vmem:[%s164 + $0xec] sm:$0xf] %v11404
        %11641 = vst [vmem:[%s164 + $0xf0] sm:$0xf] %v11405
        %11642 = vst [vmem:[%s164 + $0xf4] sm:$0xf] %v11406
        %11643 = vst [vmem:[%s164 + $0xf8] sm:$0xf] %v11407
        %11644 = vst [vmem:[%s164 + $0xfc] sm:$0xf] %v11408
        %11645 = vst [vmem:[%s164 + $0x100] sm:$0xf] %v11409
        %11646 = vst [vmem:[%s164 + $0x104] sm:$0xf] %v11410
        %11647 = vst [vmem:[%s164 + $0x108] sm:$0xf] %v11411
        %11648 = vst [vmem:[%s164 + $0x10c] sm:$0xf] %v11412
        %11649 = vst [vmem:[%s164 + $0x110] sm:$0xf] %v11413
        %11650 = vst [vmem:[%s164 + $0x114] sm:$0xf] %v11414
        %11651 = vst [vmem:[%s164 + $0x118] sm:$0xf] %v11415
        %11652 = vst [vmem:[%s164 + $0x11c] sm:$0xf] %v11416
        %11653 = vst [vmem:[%s164 + $0x120] sm:$0xf] %v11417
        %11654 = vst [vmem:[%s164 + $0x124] sm:$0xf] %v11418
        %11655 = vst [vmem:[%s164 + $0x128] sm:$0xf] %v11419
        %11656 = vst [vmem:[%s164 + $0x12c] sm:$0xf] %v11420
        %11657 = vst [vmem:[%s164 + $0x130] sm:$0xf] %v11421
        %11658 = vst [vmem:[%s164 + $0x134] sm:$0xf] %v11422
        %11659 = vst [vmem:[%s164 + $0x138] sm:$0xf] %v11423
        %11660 = vst [vmem:[%s164 + $0x13c] sm:$0xf] %v11424
        %11661 = vst [vmem:[%s164 + $0x140] sm:$0xf] %v11425
        %11662 = vst [vmem:[%s164 + $0x144] sm:$0xf] %v11426
        %11663 = vst [vmem:[%s164 + $0x148] sm:$0xf] %v11427
        %11664 = vst [vmem:[%s164 + $0x14c] sm:$0xf] %v11428
        %11665 = vst [vmem:[%s164 + $0x150] sm:$0xf] %v11429
        %11666 = vst [vmem:[%s164 + $0x154] sm:$0xf] %v11430
        %11667 = vst [vmem:[%s164 + $0x158] sm:$0xf] %v11431
        %11668 = vst [vmem:[%s164 + $0x15c] sm:$0xf] %v11432
        %11669 = vst [vmem:[%s164 + $0x160] sm:$0xf] %v11433
        %11670 = vst [vmem:[%s164 + $0x164] sm:$0xf] %v11434
        %11671 = vst [vmem:[%s164 + $0x168] sm:$0xf] %v11435
        %11672 = vst [vmem:[%s164 + $0x16c] sm:$0xf] %v11436
        %11673 = vst [vmem:[%s164 + $0x170] sm:$0xf] %v11437
        %11674 = vst [vmem:[%s164 + $0x174] sm:$0xf] %v11438
        %11675 = vst [vmem:[%s164 + $0x178] sm:$0xf] %v11439
        %11676 = vst [vmem:[%s164 + $0x17c] sm:$0xf] %v11440
        %11677 = vst [vmem:[%s164 + $0x180] sm:$0xf] %v11441
        %11678 = vst [vmem:[%s164 + $0x184] sm:$0xf] %v11442
        %11679 = vst [vmem:[%s164 + $0x188] sm:$0xf] %v11443
        %11680 = vst [vmem:[%s164 + $0x18c] sm:$0xf] %v11444
        %11681 = vst [vmem:[%s164 + $0x190] sm:$0xf] %v11445
        %11682 = vst [vmem:[%s164 + $0x194] sm:$0xf] %v11446
        %11683 = vst [vmem:[%s164 + $0x198] sm:$0xf] %v11447
        %11684 = vst [vmem:[%s164 + $0x19c] sm:$0xf] %v11448
        %11685 = vst [vmem:[%s164 + $0x1a0] sm:$0xf] %v11449
        %11686 = vst [vmem:[%s164 + $0x1a4] sm:$0xf] %v11450
        %11687 = vst [vmem:[%s164 + $0x1a8] sm:$0xf] %v11451
        %11688 = vst [vmem:[%s164 + $0x1ac] sm:$0xf] %v11452
        %11689 = vst [vmem:[%s164 + $0x1b0] sm:$0xf] %v11453
        %11690 = vst [vmem:[%s164 + $0x1b4] sm:$0xf] %v11454
        %11691 = vst [vmem:[%s164 + $0x1b8] sm:$0xf] %v11455
        %11692 = vst [vmem:[%s164 + $0x1bc] sm:$0xf] %v11456
        %11693 = vst [vmem:[%s164 + $0x1c0] sm:$0xf] %v11457
        %11694 = vst [vmem:[%s164 + $0x1c4] sm:$0xf] %v11458
        %11695 = vst [vmem:[%s164 + $0x1c8] sm:$0xf] %v11459
        %11696 = vst [vmem:[%s164 + $0x1cc] sm:$0xf] %v11460
        %11697 = vst [vmem:[%s164 + $0x1d0] sm:$0xf] %v11461
        %11698 = vst [vmem:[%s164 + $0x1d4] sm:$0xf] %v11462
        %11699 = vst [vmem:[%s164 + $0x1d8] sm:$0xf] %v11461
        %11700 = vst [vmem:[%s164 + $0x1dc] sm:$0xf] %v11462
        %s11701 = sand.u32 %s93, 1
        %s11702 = scalar_lea.sflag [#allocation3], %s11701
        %s11703 = sand.u32 %s93, 1
        %s11704 = smul.addr %s11703, 480
        %s11705 = scalar_lea.vmem [#allocation2], %s11704
        // Predicated region
        $region33: #{tpu_custom_call.1} parent=31 // pred_check
          %p11706 = pneg %p103
        $region34: #{tpu_custom_call.1} parent=31 // pred_check_branch
          %11708 = sbr.rel (%p11706) target = $region36
        $region35: #{tpu_custom_call.1} parent=31 // pred_region
          %s11709 = smul.u32 120, %s17
          %s11711 = ssub.s32 7680, 7680
          %11712 = vsyncadd %s11702, %s11711
          %s11713 = smul.addr %s11709, 64
          %s11714 = scalar_lea.hbm %s3, %s11713
          %s11715 = sshll.u32 %s11705, 4
          %s11716 = int_to_ptr.vmem [resolvable:$true] %s11715
          %11721 = dma.vmem_to_hbm [thread:$0]  %s11716, 7680, %s11714, %s11702, 64, 64, 4
        $region36: #{tpu_custom_call.1} parent=31 // pred_fallthru
          _
      $region32: #{tpu_custom_call.1} parent=5 // pred_fallthru
        _
      %p11722 = scmp.le.s32.totalorder 2, %s12
      // Predicated region
      $region37: #{tpu_custom_call.1} parent=5 // pred_check
        %p11723 = pneg %p11722
      $region38: #{tpu_custom_call.1} parent=5 // pred_check_branch
        %11725 = sbr.rel (%p11723) target = $region40
      $region39: #{tpu_custom_call.1} parent=5 // pred_region
        %s11726 = ssub.s32 %s12, 2
        // Predicated region
        $region41: #{tpu_custom_call.1} parent=39 // pred_check
          %p11727 = pneg %p109
        $region42: #{tpu_custom_call.1} parent=39 // pred_check_branch
          %11729 = sbr.rel (%p11727) target = $region44
        $region43: #{tpu_custom_call.1} parent=39 // pred_region
          %s11730 = sand.u32 %s94, 1
          %s11731 = scalar_lea.sflag [#allocation3], %s11730
          %s11732 = sand.u32 %s94, 1
          %s11733 = smul.addr %s11732, 480
          %s11734 = scalar_lea.vmem [#allocation2], %s11733
          %11735 = dma.done %s11731, 7680
        $region44: #{tpu_custom_call.1} parent=39 // pred_fallthru
          _
      $region40: #{tpu_custom_call.1} parent=5 // pred_fallthru
        _
    $region6: #{tpu_custom_call.1} parent=1 // loop_footer
      %s16 = sadd.s32 1, %s12
    $region7: #{tpu_custom_call.1} parent=1 // loop_footer_branch
      %11 = sbr.rel target = $region3
    $region8: #{tpu_custom_call.1} parent=1 // loop_exit
      _
    %11736 = vsyncpa [#allocation3], 1
    %s11737 = scalar_lea.sflag [#allocation3], 1
    %11738 = vsyncpa %s11737, 1

</llo_original>
